<compile_context>
chip_gen: v7x
topology: tpu7x:2x2x1
jax: 0.10.0
libtpu: 0.0.40
codegen_flags: <defaults>
</compile_context>

<pallas_src>
import functools

import jax
import jax.numpy as jnp
from jax.experimental import pallas as pl
from jax.experimental.pallas import tpu as pltpu

NEG_SLOPE = 0.2
IN_EPS = 1e-5
NUM_HEADS = 8
MATMUL_DTYPE = jnp.bfloat16          # MXU operand dtype (f32 accumulation kept)

_OFFSETS = tuple((dh, dw) for dh in (-1, 0, 1) for dw in (-1, 0, 1))


def _leaky(y):
    return jnp.where(y >= 0, y, NEG_SLOPE * y)


def _instance_norm(y):
    # InstanceNorm2d(affine=False): per-channel stats over spatial tokens.
    # Single-pass biased variance E[y^2] - mean^2 (one fewer VPU pass).
    mean = jnp.mean(y, axis=0, keepdims=True)
    var = jnp.maximum(jnp.mean(y * y, axis=0, keepdims=True) - mean * mean, 0.0)
    return (y - mean) * jax.lax.rsqrt(var + IN_EPS)


# ----------------------------- Pallas kernels ------------------------------


def _doubleconv_kernel(xpad_ref, w1_ref, w2_ref, o_ref, h1pad_ref, *,
                       H, W, apply_final_act, add_residual):
    """Fused DoubleConv for one batch element.

    xpad_ref : (1, HW + 2P, Cin) f32  pooled tokens, zero-padded by P = W+1 rows
    w1_ref   : (9, Cin, Cout)  bf16   3x3 taps, k = (dh+1)*3 + (dw+1)
    w2_ref   : (9, Cout, Cout) bf16
    o_ref    : (1, HW, Cout)   f32
    h1pad_ref: (HW + 2P, Cout) f32    VMEM scratch (padded conv1 output)
    """
    HW = H * W
    P = W + 1

    pos = jax.lax.broadcasted_iota(jnp.int32, (HW, 1), 0)
    col = pos % W

    def conv3x3(load, w_ref_):
        cout = w_ref_.shape[-1]
        acc = jnp.zeros((HW, cout), jnp.float32)
        for k, (dh, dw) in enumerate(_OFFSETS):
            xs = load(dh * W + dw)                 # tokens shifted by (dh, dw)
            if dw != 0:                            # zero row-wrapping columns
                ok = (col + dw >= 0) & (col + dw < W)
                xs = jnp.where(ok, xs, 0.0)
            acc = acc + jnp.dot(xs.astype(MATMUL_DTYPE), w_ref_[k],
                                preferred_element_type=jnp.float32)
        return acc

    # conv1 (no bias) + InstanceNorm + LeakyReLU
    h1 = _leaky(_instance_norm(
        conv3x3(lambda off: xpad_ref[0, pl.ds(P + off, HW), :], w1_ref)))

    # conv2 reads h1 through a zero-padded VMEM scratch (shifted loads).
    h1pad_ref[...] = jnp.zeros_like(h1pad_ref)
    h1pad_ref[pl.ds(P, HW), :] = h1
    h2 = _instance_norm(
        conv3x3(lambda off: h1pad_ref[pl.ds(P + off, HW), :], w2_ref))

    if add_residual:                               # only when Cin == Cout
        h2 = h2 + xpad_ref[0, pl.ds(P, HW), :]
    if apply_final_act:                            # DoubleConv tail (attend=False)
        h2 = _leaky(h2)
    o_ref[0] = h2


def _attention_kernel(x_ref, wqkv_ref, bqkv_ref, wout_ref, bout_ref, o_ref,
                      attn_ref, *, num_heads, dk, scale):
    """Fused self-attention + (out_proj x pointwise-conv) + LeakyReLU, one batch.

    x_ref   : (1, L, E) f32     wqkv_ref: (E, 3E) bf16    bqkv_ref: (1, 3E) f32
    wout_ref: (E, E)  bf16 (= W_out^T @ W_pw^T)           bout_ref: (1, E)  f32
    o_ref   : (1, L, E) f32     attn_ref: (L, E) f32 VMEM scratch (head outputs)
    """
    E = num_heads * dk
    x = x_ref[0]
    qkv = jnp.dot(x.astype(MATMUL_DTYPE), wqkv_ref[...],
                  preferred_element_type=jnp.float32) + bqkv_ref[...]
    q = qkv[:, 0 * E:1 * E] * scale
    k = qkv[:, 1 * E:2 * E]
    v = qkv[:, 2 * E:3 * E].astype(MATMUL_DTYPE)

    # TODO(synk): for large L (big feature maps) switch this to a KV-tiled
    # online-softmax loop so the (L, L) scores stay within v7x's 64 MiB VMEM.
    for h in range(num_heads):
        lo, hi = h * dk, (h + 1) * dk
        s = jnp.einsum("ld,md->lm", q[:, lo:hi], k[:, lo:hi],
                       preferred_element_type=jnp.float32)            # (L, L)
        s = s - jnp.max(s, axis=-1, keepdims=True)
        p = jnp.exp(s)
        p = p * pl.reciprocal(jnp.sum(p, axis=-1, keepdims=True), approx=True)
        attn_ref[:, lo:hi] = jnp.dot(p.astype(MATMUL_DTYPE), v[:, lo:hi],
                                     preferred_element_type=jnp.float32)

    y = jnp.dot(attn_ref[...].astype(MATMUL_DTYPE), wout_ref[...],
                preferred_element_type=jnp.float32) + bout_ref[...]
    o_ref[0] = _leaky(y)


# ------------------------------ host wrappers -------------------------------


def _block_bytes(shape, dtype):
    n = 1
    for d in shape:
        n *= int(d)
    return n * jnp.dtype(dtype).itemsize


def _mosaic_params(block_defs, scratch_defs=()):
    """Batch axis -> both v7x TensorCores; VMEM limit sized to the actual
    double-buffered blocks, clamped so the request is valid on 64 MiB v7x."""
    pipelined = sum(_block_bytes(s, d) for s, d in block_defs)
    scratch = sum(_block_bytes(s, d) for s, d in scratch_defs)
    need = 2 * pipelined + scratch + (8 << 20)
    limit = int(min(max(need, 32 << 20), 64 << 20))
    return pltpu.CompilerParams(
        dimension_semantics=("parallel",),
        vmem_limit_bytes=limit,
    )


def encoder_block_forward(x, params, *, attend=True):
    """x: (B, Cin, H, W) NCHW float32.  Eval-mode semantics (dropout = id)."""
    B, Cin, H, W = x.shape
    Ho, Wo = H // 2, W // 2
    HW = Ho * Wo
    P = Wo + 1
    Cout = params["conv1_w"].shape[0]

    # AvgPool2d(2) + NCHW -> (B, HW, C) token layout (+ zero pad of the token
    # axis for the shifted-matmul conv): one fused XLA glue chain, reads x once.
    pooled = x.reshape(B, Cin, Ho, 2, Wo, 2).mean(axis=(3, 5))        # (B,Cin,Ho,Wo)
    tokens = pooled.reshape(B, Cin, HW).transpose(0, 2, 1)            # (B,HW,Cin)
    tokens_pad = jnp.pad(tokens, ((0, 0), (P, P), (0, 0)))            # (B,HW+2P,Cin)

    # Conv weights: (Cout, Cin, 3, 3) -> (9, Cin, Cout), MXU-operand dtype.
    w1 = params["conv1_w"].transpose(2, 3, 1, 0).reshape(9, Cin, Cout)
    w2 = params["conv2_w"].transpose(2, 3, 1, 0).reshape(9, Cout, Cout)
    w1 = w1.astype(MATMUL_DTYPE)
    w2 = w2.astype(MATMUL_DTYPE)

    add_residual = (Cin == Cout)                  # DoubleConv residual gating

    dc_blocks = [((1, HW + 2 * P, Cin), jnp.float32),
                 ((9, Cin, Cout), MATMUL_DTYPE),
                 ((9, Cout, Cout), MATMUL_DTYPE),
                 ((1, HW, Cout), jnp.float32)]
    dc_scratch = [((HW + 2 * P, Cout), jnp.float32)]
    h2 = pl.pallas_call(
        functools.partial(_doubleconv_kernel, H=Ho, W=Wo,
                          apply_final_act=(not attend),
                          add_residual=add_residual),
        out_shape=jax.ShapeDtypeStruct((B, HW, Cout), jnp.float32),
        grid=(B,),
        in_specs=[pl.BlockSpec((1, HW + 2 * P, Cin), lambda b: (b, 0, 0)),
                  pl.BlockSpec((9, Cin, Cout), lambda b: (0, 0, 0)),
                  pl.BlockSpec((9, Cout, Cout), lambda b: (0, 0, 0))],
        out_specs=pl.BlockSpec((1, HW, Cout), lambda b: (b, 0, 0)),
        scratch_shapes=[pltpu.VMEM((HW + 2 * P, Cout), jnp.float32)],
        compiler_params=_mosaic_params(dc_blocks, dc_scratch),
    )(tokens_pad, w1, w2)

    if not attend:
        return h2.transpose(0, 2, 1).reshape(B, Cout, Ho, Wo)

    # Fold MHA out-projection and the 1x1 pointwise conv (bias=False) into one
    # (E, E) matmul:  (a @ Wo^T + bo) @ Wp^T = a @ W_fused + b_fused.
    E = Cout
    dk = E // NUM_HEADS
    scale = 1.0 / float(dk) ** 0.5
    wp = params["pw_weight"].reshape(E, E)
    w_qkv = params["in_proj_weight"].T.astype(MATMUL_DTYPE)           # (E, 3E)
    b_qkv = params["in_proj_bias"].reshape(1, 3 * E).astype(jnp.float32)
    w_fused = (params["out_proj_weight"].T @ wp.T).astype(MATMUL_DTYPE)
    b_fused = (params["out_proj_bias"] @ wp.T).reshape(1, E).astype(jnp.float32)

    at_blocks = [((1, HW, E), jnp.float32),
                 ((E, 3 * E), MATMUL_DTYPE),
                 ((1, 3 * E), jnp.float32),
                 ((E, E), MATMUL_DTYPE),
                 ((1, E), jnp.float32),
                 ((1, HW, E), jnp.float32)]
    at_scratch = [((HW, E), jnp.float32)]
    y = pl.pallas_call(
        functools.partial(_attention_kernel, num_heads=NUM_HEADS, dk=dk,
                          scale=scale),
        out_shape=jax.ShapeDtypeStruct((B, HW, E), jnp.float32),
        grid=(B,),
        in_specs=[pl.BlockSpec((1, HW, E), lambda b: (b, 0, 0)),
                  pl.BlockSpec((E, 3 * E), lambda b: (0, 0)),
                  pl.BlockSpec((1, 3 * E), lambda b: (0, 0)),
                  pl.BlockSpec((E, E), lambda b: (0, 0)),
                  pl.BlockSpec((1, E), lambda b: (0, 0))],
        out_specs=pl.BlockSpec((1, HW, E), lambda b: (b, 0, 0)),
        scratch_shapes=[pltpu.VMEM((HW, E), jnp.float32)],
        compiler_params=_mosaic_params(at_blocks, at_scratch),
    )(h2, w_qkv, b_qkv, w_fused, b_fused)

    # NOTE: E (=16) is far below 128 lanes at this toy size, so the final HBM
    # stores are masked; fusion keeps them to a single store per stage.
    return y.transpose(0, 2, 1).reshape(B, E, Ho, Wo)


def init_params(key, in_channels, out_channels):
    E = out_channels
    ks = jax.random.split(key, 6)

    def nrm(k, shape, s):
        return (s * jax.random.normal(k, shape)).astype(jnp.float32)

    return {
        "conv1_w": nrm(ks[0], (out_channels, in_channels, 3, 3), 0.2),
        "conv2_w": nrm(ks[1], (out_channels, out_channels, 3, 3), 0.1),
        "in_proj_weight": nrm(ks[2], (3 * E, E), 0.1),
        "in_proj_bias": nrm(ks[3], (3 * E,), 0.02),
        "out_proj_weight": nrm(ks[4], (E, E), 0.1),
        "out_proj_bias": jnp.zeros((E,), jnp.float32),
        "pw_weight": nrm(ks[5], (E, E, 1, 1), 0.1),
    }


if __name__ == "__main__":
    key = jax.random.PRNGKey(0)
    kx, kp = jax.random.split(key)
    B, Cin, H, W = 2, 4, 16, 16
    Cout = 16                                    # d_model, divisible by 8 heads
    x = jax.random.normal(kx, (B, Cin, H, W), dtype=jnp.float32)
    params = init_params(kp, Cin, Cout)

    fwd = jax.jit(functools.partial(encoder_block_forward, attend=True))
    out = jax.block_until_ready(fwd(x, params))
    assert out.shape == (B, Cout, H // 2, W // 2)
    assert bool(jnp.all(jnp.isfinite(out)))
    print("KERNEL_OK")
</pallas_src>

<mosaic_0001>
module attributes {stable_mosaic.version = 11 : i64} {
  func.func @_doubleconv_kernel(%arg0: i32, %arg1: memref<1x82x4xf32, #tpu.memory_space<vmem>>, %arg2: memref<9x4x16xbf16, #tpu.memory_space<vmem>>, %arg3: memref<9x16x16xbf16, #tpu.memory_space<vmem>>, %arg4: memref<1x64x16xf32, #tpu.memory_space<vmem>>, %arg5: memref<82x16xf32, #tpu.memory_space<vmem>>) attributes {dimension_semantics = [#tpu.dimension_semantics<parallel>], iteration_bounds = array<i64: 2>, scalar_prefetch = 0 : i64, scratch_operands = 1 : i64, tpu.core_type = #tpu.core_type<tc>, window_params = [{transform_indices = @transform_0, window_bounds = array<i64: 1, 82, 4>}, {pipeline_mode = #tpu.pipeline_mode<synchronous>, transform_indices = @transform_1, window_bounds = array<i64: 9, 4, 16>}, {pipeline_mode = #tpu.pipeline_mode<synchronous>, transform_indices = @transform_2, window_bounds = array<i64: 9, 16, 16>}, {transform_indices = @transform_3, window_bounds = array<i64: 1, 64, 16>}]} {
    %0 = tpu.iota {dimensions = array<i32: 0>} : vector<64x1xi32>
    %c8_i32 = arith.constant 8 : i32
    %c0_i32 = arith.constant 0 : i32
    %1 = arith.cmpi eq, %c8_i32, %c0_i32 : i32
    %c1_i32 = arith.constant 1 : i32
    %2 = arith.select %1, %c1_i32, %c8_i32 : i32
    %3 = vector.broadcast %2 : i32 to vector<64x1xi32>
    %4 = arith.remsi %0, %3 : vector<64x1xi32>
    %c0_i32_0 = arith.constant 0 : i32
    %5 = vector.broadcast %c0_i32_0 : i32 to vector<64x1xi32>
    %6 = arith.cmpi ne, %4, %5 : vector<64x1xi32>
    %c0_i32_1 = arith.constant 0 : i32
    %7 = vector.broadcast %c0_i32_1 : i32 to vector<64x1xi32>
    %8 = arith.cmpi slt, %4, %7 : vector<64x1xi32>
    %c0_i32_2 = arith.constant 0 : i32
    %9 = arith.cmpi slt, %2, %c0_i32_2 : i32
    %10 = vector.broadcast %9 : i1 to vector<64x1xi1>
    %11 = vector.broadcast %10 : vector<64x1xi1> to vector<64x1xi1>
    %12 = arith.xori %8, %11 : vector<64x1xi1>
    %13 = arith.andi %12, %6 : vector<64x1xi1>
    %14 = vector.broadcast %2 : i32 to vector<64x1xi32>
    %15 = arith.addi %4, %14 : vector<64x1xi32>
    %16 = arith.select %13, %15, %4 : vector<64x1xi1>, vector<64x1xi32>
    %cst = arith.constant 0.000000e+00 : f32
    %17 = vector.broadcast %cst : f32 to vector<64x16xf32>
    %c0 = arith.constant 0 : index
    %c0_3 = arith.constant 0 : index
    %c0_4 = arith.constant 0 : index
    %18 = vector.load %arg1[%c0, %c0_3, %c0_4] : memref<1x82x4xf32, #tpu.memory_space<vmem>>, vector<1x64x4xf32>
    %19 = vector.shape_cast %18 : vector<1x64x4xf32> to vector<64x4xf32>
    %c-1_i32 = arith.constant -1 : i32
    %20 = vector.broadcast %c-1_i32 : i32 to vector<64x1xi32>
    %21 = arith.addi %16, %20 : vector<64x1xi32>
    %c0_i32_5 = arith.constant 0 : i32
    %22 = vector.broadcast %c0_i32_5 : i32 to vector<64x1xi32>
    %23 = arith.cmpi sge, %21, %22 : vector<64x1xi32>
    %c-1_i32_6 = arith.constant -1 : i32
    %24 = vector.broadcast %c-1_i32_6 : i32 to vector<64x1xi32>
    %25 = arith.addi %16, %24 : vector<64x1xi32>
    %c8_i32_7 = arith.constant 8 : i32
    %26 = vector.broadcast %c8_i32_7 : i32 to vector<64x1xi32>
    %27 = arith.cmpi slt, %25, %26 : vector<64x1xi32>
    %28 = arith.andi %23, %27 : vector<64x1xi1>
    %cst_8 = arith.constant 0.000000e+00 : f32
    %29 = vector.shape_cast %28 : vector<64x1xi1> to vector<64x1xi1>
    %30 = vector.broadcast %29 : vector<64x1xi1> to vector<64x4xi1>
    %31 = vector.broadcast %cst_8 : f32 to vector<64x4xf32>
    %32 = arith.select %30, %19, %31 : vector<64x4xi1>, vector<64x4xf32>
    %33 = arith.truncf %32 : vector<64x4xf32> to vector<64x4xbf16>
    %c0_9 = arith.constant 0 : index
    %c0_10 = arith.constant 0 : index
    %c0_11 = arith.constant 0 : index
    %34 = vector.load %arg2[%c0_9, %c0_10, %c0_11] : memref<9x4x16xbf16, #tpu.memory_space<vmem>>, vector<1x4x16xbf16>
    %35 = vector.shape_cast %34 : vector<1x4x16xbf16> to vector<4x16xbf16>
    %cst_12 = arith.constant dense<0.000000e+00> : vector<64x16xf32>
    %36 = tpu.matmul %33, %35, %cst_12 {dimension_numbers = #tpu.dot_dimension_numbers<[1], [0], [0], [1], [0, 0, 1, 1], [], []>} : vector<64x4xbf16>, vector<4x16xbf16>, vector<64x16xf32> -> vector<64x16xf32>
    %37 = arith.addf %17, %36 : vector<64x16xf32>
    %c0_13 = arith.constant 0 : index
    %c1 = arith.constant 1 : index
    %c0_14 = arith.constant 0 : index
    %38 = vector.load %arg1[%c0_13, %c1, %c0_14] : memref<1x82x4xf32, #tpu.memory_space<vmem>>, vector<1x64x4xf32>
    %39 = vector.shape_cast %38 : vector<1x64x4xf32> to vector<64x4xf32>
    %40 = arith.truncf %39 : vector<64x4xf32> to vector<64x4xbf16>
    %c1_15 = arith.constant 1 : index
    %c0_16 = arith.constant 0 : index
    %c0_17 = arith.constant 0 : index
    %41 = vector.load %arg2[%c1_15, %c0_16, %c0_17] : memref<9x4x16xbf16, #tpu.memory_space<vmem>>, vector<1x4x16xbf16>
    %42 = vector.shape_cast %41 : vector<1x4x16xbf16> to vector<4x16xbf16>
    %cst_18 = arith.constant dense<0.000000e+00> : vector<64x16xf32>
    %43 = tpu.matmul %40, %42, %cst_18 {dimension_numbers = #tpu.dot_dimension_numbers<[1], [0], [0], [1], [0, 0, 1, 1], [], []>} : vector<64x4xbf16>, vector<4x16xbf16>, vector<64x16xf32> -> vector<64x16xf32>
    %44 = arith.addf %37, %43 : vector<64x16xf32>
    %c0_19 = arith.constant 0 : index
    %c2 = arith.constant 2 : index
    %c0_20 = arith.constant 0 : index
    %45 = vector.load %arg1[%c0_19, %c2, %c0_20] : memref<1x82x4xf32, #tpu.memory_space<vmem>>, vector<1x64x4xf32>
    %46 = vector.shape_cast %45 : vector<1x64x4xf32> to vector<64x4xf32>
    %c1_i32_21 = arith.constant 1 : i32
    %47 = vector.broadcast %c1_i32_21 : i32 to vector<64x1xi32>
    %48 = arith.addi %16, %47 : vector<64x1xi32>
    %c0_i32_22 = arith.constant 0 : i32
    %49 = vector.broadcast %c0_i32_22 : i32 to vector<64x1xi32>
    %50 = arith.cmpi sge, %48, %49 : vector<64x1xi32>
    %c1_i32_23 = arith.constant 1 : i32
    %51 = vector.broadcast %c1_i32_23 : i32 to vector<64x1xi32>
    %52 = arith.addi %16, %51 : vector<64x1xi32>
    %c8_i32_24 = arith.constant 8 : i32
    %53 = vector.broadcast %c8_i32_24 : i32 to vector<64x1xi32>
    %54 = arith.cmpi slt, %52, %53 : vector<64x1xi32>
    %55 = arith.andi %50, %54 : vector<64x1xi1>
    %cst_25 = arith.constant 0.000000e+00 : f32
    %56 = vector.shape_cast %55 : vector<64x1xi1> to vector<64x1xi1>
    %57 = vector.broadcast %56 : vector<64x1xi1> to vector<64x4xi1>
    %58 = vector.broadcast %cst_25 : f32 to vector<64x4xf32>
    %59 = arith.select %57, %46, %58 : vector<64x4xi1>, vector<64x4xf32>
    %60 = arith.truncf %59 : vector<64x4xf32> to vector<64x4xbf16>
    %c2_26 = arith.constant 2 : index
    %c0_27 = arith.constant 0 : index
    %c0_28 = arith.constant 0 : index
    %61 = vector.load %arg2[%c2_26, %c0_27, %c0_28] : memref<9x4x16xbf16, #tpu.memory_space<vmem>>, vector<1x4x16xbf16>
    %62 = vector.shape_cast %61 : vector<1x4x16xbf16> to vector<4x16xbf16>
    %cst_29 = arith.constant dense<0.000000e+00> : vector<64x16xf32>
    %63 = tpu.matmul %60, %62, %cst_29 {dimension_numbers = #tpu.dot_dimension_numbers<[1], [0], [0], [1], [0, 0, 1, 1], [], []>} : vector<64x4xbf16>, vector<4x16xbf16>, vector<64x16xf32> -> vector<64x16xf32>
    %64 = arith.addf %44, %63 : vector<64x16xf32>
    %c0_30 = arith.constant 0 : index
    %c8 = arith.constant 8 : index
    %c0_31 = arith.constant 0 : index
    %65 = vector.load %arg1[%c0_30, %c8, %c0_31] : memref<1x82x4xf32, #tpu.memory_space<vmem>>, vector<1x64x4xf32>
    %66 = vector.shape_cast %65 : vector<1x64x4xf32> to vector<64x4xf32>
    %c-1_i32_32 = arith.constant -1 : i32
    %67 = vector.broadcast %c-1_i32_32 : i32 to vector<64x1xi32>
    %68 = arith.addi %16, %67 : vector<64x1xi32>
    %c0_i32_33 = arith.constant 0 : i32
    %69 = vector.broadcast %c0_i32_33 : i32 to vector<64x1xi32>
    %70 = arith.cmpi sge, %68, %69 : vector<64x1xi32>
    %c-1_i32_34 = arith.constant -1 : i32
    %71 = vector.broadcast %c-1_i32_34 : i32 to vector<64x1xi32>
    %72 = arith.addi %16, %71 : vector<64x1xi32>
    %c8_i32_35 = arith.constant 8 : i32
    %73 = vector.broadcast %c8_i32_35 : i32 to vector<64x1xi32>
    %74 = arith.cmpi slt, %72, %73 : vector<64x1xi32>
    %75 = arith.andi %70, %74 : vector<64x1xi1>
    %cst_36 = arith.constant 0.000000e+00 : f32
    %76 = vector.shape_cast %75 : vector<64x1xi1> to vector<64x1xi1>
    %77 = vector.broadcast %76 : vector<64x1xi1> to vector<64x4xi1>
    %78 = vector.broadcast %cst_36 : f32 to vector<64x4xf32>
    %79 = arith.select %77, %66, %78 : vector<64x4xi1>, vector<64x4xf32>
    %80 = arith.truncf %79 : vector<64x4xf32> to vector<64x4xbf16>
    %c3 = arith.constant 3 : index
    %c0_37 = arith.constant 0 : index
    %c0_38 = arith.constant 0 : index
    %81 = vector.load %arg2[%c3, %c0_37, %c0_38] : memref<9x4x16xbf16, #tpu.memory_space<vmem>>, vector<1x4x16xbf16>
    %82 = vector.shape_cast %81 : vector<1x4x16xbf16> to vector<4x16xbf16>
    %cst_39 = arith.constant dense<0.000000e+00> : vector<64x16xf32>
    %83 = tpu.matmul %80, %82, %cst_39 {dimension_numbers = #tpu.dot_dimension_numbers<[1], [0], [0], [1], [0, 0, 1, 1], [], []>} : vector<64x4xbf16>, vector<4x16xbf16>, vector<64x16xf32> -> vector<64x16xf32>
    %84 = arith.addf %64, %83 : vector<64x16xf32>
    %c0_40 = arith.constant 0 : index
    %c9 = arith.constant 9 : index
    %c0_41 = arith.constant 0 : index
    %85 = vector.load %arg1[%c0_40, %c9, %c0_41] : memref<1x82x4xf32, #tpu.memory_space<vmem>>, vector<1x64x4xf32>
    %86 = vector.shape_cast %85 : vector<1x64x4xf32> to vector<64x4xf32>
    %87 = arith.truncf %86 : vector<64x4xf32> to vector<64x4xbf16>
    %c4 = arith.constant 4 : index
    %c0_42 = arith.constant 0 : index
    %c0_43 = arith.constant 0 : index
    %88 = vector.load %arg2[%c4, %c0_42, %c0_43] : memref<9x4x16xbf16, #tpu.memory_space<vmem>>, vector<1x4x16xbf16>
    %89 = vector.shape_cast %88 : vector<1x4x16xbf16> to vector<4x16xbf16>
    %cst_44 = arith.constant dense<0.000000e+00> : vector<64x16xf32>
    %90 = tpu.matmul %87, %89, %cst_44 {dimension_numbers = #tpu.dot_dimension_numbers<[1], [0], [0], [1], [0, 0, 1, 1], [], []>} : vector<64x4xbf16>, vector<4x16xbf16>, vector<64x16xf32> -> vector<64x16xf32>
    %91 = arith.addf %84, %90 : vector<64x16xf32>
    %c0_45 = arith.constant 0 : index
    %c10 = arith.constant 10 : index
    %c0_46 = arith.constant 0 : index
    %92 = vector.load %arg1[%c0_45, %c10, %c0_46] : memref<1x82x4xf32, #tpu.memory_space<vmem>>, vector<1x64x4xf32>
    %93 = vector.shape_cast %92 : vector<1x64x4xf32> to vector<64x4xf32>
    %c1_i32_47 = arith.constant 1 : i32
    %94 = vector.broadcast %c1_i32_47 : i32 to vector<64x1xi32>
    %95 = arith.addi %16, %94 : vector<64x1xi32>
    %c0_i32_48 = arith.constant 0 : i32
    %96 = vector.broadcast %c0_i32_48 : i32 to vector<64x1xi32>
    %97 = arith.cmpi sge, %95, %96 : vector<64x1xi32>
    %c1_i32_49 = arith.constant 1 : i32
    %98 = vector.broadcast %c1_i32_49 : i32 to vector<64x1xi32>
    %99 = arith.addi %16, %98 : vector<64x1xi32>
    %c8_i32_50 = arith.constant 8 : i32
    %100 = vector.broadcast %c8_i32_50 : i32 to vector<64x1xi32>
    %101 = arith.cmpi slt, %99, %100 : vector<64x1xi32>
    %102 = arith.andi %97, %101 : vector<64x1xi1>
    %cst_51 = arith.constant 0.000000e+00 : f32
    %103 = vector.shape_cast %102 : vector<64x1xi1> to vector<64x1xi1>
    %104 = vector.broadcast %103 : vector<64x1xi1> to vector<64x4xi1>
    %105 = vector.broadcast %cst_51 : f32 to vector<64x4xf32>
    %106 = arith.select %104, %93, %105 : vector<64x4xi1>, vector<64x4xf32>
    %107 = arith.truncf %106 : vector<64x4xf32> to vector<64x4xbf16>
    %c5 = arith.constant 5 : index
    %c0_52 = arith.constant 0 : index
    %c0_53 = arith.constant 0 : index
    %108 = vector.load %arg2[%c5, %c0_52, %c0_53] : memref<9x4x16xbf16, #tpu.memory_space<vmem>>, vector<1x4x16xbf16>
    %109 = vector.shape_cast %108 : vector<1x4x16xbf16> to vector<4x16xbf16>
    %cst_54 = arith.constant dense<0.000000e+00> : vector<64x16xf32>
    %110 = tpu.matmul %107, %109, %cst_54 {dimension_numbers = #tpu.dot_dimension_numbers<[1], [0], [0], [1], [0, 0, 1, 1], [], []>} : vector<64x4xbf16>, vector<4x16xbf16>, vector<64x16xf32> -> vector<64x16xf32>
    %111 = arith.addf %91, %110 : vector<64x16xf32>
    %c0_55 = arith.constant 0 : index
    %c16 = arith.constant 16 : index
    %c0_56 = arith.constant 0 : index
    %112 = vector.load %arg1[%c0_55, %c16, %c0_56] : memref<1x82x4xf32, #tpu.memory_space<vmem>>, vector<1x64x4xf32>
    %113 = vector.shape_cast %112 : vector<1x64x4xf32> to vector<64x4xf32>
    %c-1_i32_57 = arith.constant -1 : i32
    %114 = vector.broadcast %c-1_i32_57 : i32 to vector<64x1xi32>
    %115 = arith.addi %16, %114 : vector<64x1xi32>
    %c0_i32_58 = arith.constant 0 : i32
    %116 = vector.broadcast %c0_i32_58 : i32 to vector<64x1xi32>
    %117 = arith.cmpi sge, %115, %116 : vector<64x1xi32>
    %c-1_i32_59 = arith.constant -1 : i32
    %118 = vector.broadcast %c-1_i32_59 : i32 to vector<64x1xi32>
    %119 = arith.addi %16, %118 : vector<64x1xi32>
    %c8_i32_60 = arith.constant 8 : i32
    %120 = vector.broadcast %c8_i32_60 : i32 to vector<64x1xi32>
    %121 = arith.cmpi slt, %119, %120 : vector<64x1xi32>
    %122 = arith.andi %117, %121 : vector<64x1xi1>
    %cst_61 = arith.constant 0.000000e+00 : f32
    %123 = vector.shape_cast %122 : vector<64x1xi1> to vector<64x1xi1>
    %124 = vector.broadcast %123 : vector<64x1xi1> to vector<64x4xi1>
    %125 = vector.broadcast %cst_61 : f32 to vector<64x4xf32>
    %126 = arith.select %124, %113, %125 : vector<64x4xi1>, vector<64x4xf32>
    %127 = arith.truncf %126 : vector<64x4xf32> to vector<64x4xbf16>
    %c6 = arith.constant 6 : index
    %c0_62 = arith.constant 0 : index
    %c0_63 = arith.constant 0 : index
    %128 = vector.load %arg2[%c6, %c0_62, %c0_63] : memref<9x4x16xbf16, #tpu.memory_space<vmem>>, vector<1x4x16xbf16>
    %129 = vector.shape_cast %128 : vector<1x4x16xbf16> to vector<4x16xbf16>
    %cst_64 = arith.constant dense<0.000000e+00> : vector<64x16xf32>
    %130 = tpu.matmul %127, %129, %cst_64 {dimension_numbers = #tpu.dot_dimension_numbers<[1], [0], [0], [1], [0, 0, 1, 1], [], []>} : vector<64x4xbf16>, vector<4x16xbf16>, vector<64x16xf32> -> vector<64x16xf32>
    %131 = arith.addf %111, %130 : vector<64x16xf32>
    %c0_65 = arith.constant 0 : index
    %c17 = arith.constant 17 : index
    %c0_66 = arith.constant 0 : index
    %132 = vector.load %arg1[%c0_65, %c17, %c0_66] : memref<1x82x4xf32, #tpu.memory_space<vmem>>, vector<1x64x4xf32>
    %133 = vector.shape_cast %132 : vector<1x64x4xf32> to vector<64x4xf32>
    %134 = arith.truncf %133 : vector<64x4xf32> to vector<64x4xbf16>
    %c7 = arith.constant 7 : index
    %c0_67 = arith.constant 0 : index
    %c0_68 = arith.constant 0 : index
    %135 = vector.load %arg2[%c7, %c0_67, %c0_68] : memref<9x4x16xbf16, #tpu.memory_space<vmem>>, vector<1x4x16xbf16>
    %136 = vector.shape_cast %135 : vector<1x4x16xbf16> to vector<4x16xbf16>
    %cst_69 = arith.constant dense<0.000000e+00> : vector<64x16xf32>
    %137 = tpu.matmul %134, %136, %cst_69 {dimension_numbers = #tpu.dot_dimension_numbers<[1], [0], [0], [1], [0, 0, 1, 1], [], []>} : vector<64x4xbf16>, vector<4x16xbf16>, vector<64x16xf32> -> vector<64x16xf32>
    %138 = arith.addf %131, %137 : vector<64x16xf32>
    %c0_70 = arith.constant 0 : index
    %c18 = arith.constant 18 : index
    %c0_71 = arith.constant 0 : index
    %139 = vector.load %arg1[%c0_70, %c18, %c0_71] : memref<1x82x4xf32, #tpu.memory_space<vmem>>, vector<1x64x4xf32>
    %140 = vector.shape_cast %139 : vector<1x64x4xf32> to vector<64x4xf32>
    %c1_i32_72 = arith.constant 1 : i32
    %141 = vector.broadcast %c1_i32_72 : i32 to vector<64x1xi32>
    %142 = arith.addi %16, %141 : vector<64x1xi32>
    %c0_i32_73 = arith.constant 0 : i32
    %143 = vector.broadcast %c0_i32_73 : i32 to vector<64x1xi32>
    %144 = arith.cmpi sge, %142, %143 : vector<64x1xi32>
    %c1_i32_74 = arith.constant 1 : i32
    %145 = vector.broadcast %c1_i32_74 : i32 to vector<64x1xi32>
    %146 = arith.addi %16, %145 : vector<64x1xi32>
    %c8_i32_75 = arith.constant 8 : i32
    %147 = vector.broadcast %c8_i32_75 : i32 to vector<64x1xi32>
    %148 = arith.cmpi slt, %146, %147 : vector<64x1xi32>
    %149 = arith.andi %144, %148 : vector<64x1xi1>
    %cst_76 = arith.constant 0.000000e+00 : f32
    %150 = vector.shape_cast %149 : vector<64x1xi1> to vector<64x1xi1>
    %151 = vector.broadcast %150 : vector<64x1xi1> to vector<64x4xi1>
    %152 = vector.broadcast %cst_76 : f32 to vector<64x4xf32>
    %153 = arith.select %151, %140, %152 : vector<64x4xi1>, vector<64x4xf32>
    %154 = arith.truncf %153 : vector<64x4xf32> to vector<64x4xbf16>
    %c8_77 = arith.constant 8 : index
    %c0_78 = arith.constant 0 : index
    %c0_79 = arith.constant 0 : index
    %155 = vector.load %arg2[%c8_77, %c0_78, %c0_79] : memref<9x4x16xbf16, #tpu.memory_space<vmem>>, vector<1x4x16xbf16>
    %156 = vector.shape_cast %155 : vector<1x4x16xbf16> to vector<4x16xbf16>
    %cst_80 = arith.constant dense<0.000000e+00> : vector<64x16xf32>
    %157 = tpu.matmul %154, %156, %cst_80 {dimension_numbers = #tpu.dot_dimension_numbers<[1], [0], [0], [1], [0, 0, 1, 1], [], []>} : vector<64x4xbf16>, vector<4x16xbf16>, vector<64x16xf32> -> vector<64x16xf32>
    %158 = arith.addf %138, %157 : vector<64x16xf32>
    %cst_81 = arith.constant dense<0.000000e+00> : vector<16xf32>
    %159 = vector.multi_reduction <add>, %158, %cst_81 [0] : vector<64x16xf32> to vector<16xf32>
    %160 = vector.shape_cast %159 : vector<16xf32> to vector<1x16xf32>
    %cst_82 = arith.constant 6.400000e+01 : f32
    %161 = vector.broadcast %cst_82 : f32 to vector<1x16xf32>
    %162 = arith.divf %160, %161 : vector<1x16xf32>
    %163 = arith.mulf %158, %158 : vector<64x16xf32>
    %cst_83 = arith.constant dense<0.000000e+00> : vector<16xf32>
    %164 = vector.multi_reduction <add>, %163, %cst_83 [0] : vector<64x16xf32> to vector<16xf32>
    %165 = vector.shape_cast %164 : vector<16xf32> to vector<1x16xf32>
    %cst_84 = arith.constant 6.400000e+01 : f32
    %166 = vector.broadcast %cst_84 : f32 to vector<1x16xf32>
    %167 = arith.divf %165, %166 : vector<1x16xf32>
    %168 = arith.mulf %162, %162 : vector<1x16xf32>
    %169 = arith.subf %167, %168 : vector<1x16xf32>
    %cst_85 = arith.constant 0.000000e+00 : f32
    %170 = vector.broadcast %cst_85 : f32 to vector<1x16xf32>
    %171 = arith.maximumf %169, %170 : vector<1x16xf32>
    %172 = vector.broadcast %162 : vector<1x16xf32> to vector<64x16xf32>
    %173 = arith.subf %158, %172 : vector<64x16xf32>
    %cst_86 = arith.constant 9.99999974E-6 : f32
    %174 = vector.broadcast %cst_86 : f32 to vector<1x16xf32>
    %175 = arith.addf %171, %174 : vector<1x16xf32>
    %176 = math.rsqrt %175 : vector<1x16xf32>
    %177 = vector.broadcast %176 : vector<1x16xf32> to vector<64x16xf32>
    %178 = arith.mulf %173, %177 : vector<64x16xf32>
    %cst_87 = arith.constant 0.000000e+00 : f32
    %179 = vector.broadcast %cst_87 : f32 to vector<64x16xf32>
    %180 = arith.cmpf oge, %178, %179 : vector<64x16xf32>
    %cst_88 = arith.constant 2.000000e-01 : f32
    %181 = vector.broadcast %cst_88 : f32 to vector<64x16xf32>
    %182 = arith.mulf %181, %178 : vector<64x16xf32>
    %183 = arith.select %180, %178, %182 : vector<64x16xi1>, vector<64x16xf32>
    %cst_89 = arith.constant 0.000000e+00 : f32
    %184 = vector.broadcast %cst_89 : f32 to vector<82x16xf32>
    %c0_90 = arith.constant 0 : index
    %c0_91 = arith.constant 0 : index
    %185 = vector.load %arg5[%c0_90, %c0_91] : memref<82x16xf32, #tpu.memory_space<vmem>>, vector<82x16xf32>
    tpu.vector_store %arg5[%c0_90, %c0_91], %184 {strides = array<i32>} : memref<82x16xf32, #tpu.memory_space<vmem>>, vector<82x16xf32>,
    %c9_92 = arith.constant 9 : index
    %c0_93 = arith.constant 0 : index
    %186 = vector.load %arg5[%c9_92, %c0_93] : memref<82x16xf32, #tpu.memory_space<vmem>>, vector<64x16xf32>
    tpu.vector_store %arg5[%c9_92, %c0_93], %183 {strides = array<i32>} : memref<82x16xf32, #tpu.memory_space<vmem>>, vector<64x16xf32>,
    %cst_94 = arith.constant 0.000000e+00 : f32
    %187 = vector.broadcast %cst_94 : f32 to vector<64x16xf32>
    %c0_95 = arith.constant 0 : index
    %c0_96 = arith.constant 0 : index
    %188 = vector.load %arg5[%c0_95, %c0_96] : memref<82x16xf32, #tpu.memory_space<vmem>>, vector<64x16xf32>
    %c-1_i32_97 = arith.constant -1 : i32
    %189 = vector.broadcast %c-1_i32_97 : i32 to vector<64x1xi32>
    %190 = arith.addi %16, %189 : vector<64x1xi32>
    %c0_i32_98 = arith.constant 0 : i32
    %191 = vector.broadcast %c0_i32_98 : i32 to vector<64x1xi32>
    %192 = arith.cmpi sge, %190, %191 : vector<64x1xi32>
    %c-1_i32_99 = arith.constant -1 : i32
    %193 = vector.broadcast %c-1_i32_99 : i32 to vector<64x1xi32>
    %194 = arith.addi %16, %193 : vector<64x1xi32>
    %c8_i32_100 = arith.constant 8 : i32
    %195 = vector.broadcast %c8_i32_100 : i32 to vector<64x1xi32>
    %196 = arith.cmpi slt, %194, %195 : vector<64x1xi32>
    %197 = arith.andi %192, %196 : vector<64x1xi1>
    %cst_101 = arith.constant 0.000000e+00 : f32
    %198 = vector.shape_cast %197 : vector<64x1xi1> to vector<64x1xi1>
    %199 = vector.broadcast %198 : vector<64x1xi1> to vector<64x16xi1>
    %200 = vector.broadcast %cst_101 : f32 to vector<64x16xf32>
    %201 = arith.select %199, %188, %200 : vector<64x16xi1>, vector<64x16xf32>
    %202 = arith.truncf %201 : vector<64x16xf32> to vector<64x16xbf16>
    %c0_102 = arith.constant 0 : index
    %c0_103 = arith.constant 0 : index
    %c0_104 = arith.constant 0 : index
    %203 = vector.load %arg3[%c0_102, %c0_103, %c0_104] : memref<9x16x16xbf16, #tpu.memory_space<vmem>>, vector<1x16x16xbf16>
    %204 = vector.shape_cast %203 : vector<1x16x16xbf16> to vector<16x16xbf16>
    %cst_105 = arith.constant dense<0.000000e+00> : vector<64x16xf32>
    %205 = tpu.matmul %202, %204, %cst_105 {dimension_numbers = #tpu.dot_dimension_numbers<[1], [0], [0], [1], [0, 0, 1, 1], [], []>} : vector<64x16xbf16>, vector<16x16xbf16>, vector<64x16xf32> -> vector<64x16xf32>
    %206 = arith.addf %187, %205 : vector<64x16xf32>
    %c1_106 = arith.constant 1 : index
    %c0_107 = arith.constant 0 : index
    %207 = vector.load %arg5[%c1_106, %c0_107] : memref<82x16xf32, #tpu.memory_space<vmem>>, vector<64x16xf32>
    %208 = arith.truncf %207 : vector<64x16xf32> to vector<64x16xbf16>
    %c1_108 = arith.constant 1 : index
    %c0_109 = arith.constant 0 : index
    %c0_110 = arith.constant 0 : index
    %209 = vector.load %arg3[%c1_108, %c0_109, %c0_110] : memref<9x16x16xbf16, #tpu.memory_space<vmem>>, vector<1x16x16xbf16>
    %210 = vector.shape_cast %209 : vector<1x16x16xbf16> to vector<16x16xbf16>
    %cst_111 = arith.constant dense<0.000000e+00> : vector<64x16xf32>
    %211 = tpu.matmul %208, %210, %cst_111 {dimension_numbers = #tpu.dot_dimension_numbers<[1], [0], [0], [1], [0, 0, 1, 1], [], []>} : vector<64x16xbf16>, vector<16x16xbf16>, vector<64x16xf32> -> vector<64x16xf32>
    %212 = arith.addf %206, %211 : vector<64x16xf32>
    %c2_112 = arith.constant 2 : index
    %c0_113 = arith.constant 0 : index
    %213 = vector.load %arg5[%c2_112, %c0_113] : memref<82x16xf32, #tpu.memory_space<vmem>>, vector<64x16xf32>
    %c1_i32_114 = arith.constant 1 : i32
    %214 = vector.broadcast %c1_i32_114 : i32 to vector<64x1xi32>
    %215 = arith.addi %16, %214 : vector<64x1xi32>
    %c0_i32_115 = arith.constant 0 : i32
    %216 = vector.broadcast %c0_i32_115 : i32 to vector<64x1xi32>
    %217 = arith.cmpi sge, %215, %216 : vector<64x1xi32>
    %c1_i32_116 = arith.constant 1 : i32
    %218 = vector.broadcast %c1_i32_116 : i32 to vector<64x1xi32>
    %219 = arith.addi %16, %218 : vector<64x1xi32>
    %c8_i32_117 = arith.constant 8 : i32
    %220 = vector.broadcast %c8_i32_117 : i32 to vector<64x1xi32>
    %221 = arith.cmpi slt, %219, %220 : vector<64x1xi32>
    %222 = arith.andi %217, %221 : vector<64x1xi1>
    %cst_118 = arith.constant 0.000000e+00 : f32
    %223 = vector.shape_cast %222 : vector<64x1xi1> to vector<64x1xi1>
    %224 = vector.broadcast %223 : vector<64x1xi1> to vector<64x16xi1>
    %225 = vector.broadcast %cst_118 : f32 to vector<64x16xf32>
    %226 = arith.select %224, %213, %225 : vector<64x16xi1>, vector<64x16xf32>
    %227 = arith.truncf %226 : vector<64x16xf32> to vector<64x16xbf16>
    %c2_119 = arith.constant 2 : index
    %c0_120 = arith.constant 0 : index
    %c0_121 = arith.constant 0 : index
    %228 = vector.load %arg3[%c2_119, %c0_120, %c0_121] : memref<9x16x16xbf16, #tpu.memory_space<vmem>>, vector<1x16x16xbf16>
    %229 = vector.shape_cast %228 : vector<1x16x16xbf16> to vector<16x16xbf16>
    %cst_122 = arith.constant dense<0.000000e+00> : vector<64x16xf32>
    %230 = tpu.matmul %227, %229, %cst_122 {dimension_numbers = #tpu.dot_dimension_numbers<[1], [0], [0], [1], [0, 0, 1, 1], [], []>} : vector<64x16xbf16>, vector<16x16xbf16>, vector<64x16xf32> -> vector<64x16xf32>
    %231 = arith.addf %212, %230 : vector<64x16xf32>
    %c8_123 = arith.constant 8 : index
    %c0_124 = arith.constant 0 : index
    %232 = vector.load %arg5[%c8_123, %c0_124] : memref<82x16xf32, #tpu.memory_space<vmem>>, vector<64x16xf32>
    %c-1_i32_125 = arith.constant -1 : i32
    %233 = vector.broadcast %c-1_i32_125 : i32 to vector<64x1xi32>
    %234 = arith.addi %16, %233 : vector<64x1xi32>
    %c0_i32_126 = arith.constant 0 : i32
    %235 = vector.broadcast %c0_i32_126 : i32 to vector<64x1xi32>
    %236 = arith.cmpi sge, %234, %235 : vector<64x1xi32>
    %c-1_i32_127 = arith.constant -1 : i32
    %237 = vector.broadcast %c-1_i32_127 : i32 to vector<64x1xi32>
    %238 = arith.addi %16, %237 : vector<64x1xi32>
    %c8_i32_128 = arith.constant 8 : i32
    %239 = vector.broadcast %c8_i32_128 : i32 to vector<64x1xi32>
    %240 = arith.cmpi slt, %238, %239 : vector<64x1xi32>
    %241 = arith.andi %236, %240 : vector<64x1xi1>
    %cst_129 = arith.constant 0.000000e+00 : f32
    %242 = vector.shape_cast %241 : vector<64x1xi1> to vector<64x1xi1>
    %243 = vector.broadcast %242 : vector<64x1xi1> to vector<64x16xi1>
    %244 = vector.broadcast %cst_129 : f32 to vector<64x16xf32>
    %245 = arith.select %243, %232, %244 : vector<64x16xi1>, vector<64x16xf32>
    %246 = arith.truncf %245 : vector<64x16xf32> to vector<64x16xbf16>
    %c3_130 = arith.constant 3 : index
    %c0_131 = arith.constant 0 : index
    %c0_132 = arith.constant 0 : index
    %247 = vector.load %arg3[%c3_130, %c0_131, %c0_132] : memref<9x16x16xbf16, #tpu.memory_space<vmem>>, vector<1x16x16xbf16>
    %248 = vector.shape_cast %247 : vector<1x16x16xbf16> to vector<16x16xbf16>
    %cst_133 = arith.constant dense<0.000000e+00> : vector<64x16xf32>
    %249 = tpu.matmul %246, %248, %cst_133 {dimension_numbers = #tpu.dot_dimension_numbers<[1], [0], [0], [1], [0, 0, 1, 1], [], []>} : vector<64x16xbf16>, vector<16x16xbf16>, vector<64x16xf32> -> vector<64x16xf32>
    %250 = arith.addf %231, %249 : vector<64x16xf32>
    %c9_134 = arith.constant 9 : index
    %c0_135 = arith.constant 0 : index
    %251 = vector.load %arg5[%c9_134, %c0_135] : memref<82x16xf32, #tpu.memory_space<vmem>>, vector<64x16xf32>
    %252 = arith.truncf %251 : vector<64x16xf32> to vector<64x16xbf16>
    %c4_136 = arith.constant 4 : index
    %c0_137 = arith.constant 0 : index
    %c0_138 = arith.constant 0 : index
    %253 = vector.load %arg3[%c4_136, %c0_137, %c0_138] : memref<9x16x16xbf16, #tpu.memory_space<vmem>>, vector<1x16x16xbf16>
    %254 = vector.shape_cast %253 : vector<1x16x16xbf16> to vector<16x16xbf16>
    %cst_139 = arith.constant dense<0.000000e+00> : vector<64x16xf32>
    %255 = tpu.matmul %252, %254, %cst_139 {dimension_numbers = #tpu.dot_dimension_numbers<[1], [0], [0], [1], [0, 0, 1, 1], [], []>} : vector<64x16xbf16>, vector<16x16xbf16>, vector<64x16xf32> -> vector<64x16xf32>
    %256 = arith.addf %250, %255 : vector<64x16xf32>
    %c10_140 = arith.constant 10 : index
    %c0_141 = arith.constant 0 : index
    %257 = vector.load %arg5[%c10_140, %c0_141] : memref<82x16xf32, #tpu.memory_space<vmem>>, vector<64x16xf32>
    %c1_i32_142 = arith.constant 1 : i32
    %258 = vector.broadcast %c1_i32_142 : i32 to vector<64x1xi32>
    %259 = arith.addi %16, %258 : vector<64x1xi32>
    %c0_i32_143 = arith.constant 0 : i32
    %260 = vector.broadcast %c0_i32_143 : i32 to vector<64x1xi32>
    %261 = arith.cmpi sge, %259, %260 : vector<64x1xi32>
    %c1_i32_144 = arith.constant 1 : i32
    %262 = vector.broadcast %c1_i32_144 : i32 to vector<64x1xi32>
    %263 = arith.addi %16, %262 : vector<64x1xi32>
    %c8_i32_145 = arith.constant 8 : i32
    %264 = vector.broadcast %c8_i32_145 : i32 to vector<64x1xi32>
    %265 = arith.cmpi slt, %263, %264 : vector<64x1xi32>
    %266 = arith.andi %261, %265 : vector<64x1xi1>
    %cst_146 = arith.constant 0.000000e+00 : f32
    %267 = vector.shape_cast %266 : vector<64x1xi1> to vector<64x1xi1>
    %268 = vector.broadcast %267 : vector<64x1xi1> to vector<64x16xi1>
    %269 = vector.broadcast %cst_146 : f32 to vector<64x16xf32>
    %270 = arith.select %268, %257, %269 : vector<64x16xi1>, vector<64x16xf32>
    %271 = arith.truncf %270 : vector<64x16xf32> to vector<64x16xbf16>
    %c5_147 = arith.constant 5 : index
    %c0_148 = arith.constant 0 : index
    %c0_149 = arith.constant 0 : index
    %272 = vector.load %arg3[%c5_147, %c0_148, %c0_149] : memref<9x16x16xbf16, #tpu.memory_space<vmem>>, vector<1x16x16xbf16>
    %273 = vector.shape_cast %272 : vector<1x16x16xbf16> to vector<16x16xbf16>
    %cst_150 = arith.constant dense<0.000000e+00> : vector<64x16xf32>
    %274 = tpu.matmul %271, %273, %cst_150 {dimension_numbers = #tpu.dot_dimension_numbers<[1], [0], [0], [1], [0, 0, 1, 1], [], []>} : vector<64x16xbf16>, vector<16x16xbf16>, vector<64x16xf32> -> vector<64x16xf32>
    %275 = arith.addf %256, %274 : vector<64x16xf32>
    %c16_151 = arith.constant 16 : index
    %c0_152 = arith.constant 0 : index
    %276 = vector.load %arg5[%c16_151, %c0_152] : memref<82x16xf32, #tpu.memory_space<vmem>>, vector<64x16xf32>
    %c-1_i32_153 = arith.constant -1 : i32
    %277 = vector.broadcast %c-1_i32_153 : i32 to vector<64x1xi32>
    %278 = arith.addi %16, %277 : vector<64x1xi32>
    %c0_i32_154 = arith.constant 0 : i32
    %279 = vector.broadcast %c0_i32_154 : i32 to vector<64x1xi32>
    %280 = arith.cmpi sge, %278, %279 : vector<64x1xi32>
    %c-1_i32_155 = arith.constant -1 : i32
    %281 = vector.broadcast %c-1_i32_155 : i32 to vector<64x1xi32>
    %282 = arith.addi %16, %281 : vector<64x1xi32>
    %c8_i32_156 = arith.constant 8 : i32
    %283 = vector.broadcast %c8_i32_156 : i32 to vector<64x1xi32>
    %284 = arith.cmpi slt, %282, %283 : vector<64x1xi32>
    %285 = arith.andi %280, %284 : vector<64x1xi1>
    %cst_157 = arith.constant 0.000000e+00 : f32
    %286 = vector.shape_cast %285 : vector<64x1xi1> to vector<64x1xi1>
    %287 = vector.broadcast %286 : vector<64x1xi1> to vector<64x16xi1>
    %288 = vector.broadcast %cst_157 : f32 to vector<64x16xf32>
    %289 = arith.select %287, %276, %288 : vector<64x16xi1>, vector<64x16xf32>
    %290 = arith.truncf %289 : vector<64x16xf32> to vector<64x16xbf16>
    %c6_158 = arith.constant 6 : index
    %c0_159 = arith.constant 0 : index
    %c0_160 = arith.constant 0 : index
    %291 = vector.load %arg3[%c6_158, %c0_159, %c0_160] : memref<9x16x16xbf16, #tpu.memory_space<vmem>>, vector<1x16x16xbf16>
    %292 = vector.shape_cast %291 : vector<1x16x16xbf16> to vector<16x16xbf16>
    %cst_161 = arith.constant dense<0.000000e+00> : vector<64x16xf32>
    %293 = tpu.matmul %290, %292, %cst_161 {dimension_numbers = #tpu.dot_dimension_numbers<[1], [0], [0], [1], [0, 0, 1, 1], [], []>} : vector<64x16xbf16>, vector<16x16xbf16>, vector<64x16xf32> -> vector<64x16xf32>
    %294 = arith.addf %275, %293 : vector<64x16xf32>
    %c17_162 = arith.constant 17 : index
    %c0_163 = arith.constant 0 : index
    %295 = vector.load %arg5[%c17_162, %c0_163] : memref<82x16xf32, #tpu.memory_space<vmem>>, vector<64x16xf32>
    %296 = arith.truncf %295 : vector<64x16xf32> to vector<64x16xbf16>
    %c7_164 = arith.constant 7 : index
    %c0_165 = arith.constant 0 : index
    %c0_166 = arith.constant 0 : index
    %297 = vector.load %arg3[%c7_164, %c0_165, %c0_166] : memref<9x16x16xbf16, #tpu.memory_space<vmem>>, vector<1x16x16xbf16>
    %298 = vector.shape_cast %297 : vector<1x16x16xbf16> to vector<16x16xbf16>
    %cst_167 = arith.constant dense<0.000000e+00> : vector<64x16xf32>
    %299 = tpu.matmul %296, %298, %cst_167 {dimension_numbers = #tpu.dot_dimension_numbers<[1], [0], [0], [1], [0, 0, 1, 1], [], []>} : vector<64x16xbf16>, vector<16x16xbf16>, vector<64x16xf32> -> vector<64x16xf32>
    %300 = arith.addf %294, %299 : vector<64x16xf32>
    %c18_168 = arith.constant 18 : index
    %c0_169 = arith.constant 0 : index
    %301 = vector.load %arg5[%c18_168, %c0_169] : memref<82x16xf32, #tpu.memory_space<vmem>>, vector<64x16xf32>
    %c1_i32_170 = arith.constant 1 : i32
    %302 = vector.broadcast %c1_i32_170 : i32 to vector<64x1xi32>
    %303 = arith.addi %16, %302 : vector<64x1xi32>
    %c0_i32_171 = arith.constant 0 : i32
    %304 = vector.broadcast %c0_i32_171 : i32 to vector<64x1xi32>
    %305 = arith.cmpi sge, %303, %304 : vector<64x1xi32>
    %c1_i32_172 = arith.constant 1 : i32
    %306 = vector.broadcast %c1_i32_172 : i32 to vector<64x1xi32>
    %307 = arith.addi %16, %306 : vector<64x1xi32>
    %c8_i32_173 = arith.constant 8 : i32
    %308 = vector.broadcast %c8_i32_173 : i32 to vector<64x1xi32>
    %309 = arith.cmpi slt, %307, %308 : vector<64x1xi32>
    %310 = arith.andi %305, %309 : vector<64x1xi1>
    %cst_174 = arith.constant 0.000000e+00 : f32
    %311 = vector.shape_cast %310 : vector<64x1xi1> to vector<64x1xi1>
    %312 = vector.broadcast %311 : vector<64x1xi1> to vector<64x16xi1>
    %313 = vector.broadcast %cst_174 : f32 to vector<64x16xf32>
    %314 = arith.select %312, %301, %313 : vector<64x16xi1>, vector<64x16xf32>
    %315 = arith.truncf %314 : vector<64x16xf32> to vector<64x16xbf16>
    %c8_175 = arith.constant 8 : index
    %c0_176 = arith.constant 0 : index
    %c0_177 = arith.constant 0 : index
    %316 = vector.load %arg3[%c8_175, %c0_176, %c0_177] : memref<9x16x16xbf16, #tpu.memory_space<vmem>>, vector<1x16x16xbf16>
    %317 = vector.shape_cast %316 : vector<1x16x16xbf16> to vector<16x16xbf16>
    %cst_178 = arith.constant dense<0.000000e+00> : vector<64x16xf32>
    %318 = tpu.matmul %315, %317, %cst_178 {dimension_numbers = #tpu.dot_dimension_numbers<[1], [0], [0], [1], [0, 0, 1, 1], [], []>} : vector<64x16xbf16>, vector<16x16xbf16>, vector<64x16xf32> -> vector<64x16xf32>
    %319 = arith.addf %300, %318 : vector<64x16xf32>
    %cst_179 = arith.constant dense<0.000000e+00> : vector<16xf32>
    %320 = vector.multi_reduction <add>, %319, %cst_179 [0] : vector<64x16xf32> to vector<16xf32>
    %321 = vector.shape_cast %320 : vector<16xf32> to vector<1x16xf32>
    %cst_180 = arith.constant 6.400000e+01 : f32
    %322 = vector.broadcast %cst_180 : f32 to vector<1x16xf32>
    %323 = arith.divf %321, %322 : vector<1x16xf32>
    %324 = arith.mulf %319, %319 : vector<64x16xf32>
    %cst_181 = arith.constant dense<0.000000e+00> : vector<16xf32>
    %325 = vector.multi_reduction <add>, %324, %cst_181 [0] : vector<64x16xf32> to vector<16xf32>
    %326 = vector.shape_cast %325 : vector<16xf32> to vector<1x16xf32>
    %cst_182 = arith.constant 6.400000e+01 : f32
    %327 = vector.broadcast %cst_182 : f32 to vector<1x16xf32>
    %328 = arith.divf %326, %327 : vector<1x16xf32>
    %329 = arith.mulf %323, %323 : vector<1x16xf32>
    %330 = arith.subf %328, %329 : vector<1x16xf32>
    %cst_183 = arith.constant 0.000000e+00 : f32
    %331 = vector.broadcast %cst_183 : f32 to vector<1x16xf32>
    %332 = arith.maximumf %330, %331 : vector<1x16xf32>
    %333 = vector.broadcast %323 : vector<1x16xf32> to vector<64x16xf32>
    %334 = arith.subf %319, %333 : vector<64x16xf32>
    %cst_184 = arith.constant 9.99999974E-6 : f32
    %335 = vector.broadcast %cst_184 : f32 to vector<1x16xf32>
    %336 = arith.addf %332, %335 : vector<1x16xf32>
    %337 = math.rsqrt %336 : vector<1x16xf32>
    %338 = vector.broadcast %337 : vector<1x16xf32> to vector<64x16xf32>
    %339 = arith.mulf %334, %338 : vector<64x16xf32>
    %c0_185 = arith.constant 0 : index
    %c0_186 = arith.constant 0 : index
    %c0_187 = arith.constant 0 : index
    %340 = vector.load %arg4[%c0_185, %c0_186, %c0_187] : memref<1x64x16xf32, #tpu.memory_space<vmem>>, vector<1x64x16xf32>
    %341 = vector.shape_cast %340 : vector<1x64x16xf32> to vector<64x16xf32>
    %342 = vector.shape_cast %339 : vector<64x16xf32> to vector<1x64x16xf32>
    tpu.vector_store %arg4[%c0_185, %c0_186, %c0_187], %342 {strides = array<i32>} : memref<1x64x16xf32, #tpu.memory_space<vmem>>, vector<1x64x16xf32>,
    return
  }
  func.func @transform_0(%arg0: i32) -> (i32, i32, i32) {
    %c0_i32 = arith.constant 0 : i32
    %c0_i32_0 = arith.constant 0 : i32
    %c0_i32_1 = arith.constant 0 : i32
    return %arg0, %c0_i32, %c0_i32_0 : i32, i32, i32
  }
  func.func @transform_1(%arg0: i32) -> (i32, i32, i32) {
    %c0_i32 = arith.constant 0 : i32
    %c0_i32_0 = arith.constant 0 : i32
    %c0_i32_1 = arith.constant 0 : i32
    %c0_i32_2 = arith.constant 0 : i32
    return %c0_i32, %c0_i32_0, %c0_i32_1 : i32, i32, i32
  }
  func.func @transform_2(%arg0: i32) -> (i32, i32, i32) {
    %c0_i32 = arith.constant 0 : i32
    %c0_i32_0 = arith.constant 0 : i32
    %c0_i32_1 = arith.constant 0 : i32
    %c0_i32_2 = arith.constant 0 : i32
    return %c0_i32, %c0_i32_0, %c0_i32_1 : i32, i32, i32
  }
  func.func @transform_3(%arg0: i32) -> (i32, i32, i32) {
    %c0_i32 = arith.constant 0 : i32
    %c0_i32_0 = arith.constant 0 : i32
    %c0_i32_1 = arith.constant 0 : i32
    return %arg0, %c0_i32, %c0_i32_0 : i32, i32, i32
  }
}

module attributes {stable_mosaic.version = 11 : i64} {
  func.func @_attention_kernel(%arg0: i32, %arg1: memref<1x64x16xf32, #tpu.memory_space<vmem>>, %arg2: memref<16x48xbf16, #tpu.memory_space<vmem>>, %arg3: memref<1x48xf32, #tpu.memory_space<vmem>>, %arg4: memref<16x16xbf16, #tpu.memory_space<vmem>>, %arg5: memref<1x16xf32, #tpu.memory_space<vmem>>, %arg6: memref<1x64x16xf32, #tpu.memory_space<vmem>>, %arg7: memref<64x16xf32, #tpu.memory_space<vmem>>) attributes {dimension_semantics = [#tpu.dimension_semantics<parallel>], iteration_bounds = array<i64: 2>, scalar_prefetch = 0 : i64, scratch_operands = 1 : i64, tpu.core_type = #tpu.core_type<tc>, window_params = [{transform_indices = @transform_0, window_bounds = array<i64: 1, 64, 16>}, {pipeline_mode = #tpu.pipeline_mode<synchronous>, transform_indices = @transform_1, window_bounds = array<i64: 16, 48>}, {pipeline_mode = #tpu.pipeline_mode<synchronous>, transform_indices = @transform_2, window_bounds = array<i64: 1, 48>}, {pipeline_mode = #tpu.pipeline_mode<synchronous>, transform_indices = @transform_3, window_bounds = array<i64: 16, 16>}, {pipeline_mode = #tpu.pipeline_mode<synchronous>, transform_indices = @transform_4, window_bounds = array<i64: 1, 16>}, {transform_indices = @transform_5, window_bounds = array<i64: 1, 64, 16>}]} {
    %c0 = arith.constant 0 : index
    %c0_0 = arith.constant 0 : index
    %c0_1 = arith.constant 0 : index
    %0 = vector.load %arg1[%c0, %c0_0, %c0_1] : memref<1x64x16xf32, #tpu.memory_space<vmem>>, vector<1x64x16xf32>
    %1 = vector.shape_cast %0 : vector<1x64x16xf32> to vector<64x16xf32>
    %2 = arith.truncf %1 : vector<64x16xf32> to vector<64x16xbf16>
    %c0_2 = arith.constant 0 : index
    %c0_3 = arith.constant 0 : index
    %3 = vector.load %arg2[%c0_2, %c0_3] : memref<16x48xbf16, #tpu.memory_space<vmem>>, vector<16x48xbf16>
    %cst = arith.constant dense<0.000000e+00> : vector<64x48xf32>
    %4 = tpu.matmul %2, %3, %cst {dimension_numbers = #tpu.dot_dimension_numbers<[1], [0], [0], [1], [0, 0, 1, 1], [], []>} : vector<64x16xbf16>, vector<16x48xbf16>, vector<64x48xf32> -> vector<64x48xf32>
    %c0_4 = arith.constant 0 : index
    %c0_5 = arith.constant 0 : index
    %5 = vector.load %arg3[%c0_4, %c0_5] : memref<1x48xf32, #tpu.memory_space<vmem>>, vector<1x48xf32>
    %6 = vector.broadcast %5 : vector<1x48xf32> to vector<64x48xf32>
    %7 = arith.addf %4, %6 : vector<64x48xf32>
    %8 = vector.extract_strided_slice %7 {offsets = [0, 0], sizes = [64, 16], strides = [1, 1]} : vector<64x48xf32> to vector<64x16xf32>
    %cst_6 = arith.constant 0.707106769 : f32
    %9 = vector.broadcast %cst_6 : f32 to vector<64x16xf32>
    %10 = arith.mulf %8, %9 : vector<64x16xf32>
    %11 = vector.extract_strided_slice %7 {offsets = [0, 16], sizes = [64, 16], strides = [1, 1]} : vector<64x48xf32> to vector<64x16xf32>
    %12 = vector.extract_strided_slice %7 {offsets = [0, 32], sizes = [64, 16], strides = [1, 1]} : vector<64x48xf32> to vector<64x16xf32>
    %13 = arith.truncf %12 : vector<64x16xf32> to vector<64x16xbf16>
    %14 = vector.extract_strided_slice %10 {offsets = [0, 0], sizes = [64, 2], strides = [1, 1]} : vector<64x16xf32> to vector<64x2xf32>
    %15 = vector.extract_strided_slice %11 {offsets = [0, 0], sizes = [64, 2], strides = [1, 1]} : vector<64x16xf32> to vector<64x2xf32>
    "tpu.trace_start"() <{level = 10 : i32, message = "ld,md->lm"}> : () -> ()
    %cst_7 = arith.constant dense<0.000000e+00> : vector<64x64xf32>
    %16 = tpu.matmul %14, %15, %cst_7 {dimension_numbers = #tpu.dot_dimension_numbers<[1], [1], [0], [0], [0, 0, 1, 0], [], []>} : vector<64x2xf32>, vector<64x2xf32>, vector<64x64xf32> -> vector<64x64xf32>
    "tpu.trace_stop"() : () -> ()
    %cst_8 = arith.constant dense<0xFF800000> : vector<64xf32>
    %17 = vector.multi_reduction <maximumf>, %16, %cst_8 [1] : vector<64x64xf32> to vector<64xf32>
    %18 = vector.shape_cast %17 : vector<64xf32> to vector<64x1xf32>
    %19 = vector.broadcast %18 : vector<64x1xf32> to vector<64x64xf32>
    %20 = arith.subf %16, %19 : vector<64x64xf32>
    %21 = math.exp %20 : vector<64x64xf32>
    %cst_9 = arith.constant dense<0.000000e+00> : vector<64xf32>
    %22 = vector.multi_reduction <add>, %21, %cst_9 [1] : vector<64x64xf32> to vector<64xf32>
    %23 = vector.shape_cast %22 : vector<64xf32> to vector<64x1xf32>
    %24 = tpu.reciprocal %23 {approx = true} : vector<64x1xf32> -> vector<64x1xf32>
    %25 = vector.broadcast %24 : vector<64x1xf32> to vector<64x64xf32>
    %26 = arith.mulf %21, %25 : vector<64x64xf32>
    %27 = arith.truncf %26 : vector<64x64xf32> to vector<64x64xbf16>
    %28 = vector.extract_strided_slice %13 {offsets = [0, 0], sizes = [64, 2], strides = [1, 1]} : vector<64x16xbf16> to vector<64x2xbf16>
    %cst_10 = arith.constant dense<0.000000e+00> : vector<64x2xf32>
    %29 = tpu.matmul %27, %28, %cst_10 {dimension_numbers = #tpu.dot_dimension_numbers<[1], [0], [0], [1], [0, 0, 1, 1], [], []>} : vector<64x64xbf16>, vector<64x2xbf16>, vector<64x2xf32> -> vector<64x2xf32>
    %c0_11 = arith.constant 0 : index
    %c0_12 = arith.constant 0 : index
    %30 = vector.load %arg7[%c0_11, %c0_12] : memref<64x16xf32, #tpu.memory_space<vmem>>, vector<64x2xf32>
    tpu.vector_store %arg7[%c0_11, %c0_12], %29 {strides = array<i32>} : memref<64x16xf32, #tpu.memory_space<vmem>>, vector<64x2xf32>,
    %31 = vector.extract_strided_slice %10 {offsets = [0, 2], sizes = [64, 2], strides = [1, 1]} : vector<64x16xf32> to vector<64x2xf32>
    %32 = vector.extract_strided_slice %11 {offsets = [0, 2], sizes = [64, 2], strides = [1, 1]} : vector<64x16xf32> to vector<64x2xf32>
    "tpu.trace_start"() <{level = 10 : i32, message = "ld,md->lm"}> : () -> ()
    %cst_13 = arith.constant dense<0.000000e+00> : vector<64x64xf32>
    %33 = tpu.matmul %31, %32, %cst_13 {dimension_numbers = #tpu.dot_dimension_numbers<[1], [1], [0], [0], [0, 0, 1, 0], [], []>} : vector<64x2xf32>, vector<64x2xf32>, vector<64x64xf32> -> vector<64x64xf32>
    "tpu.trace_stop"() : () -> ()
    %cst_14 = arith.constant dense<0xFF800000> : vector<64xf32>
    %34 = vector.multi_reduction <maximumf>, %33, %cst_14 [1] : vector<64x64xf32> to vector<64xf32>
    %35 = vector.shape_cast %34 : vector<64xf32> to vector<64x1xf32>
    %36 = vector.broadcast %35 : vector<64x1xf32> to vector<64x64xf32>
    %37 = arith.subf %33, %36 : vector<64x64xf32>
    %38 = math.exp %37 : vector<64x64xf32>
    %cst_15 = arith.constant dense<0.000000e+00> : vector<64xf32>
    %39 = vector.multi_reduction <add>, %38, %cst_15 [1] : vector<64x64xf32> to vector<64xf32>
    %40 = vector.shape_cast %39 : vector<64xf32> to vector<64x1xf32>
    %41 = tpu.reciprocal %40 {approx = true} : vector<64x1xf32> -> vector<64x1xf32>
    %42 = vector.broadcast %41 : vector<64x1xf32> to vector<64x64xf32>
    %43 = arith.mulf %38, %42 : vector<64x64xf32>
    %44 = arith.truncf %43 : vector<64x64xf32> to vector<64x64xbf16>
    %45 = vector.extract_strided_slice %13 {offsets = [0, 2], sizes = [64, 2], strides = [1, 1]} : vector<64x16xbf16> to vector<64x2xbf16>
    %cst_16 = arith.constant dense<0.000000e+00> : vector<64x2xf32>
    %46 = tpu.matmul %44, %45, %cst_16 {dimension_numbers = #tpu.dot_dimension_numbers<[1], [0], [0], [1], [0, 0, 1, 1], [], []>} : vector<64x64xbf16>, vector<64x2xbf16>, vector<64x2xf32> -> vector<64x2xf32>
    %c0_17 = arith.constant 0 : index
    %c2 = arith.constant 2 : index
    %47 = vector.load %arg7[%c0_17, %c2] : memref<64x16xf32, #tpu.memory_space<vmem>>, vector<64x2xf32>
    tpu.vector_store %arg7[%c0_17, %c2], %46 {strides = array<i32>} : memref<64x16xf32, #tpu.memory_space<vmem>>, vector<64x2xf32>,
    %48 = vector.extract_strided_slice %10 {offsets = [0, 4], sizes = [64, 2], strides = [1, 1]} : vector<64x16xf32> to vector<64x2xf32>
    %49 = vector.extract_strided_slice %11 {offsets = [0, 4], sizes = [64, 2], strides = [1, 1]} : vector<64x16xf32> to vector<64x2xf32>
    "tpu.trace_start"() <{level = 10 : i32, message = "ld,md->lm"}> : () -> ()
    %cst_18 = arith.constant dense<0.000000e+00> : vector<64x64xf32>
    %50 = tpu.matmul %48, %49, %cst_18 {dimension_numbers = #tpu.dot_dimension_numbers<[1], [1], [0], [0], [0, 0, 1, 0], [], []>} : vector<64x2xf32>, vector<64x2xf32>, vector<64x64xf32> -> vector<64x64xf32>
    "tpu.trace_stop"() : () -> ()
    %cst_19 = arith.constant dense<0xFF800000> : vector<64xf32>
    %51 = vector.multi_reduction <maximumf>, %50, %cst_19 [1] : vector<64x64xf32> to vector<64xf32>
    %52 = vector.shape_cast %51 : vector<64xf32> to vector<64x1xf32>
    %53 = vector.broadcast %52 : vector<64x1xf32> to vector<64x64xf32>
    %54 = arith.subf %50, %53 : vector<64x64xf32>
    %55 = math.exp %54 : vector<64x64xf32>
    %cst_20 = arith.constant dense<0.000000e+00> : vector<64xf32>
    %56 = vector.multi_reduction <add>, %55, %cst_20 [1] : vector<64x64xf32> to vector<64xf32>
    %57 = vector.shape_cast %56 : vector<64xf32> to vector<64x1xf32>
    %58 = tpu.reciprocal %57 {approx = true} : vector<64x1xf32> -> vector<64x1xf32>
    %59 = vector.broadcast %58 : vector<64x1xf32> to vector<64x64xf32>
    %60 = arith.mulf %55, %59 : vector<64x64xf32>
    %61 = arith.truncf %60 : vector<64x64xf32> to vector<64x64xbf16>
    %62 = vector.extract_strided_slice %13 {offsets = [0, 4], sizes = [64, 2], strides = [1, 1]} : vector<64x16xbf16> to vector<64x2xbf16>
    %cst_21 = arith.constant dense<0.000000e+00> : vector<64x2xf32>
    %63 = tpu.matmul %61, %62, %cst_21 {dimension_numbers = #tpu.dot_dimension_numbers<[1], [0], [0], [1], [0, 0, 1, 1], [], []>} : vector<64x64xbf16>, vector<64x2xbf16>, vector<64x2xf32> -> vector<64x2xf32>
    %c0_22 = arith.constant 0 : index
    %c4 = arith.constant 4 : index
    %64 = vector.load %arg7[%c0_22, %c4] : memref<64x16xf32, #tpu.memory_space<vmem>>, vector<64x2xf32>
    tpu.vector_store %arg7[%c0_22, %c4], %63 {strides = array<i32>} : memref<64x16xf32, #tpu.memory_space<vmem>>, vector<64x2xf32>,
    %65 = vector.extract_strided_slice %10 {offsets = [0, 6], sizes = [64, 2], strides = [1, 1]} : vector<64x16xf32> to vector<64x2xf32>
    %66 = vector.extract_strided_slice %11 {offsets = [0, 6], sizes = [64, 2], strides = [1, 1]} : vector<64x16xf32> to vector<64x2xf32>
    "tpu.trace_start"() <{level = 10 : i32, message = "ld,md->lm"}> : () -> ()
    %cst_23 = arith.constant dense<0.000000e+00> : vector<64x64xf32>
    %67 = tpu.matmul %65, %66, %cst_23 {dimension_numbers = #tpu.dot_dimension_numbers<[1], [1], [0], [0], [0, 0, 1, 0], [], []>} : vector<64x2xf32>, vector<64x2xf32>, vector<64x64xf32> -> vector<64x64xf32>
    "tpu.trace_stop"() : () -> ()
    %cst_24 = arith.constant dense<0xFF800000> : vector<64xf32>
    %68 = vector.multi_reduction <maximumf>, %67, %cst_24 [1] : vector<64x64xf32> to vector<64xf32>
    %69 = vector.shape_cast %68 : vector<64xf32> to vector<64x1xf32>
    %70 = vector.broadcast %69 : vector<64x1xf32> to vector<64x64xf32>
    %71 = arith.subf %67, %70 : vector<64x64xf32>
    %72 = math.exp %71 : vector<64x64xf32>
    %cst_25 = arith.constant dense<0.000000e+00> : vector<64xf32>
    %73 = vector.multi_reduction <add>, %72, %cst_25 [1] : vector<64x64xf32> to vector<64xf32>
    %74 = vector.shape_cast %73 : vector<64xf32> to vector<64x1xf32>
    %75 = tpu.reciprocal %74 {approx = true} : vector<64x1xf32> -> vector<64x1xf32>
    %76 = vector.broadcast %75 : vector<64x1xf32> to vector<64x64xf32>
    %77 = arith.mulf %72, %76 : vector<64x64xf32>
    %78 = arith.truncf %77 : vector<64x64xf32> to vector<64x64xbf16>
    %79 = vector.extract_strided_slice %13 {offsets = [0, 6], sizes = [64, 2], strides = [1, 1]} : vector<64x16xbf16> to vector<64x2xbf16>
    %cst_26 = arith.constant dense<0.000000e+00> : vector<64x2xf32>
    %80 = tpu.matmul %78, %79, %cst_26 {dimension_numbers = #tpu.dot_dimension_numbers<[1], [0], [0], [1], [0, 0, 1, 1], [], []>} : vector<64x64xbf16>, vector<64x2xbf16>, vector<64x2xf32> -> vector<64x2xf32>
    %c0_27 = arith.constant 0 : index
    %c6 = arith.constant 6 : index
    %81 = vector.load %arg7[%c0_27, %c6] : memref<64x16xf32, #tpu.memory_space<vmem>>, vector<64x2xf32>
    tpu.vector_store %arg7[%c0_27, %c6], %80 {strides = array<i32>} : memref<64x16xf32, #tpu.memory_space<vmem>>, vector<64x2xf32>,
    %82 = vector.extract_strided_slice %10 {offsets = [0, 8], sizes = [64, 2], strides = [1, 1]} : vector<64x16xf32> to vector<64x2xf32>
    %83 = vector.extract_strided_slice %11 {offsets = [0, 8], sizes = [64, 2], strides = [1, 1]} : vector<64x16xf32> to vector<64x2xf32>
    "tpu.trace_start"() <{level = 10 : i32, message = "ld,md->lm"}> : () -> ()
    %cst_28 = arith.constant dense<0.000000e+00> : vector<64x64xf32>
    %84 = tpu.matmul %82, %83, %cst_28 {dimension_numbers = #tpu.dot_dimension_numbers<[1], [1], [0], [0], [0, 0, 1, 0], [], []>} : vector<64x2xf32>, vector<64x2xf32>, vector<64x64xf32> -> vector<64x64xf32>
    "tpu.trace_stop"() : () -> ()
    %cst_29 = arith.constant dense<0xFF800000> : vector<64xf32>
    %85 = vector.multi_reduction <maximumf>, %84, %cst_29 [1] : vector<64x64xf32> to vector<64xf32>
    %86 = vector.shape_cast %85 : vector<64xf32> to vector<64x1xf32>
    %87 = vector.broadcast %86 : vector<64x1xf32> to vector<64x64xf32>
    %88 = arith.subf %84, %87 : vector<64x64xf32>
    %89 = math.exp %88 : vector<64x64xf32>
    %cst_30 = arith.constant dense<0.000000e+00> : vector<64xf32>
    %90 = vector.multi_reduction <add>, %89, %cst_30 [1] : vector<64x64xf32> to vector<64xf32>
    %91 = vector.shape_cast %90 : vector<64xf32> to vector<64x1xf32>
    %92 = tpu.reciprocal %91 {approx = true} : vector<64x1xf32> -> vector<64x1xf32>
    %93 = vector.broadcast %92 : vector<64x1xf32> to vector<64x64xf32>
    %94 = arith.mulf %89, %93 : vector<64x64xf32>
    %95 = arith.truncf %94 : vector<64x64xf32> to vector<64x64xbf16>
    %96 = vector.extract_strided_slice %13 {offsets = [0, 8], sizes = [64, 2], strides = [1, 1]} : vector<64x16xbf16> to vector<64x2xbf16>
    %cst_31 = arith.constant dense<0.000000e+00> : vector<64x2xf32>
    %97 = tpu.matmul %95, %96, %cst_31 {dimension_numbers = #tpu.dot_dimension_numbers<[1], [0], [0], [1], [0, 0, 1, 1], [], []>} : vector<64x64xbf16>, vector<64x2xbf16>, vector<64x2xf32> -> vector<64x2xf32>
    %c0_32 = arith.constant 0 : index
    %c8 = arith.constant 8 : index
    %98 = vector.load %arg7[%c0_32, %c8] : memref<64x16xf32, #tpu.memory_space<vmem>>, vector<64x2xf32>
    tpu.vector_store %arg7[%c0_32, %c8], %97 {strides = array<i32>} : memref<64x16xf32, #tpu.memory_space<vmem>>, vector<64x2xf32>,
    %99 = vector.extract_strided_slice %10 {offsets = [0, 10], sizes = [64, 2], strides = [1, 1]} : vector<64x16xf32> to vector<64x2xf32>
    %100 = vector.extract_strided_slice %11 {offsets = [0, 10], sizes = [64, 2], strides = [1, 1]} : vector<64x16xf32> to vector<64x2xf32>
    "tpu.trace_start"() <{level = 10 : i32, message = "ld,md->lm"}> : () -> ()
    %cst_33 = arith.constant dense<0.000000e+00> : vector<64x64xf32>
    %101 = tpu.matmul %99, %100, %cst_33 {dimension_numbers = #tpu.dot_dimension_numbers<[1], [1], [0], [0], [0, 0, 1, 0], [], []>} : vector<64x2xf32>, vector<64x2xf32>, vector<64x64xf32> -> vector<64x64xf32>
    "tpu.trace_stop"() : () -> ()
    %cst_34 = arith.constant dense<0xFF800000> : vector<64xf32>
    %102 = vector.multi_reduction <maximumf>, %101, %cst_34 [1] : vector<64x64xf32> to vector<64xf32>
    %103 = vector.shape_cast %102 : vector<64xf32> to vector<64x1xf32>
    %104 = vector.broadcast %103 : vector<64x1xf32> to vector<64x64xf32>
    %105 = arith.subf %101, %104 : vector<64x64xf32>
    %106 = math.exp %105 : vector<64x64xf32>
    %cst_35 = arith.constant dense<0.000000e+00> : vector<64xf32>
    %107 = vector.multi_reduction <add>, %106, %cst_35 [1] : vector<64x64xf32> to vector<64xf32>
    %108 = vector.shape_cast %107 : vector<64xf32> to vector<64x1xf32>
    %109 = tpu.reciprocal %108 {approx = true} : vector<64x1xf32> -> vector<64x1xf32>
    %110 = vector.broadcast %109 : vector<64x1xf32> to vector<64x64xf32>
    %111 = arith.mulf %106, %110 : vector<64x64xf32>
    %112 = arith.truncf %111 : vector<64x64xf32> to vector<64x64xbf16>
    %113 = vector.extract_strided_slice %13 {offsets = [0, 10], sizes = [64, 2], strides = [1, 1]} : vector<64x16xbf16> to vector<64x2xbf16>
    %cst_36 = arith.constant dense<0.000000e+00> : vector<64x2xf32>
    %114 = tpu.matmul %112, %113, %cst_36 {dimension_numbers = #tpu.dot_dimension_numbers<[1], [0], [0], [1], [0, 0, 1, 1], [], []>} : vector<64x64xbf16>, vector<64x2xbf16>, vector<64x2xf32> -> vector<64x2xf32>
    %c0_37 = arith.constant 0 : index
    %c10 = arith.constant 10 : index
    %115 = vector.load %arg7[%c0_37, %c10] : memref<64x16xf32, #tpu.memory_space<vmem>>, vector<64x2xf32>
    tpu.vector_store %arg7[%c0_37, %c10], %114 {strides = array<i32>} : memref<64x16xf32, #tpu.memory_space<vmem>>, vector<64x2xf32>,
    %116 = vector.extract_strided_slice %10 {offsets = [0, 12], sizes = [64, 2], strides = [1, 1]} : vector<64x16xf32> to vector<64x2xf32>
    %117 = vector.extract_strided_slice %11 {offsets = [0, 12], sizes = [64, 2], strides = [1, 1]} : vector<64x16xf32> to vector<64x2xf32>
    "tpu.trace_start"() <{level = 10 : i32, message = "ld,md->lm"}> : () -> ()
    %cst_38 = arith.constant dense<0.000000e+00> : vector<64x64xf32>
    %118 = tpu.matmul %116, %117, %cst_38 {dimension_numbers = #tpu.dot_dimension_numbers<[1], [1], [0], [0], [0, 0, 1, 0], [], []>} : vector<64x2xf32>, vector<64x2xf32>, vector<64x64xf32> -> vector<64x64xf32>
    "tpu.trace_stop"() : () -> ()
    %cst_39 = arith.constant dense<0xFF800000> : vector<64xf32>
    %119 = vector.multi_reduction <maximumf>, %118, %cst_39 [1] : vector<64x64xf32> to vector<64xf32>
    %120 = vector.shape_cast %119 : vector<64xf32> to vector<64x1xf32>
    %121 = vector.broadcast %120 : vector<64x1xf32> to vector<64x64xf32>
    %122 = arith.subf %118, %121 : vector<64x64xf32>
    %123 = math.exp %122 : vector<64x64xf32>
    %cst_40 = arith.constant dense<0.000000e+00> : vector<64xf32>
    %124 = vector.multi_reduction <add>, %123, %cst_40 [1] : vector<64x64xf32> to vector<64xf32>
    %125 = vector.shape_cast %124 : vector<64xf32> to vector<64x1xf32>
    %126 = tpu.reciprocal %125 {approx = true} : vector<64x1xf32> -> vector<64x1xf32>
    %127 = vector.broadcast %126 : vector<64x1xf32> to vector<64x64xf32>
    %128 = arith.mulf %123, %127 : vector<64x64xf32>
    %129 = arith.truncf %128 : vector<64x64xf32> to vector<64x64xbf16>
    %130 = vector.extract_strided_slice %13 {offsets = [0, 12], sizes = [64, 2], strides = [1, 1]} : vector<64x16xbf16> to vector<64x2xbf16>
    %cst_41 = arith.constant dense<0.000000e+00> : vector<64x2xf32>
    %131 = tpu.matmul %129, %130, %cst_41 {dimension_numbers = #tpu.dot_dimension_numbers<[1], [0], [0], [1], [0, 0, 1, 1], [], []>} : vector<64x64xbf16>, vector<64x2xbf16>, vector<64x2xf32> -> vector<64x2xf32>
    %c0_42 = arith.constant 0 : index
    %c12 = arith.constant 12 : index
    %132 = vector.load %arg7[%c0_42, %c12] : memref<64x16xf32, #tpu.memory_space<vmem>>, vector<64x2xf32>
    tpu.vector_store %arg7[%c0_42, %c12], %131 {strides = array<i32>} : memref<64x16xf32, #tpu.memory_space<vmem>>, vector<64x2xf32>,
    %133 = vector.extract_strided_slice %10 {offsets = [0, 14], sizes = [64, 2], strides = [1, 1]} : vector<64x16xf32> to vector<64x2xf32>
    %134 = vector.extract_strided_slice %11 {offsets = [0, 14], sizes = [64, 2], strides = [1, 1]} : vector<64x16xf32> to vector<64x2xf32>
    "tpu.trace_start"() <{level = 10 : i32, message = "ld,md->lm"}> : () -> ()
    %cst_43 = arith.constant dense<0.000000e+00> : vector<64x64xf32>
    %135 = tpu.matmul %133, %134, %cst_43 {dimension_numbers = #tpu.dot_dimension_numbers<[1], [1], [0], [0], [0, 0, 1, 0], [], []>} : vector<64x2xf32>, vector<64x2xf32>, vector<64x64xf32> -> vector<64x64xf32>
    "tpu.trace_stop"() : () -> ()
    %cst_44 = arith.constant dense<0xFF800000> : vector<64xf32>
    %136 = vector.multi_reduction <maximumf>, %135, %cst_44 [1] : vector<64x64xf32> to vector<64xf32>
    %137 = vector.shape_cast %136 : vector<64xf32> to vector<64x1xf32>
    %138 = vector.broadcast %137 : vector<64x1xf32> to vector<64x64xf32>
    %139 = arith.subf %135, %138 : vector<64x64xf32>
    %140 = math.exp %139 : vector<64x64xf32>
    %cst_45 = arith.constant dense<0.000000e+00> : vector<64xf32>
    %141 = vector.multi_reduction <add>, %140, %cst_45 [1] : vector<64x64xf32> to vector<64xf32>
    %142 = vector.shape_cast %141 : vector<64xf32> to vector<64x1xf32>
    %143 = tpu.reciprocal %142 {approx = true} : vector<64x1xf32> -> vector<64x1xf32>
    %144 = vector.broadcast %143 : vector<64x1xf32> to vector<64x64xf32>
    %145 = arith.mulf %140, %144 : vector<64x64xf32>
    %146 = arith.truncf %145 : vector<64x64xf32> to vector<64x64xbf16>
    %147 = vector.extract_strided_slice %13 {offsets = [0, 14], sizes = [64, 2], strides = [1, 1]} : vector<64x16xbf16> to vector<64x2xbf16>
    %cst_46 = arith.constant dense<0.000000e+00> : vector<64x2xf32>
    %148 = tpu.matmul %146, %147, %cst_46 {dimension_numbers = #tpu.dot_dimension_numbers<[1], [0], [0], [1], [0, 0, 1, 1], [], []>} : vector<64x64xbf16>, vector<64x2xbf16>, vector<64x2xf32> -> vector<64x2xf32>
    %c0_47 = arith.constant 0 : index
    %c14 = arith.constant 14 : index
    %149 = vector.load %arg7[%c0_47, %c14] : memref<64x16xf32, #tpu.memory_space<vmem>>, vector<64x2xf32>
    tpu.vector_store %arg7[%c0_47, %c14], %148 {strides = array<i32>} : memref<64x16xf32, #tpu.memory_space<vmem>>, vector<64x2xf32>,
    %c0_48 = arith.constant 0 : index
    %c0_49 = arith.constant 0 : index
    %150 = vector.load %arg7[%c0_48, %c0_49] : memref<64x16xf32, #tpu.memory_space<vmem>>, vector<64x16xf32>
    %151 = arith.truncf %150 : vector<64x16xf32> to vector<64x16xbf16>
    %c0_50 = arith.constant 0 : index
    %c0_51 = arith.constant 0 : index
    %152 = vector.load %arg4[%c0_50, %c0_51] : memref<16x16xbf16, #tpu.memory_space<vmem>>, vector<16x16xbf16>
    %cst_52 = arith.constant dense<0.000000e+00> : vector<64x16xf32>
    %153 = tpu.matmul %151, %152, %cst_52 {dimension_numbers = #tpu.dot_dimension_numbers<[1], [0], [0], [1], [0, 0, 1, 1], [], []>} : vector<64x16xbf16>, vector<16x16xbf16>, vector<64x16xf32> -> vector<64x16xf32>
    %c0_53 = arith.constant 0 : index
    %c0_54 = arith.constant 0 : index
    %154 = vector.load %arg5[%c0_53, %c0_54] : memref<1x16xf32, #tpu.memory_space<vmem>>, vector<1x16xf32>
    %155 = vector.broadcast %154 : vector<1x16xf32> to vector<64x16xf32>
    %156 = arith.addf %153, %155 : vector<64x16xf32>
    %cst_55 = arith.constant 0.000000e+00 : f32
    %157 = vector.broadcast %cst_55 : f32 to vector<64x16xf32>
    %158 = arith.cmpf oge, %156, %157 : vector<64x16xf32>
    %cst_56 = arith.constant 2.000000e-01 : f32
    %159 = vector.broadcast %cst_56 : f32 to vector<64x16xf32>
    %160 = arith.mulf %159, %156 : vector<64x16xf32>
    %161 = arith.select %158, %156, %160 : vector<64x16xi1>, vector<64x16xf32>
    %c0_57 = arith.constant 0 : index
    %c0_58 = arith.constant 0 : index
    %c0_59 = arith.constant 0 : index
    %162 = vector.load %arg6[%c0_57, %c0_58, %c0_59] : memref<1x64x16xf32, #tpu.memory_space<vmem>>, vector<1x64x16xf32>
    %163 = vector.shape_cast %162 : vector<1x64x16xf32> to vector<64x16xf32>
    %164 = vector.shape_cast %161 : vector<64x16xf32> to vector<1x64x16xf32>
    tpu.vector_store %arg6[%c0_57, %c0_58, %c0_59], %164 {strides = array<i32>} : memref<1x64x16xf32, #tpu.memory_space<vmem>>, vector<1x64x16xf32>,
    return
  }
  func.func @transform_0(%arg0: i32) -> (i32, i32, i32) {
    %c0_i32 = arith.constant 0 : i32
    %c0_i32_0 = arith.constant 0 : i32
    %c0_i32_1 = arith.constant 0 : i32
    return %arg0, %c0_i32, %c0_i32_0 : i32, i32, i32
  }
  func.func @transform_1(%arg0: i32) -> (i32, i32) {
    %c0_i32 = arith.constant 0 : i32
    %c0_i32_0 = arith.constant 0 : i32
    %c0_i32_1 = arith.constant 0 : i32
    return %c0_i32, %c0_i32_0 : i32, i32
  }
  func.func @transform_2(%arg0: i32) -> (i32, i32) {
    %c0_i32 = arith.constant 0 : i32
    %c0_i32_0 = arith.constant 0 : i32
    %c0_i32_1 = arith.constant 0 : i32
    return %c0_i32, %c0_i32_0 : i32, i32
  }
  func.func @transform_3(%arg0: i32) -> (i32, i32) {
    %c0_i32 = arith.constant 0 : i32
    %c0_i32_0 = arith.constant 0 : i32
    %c0_i32_1 = arith.constant 0 : i32
    return %c0_i32, %c0_i32_0 : i32, i32
  }
  func.func @transform_4(%arg0: i32) -> (i32, i32) {
    %c0_i32 = arith.constant 0 : i32
    %c0_i32_0 = arith.constant 0 : i32
    %c0_i32_1 = arith.constant 0 : i32
    return %c0_i32, %c0_i32_0 : i32, i32
  }
  func.func @transform_5(%arg0: i32) -> (i32, i32, i32) {
    %c0_i32 = arith.constant 0 : i32
    %c0_i32_0 = arith.constant 0 : i32
    %c0_i32_1 = arith.constant 0 : i32
    return %arg0, %c0_i32, %c0_i32_0 : i32, i32, i32
  }
}

</mosaic_0001>

<llo_original>
// kernel: encoder_block_forward.3
$region0: #{encoder_block_forward.3}
  #allocation0 [shape = 'u32[]', space=smem, size = 0x4, offset = 0x4, fixed_abs, tag = 'smem constant byte address 0x4 - core index']
  #allocation1 [shape = 'u32[144,128]{1,0:T(1,128)}', space=vmem, size = 0x12000, scoped, tag = 'internal scratch']
  #allocation2 [shape = 'f32[64,16]{1,0:T(8,128)}', space=vmem, size = 0x8000, scoped, tag = 'scratch operand']
  %s0 = inlined_call_operand.vmem [shape: f32[2,64,16], index: 0, kind: input, shape index: {}]
  %s1 = inlined_call_operand.vmem [shape: bf16[16,48], index: 1, kind: input, shape index: {}]
  %s2 = inlined_call_operand.vmem [shape: f32[1,48], index: 2, kind: input, shape index: {}]
  %s3 = inlined_call_operand.vmem [shape: bf16[16,16], index: 3, kind: input, shape index: {}]
  %s4 = inlined_call_operand.vmem [shape: f32[1,16], index: 4, kind: input, shape index: {}]
  %s5 = inlined_call_operand.hbm [shape: f32[2,64,16], index: 5, kind: output, shape index: {}]
  %s6 = sld [smem:[#allocation0]]
  $region53: #{encoder_block_forward.3} parent=0
    _
  %s8 = ssub.s32 1, %s6
  %s9 = scalar_select 0, %s8, %s6
  $region1: #{encoder_block_forward.3} parent=0
    #allocation3 [shape = 'u8[65536]{0}', space=vmem, size = 0x10000, scoped, tag = 'output window, operand 0']
    #allocation4 [shape = 's32[2]{0}', space=sflag, size = 0x8, scoped, tag = 'scoped memory for encoder_block_forward.3']
    %10 = vsyncpa [#allocation4], 0
    %s11 = scalar_lea.sflag [#allocation4], 1
    %12 = vsyncpa %s11, 0
    loop: start=0, step=1, limit=4
    $region2: #{encoder_block_forward.3} parent=1 // loop_pre_header
      _
    $region3: #{encoder_block_forward.3} parent=1 // loop_header
      %s14 = sphi 0, %s18
      %p15 = scmp.ge.s32.totalorder %s14, 4
      %s24 = sphi 0, %s26
      %s27 = sphi 0, %s24
      %s28 = sphi 0, %s27
      %s44 = sphi 0, %s28
      %s48 = sphi 0, %s48
      %s50 = sphi 0, %s48
      %s51 = sphi 0, %s50
      %s65 = sphi 0, %s51
      %s69 = sphi 0, %s69
      %s71 = sphi 0, %s69
      %s72 = sphi 0, %s71
      %s86 = sphi 0, %s72
      %s90 = sphi 0, %s90
      %s92 = sphi 0, %s90
      %s93 = sphi 0, %s92
      %s107 = sphi 0, %s93
      %s111 = sphi 0, %s111
      %s113 = sphi 0, %s111
      %s114 = sphi 0, %s113
      %s128 = sphi 0, %s114
      %s134 = sphi 0, %s136
      %s137 = sphi 0, %s134
      %s138 = sphi 0, %s137
      %s154 = sphi 0, %s138
    $region4: #{encoder_block_forward.3} parent=1 // loop_header_branch
      %17 = sbr.rel (%p15) target = $region8
    $region5: #{encoder_block_forward.3} parent=1 // loop_body
      %s19 = ssub.s32 %s14, 1
      %s20 = ssub.s32 %s14, 2
      %s21 = sadd.s32 %s14, 1
      %s22 = ssub.s32 %s14, %s21
      %p23 = scmp.eq.s32.totalorder %s22, 0
      %s25 = sadd.s32 %s24, 1
      %s26 = scalar_select %p23, %s24, %s25
      %p29 = pneg %p23
      %p30 = scmp.eq.s32.totalorder %s14, 1
      %p31 = por %p29, %p30
      %p32 = scmp.ne.s32.totalorder %s24, %s27
      %p33 = scmp.eq.s32.totalorder %s14, 0
      %p34 = por %p32, %p33
      %p35 = scmp.ne.s32.totalorder %s24, %s27
      %p36 = scmp.eq.s32.totalorder %s19, 1
      %p37 = por %p35, %p36
      %p38 = scmp.ne.s32.totalorder %s27, %s28
      %p39 = scmp.eq.s32.totalorder %s19, 0
      %p40 = por %p38, %p39
      %p41 = scmp.ne.s32.totalorder %s27, %s28
      %p42 = scmp.eq.s32.totalorder %s20, 1
      %p43 = por %p41, %p42
      %p45 = scmp.ne.s32.totalorder %s28, %s44
      %p46 = scmp.eq.s32.totalorder %s20, 0
      %p47 = por %p45, %p46
      %s49 = sadd.s32 %s48, 1
      %p52 = scmp.eq.s32.totalorder %s14, 1
      %p53 = scmp.ne.s32.totalorder %s48, %s50
      %p54 = scmp.eq.s32.totalorder %s14, 0
      %p55 = por %p53, %p54
      %p56 = scmp.ne.s32.totalorder %s48, %s50
      %p57 = scmp.eq.s32.totalorder %s19, 1
      %p58 = por %p56, %p57
      %p59 = scmp.ne.s32.totalorder %s50, %s51
      %p60 = scmp.eq.s32.totalorder %s19, 0
      %p61 = por %p59, %p60
      %p62 = scmp.ne.s32.totalorder %s50, %s51
      %p63 = scmp.eq.s32.totalorder %s20, 1
      %p64 = por %p62, %p63
      %p66 = scmp.ne.s32.totalorder %s51, %s65
      %p67 = scmp.eq.s32.totalorder %s20, 0
      %p68 = por %p66, %p67
      %s70 = sadd.s32 %s69, 1
      %p73 = scmp.eq.s32.totalorder %s14, 1
      %p74 = scmp.ne.s32.totalorder %s69, %s71
      %p75 = scmp.eq.s32.totalorder %s14, 0
      %p76 = por %p74, %p75
      %p77 = scmp.ne.s32.totalorder %s69, %s71
      %p78 = scmp.eq.s32.totalorder %s19, 1
      %p79 = por %p77, %p78
      %p80 = scmp.ne.s32.totalorder %s71, %s72
      %p81 = scmp.eq.s32.totalorder %s19, 0
      %p82 = por %p80, %p81
      %p83 = scmp.ne.s32.totalorder %s71, %s72
      %p84 = scmp.eq.s32.totalorder %s20, 1
      %p85 = por %p83, %p84
      %p87 = scmp.ne.s32.totalorder %s72, %s86
      %p88 = scmp.eq.s32.totalorder %s20, 0
      %p89 = por %p87, %p88
      %s91 = sadd.s32 %s90, 1
      %p94 = scmp.eq.s32.totalorder %s14, 1
      %p95 = scmp.ne.s32.totalorder %s90, %s92
      %p96 = scmp.eq.s32.totalorder %s14, 0
      %p97 = por %p95, %p96
      %p98 = scmp.ne.s32.totalorder %s90, %s92
      %p99 = scmp.eq.s32.totalorder %s19, 1
      %p100 = por %p98, %p99
      %p101 = scmp.ne.s32.totalorder %s92, %s93
      %p102 = scmp.eq.s32.totalorder %s19, 0
      %p103 = por %p101, %p102
      %p104 = scmp.ne.s32.totalorder %s92, %s93
      %p105 = scmp.eq.s32.totalorder %s20, 1
      %p106 = por %p104, %p105
      %p108 = scmp.ne.s32.totalorder %s93, %s107
      %p109 = scmp.eq.s32.totalorder %s20, 0
      %p110 = por %p108, %p109
      %s112 = sadd.s32 %s111, 1
      %p115 = scmp.eq.s32.totalorder %s14, 1
      %p116 = scmp.ne.s32.totalorder %s111, %s113
      %p117 = scmp.eq.s32.totalorder %s14, 0
      %p118 = por %p116, %p117
      %p119 = scmp.ne.s32.totalorder %s111, %s113
      %p120 = scmp.eq.s32.totalorder %s19, 1
      %p121 = por %p119, %p120
      %p122 = scmp.ne.s32.totalorder %s113, %s114
      %p123 = scmp.eq.s32.totalorder %s19, 0
      %p124 = por %p122, %p123
      %p125 = scmp.ne.s32.totalorder %s113, %s114
      %p126 = scmp.eq.s32.totalorder %s20, 1
      %p127 = por %p125, %p126
      %p129 = scmp.ne.s32.totalorder %s114, %s128
      %p130 = scmp.eq.s32.totalorder %s20, 0
      %p131 = por %p129, %p130
      %s132 = ssub.s32 %s14, %s21
      %p133 = scmp.eq.s32.totalorder %s132, 0
      %s135 = sadd.s32 %s134, 1
      %s136 = scalar_select %p133, %s134, %s135
      %p139 = pneg %p133
      %p140 = scmp.eq.s32.totalorder %s14, 1
      %p141 = por %p139, %p140
      %p142 = scmp.ne.s32.totalorder %s134, %s137
      %p143 = scmp.eq.s32.totalorder %s14, 0
      %p144 = por %p142, %p143
      %p145 = scmp.ne.s32.totalorder %s134, %s137
      %p146 = scmp.eq.s32.totalorder %s19, 1
      %p147 = por %p145, %p146
      %p148 = scmp.ne.s32.totalorder %s137, %s138
      %p149 = scmp.eq.s32.totalorder %s19, 0
      %p150 = por %p148, %p149
      %p151 = scmp.ne.s32.totalorder %s137, %s138
      %p152 = scmp.eq.s32.totalorder %s20, 1
      %p153 = por %p151, %p152
      %p155 = scmp.ne.s32.totalorder %s138, %s154
      %p156 = scmp.eq.s32.totalorder %s20, 0
      %p157 = por %p155, %p156
      %p158 = scmp.le.s32.totalorder 1, %s14
      %p159 = scmp.lt.s32.totalorder %s14, 3
      %p160 = pnand %p158, %p159
      %p161 = pneg %p160
      // Predicated region
      $region9: #{encoder_block_forward.3} parent=5 // pred_check
        _
      $region10: #{encoder_block_forward.3} parent=5 // pred_check_branch
        %163 = sbr.rel (%p160) target = $region12
      $region11: #{encoder_block_forward.3} parent=5 // pred_region
        %s164 = ssub.s32 %s14, 1
        // Predicated region
        $region13: #{encoder_block_forward.3} parent=11 // pred_check
          %p165 = pneg %p61
        $region14: #{encoder_block_forward.3} parent=11 // pred_check_branch
          %167 = sbr.rel (%p165) target = $region16
        $region15: #{encoder_block_forward.3} parent=11 // pred_region
          _
        $region16: #{encoder_block_forward.3} parent=11 // pred_fallthru
          _
        // Predicated region
        $region17: #{encoder_block_forward.3} parent=11 // pred_check
          %p168 = pneg %p82
        $region18: #{encoder_block_forward.3} parent=11 // pred_check_branch
          %170 = sbr.rel (%p168) target = $region20
        $region19: #{encoder_block_forward.3} parent=11 // pred_region
          _
        $region20: #{encoder_block_forward.3} parent=11 // pred_fallthru
          _
        // Predicated region
        $region21: #{encoder_block_forward.3} parent=11 // pred_check
          %p171 = pneg %p103
        $region22: #{encoder_block_forward.3} parent=11 // pred_check_branch
          %173 = sbr.rel (%p171) target = $region24
        $region23: #{encoder_block_forward.3} parent=11 // pred_region
          _
        $region24: #{encoder_block_forward.3} parent=11 // pred_fallthru
          _
        // Predicated region
        $region25: #{encoder_block_forward.3} parent=11 // pred_check
          %p174 = pneg %p124
        $region26: #{encoder_block_forward.3} parent=11 // pred_check_branch
          %176 = sbr.rel (%p174) target = $region28
        $region27: #{encoder_block_forward.3} parent=11 // pred_region
          _
        $region28: #{encoder_block_forward.3} parent=11 // pred_fallthru
          _
      $region12: #{encoder_block_forward.3} parent=5 // pred_fallthru
        _
      %p177 = scmp.lt.s32.totalorder %s14, 2
      // Predicated region
      $region29: #{encoder_block_forward.3} parent=5 // pred_check
        %p178 = pneg %p177
      $region30: #{encoder_block_forward.3} parent=5 // pred_check_branch
        %180 = sbr.rel (%p178) target = $region32
      $region31: #{encoder_block_forward.3} parent=5 // pred_region
        // Predicated region
        $region33: #{encoder_block_forward.3} parent=31 // pred_check
          %p181 = pneg %p34
        $region34: #{encoder_block_forward.3} parent=31 // pred_check_branch
          %183 = sbr.rel (%p181) target = $region36
        $region35: #{encoder_block_forward.3} parent=31 // pred_region
          %p184 = scmp.lt.s32.totalorder %s14, 1
          %s185 = scalar_select %p184, %s14, 1
          %s186 = smul.addr %s185, 8
          %s187 = smul.addr %s186, 8
          %s188 = scalar_lea.vmem %s0, %s187
        $region36: #{encoder_block_forward.3} parent=31 // pred_fallthru
          _
      $region32: #{encoder_block_forward.3} parent=5 // pred_fallthru
        _
      %p189 = scmp.le.s32.totalorder 1, %s14
      %p190 = scmp.lt.s32.totalorder %s14, 3
      %p191 = pnand %p189, %p190
      %p192 = pneg %p191
      // Predicated region
      $region37: #{encoder_block_forward.3} parent=5 // pred_check
        _
      $region38: #{encoder_block_forward.3} parent=5 // pred_check_branch
        %194 = sbr.rel (%p191) target = $region40
      $region39: #{encoder_block_forward.3} parent=5 // pred_region
        %s195 = ssub.s32 %s14, 1
        %p196 = scmp.lt.s32.totalorder %s19, 1
        %s197 = scalar_select %p196, %s19, 1
        %s198 = smul.addr %s197, 8
        %s199 = smul.addr %s198, 8
        %s200 = scalar_lea.vmem %s0, %s199
        %p201 = pneg %p40
        %p202 = pneg %p37
        %p203 = pneg %p61
        %p204 = pneg %p58
        %p205 = pneg %p82
        %p206 = pneg %p79
        %p207 = pneg %p103
        %p208 = pneg %p100
        %p209 = pneg %p124
        %p210 = pneg %p121
        %p211 = pneg %p150
        %p212 = pneg %p147
        %s213 = sand.u32 %s137, 1
        %s214 = scalar_lea.sflag [#allocation4], %s213
        %s215 = sand.u32 %s137, 1
        %s216 = smul.addr %s215, 64
        %s217 = scalar_lea.vmem [#allocation3], %s216
        %p218 = scmp.lt.s32.totalorder %s19, 1
        %s219 = scalar_select %p218, %s19, 1
        %s220 = smul.addr %s219, 8
        %s221 = smul.addr %s220, 8
        %s222 = scalar_lea.vmem %s0, %s221
        %v224 = vld [vmem:[%s222] sm:$0xff]
        %v225 = vld [vmem:[%s222 + $0x8] sm:$0xff]
        %v226 = vld [vmem:[%s222 + $0x10] sm:$0xff]
        %v227 = vld [vmem:[%s222 + $0x18] sm:$0xff]
        %v228 = vld [vmem:[%s222 + $0x20] sm:$0xff]
        %v229 = vld [vmem:[%s222 + $0x28] sm:$0xff]
        %v230 = vld [vmem:[%s222 + $0x30] sm:$0xff]
        %v231 = vld [vmem:[%s222 + $0x38] sm:$0xff]
        %v232 = vpack.c.bf16 %v225, %v224
        %v233 = vpack.c.bf16 %v227, %v226
        %v234 = vpack.c.bf16 %v229, %v228
        %v235 = vpack.c.bf16 %v231, %v230
        %v236 = vld [vmem:[%s1] sm:$0xf]
        %v237 = vld [vmem:[%s1 + $0x4] sm:$0xf]
        %v238 = vld [vmem:[%s2] sm:$0x1]
        %v240 = vlaneseq
        %v241 = vshrl.u32 %v240, 7
        %v242 = vsub.s32 0, %v241
        %v243 = vrot.slane %v238, %v242
        %v247 = vunpack.c.l.b16 %v236
        %v248 = vunpack.c.l.b16 %v237
        %v249 = vpack.c.b16 %v248, %v247
        %vm251 = vcmask 130048
        %v253 = vsel %vm251, %v232, 0
        %v256 = vsel %vm251, %v233, 0
        %v259 = vsel %vm251, %v234, 0
        %v262 = vsel %vm251, %v235, 0
        %264 = vmatprep.subr.bf16.mxu0 0
        %265 = vmatpush1.bf16.msra.mxu0 %v249
        %266 = vmatprep.subr.bf16.mxu0 0
        %267 = vmatpush1.bf16.msra.mxu0 0
        %268 = vmatprep.subr.bf16.mxu0 0
        %269 = vmatpush1.bf16.msra.mxu0 0
        %270 = vmatprep.subr.bf16.mxu0 0
        %271 = vmatpush1.bf16.msra.mxu0 0
        %272 = vmatprep.subr.bf16.mxu0 0
        %273 = vmatpush1.bf16.msra.mxu0 0
        %274 = vmatprep.subr.bf16.mxu0 0
        %275 = vmatpush1.bf16.msra.mxu0 0
        %276 = vmatprep.subr.bf16.mxu0 0
        %277 = vmatpush1.bf16.msra.mxu0 0
        %278 = vmatprep.subr.bf16.mxu0 0
        %279 = vmatpush1.bf16.msra.mxu0 0
        %280 = vmatprep.subr.bf16.mxu0 0
        %281 = vmatpush1.bf16.msra.mxu0 0
        %282 = vmatprep.subr.bf16.mxu0 0
        %283 = vmatpush1.bf16.msra.mxu0 0
        %284 = vmatprep.subr.bf16.mxu0 0
        %285 = vmatpush1.bf16.msra.mxu0 0
        %286 = vmatprep.subr.bf16.mxu0 0
        %287 = vmatpush1.bf16.msra.mxu0 0
        %288 = vmatprep.subr.bf16.mxu0 0
        %289 = vmatpush1.bf16.msra.mxu0 0
        %290 = vmatprep.subr.bf16.mxu0 0
        %291 = vmatpush1.bf16.msra.mxu0 0
        %292 = vmatprep.subr.bf16.mxu0 0
        %293 = vmatpush1.bf16.msra.mxu0 0
        %294 = vmatprep.subr.bf16.mxu0 0
        %295 = vmatpush1.bf16.msra.mxu0 0
        %296 = vmatprep.mubr.bf16.mxu0 0
        %297 = vmatmul.mubr.bf16.gmra.mrb[0].mxu0 %v253
        %v298 = vpop.f32.mrb[0].mxu0
        %v299 = vadd.f32 %v243, %v298
        %v300 = vpop.f32.mrb[0].mxu0
        %v301 = vpop.f32.mrb[0].mxu0
        %v302 = vadd.f32 %v243, %v301
        %v303 = vpop.f32.mrb[0].mxu0
        %304 = vmatprep.mubr.bf16.mxu0 0
        %305 = vmatmul.mubr.bf16.gmra.mrb[0].mxu0 %v256
        %v306 = vpop.f32.mrb[0].mxu0
        %v307 = vadd.f32 %v243, %v306
        %v308 = vpop.f32.mrb[0].mxu0
        %v309 = vpop.f32.mrb[0].mxu0
        %v310 = vadd.f32 %v243, %v309
        %v311 = vpop.f32.mrb[0].mxu0
        %312 = vmatprep.mubr.bf16.mxu0 0
        %313 = vmatmul.mubr.bf16.gmra.mrb[0].mxu0 %v259
        %v314 = vpop.f32.mrb[0].mxu0
        %v315 = vadd.f32 %v243, %v314
        %v316 = vpop.f32.mrb[0].mxu0
        %v317 = vpop.f32.mrb[0].mxu0
        %v318 = vadd.f32 %v243, %v317
        %v319 = vpop.f32.mrb[0].mxu0
        %320 = vmatprep.mubr.bf16.mxu0 0
        %321 = vmatmul.mubr.bf16.gmra.mrb[0].mxu0 %v262
        %v322 = vpop.f32.mrb[0].mxu0
        %v323 = vadd.f32 %v243, %v322
        %v324 = vpop.f32.mrb[0].mxu0
        %v325 = vpop.f32.mrb[0].mxu0
        %v326 = vadd.f32 %v243, %v325
        %v327 = vpop.f32.mrb[0].mxu0
        %328 = vdwg.mxu0
        %v329 = vmul.f32 %v299, 0.70710677
        %v330 = vmul.f32 %v302, 0.70710677
        %v331 = vmul.f32 %v307, 0.70710677
        %v332 = vmul.f32 %v310, 0.70710677
        %v333 = vmul.f32 %v315, 0.70710677
        %v334 = vmul.f32 %v318, 0.70710677
        %v335 = vmul.f32 %v323, 0.70710677
        %v336 = vmul.f32 %v326, 0.70710677
        %v337 = vpack.c.bf16 %v302, %v299
        %v338 = vpack.c.bf16 %v310, %v307
        %v339 = vpack.c.bf16 %v318, %v315
        %v340 = vpack.c.bf16 %v326, %v323
        %349 = vrot.lane.b32.xlu0 %v299, 112
        %v350 = vpop.permute.xlu0 %349
        %351 = vrot.lane.b32.xlu0 %v302, 112
        %v352 = vpop.permute.xlu0 %351
        %353 = vrot.lane.b32.xlu0 %v307, 112
        %v354 = vpop.permute.xlu0 %353
        %355 = vrot.lane.b32.xlu0 %v310, 112
        %v356 = vpop.permute.xlu0 %355
        %357 = vrot.lane.b32.xlu0 %v315, 112
        %v358 = vpop.permute.xlu0 %357
        %359 = vrot.lane.b32.xlu0 %v318, 112
        %v360 = vpop.permute.xlu0 %359
        %361 = vrot.lane.b32.xlu0 %v323, 112
        %v362 = vpop.permute.xlu0 %361
        %363 = vrot.lane.b32.xlu0 %v326, 112
        %v364 = vpop.permute.xlu0 %363
        %vm365 = vcmask 15360
        %v367 = vsel %vm365, %v329, 0
        %v370 = vsel %vm365, %v330, 0
        %v373 = vsel %vm365, %v331, 0
        %v376 = vsel %vm365, %v332, 0
        %v379 = vsel %vm365, %v333, 0
        %v382 = vsel %vm365, %v334, 0
        %v385 = vsel %vm365, %v335, 0
        %v388 = vsel %vm365, %v336, 0
        %v390 = vsel %vm365, %v350, 0
        %v392 = vsel %vm365, %v352, 0
        %v394 = vsel %vm365, %v354, 0
        %v396 = vsel %vm365, %v356, 0
        %v398 = vsel %vm365, %v358, 0
        %v400 = vsel %vm365, %v360, 0
        %v402 = vsel %vm365, %v362, 0
        %v404 = vsel %vm365, %v364, 0
        %406 = vmatprep.subr.mxu0 0.0
        %407 = vmatpush1.xpose.msra.mxu0 %v390
        %408 = vmatprep.subr.mxu0 0.0
        %409 = vmatpush1.xpose.msra.mxu0 %v392
        %410 = vmatprep.subr.mxu0 0.0
        %411 = vmatpush1.xpose.msra.mxu0 %v394
        %412 = vmatprep.subr.mxu0 0.0
        %413 = vmatpush1.xpose.msra.mxu0 %v396
        %414 = vmatprep.subr.mxu0 0.0
        %415 = vmatpush1.xpose.msra.mxu0 %v398
        %416 = vmatprep.subr.mxu0 0.0
        %417 = vmatpush1.xpose.msra.mxu0 %v400
        %418 = vmatprep.subr.mxu0 0.0
        %419 = vmatpush1.xpose.msra.mxu0 %v402
        %420 = vmatprep.subr.mxu0 0.0
        %421 = vmatpush1.xpose.msra.mxu0 %v404
        %422 = vmatprep.subr.mxu0 0.0
        %423 = vmatpush1.xpose.msra.mxu0 0.0
        %424 = vmatprep.subr.mxu0 0.0
        %425 = vmatpush1.xpose.msra.mxu0 0.0
        %426 = vmatprep.subr.mxu0 0.0
        %427 = vmatpush1.xpose.msra.mxu0 0.0
        %428 = vmatprep.subr.mxu0 0.0
        %429 = vmatpush1.xpose.msra.mxu0 0.0
        %430 = vmatprep.subr.mxu0 0.0
        %431 = vmatpush1.xpose.msra.mxu0 0.0
        %432 = vmatprep.subr.mxu0 0.0
        %433 = vmatpush1.xpose.msra.mxu0 0.0
        %434 = vmatprep.subr.mxu0 0.0
        %435 = vmatpush1.xpose.msra.mxu0 0.0
        %436 = vmatprep.subr.mxu0 0.0
        %437 = vmatpush1.xpose.msra.mxu0 0.0
        %438 = vmatprep.subr.mxu0 0.0
        %439 = vmatpush1.xpose.msra.mxu0 0.0
        %440 = vmatprep.subr.mxu0 0.0
        %441 = vmatpush1.xpose.msra.mxu0 0.0
        %442 = vmatprep.subr.mxu0 0.0
        %443 = vmatpush1.xpose.msra.mxu0 0.0
        %444 = vmatprep.subr.mxu0 0.0
        %445 = vmatpush1.xpose.msra.mxu0 0.0
        %446 = vmatprep.subr.mxu0 0.0
        %447 = vmatpush1.xpose.msra.mxu0 0.0
        %448 = vmatprep.subr.mxu0 0.0
        %449 = vmatpush1.xpose.msra.mxu0 0.0
        %450 = vmatprep.subr.mxu0 0.0
        %451 = vmatpush1.xpose.msra.mxu0 0.0
        %452 = vmatprep.subr.mxu0 0.0
        %453 = vmatpush1.xpose.msra.mxu0 0.0
        %454 = vmatprep.subr.mxu0 0.0
        %455 = vmatpush1.xpose.msra.mxu0 0.0
        %456 = vmatprep.subr.mxu0 0.0
        %457 = vmatpush1.xpose.msra.mxu0 0.0
        %458 = vmatprep.subr.mxu0 0.0
        %459 = vmatpush1.xpose.msra.mxu0 0.0
        %460 = vmatprep.subr.mxu0 0.0
        %461 = vmatpush1.xpose.msra.mxu0 0.0
        %462 = vmatprep.subr.mxu0 0.0
        %463 = vmatpush1.xpose.msra.mxu0 0.0
        %464 = vmatprep.subr.mxu0 0.0
        %465 = vmatpush1.xpose.msra.mxu0 0.0
        %466 = vmatprep.subr.mxu0 0.0
        %467 = vmatpush1.xpose.msra.mxu0 0.0
        %468 = vmatprep.subr.mxu0 0.0
        %469 = vmatpush1.xpose.msra.mxu0 0.0
        %470 = vmatprep.mubr.f32.mxu0 0.0
        %471 = vmatmul.mubr.f32.gmra.mrb[0].mxu0 %v367
        %v472 = vpop.f32.mrb[0].mxu0
        %v473 = vadd.f32 0.0, %v472
        %v474 = vpop.f32.mrb[0].mxu0
        %475 = vmatprep.mubr.f32.mxu0 0.0
        %476 = vmatmul.mubr.f32.gmra.mrb[0].mxu0 %v370
        %v477 = vpop.f32.mrb[0].mxu0
        %v478 = vadd.f32 0.0, %v477
        %v479 = vpop.f32.mrb[0].mxu0
        %480 = vmatprep.mubr.f32.mxu0 0.0
        %481 = vmatmul.mubr.f32.gmra.mrb[0].mxu0 %v373
        %v482 = vpop.f32.mrb[0].mxu0
        %v483 = vadd.f32 0.0, %v482
        %v484 = vpop.f32.mrb[0].mxu0
        %485 = vmatprep.mubr.f32.mxu0 0.0
        %486 = vmatmul.mubr.f32.gmra.mrb[0].mxu0 %v376
        %v487 = vpop.f32.mrb[0].mxu0
        %v488 = vadd.f32 0.0, %v487
        %v489 = vpop.f32.mrb[0].mxu0
        %490 = vmatprep.mubr.f32.mxu0 0.0
        %491 = vmatmul.mubr.f32.gmra.mrb[0].mxu0 %v379
        %v492 = vpop.f32.mrb[0].mxu0
        %v493 = vadd.f32 0.0, %v492
        %v494 = vpop.f32.mrb[0].mxu0
        %495 = vmatprep.mubr.f32.mxu0 0.0
        %496 = vmatmul.mubr.f32.gmra.mrb[0].mxu0 %v382
        %v497 = vpop.f32.mrb[0].mxu0
        %v498 = vadd.f32 0.0, %v497
        %v499 = vpop.f32.mrb[0].mxu0
        %500 = vmatprep.mubr.f32.mxu0 0.0
        %501 = vmatmul.mubr.f32.gmra.mrb[0].mxu0 %v385
        %v502 = vpop.f32.mrb[0].mxu0
        %v503 = vadd.f32 0.0, %v502
        %v504 = vpop.f32.mrb[0].mxu0
        %505 = vmatprep.mubr.f32.mxu0 0.0
        %506 = vmatmul.mubr.f32.gmra.mrb[0].mxu0 %v388
        %v507 = vpop.f32.mrb[0].mxu0
        %v508 = vadd.f32 0.0, %v507
        %v509 = vpop.f32.mrb[0].mxu0
        %510 = vdwg.mxu0
        %vm511 = vcmask 523264
        %v512 = vsel %vm511, %v473, -inf
        %513 = vmax.xlane.f32.xlu0 %v512
        %v514 = vpop.xlane.xlu0 %513
        %v515 = vsel %vm511, %v478, -inf
        %516 = vmax.xlane.f32.xlu0 %v515
        %v517 = vpop.xlane.xlu0 %516
        %v518 = vsel %vm511, %v483, -inf
        %519 = vmax.xlane.f32.xlu0 %v518
        %v520 = vpop.xlane.xlu0 %519
        %v521 = vsel %vm511, %v488, -inf
        %522 = vmax.xlane.f32.xlu0 %v521
        %v523 = vpop.xlane.xlu0 %522
        %v524 = vsel %vm511, %v493, -inf
        %525 = vmax.xlane.f32.xlu0 %v524
        %v526 = vpop.xlane.xlu0 %525
        %v527 = vsel %vm511, %v498, -inf
        %528 = vmax.xlane.f32.xlu0 %v527
        %v529 = vpop.xlane.xlu0 %528
        %v530 = vsel %vm511, %v503, -inf
        %531 = vmax.xlane.f32.xlu0 %v530
        %v532 = vpop.xlane.xlu0 %531
        %v533 = vsel %vm511, %v508, -inf
        %534 = vmax.xlane.f32.xlu0 %v533
        %v535 = vpop.xlane.xlu0 %534
        %v536 = vsub.f32 %v473, %v514
        %v537 = vsub.f32 %v478, %v517
        %v538 = vsub.f32 %v483, %v520
        %v539 = vsub.f32 %v488, %v523
        %v540 = vsub.f32 %v493, %v526
        %v541 = vsub.f32 %v498, %v529
        %v542 = vsub.f32 %v503, %v532
        %v543 = vsub.f32 %v508, %v535
        %v544 = vmul.f32 %v536, 1.442695
        %v545 = vpow.pop %v544
        %v546 = vmul.f32 %v537, 1.442695
        %v547 = vpow.pop %v546
        %v548 = vmul.f32 %v538, 1.442695
        %v549 = vpow.pop %v548
        %v550 = vmul.f32 %v539, 1.442695
        %v551 = vpow.pop %v550
        %v552 = vmul.f32 %v540, 1.442695
        %v553 = vpow.pop %v552
        %v554 = vmul.f32 %v541, 1.442695
        %v555 = vpow.pop %v554
        %v556 = vmul.f32 %v542, 1.442695
        %v557 = vpow.pop %v556
        %v558 = vmul.f32 %v543, 1.442695
        %v559 = vpow.pop %v558
        %v560 = vsel %vm511, %v545, 0.0
        %561 = vadd.xlane.f32.xlu0 %v560
        %v562 = vpop.xlane.xlu0 %561
        %v563 = vsel %vm511, %v547, 0.0
        %564 = vadd.xlane.f32.xlu0 %v563
        %v565 = vpop.xlane.xlu0 %564
        %v566 = vsel %vm511, %v549, 0.0
        %567 = vadd.xlane.f32.xlu0 %v566
        %v568 = vpop.xlane.xlu0 %567
        %v569 = vsel %vm511, %v551, 0.0
        %570 = vadd.xlane.f32.xlu0 %v569
        %v571 = vpop.xlane.xlu0 %570
        %v572 = vsel %vm511, %v553, 0.0
        %573 = vadd.xlane.f32.xlu0 %v572
        %v574 = vpop.xlane.xlu0 %573
        %v575 = vsel %vm511, %v555, 0.0
        %576 = vadd.xlane.f32.xlu0 %v575
        %v577 = vpop.xlane.xlu0 %576
        %v578 = vsel %vm511, %v557, 0.0
        %579 = vadd.xlane.f32.xlu0 %v578
        %v580 = vpop.xlane.xlu0 %579
        %v581 = vsel %vm511, %v559, 0.0
        %582 = vadd.xlane.f32.xlu0 %v581
        %v583 = vpop.xlane.xlu0 %582
        %v584 = vrcp.pop %v562
        %v585 = vrcp.pop %v565
        %v586 = vrcp.pop %v568
        %v587 = vrcp.pop %v571
        %v588 = vrcp.pop %v574
        %v589 = vrcp.pop %v577
        %v590 = vrcp.pop %v580
        %v591 = vrcp.pop %v583
        %v592 = vmul.f32 %v545, %v584
        %v593 = vmul.f32 %v547, %v585
        %v594 = vmul.f32 %v549, %v586
        %v595 = vmul.f32 %v551, %v587
        %v596 = vmul.f32 %v553, %v588
        %v597 = vmul.f32 %v555, %v589
        %v598 = vmul.f32 %v557, %v590
        %v599 = vmul.f32 %v559, %v591
        %v600 = vpack.c.bf16 %v593, %v592
        %v601 = vpack.c.bf16 %v595, %v594
        %v602 = vpack.c.bf16 %v597, %v596
        %v603 = vpack.c.bf16 %v599, %v598
        %608 = vrot.lane.b32.xlu0 %v337, 96
        %v609 = vpop.permute.xlu0 %608
        %610 = vrot.lane.b32.xlu0 %v338, 96
        %v611 = vpop.permute.xlu0 %610
        %612 = vrot.lane.b32.xlu0 %v339, 96
        %v613 = vpop.permute.xlu0 %612
        %614 = vrot.lane.b32.xlu0 %v340, 96
        %v615 = vpop.permute.xlu0 %614
        %v621 = vsel %vm511, %v600, 0
        %v624 = vsel %vm511, %v601, 0
        %v627 = vsel %vm511, %v602, 0
        %v630 = vsel %vm511, %v603, 0
        %632 = vmatprep.subr.bf16.mxu0 0
        %633 = vmatpush1.bf16.msra.mxu0 %v609
        %634 = vmatprep.subr.bf16.mxu0 0
        %635 = vmatpush1.bf16.msra.mxu0 %v611
        %636 = vmatprep.subr.bf16.mxu0 0
        %637 = vmatpush1.bf16.msra.mxu0 %v613
        %638 = vmatprep.subr.bf16.mxu0 0
        %639 = vmatpush1.bf16.msra.mxu0 %v615
        %640 = vmatprep.subr.bf16.mxu0 0
        %641 = vmatpush1.bf16.msra.mxu0 0
        %642 = vmatprep.subr.bf16.mxu0 0
        %643 = vmatpush1.bf16.msra.mxu0 0
        %644 = vmatprep.subr.bf16.mxu0 0
        %645 = vmatpush1.bf16.msra.mxu0 0
        %646 = vmatprep.subr.bf16.mxu0 0
        %647 = vmatpush1.bf16.msra.mxu0 0
        %648 = vmatprep.subr.bf16.mxu0 0
        %649 = vmatpush1.bf16.msra.mxu0 0
        %650 = vmatprep.subr.bf16.mxu0 0
        %651 = vmatpush1.bf16.msra.mxu0 0
        %652 = vmatprep.subr.bf16.mxu0 0
        %653 = vmatpush1.bf16.msra.mxu0 0
        %654 = vmatprep.subr.bf16.mxu0 0
        %655 = vmatpush1.bf16.msra.mxu0 0
        %656 = vmatprep.subr.bf16.mxu0 0
        %657 = vmatpush1.bf16.msra.mxu0 0
        %658 = vmatprep.subr.bf16.mxu0 0
        %659 = vmatpush1.bf16.msra.mxu0 0
        %660 = vmatprep.subr.bf16.mxu0 0
        %661 = vmatpush1.bf16.msra.mxu0 0
        %662 = vmatprep.subr.bf16.mxu0 0
        %663 = vmatpush1.bf16.msra.mxu0 0
        %664 = vmatprep.mubr.bf16.mxu0 0
        %665 = vmatmul.mubr.bf16.gmra.mrb[0].mxu0 %v621
        %v666 = vpop.f32.mrb[0].mxu0
        %v667 = vadd.f32 0.0, %v666
        %v668 = vpop.f32.mrb[0].mxu0
        %v669 = vpop.f32.mrb[0].mxu0
        %v670 = vadd.f32 0.0, %v669
        %v671 = vpop.f32.mrb[0].mxu0
        %672 = vmatprep.mubr.bf16.mxu0 0
        %673 = vmatmul.mubr.bf16.gmra.mrb[0].mxu0 %v624
        %v674 = vpop.f32.mrb[0].mxu0
        %v675 = vadd.f32 0.0, %v674
        %v676 = vpop.f32.mrb[0].mxu0
        %v677 = vpop.f32.mrb[0].mxu0
        %v678 = vadd.f32 0.0, %v677
        %v679 = vpop.f32.mrb[0].mxu0
        %680 = vmatprep.mubr.bf16.mxu0 0
        %681 = vmatmul.mubr.bf16.gmra.mrb[0].mxu0 %v627
        %v682 = vpop.f32.mrb[0].mxu0
        %v683 = vadd.f32 0.0, %v682
        %v684 = vpop.f32.mrb[0].mxu0
        %v685 = vpop.f32.mrb[0].mxu0
        %v686 = vadd.f32 0.0, %v685
        %v687 = vpop.f32.mrb[0].mxu0
        %688 = vmatprep.mubr.bf16.mxu0 0
        %689 = vmatmul.mubr.bf16.gmra.mrb[0].mxu0 %v630
        %v690 = vpop.f32.mrb[0].mxu0
        %v691 = vadd.f32 0.0, %v690
        %v692 = vpop.f32.mrb[0].mxu0
        %v693 = vpop.f32.mrb[0].mxu0
        %v694 = vadd.f32 0.0, %v693
        %v695 = vpop.f32.mrb[0].mxu0
        %696 = vdwg.mxu0
        %697 = vst.msk [vmem:[#allocation2] sm:$0xff] %vm365, %v667
        %698 = vst.msk [vmem:[#allocation2 + $0x8] sm:$0xff] %vm365, %v670
        %699 = vst.msk [vmem:[#allocation2 + $0x10] sm:$0xff] %vm365, %v675
        %700 = vst.msk [vmem:[#allocation2 + $0x18] sm:$0xff] %vm365, %v678
        %701 = vst.msk [vmem:[#allocation2 + $0x20] sm:$0xff] %vm365, %v683
        %702 = vst.msk [vmem:[#allocation2 + $0x28] sm:$0xff] %vm365, %v686
        %703 = vst.msk [vmem:[#allocation2 + $0x30] sm:$0xff] %vm365, %v691
        %704 = vst.msk [vmem:[#allocation2 + $0x38] sm:$0xff] %vm365, %v694
        %705 = vrot.lane.b32.xlu0 %v329, 126
        %v706 = vpop.permute.xlu0 %705
        %707 = vrot.lane.b32.xlu0 %v330, 126
        %v708 = vpop.permute.xlu0 %707
        %709 = vrot.lane.b32.xlu0 %v331, 126
        %v710 = vpop.permute.xlu0 %709
        %711 = vrot.lane.b32.xlu0 %v332, 126
        %v712 = vpop.permute.xlu0 %711
        %713 = vrot.lane.b32.xlu0 %v333, 126
        %v714 = vpop.permute.xlu0 %713
        %715 = vrot.lane.b32.xlu0 %v334, 126
        %v716 = vpop.permute.xlu0 %715
        %717 = vrot.lane.b32.xlu0 %v335, 126
        %v718 = vpop.permute.xlu0 %717
        %719 = vrot.lane.b32.xlu0 %v336, 126
        %v720 = vpop.permute.xlu0 %719
        %721 = vrot.lane.b32.xlu0 %v299, 110
        %v722 = vpop.permute.xlu0 %721
        %723 = vrot.lane.b32.xlu0 %v302, 110
        %v724 = vpop.permute.xlu0 %723
        %725 = vrot.lane.b32.xlu0 %v307, 110
        %v726 = vpop.permute.xlu0 %725
        %727 = vrot.lane.b32.xlu0 %v310, 110
        %v728 = vpop.permute.xlu0 %727
        %729 = vrot.lane.b32.xlu0 %v315, 110
        %v730 = vpop.permute.xlu0 %729
        %731 = vrot.lane.b32.xlu0 %v318, 110
        %v732 = vpop.permute.xlu0 %731
        %733 = vrot.lane.b32.xlu0 %v323, 110
        %v734 = vpop.permute.xlu0 %733
        %735 = vrot.lane.b32.xlu0 %v326, 110
        %v736 = vpop.permute.xlu0 %735
        %v737 = vsel %vm365, %v706, 0
        %v739 = vsel %vm365, %v708, 0
        %v741 = vsel %vm365, %v710, 0
        %v743 = vsel %vm365, %v712, 0
        %v745 = vsel %vm365, %v714, 0
        %v747 = vsel %vm365, %v716, 0
        %v749 = vsel %vm365, %v718, 0
        %v751 = vsel %vm365, %v720, 0
        %v753 = vsel %vm365, %v722, 0
        %v755 = vsel %vm365, %v724, 0
        %v757 = vsel %vm365, %v726, 0
        %v759 = vsel %vm365, %v728, 0
        %v761 = vsel %vm365, %v730, 0
        %v763 = vsel %vm365, %v732, 0
        %v765 = vsel %vm365, %v734, 0
        %v767 = vsel %vm365, %v736, 0
        %769 = vmatprep.subr.mxu0 0.0
        %770 = vmatpush1.xpose.msra.mxu0 %v753
        %771 = vmatprep.subr.mxu0 0.0
        %772 = vmatpush1.xpose.msra.mxu0 %v755
        %773 = vmatprep.subr.mxu0 0.0
        %774 = vmatpush1.xpose.msra.mxu0 %v757
        %775 = vmatprep.subr.mxu0 0.0
        %776 = vmatpush1.xpose.msra.mxu0 %v759
        %777 = vmatprep.subr.mxu0 0.0
        %778 = vmatpush1.xpose.msra.mxu0 %v761
        %779 = vmatprep.subr.mxu0 0.0
        %780 = vmatpush1.xpose.msra.mxu0 %v763
        %781 = vmatprep.subr.mxu0 0.0
        %782 = vmatpush1.xpose.msra.mxu0 %v765
        %783 = vmatprep.subr.mxu0 0.0
        %784 = vmatpush1.xpose.msra.mxu0 %v767
        %785 = vmatprep.subr.mxu0 0.0
        %786 = vmatpush1.xpose.msra.mxu0 0.0
        %787 = vmatprep.subr.mxu0 0.0
        %788 = vmatpush1.xpose.msra.mxu0 0.0
        %789 = vmatprep.subr.mxu0 0.0
        %790 = vmatpush1.xpose.msra.mxu0 0.0
        %791 = vmatprep.subr.mxu0 0.0
        %792 = vmatpush1.xpose.msra.mxu0 0.0
        %793 = vmatprep.subr.mxu0 0.0
        %794 = vmatpush1.xpose.msra.mxu0 0.0
        %795 = vmatprep.subr.mxu0 0.0
        %796 = vmatpush1.xpose.msra.mxu0 0.0
        %797 = vmatprep.subr.mxu0 0.0
        %798 = vmatpush1.xpose.msra.mxu0 0.0
        %799 = vmatprep.subr.mxu0 0.0
        %800 = vmatpush1.xpose.msra.mxu0 0.0
        %801 = vmatprep.subr.mxu0 0.0
        %802 = vmatpush1.xpose.msra.mxu0 0.0
        %803 = vmatprep.subr.mxu0 0.0
        %804 = vmatpush1.xpose.msra.mxu0 0.0
        %805 = vmatprep.subr.mxu0 0.0
        %806 = vmatpush1.xpose.msra.mxu0 0.0
        %807 = vmatprep.subr.mxu0 0.0
        %808 = vmatpush1.xpose.msra.mxu0 0.0
        %809 = vmatprep.subr.mxu0 0.0
        %810 = vmatpush1.xpose.msra.mxu0 0.0
        %811 = vmatprep.subr.mxu0 0.0
        %812 = vmatpush1.xpose.msra.mxu0 0.0
        %813 = vmatprep.subr.mxu0 0.0
        %814 = vmatpush1.xpose.msra.mxu0 0.0
        %815 = vmatprep.subr.mxu0 0.0
        %816 = vmatpush1.xpose.msra.mxu0 0.0
        %817 = vmatprep.subr.mxu0 0.0
        %818 = vmatpush1.xpose.msra.mxu0 0.0
        %819 = vmatprep.subr.mxu0 0.0
        %820 = vmatpush1.xpose.msra.mxu0 0.0
        %821 = vmatprep.subr.mxu0 0.0
        %822 = vmatpush1.xpose.msra.mxu0 0.0
        %823 = vmatprep.subr.mxu0 0.0
        %824 = vmatpush1.xpose.msra.mxu0 0.0
        %825 = vmatprep.subr.mxu0 0.0
        %826 = vmatpush1.xpose.msra.mxu0 0.0
        %827 = vmatprep.subr.mxu0 0.0
        %828 = vmatpush1.xpose.msra.mxu0 0.0
        %829 = vmatprep.subr.mxu0 0.0
        %830 = vmatpush1.xpose.msra.mxu0 0.0
        %831 = vmatprep.subr.mxu0 0.0
        %832 = vmatpush1.xpose.msra.mxu0 0.0
        %833 = vmatprep.mubr.f32.mxu0 0.0
        %834 = vmatmul.mubr.f32.gmra.mrb[0].mxu0 %v737
        %v835 = vpop.f32.mrb[0].mxu0
        %v836 = vadd.f32 0.0, %v835
        %v837 = vpop.f32.mrb[0].mxu0
        %838 = vmatprep.mubr.f32.mxu0 0.0
        %839 = vmatmul.mubr.f32.gmra.mrb[0].mxu0 %v739
        %v840 = vpop.f32.mrb[0].mxu0
        %v841 = vadd.f32 0.0, %v840
        %v842 = vpop.f32.mrb[0].mxu0
        %843 = vmatprep.mubr.f32.mxu0 0.0
        %844 = vmatmul.mubr.f32.gmra.mrb[0].mxu0 %v741
        %v845 = vpop.f32.mrb[0].mxu0
        %v846 = vadd.f32 0.0, %v845
        %v847 = vpop.f32.mrb[0].mxu0
        %848 = vmatprep.mubr.f32.mxu0 0.0
        %849 = vmatmul.mubr.f32.gmra.mrb[0].mxu0 %v743
        %v850 = vpop.f32.mrb[0].mxu0
        %v851 = vadd.f32 0.0, %v850
        %v852 = vpop.f32.mrb[0].mxu0
        %853 = vmatprep.mubr.f32.mxu0 0.0
        %854 = vmatmul.mubr.f32.gmra.mrb[0].mxu0 %v745
        %v855 = vpop.f32.mrb[0].mxu0
        %v856 = vadd.f32 0.0, %v855
        %v857 = vpop.f32.mrb[0].mxu0
        %858 = vmatprep.mubr.f32.mxu0 0.0
        %859 = vmatmul.mubr.f32.gmra.mrb[0].mxu0 %v747
        %v860 = vpop.f32.mrb[0].mxu0
        %v861 = vadd.f32 0.0, %v860
        %v862 = vpop.f32.mrb[0].mxu0
        %863 = vmatprep.mubr.f32.mxu0 0.0
        %864 = vmatmul.mubr.f32.gmra.mrb[0].mxu0 %v749
        %v865 = vpop.f32.mrb[0].mxu0
        %v866 = vadd.f32 0.0, %v865
        %v867 = vpop.f32.mrb[0].mxu0
        %868 = vmatprep.mubr.f32.mxu0 0.0
        %869 = vmatmul.mubr.f32.gmra.mrb[0].mxu0 %v751
        %v870 = vpop.f32.mrb[0].mxu0
        %v871 = vadd.f32 0.0, %v870
        %v872 = vpop.f32.mrb[0].mxu0
        %873 = vdwg.mxu0
        %v874 = vsel %vm511, %v836, -inf
        %875 = vmax.xlane.f32.xlu0 %v874
        %v876 = vpop.xlane.xlu0 %875
        %v877 = vsel %vm511, %v841, -inf
        %878 = vmax.xlane.f32.xlu0 %v877
        %v879 = vpop.xlane.xlu0 %878
        %v880 = vsel %vm511, %v846, -inf
        %881 = vmax.xlane.f32.xlu0 %v880
        %v882 = vpop.xlane.xlu0 %881
        %v883 = vsel %vm511, %v851, -inf
        %884 = vmax.xlane.f32.xlu0 %v883
        %v885 = vpop.xlane.xlu0 %884
        %v886 = vsel %vm511, %v856, -inf
        %887 = vmax.xlane.f32.xlu0 %v886
        %v888 = vpop.xlane.xlu0 %887
        %v889 = vsel %vm511, %v861, -inf
        %890 = vmax.xlane.f32.xlu0 %v889
        %v891 = vpop.xlane.xlu0 %890
        %v892 = vsel %vm511, %v866, -inf
        %893 = vmax.xlane.f32.xlu0 %v892
        %v894 = vpop.xlane.xlu0 %893
        %v895 = vsel %vm511, %v871, -inf
        %896 = vmax.xlane.f32.xlu0 %v895
        %v897 = vpop.xlane.xlu0 %896
        %v898 = vsub.f32 %v836, %v876
        %v899 = vsub.f32 %v841, %v879
        %v900 = vsub.f32 %v846, %v882
        %v901 = vsub.f32 %v851, %v885
        %v902 = vsub.f32 %v856, %v888
        %v903 = vsub.f32 %v861, %v891
        %v904 = vsub.f32 %v866, %v894
        %v905 = vsub.f32 %v871, %v897
        %v906 = vmul.f32 %v898, 1.442695
        %v907 = vpow.pop %v906
        %v908 = vmul.f32 %v899, 1.442695
        %v909 = vpow.pop %v908
        %v910 = vmul.f32 %v900, 1.442695
        %v911 = vpow.pop %v910
        %v912 = vmul.f32 %v901, 1.442695
        %v913 = vpow.pop %v912
        %v914 = vmul.f32 %v902, 1.442695
        %v915 = vpow.pop %v914
        %v916 = vmul.f32 %v903, 1.442695
        %v917 = vpow.pop %v916
        %v918 = vmul.f32 %v904, 1.442695
        %v919 = vpow.pop %v918
        %v920 = vmul.f32 %v905, 1.442695
        %v921 = vpow.pop %v920
        %v922 = vsel %vm511, %v907, 0.0
        %923 = vadd.xlane.f32.xlu0 %v922
        %v924 = vpop.xlane.xlu0 %923
        %v925 = vsel %vm511, %v909, 0.0
        %926 = vadd.xlane.f32.xlu0 %v925
        %v927 = vpop.xlane.xlu0 %926
        %v928 = vsel %vm511, %v911, 0.0
        %929 = vadd.xlane.f32.xlu0 %v928
        %v930 = vpop.xlane.xlu0 %929
        %v931 = vsel %vm511, %v913, 0.0
        %932 = vadd.xlane.f32.xlu0 %v931
        %v933 = vpop.xlane.xlu0 %932
        %v934 = vsel %vm511, %v915, 0.0
        %935 = vadd.xlane.f32.xlu0 %v934
        %v936 = vpop.xlane.xlu0 %935
        %v937 = vsel %vm511, %v917, 0.0
        %938 = vadd.xlane.f32.xlu0 %v937
        %v939 = vpop.xlane.xlu0 %938
        %v940 = vsel %vm511, %v919, 0.0
        %941 = vadd.xlane.f32.xlu0 %v940
        %v942 = vpop.xlane.xlu0 %941
        %v943 = vsel %vm511, %v921, 0.0
        %944 = vadd.xlane.f32.xlu0 %v943
        %v945 = vpop.xlane.xlu0 %944
        %v946 = vrcp.pop %v924
        %v947 = vrcp.pop %v927
        %v948 = vrcp.pop %v930
        %v949 = vrcp.pop %v933
        %v950 = vrcp.pop %v936
        %v951 = vrcp.pop %v939
        %v952 = vrcp.pop %v942
        %v953 = vrcp.pop %v945
        %v954 = vmul.f32 %v907, %v946
        %v955 = vmul.f32 %v909, %v947
        %v956 = vmul.f32 %v911, %v948
        %v957 = vmul.f32 %v913, %v949
        %v958 = vmul.f32 %v915, %v950
        %v959 = vmul.f32 %v917, %v951
        %v960 = vmul.f32 %v919, %v952
        %v961 = vmul.f32 %v921, %v953
        %v962 = vpack.c.bf16 %v955, %v954
        %v963 = vpack.c.bf16 %v957, %v956
        %v964 = vpack.c.bf16 %v959, %v958
        %v965 = vpack.c.bf16 %v961, %v960
        %966 = vrot.lane.b32.xlu0 %v337, 94
        %v967 = vpop.permute.xlu0 %966
        %968 = vrot.lane.b32.xlu0 %v338, 94
        %v969 = vpop.permute.xlu0 %968
        %970 = vrot.lane.b32.xlu0 %v339, 94
        %v971 = vpop.permute.xlu0 %970
        %972 = vrot.lane.b32.xlu0 %v340, 94
        %v973 = vpop.permute.xlu0 %972
        %v979 = vsel %vm511, %v962, 0
        %v982 = vsel %vm511, %v963, 0
        %v985 = vsel %vm511, %v964, 0
        %v988 = vsel %vm511, %v965, 0
        %990 = vmatprep.subr.bf16.mxu0 0
        %991 = vmatpush1.bf16.msra.mxu0 %v967
        %992 = vmatprep.subr.bf16.mxu0 0
        %993 = vmatpush1.bf16.msra.mxu0 %v969
        %994 = vmatprep.subr.bf16.mxu0 0
        %995 = vmatpush1.bf16.msra.mxu0 %v971
        %996 = vmatprep.subr.bf16.mxu0 0
        %997 = vmatpush1.bf16.msra.mxu0 %v973
        %998 = vmatprep.subr.bf16.mxu0 0
        %999 = vmatpush1.bf16.msra.mxu0 0
        %1000 = vmatprep.subr.bf16.mxu0 0
        %1001 = vmatpush1.bf16.msra.mxu0 0
        %1002 = vmatprep.subr.bf16.mxu0 0
        %1003 = vmatpush1.bf16.msra.mxu0 0
        %1004 = vmatprep.subr.bf16.mxu0 0
        %1005 = vmatpush1.bf16.msra.mxu0 0
        %1006 = vmatprep.subr.bf16.mxu0 0
        %1007 = vmatpush1.bf16.msra.mxu0 0
        %1008 = vmatprep.subr.bf16.mxu0 0
        %1009 = vmatpush1.bf16.msra.mxu0 0
        %1010 = vmatprep.subr.bf16.mxu0 0
        %1011 = vmatpush1.bf16.msra.mxu0 0
        %1012 = vmatprep.subr.bf16.mxu0 0
        %1013 = vmatpush1.bf16.msra.mxu0 0
        %1014 = vmatprep.subr.bf16.mxu0 0
        %1015 = vmatpush1.bf16.msra.mxu0 0
        %1016 = vmatprep.subr.bf16.mxu0 0
        %1017 = vmatpush1.bf16.msra.mxu0 0
        %1018 = vmatprep.subr.bf16.mxu0 0
        %1019 = vmatpush1.bf16.msra.mxu0 0
        %1020 = vmatprep.subr.bf16.mxu0 0
        %1021 = vmatpush1.bf16.msra.mxu0 0
        %1022 = vmatprep.mubr.bf16.mxu0 0
        %1023 = vmatmul.mubr.bf16.gmra.mrb[0].mxu0 %v979
        %v1024 = vpop.f32.mrb[0].mxu0
        %v1025 = vadd.f32 0.0, %v1024
        %v1026 = vpop.f32.mrb[0].mxu0
        %v1027 = vpop.f32.mrb[0].mxu0
        %v1028 = vadd.f32 0.0, %v1027
        %v1029 = vpop.f32.mrb[0].mxu0
        %1030 = vmatprep.mubr.bf16.mxu0 0
        %1031 = vmatmul.mubr.bf16.gmra.mrb[0].mxu0 %v982
        %v1032 = vpop.f32.mrb[0].mxu0
        %v1033 = vadd.f32 0.0, %v1032
        %v1034 = vpop.f32.mrb[0].mxu0
        %v1035 = vpop.f32.mrb[0].mxu0
        %v1036 = vadd.f32 0.0, %v1035
        %v1037 = vpop.f32.mrb[0].mxu0
        %1038 = vmatprep.mubr.bf16.mxu0 0
        %1039 = vmatmul.mubr.bf16.gmra.mrb[0].mxu0 %v985
        %v1040 = vpop.f32.mrb[0].mxu0
        %v1041 = vadd.f32 0.0, %v1040
        %v1042 = vpop.f32.mrb[0].mxu0
        %v1043 = vpop.f32.mrb[0].mxu0
        %v1044 = vadd.f32 0.0, %v1043
        %v1045 = vpop.f32.mrb[0].mxu0
        %1046 = vmatprep.mubr.bf16.mxu0 0
        %1047 = vmatmul.mubr.bf16.gmra.mrb[0].mxu0 %v988
        %v1048 = vpop.f32.mrb[0].mxu0
        %v1049 = vadd.f32 0.0, %v1048
        %v1050 = vpop.f32.mrb[0].mxu0
        %v1051 = vpop.f32.mrb[0].mxu0
        %v1052 = vadd.f32 0.0, %v1051
        %v1053 = vpop.f32.mrb[0].mxu0
        %1054 = vdwg.mxu0
        %1063 = vrot.lane.b32.xlu0 %v1025, 2
        %v1064 = vpop.permute.xlu0 %1063
        %1065 = vrot.lane.b32.xlu0 %v1028, 2
        %v1066 = vpop.permute.xlu0 %1065
        %1067 = vrot.lane.b32.xlu0 %v1033, 2
        %v1068 = vpop.permute.xlu0 %1067
        %1069 = vrot.lane.b32.xlu0 %v1036, 2
        %v1070 = vpop.permute.xlu0 %1069
        %1071 = vrot.lane.b32.xlu0 %v1041, 2
        %v1072 = vpop.permute.xlu0 %1071
        %1073 = vrot.lane.b32.xlu0 %v1044, 2
        %v1074 = vpop.permute.xlu0 %1073
        %1075 = vrot.lane.b32.xlu0 %v1049, 2
        %v1076 = vpop.permute.xlu0 %1075
        %1077 = vrot.lane.b32.xlu0 %v1052, 2
        %v1078 = vpop.permute.xlu0 %1077
        %vm1087 = vcmask 31760
        %1088 = vst.msk [vmem:[#allocation2] sm:$0xff] %vm1087, %v1064
        %1089 = vst.msk [vmem:[#allocation2 + $0x8] sm:$0xff] %vm1087, %v1066
        %1090 = vst.msk [vmem:[#allocation2 + $0x10] sm:$0xff] %vm1087, %v1068
        %1091 = vst.msk [vmem:[#allocation2 + $0x18] sm:$0xff] %vm1087, %v1070
        %1092 = vst.msk [vmem:[#allocation2 + $0x20] sm:$0xff] %vm1087, %v1072
        %1093 = vst.msk [vmem:[#allocation2 + $0x28] sm:$0xff] %vm1087, %v1074
        %1094 = vst.msk [vmem:[#allocation2 + $0x30] sm:$0xff] %vm1087, %v1076
        %1095 = vst.msk [vmem:[#allocation2 + $0x38] sm:$0xff] %vm1087, %v1078
        %1096 = vrot.lane.b32.xlu0 %v329, 124
        %v1097 = vpop.permute.xlu0 %1096
        %1098 = vrot.lane.b32.xlu0 %v330, 124
        %v1099 = vpop.permute.xlu0 %1098
        %1100 = vrot.lane.b32.xlu0 %v331, 124
        %v1101 = vpop.permute.xlu0 %1100
        %1102 = vrot.lane.b32.xlu0 %v332, 124
        %v1103 = vpop.permute.xlu0 %1102
        %1104 = vrot.lane.b32.xlu0 %v333, 124
        %v1105 = vpop.permute.xlu0 %1104
        %1106 = vrot.lane.b32.xlu0 %v334, 124
        %v1107 = vpop.permute.xlu0 %1106
        %1108 = vrot.lane.b32.xlu0 %v335, 124
        %v1109 = vpop.permute.xlu0 %1108
        %1110 = vrot.lane.b32.xlu0 %v336, 124
        %v1111 = vpop.permute.xlu0 %1110
        %1112 = vrot.lane.b32.xlu0 %v299, 108
        %v1113 = vpop.permute.xlu0 %1112
        %1114 = vrot.lane.b32.xlu0 %v302, 108
        %v1115 = vpop.permute.xlu0 %1114
        %1116 = vrot.lane.b32.xlu0 %v307, 108
        %v1117 = vpop.permute.xlu0 %1116
        %1118 = vrot.lane.b32.xlu0 %v310, 108
        %v1119 = vpop.permute.xlu0 %1118
        %1120 = vrot.lane.b32.xlu0 %v315, 108
        %v1121 = vpop.permute.xlu0 %1120
        %1122 = vrot.lane.b32.xlu0 %v318, 108
        %v1123 = vpop.permute.xlu0 %1122
        %1124 = vrot.lane.b32.xlu0 %v323, 108
        %v1125 = vpop.permute.xlu0 %1124
        %1126 = vrot.lane.b32.xlu0 %v326, 108
        %v1127 = vpop.permute.xlu0 %1126
        %v1128 = vsel %vm365, %v1097, 0
        %v1130 = vsel %vm365, %v1099, 0
        %v1132 = vsel %vm365, %v1101, 0
        %v1134 = vsel %vm365, %v1103, 0
        %v1136 = vsel %vm365, %v1105, 0
        %v1138 = vsel %vm365, %v1107, 0
        %v1140 = vsel %vm365, %v1109, 0
        %v1142 = vsel %vm365, %v1111, 0
        %v1144 = vsel %vm365, %v1113, 0
        %v1146 = vsel %vm365, %v1115, 0
        %v1148 = vsel %vm365, %v1117, 0
        %v1150 = vsel %vm365, %v1119, 0
        %v1152 = vsel %vm365, %v1121, 0
        %v1154 = vsel %vm365, %v1123, 0
        %v1156 = vsel %vm365, %v1125, 0
        %v1158 = vsel %vm365, %v1127, 0
        %1160 = vmatprep.subr.mxu0 0.0
        %1161 = vmatpush1.xpose.msra.mxu0 %v1144
        %1162 = vmatprep.subr.mxu0 0.0
        %1163 = vmatpush1.xpose.msra.mxu0 %v1146
        %1164 = vmatprep.subr.mxu0 0.0
        %1165 = vmatpush1.xpose.msra.mxu0 %v1148
        %1166 = vmatprep.subr.mxu0 0.0
        %1167 = vmatpush1.xpose.msra.mxu0 %v1150
        %1168 = vmatprep.subr.mxu0 0.0
        %1169 = vmatpush1.xpose.msra.mxu0 %v1152
        %1170 = vmatprep.subr.mxu0 0.0
        %1171 = vmatpush1.xpose.msra.mxu0 %v1154
        %1172 = vmatprep.subr.mxu0 0.0
        %1173 = vmatpush1.xpose.msra.mxu0 %v1156
        %1174 = vmatprep.subr.mxu0 0.0
        %1175 = vmatpush1.xpose.msra.mxu0 %v1158
        %1176 = vmatprep.subr.mxu0 0.0
        %1177 = vmatpush1.xpose.msra.mxu0 0.0
        %1178 = vmatprep.subr.mxu0 0.0
        %1179 = vmatpush1.xpose.msra.mxu0 0.0
        %1180 = vmatprep.subr.mxu0 0.0
        %1181 = vmatpush1.xpose.msra.mxu0 0.0
        %1182 = vmatprep.subr.mxu0 0.0
        %1183 = vmatpush1.xpose.msra.mxu0 0.0
        %1184 = vmatprep.subr.mxu0 0.0
        %1185 = vmatpush1.xpose.msra.mxu0 0.0
        %1186 = vmatprep.subr.mxu0 0.0
        %1187 = vmatpush1.xpose.msra.mxu0 0.0
        %1188 = vmatprep.subr.mxu0 0.0
        %1189 = vmatpush1.xpose.msra.mxu0 0.0
        %1190 = vmatprep.subr.mxu0 0.0
        %1191 = vmatpush1.xpose.msra.mxu0 0.0
        %1192 = vmatprep.subr.mxu0 0.0
        %1193 = vmatpush1.xpose.msra.mxu0 0.0
        %1194 = vmatprep.subr.mxu0 0.0
        %1195 = vmatpush1.xpose.msra.mxu0 0.0
        %1196 = vmatprep.subr.mxu0 0.0
        %1197 = vmatpush1.xpose.msra.mxu0 0.0
        %1198 = vmatprep.subr.mxu0 0.0
        %1199 = vmatpush1.xpose.msra.mxu0 0.0
        %1200 = vmatprep.subr.mxu0 0.0
        %1201 = vmatpush1.xpose.msra.mxu0 0.0
        %1202 = vmatprep.subr.mxu0 0.0
        %1203 = vmatpush1.xpose.msra.mxu0 0.0
        %1204 = vmatprep.subr.mxu0 0.0
        %1205 = vmatpush1.xpose.msra.mxu0 0.0
        %1206 = vmatprep.subr.mxu0 0.0
        %1207 = vmatpush1.xpose.msra.mxu0 0.0
        %1208 = vmatprep.subr.mxu0 0.0
        %1209 = vmatpush1.xpose.msra.mxu0 0.0
        %1210 = vmatprep.subr.mxu0 0.0
        %1211 = vmatpush1.xpose.msra.mxu0 0.0
        %1212 = vmatprep.subr.mxu0 0.0
        %1213 = vmatpush1.xpose.msra.mxu0 0.0
        %1214 = vmatprep.subr.mxu0 0.0
        %1215 = vmatpush1.xpose.msra.mxu0 0.0
        %1216 = vmatprep.subr.mxu0 0.0
        %1217 = vmatpush1.xpose.msra.mxu0 0.0
        %1218 = vmatprep.subr.mxu0 0.0
        %1219 = vmatpush1.xpose.msra.mxu0 0.0
        %1220 = vmatprep.subr.mxu0 0.0
        %1221 = vmatpush1.xpose.msra.mxu0 0.0
        %1222 = vmatprep.subr.mxu0 0.0
        %1223 = vmatpush1.xpose.msra.mxu0 0.0
        %1224 = vmatprep.mubr.f32.mxu0 0.0
        %1225 = vmatmul.mubr.f32.gmra.mrb[0].mxu0 %v1128
        %v1226 = vpop.f32.mrb[0].mxu0
        %v1227 = vadd.f32 0.0, %v1226
        %v1228 = vpop.f32.mrb[0].mxu0
        %1229 = vmatprep.mubr.f32.mxu0 0.0
        %1230 = vmatmul.mubr.f32.gmra.mrb[0].mxu0 %v1130
        %v1231 = vpop.f32.mrb[0].mxu0
        %v1232 = vadd.f32 0.0, %v1231
        %v1233 = vpop.f32.mrb[0].mxu0
        %1234 = vmatprep.mubr.f32.mxu0 0.0
        %1235 = vmatmul.mubr.f32.gmra.mrb[0].mxu0 %v1132
        %v1236 = vpop.f32.mrb[0].mxu0
        %v1237 = vadd.f32 0.0, %v1236
        %v1238 = vpop.f32.mrb[0].mxu0
        %1239 = vmatprep.mubr.f32.mxu0 0.0
        %1240 = vmatmul.mubr.f32.gmra.mrb[0].mxu0 %v1134
        %v1241 = vpop.f32.mrb[0].mxu0
        %v1242 = vadd.f32 0.0, %v1241
        %v1243 = vpop.f32.mrb[0].mxu0
        %1244 = vmatprep.mubr.f32.mxu0 0.0
        %1245 = vmatmul.mubr.f32.gmra.mrb[0].mxu0 %v1136
        %v1246 = vpop.f32.mrb[0].mxu0
        %v1247 = vadd.f32 0.0, %v1246
        %v1248 = vpop.f32.mrb[0].mxu0
        %1249 = vmatprep.mubr.f32.mxu0 0.0
        %1250 = vmatmul.mubr.f32.gmra.mrb[0].mxu0 %v1138
        %v1251 = vpop.f32.mrb[0].mxu0
        %v1252 = vadd.f32 0.0, %v1251
        %v1253 = vpop.f32.mrb[0].mxu0
        %1254 = vmatprep.mubr.f32.mxu0 0.0
        %1255 = vmatmul.mubr.f32.gmra.mrb[0].mxu0 %v1140
        %v1256 = vpop.f32.mrb[0].mxu0
        %v1257 = vadd.f32 0.0, %v1256
        %v1258 = vpop.f32.mrb[0].mxu0
        %1259 = vmatprep.mubr.f32.mxu0 0.0
        %1260 = vmatmul.mubr.f32.gmra.mrb[0].mxu0 %v1142
        %v1261 = vpop.f32.mrb[0].mxu0
        %v1262 = vadd.f32 0.0, %v1261
        %v1263 = vpop.f32.mrb[0].mxu0
        %1264 = vdwg.mxu0
        %v1265 = vsel %vm511, %v1227, -inf
        %1266 = vmax.xlane.f32.xlu0 %v1265
        %v1267 = vpop.xlane.xlu0 %1266
        %v1268 = vsel %vm511, %v1232, -inf
        %1269 = vmax.xlane.f32.xlu0 %v1268
        %v1270 = vpop.xlane.xlu0 %1269
        %v1271 = vsel %vm511, %v1237, -inf
        %1272 = vmax.xlane.f32.xlu0 %v1271
        %v1273 = vpop.xlane.xlu0 %1272
        %v1274 = vsel %vm511, %v1242, -inf
        %1275 = vmax.xlane.f32.xlu0 %v1274
        %v1276 = vpop.xlane.xlu0 %1275
        %v1277 = vsel %vm511, %v1247, -inf
        %1278 = vmax.xlane.f32.xlu0 %v1277
        %v1279 = vpop.xlane.xlu0 %1278
        %v1280 = vsel %vm511, %v1252, -inf
        %1281 = vmax.xlane.f32.xlu0 %v1280
        %v1282 = vpop.xlane.xlu0 %1281
        %v1283 = vsel %vm511, %v1257, -inf
        %1284 = vmax.xlane.f32.xlu0 %v1283
        %v1285 = vpop.xlane.xlu0 %1284
        %v1286 = vsel %vm511, %v1262, -inf
        %1287 = vmax.xlane.f32.xlu0 %v1286
        %v1288 = vpop.xlane.xlu0 %1287
        %v1289 = vsub.f32 %v1227, %v1267
        %v1290 = vsub.f32 %v1232, %v1270
        %v1291 = vsub.f32 %v1237, %v1273
        %v1292 = vsub.f32 %v1242, %v1276
        %v1293 = vsub.f32 %v1247, %v1279
        %v1294 = vsub.f32 %v1252, %v1282
        %v1295 = vsub.f32 %v1257, %v1285
        %v1296 = vsub.f32 %v1262, %v1288
        %v1297 = vmul.f32 %v1289, 1.442695
        %v1298 = vpow.pop %v1297
        %v1299 = vmul.f32 %v1290, 1.442695
        %v1300 = vpow.pop %v1299
        %v1301 = vmul.f32 %v1291, 1.442695
        %v1302 = vpow.pop %v1301
        %v1303 = vmul.f32 %v1292, 1.442695
        %v1304 = vpow.pop %v1303
        %v1305 = vmul.f32 %v1293, 1.442695
        %v1306 = vpow.pop %v1305
        %v1307 = vmul.f32 %v1294, 1.442695
        %v1308 = vpow.pop %v1307
        %v1309 = vmul.f32 %v1295, 1.442695
        %v1310 = vpow.pop %v1309
        %v1311 = vmul.f32 %v1296, 1.442695
        %v1312 = vpow.pop %v1311
        %v1313 = vsel %vm511, %v1298, 0.0
        %1314 = vadd.xlane.f32.xlu0 %v1313
        %v1315 = vpop.xlane.xlu0 %1314
        %v1316 = vsel %vm511, %v1300, 0.0
        %1317 = vadd.xlane.f32.xlu0 %v1316
        %v1318 = vpop.xlane.xlu0 %1317
        %v1319 = vsel %vm511, %v1302, 0.0
        %1320 = vadd.xlane.f32.xlu0 %v1319
        %v1321 = vpop.xlane.xlu0 %1320
        %v1322 = vsel %vm511, %v1304, 0.0
        %1323 = vadd.xlane.f32.xlu0 %v1322
        %v1324 = vpop.xlane.xlu0 %1323
        %v1325 = vsel %vm511, %v1306, 0.0
        %1326 = vadd.xlane.f32.xlu0 %v1325
        %v1327 = vpop.xlane.xlu0 %1326
        %v1328 = vsel %vm511, %v1308, 0.0
        %1329 = vadd.xlane.f32.xlu0 %v1328
        %v1330 = vpop.xlane.xlu0 %1329
        %v1331 = vsel %vm511, %v1310, 0.0
        %1332 = vadd.xlane.f32.xlu0 %v1331
        %v1333 = vpop.xlane.xlu0 %1332
        %v1334 = vsel %vm511, %v1312, 0.0
        %1335 = vadd.xlane.f32.xlu0 %v1334
        %v1336 = vpop.xlane.xlu0 %1335
        %v1337 = vrcp.pop %v1315
        %v1338 = vrcp.pop %v1318
        %v1339 = vrcp.pop %v1321
        %v1340 = vrcp.pop %v1324
        %v1341 = vrcp.pop %v1327
        %v1342 = vrcp.pop %v1330
        %v1343 = vrcp.pop %v1333
        %v1344 = vrcp.pop %v1336
        %v1345 = vmul.f32 %v1298, %v1337
        %v1346 = vmul.f32 %v1300, %v1338
        %v1347 = vmul.f32 %v1302, %v1339
        %v1348 = vmul.f32 %v1304, %v1340
        %v1349 = vmul.f32 %v1306, %v1341
        %v1350 = vmul.f32 %v1308, %v1342
        %v1351 = vmul.f32 %v1310, %v1343
        %v1352 = vmul.f32 %v1312, %v1344
        %v1353 = vpack.c.bf16 %v1346, %v1345
        %v1354 = vpack.c.bf16 %v1348, %v1347
        %v1355 = vpack.c.bf16 %v1350, %v1349
        %v1356 = vpack.c.bf16 %v1352, %v1351
        %1357 = vrot.lane.b32.xlu0 %v337, 92
        %v1358 = vpop.permute.xlu0 %1357
        %1359 = vrot.lane.b32.xlu0 %v338, 92
        %v1360 = vpop.permute.xlu0 %1359
        %1361 = vrot.lane.b32.xlu0 %v339, 92
        %v1362 = vpop.permute.xlu0 %1361
        %1363 = vrot.lane.b32.xlu0 %v340, 92
        %v1364 = vpop.permute.xlu0 %1363
        %v1370 = vsel %vm511, %v1353, 0
        %v1373 = vsel %vm511, %v1354, 0
        %v1376 = vsel %vm511, %v1355, 0
        %v1379 = vsel %vm511, %v1356, 0
        %1381 = vmatprep.subr.bf16.mxu0 0
        %1382 = vmatpush1.bf16.msra.mxu0 %v1358
        %1383 = vmatprep.subr.bf16.mxu0 0
        %1384 = vmatpush1.bf16.msra.mxu0 %v1360
        %1385 = vmatprep.subr.bf16.mxu0 0
        %1386 = vmatpush1.bf16.msra.mxu0 %v1362
        %1387 = vmatprep.subr.bf16.mxu0 0
        %1388 = vmatpush1.bf16.msra.mxu0 %v1364
        %1389 = vmatprep.subr.bf16.mxu0 0
        %1390 = vmatpush1.bf16.msra.mxu0 0
        %1391 = vmatprep.subr.bf16.mxu0 0
        %1392 = vmatpush1.bf16.msra.mxu0 0
        %1393 = vmatprep.subr.bf16.mxu0 0
        %1394 = vmatpush1.bf16.msra.mxu0 0
        %1395 = vmatprep.subr.bf16.mxu0 0
        %1396 = vmatpush1.bf16.msra.mxu0 0
        %1397 = vmatprep.subr.bf16.mxu0 0
        %1398 = vmatpush1.bf16.msra.mxu0 0
        %1399 = vmatprep.subr.bf16.mxu0 0
        %1400 = vmatpush1.bf16.msra.mxu0 0
        %1401 = vmatprep.subr.bf16.mxu0 0
        %1402 = vmatpush1.bf16.msra.mxu0 0
        %1403 = vmatprep.subr.bf16.mxu0 0
        %1404 = vmatpush1.bf16.msra.mxu0 0
        %1405 = vmatprep.subr.bf16.mxu0 0
        %1406 = vmatpush1.bf16.msra.mxu0 0
        %1407 = vmatprep.subr.bf16.mxu0 0
        %1408 = vmatpush1.bf16.msra.mxu0 0
        %1409 = vmatprep.subr.bf16.mxu0 0
        %1410 = vmatpush1.bf16.msra.mxu0 0
        %1411 = vmatprep.subr.bf16.mxu0 0
        %1412 = vmatpush1.bf16.msra.mxu0 0
        %1413 = vmatprep.mubr.bf16.mxu0 0
        %1414 = vmatmul.mubr.bf16.gmra.mrb[0].mxu0 %v1370
        %v1415 = vpop.f32.mrb[0].mxu0
        %v1416 = vadd.f32 0.0, %v1415
        %v1417 = vpop.f32.mrb[0].mxu0
        %v1418 = vpop.f32.mrb[0].mxu0
        %v1419 = vadd.f32 0.0, %v1418
        %v1420 = vpop.f32.mrb[0].mxu0
        %1421 = vmatprep.mubr.bf16.mxu0 0
        %1422 = vmatmul.mubr.bf16.gmra.mrb[0].mxu0 %v1373
        %v1423 = vpop.f32.mrb[0].mxu0
        %v1424 = vadd.f32 0.0, %v1423
        %v1425 = vpop.f32.mrb[0].mxu0
        %v1426 = vpop.f32.mrb[0].mxu0
        %v1427 = vadd.f32 0.0, %v1426
        %v1428 = vpop.f32.mrb[0].mxu0
        %1429 = vmatprep.mubr.bf16.mxu0 0
        %1430 = vmatmul.mubr.bf16.gmra.mrb[0].mxu0 %v1376
        %v1431 = vpop.f32.mrb[0].mxu0
        %v1432 = vadd.f32 0.0, %v1431
        %v1433 = vpop.f32.mrb[0].mxu0
        %v1434 = vpop.f32.mrb[0].mxu0
        %v1435 = vadd.f32 0.0, %v1434
        %v1436 = vpop.f32.mrb[0].mxu0
        %1437 = vmatprep.mubr.bf16.mxu0 0
        %1438 = vmatmul.mubr.bf16.gmra.mrb[0].mxu0 %v1379
        %v1439 = vpop.f32.mrb[0].mxu0
        %v1440 = vadd.f32 0.0, %v1439
        %v1441 = vpop.f32.mrb[0].mxu0
        %v1442 = vpop.f32.mrb[0].mxu0
        %v1443 = vadd.f32 0.0, %v1442
        %v1444 = vpop.f32.mrb[0].mxu0
        %1445 = vdwg.mxu0
        %1454 = vrot.lane.b32.xlu0 %v1416, 4
        %v1455 = vpop.permute.xlu0 %1454
        %1456 = vrot.lane.b32.xlu0 %v1419, 4
        %v1457 = vpop.permute.xlu0 %1456
        %1458 = vrot.lane.b32.xlu0 %v1424, 4
        %v1459 = vpop.permute.xlu0 %1458
        %1460 = vrot.lane.b32.xlu0 %v1427, 4
        %v1461 = vpop.permute.xlu0 %1460
        %1462 = vrot.lane.b32.xlu0 %v1432, 4
        %v1463 = vpop.permute.xlu0 %1462
        %1464 = vrot.lane.b32.xlu0 %v1435, 4
        %v1465 = vpop.permute.xlu0 %1464
        %1466 = vrot.lane.b32.xlu0 %v1440, 4
        %v1467 = vpop.permute.xlu0 %1466
        %1468 = vrot.lane.b32.xlu0 %v1443, 4
        %v1469 = vpop.permute.xlu0 %1468
        %vm1478 = vcmask 48160
        %1479 = vst.msk [vmem:[#allocation2] sm:$0xff] %vm1478, %v1455
        %1480 = vst.msk [vmem:[#allocation2 + $0x8] sm:$0xff] %vm1478, %v1457
        %1481 = vst.msk [vmem:[#allocation2 + $0x10] sm:$0xff] %vm1478, %v1459
        %1482 = vst.msk [vmem:[#allocation2 + $0x18] sm:$0xff] %vm1478, %v1461
        %1483 = vst.msk [vmem:[#allocation2 + $0x20] sm:$0xff] %vm1478, %v1463
        %1484 = vst.msk [vmem:[#allocation2 + $0x28] sm:$0xff] %vm1478, %v1465
        %1485 = vst.msk [vmem:[#allocation2 + $0x30] sm:$0xff] %vm1478, %v1467
        %1486 = vst.msk [vmem:[#allocation2 + $0x38] sm:$0xff] %vm1478, %v1469
        %1487 = vrot.lane.b32.xlu0 %v329, 122
        %v1488 = vpop.permute.xlu0 %1487
        %1489 = vrot.lane.b32.xlu0 %v330, 122
        %v1490 = vpop.permute.xlu0 %1489
        %1491 = vrot.lane.b32.xlu0 %v331, 122
        %v1492 = vpop.permute.xlu0 %1491
        %1493 = vrot.lane.b32.xlu0 %v332, 122
        %v1494 = vpop.permute.xlu0 %1493
        %1495 = vrot.lane.b32.xlu0 %v333, 122
        %v1496 = vpop.permute.xlu0 %1495
        %1497 = vrot.lane.b32.xlu0 %v334, 122
        %v1498 = vpop.permute.xlu0 %1497
        %1499 = vrot.lane.b32.xlu0 %v335, 122
        %v1500 = vpop.permute.xlu0 %1499
        %1501 = vrot.lane.b32.xlu0 %v336, 122
        %v1502 = vpop.permute.xlu0 %1501
        %1503 = vrot.lane.b32.xlu0 %v299, 106
        %v1504 = vpop.permute.xlu0 %1503
        %1505 = vrot.lane.b32.xlu0 %v302, 106
        %v1506 = vpop.permute.xlu0 %1505
        %1507 = vrot.lane.b32.xlu0 %v307, 106
        %v1508 = vpop.permute.xlu0 %1507
        %1509 = vrot.lane.b32.xlu0 %v310, 106
        %v1510 = vpop.permute.xlu0 %1509
        %1511 = vrot.lane.b32.xlu0 %v315, 106
        %v1512 = vpop.permute.xlu0 %1511
        %1513 = vrot.lane.b32.xlu0 %v318, 106
        %v1514 = vpop.permute.xlu0 %1513
        %1515 = vrot.lane.b32.xlu0 %v323, 106
        %v1516 = vpop.permute.xlu0 %1515
        %1517 = vrot.lane.b32.xlu0 %v326, 106
        %v1518 = vpop.permute.xlu0 %1517
        %v1519 = vsel %vm365, %v1488, 0
        %v1521 = vsel %vm365, %v1490, 0
        %v1523 = vsel %vm365, %v1492, 0
        %v1525 = vsel %vm365, %v1494, 0
        %v1527 = vsel %vm365, %v1496, 0
        %v1529 = vsel %vm365, %v1498, 0
        %v1531 = vsel %vm365, %v1500, 0
        %v1533 = vsel %vm365, %v1502, 0
        %v1535 = vsel %vm365, %v1504, 0
        %v1537 = vsel %vm365, %v1506, 0
        %v1539 = vsel %vm365, %v1508, 0
        %v1541 = vsel %vm365, %v1510, 0
        %v1543 = vsel %vm365, %v1512, 0
        %v1545 = vsel %vm365, %v1514, 0
        %v1547 = vsel %vm365, %v1516, 0
        %v1549 = vsel %vm365, %v1518, 0
        %1551 = vmatprep.subr.mxu0 0.0
        %1552 = vmatpush1.xpose.msra.mxu0 %v1535
        %1553 = vmatprep.subr.mxu0 0.0
        %1554 = vmatpush1.xpose.msra.mxu0 %v1537
        %1555 = vmatprep.subr.mxu0 0.0
        %1556 = vmatpush1.xpose.msra.mxu0 %v1539
        %1557 = vmatprep.subr.mxu0 0.0
        %1558 = vmatpush1.xpose.msra.mxu0 %v1541
        %1559 = vmatprep.subr.mxu0 0.0
        %1560 = vmatpush1.xpose.msra.mxu0 %v1543
        %1561 = vmatprep.subr.mxu0 0.0
        %1562 = vmatpush1.xpose.msra.mxu0 %v1545
        %1563 = vmatprep.subr.mxu0 0.0
        %1564 = vmatpush1.xpose.msra.mxu0 %v1547
        %1565 = vmatprep.subr.mxu0 0.0
        %1566 = vmatpush1.xpose.msra.mxu0 %v1549
        %1567 = vmatprep.subr.mxu0 0.0
        %1568 = vmatpush1.xpose.msra.mxu0 0.0
        %1569 = vmatprep.subr.mxu0 0.0
        %1570 = vmatpush1.xpose.msra.mxu0 0.0
        %1571 = vmatprep.subr.mxu0 0.0
        %1572 = vmatpush1.xpose.msra.mxu0 0.0
        %1573 = vmatprep.subr.mxu0 0.0
        %1574 = vmatpush1.xpose.msra.mxu0 0.0
        %1575 = vmatprep.subr.mxu0 0.0
        %1576 = vmatpush1.xpose.msra.mxu0 0.0
        %1577 = vmatprep.subr.mxu0 0.0
        %1578 = vmatpush1.xpose.msra.mxu0 0.0
        %1579 = vmatprep.subr.mxu0 0.0
        %1580 = vmatpush1.xpose.msra.mxu0 0.0
        %1581 = vmatprep.subr.mxu0 0.0
        %1582 = vmatpush1.xpose.msra.mxu0 0.0
        %1583 = vmatprep.subr.mxu0 0.0
        %1584 = vmatpush1.xpose.msra.mxu0 0.0
        %1585 = vmatprep.subr.mxu0 0.0
        %1586 = vmatpush1.xpose.msra.mxu0 0.0
        %1587 = vmatprep.subr.mxu0 0.0
        %1588 = vmatpush1.xpose.msra.mxu0 0.0
        %1589 = vmatprep.subr.mxu0 0.0
        %1590 = vmatpush1.xpose.msra.mxu0 0.0
        %1591 = vmatprep.subr.mxu0 0.0
        %1592 = vmatpush1.xpose.msra.mxu0 0.0
        %1593 = vmatprep.subr.mxu0 0.0
        %1594 = vmatpush1.xpose.msra.mxu0 0.0
        %1595 = vmatprep.subr.mxu0 0.0
        %1596 = vmatpush1.xpose.msra.mxu0 0.0
        %1597 = vmatprep.subr.mxu0 0.0
        %1598 = vmatpush1.xpose.msra.mxu0 0.0
        %1599 = vmatprep.subr.mxu0 0.0
        %1600 = vmatpush1.xpose.msra.mxu0 0.0
        %1601 = vmatprep.subr.mxu0 0.0
        %1602 = vmatpush1.xpose.msra.mxu0 0.0
        %1603 = vmatprep.subr.mxu0 0.0
        %1604 = vmatpush1.xpose.msra.mxu0 0.0
        %1605 = vmatprep.subr.mxu0 0.0
        %1606 = vmatpush1.xpose.msra.mxu0 0.0
        %1607 = vmatprep.subr.mxu0 0.0
        %1608 = vmatpush1.xpose.msra.mxu0 0.0
        %1609 = vmatprep.subr.mxu0 0.0
        %1610 = vmatpush1.xpose.msra.mxu0 0.0
        %1611 = vmatprep.subr.mxu0 0.0
        %1612 = vmatpush1.xpose.msra.mxu0 0.0
        %1613 = vmatprep.subr.mxu0 0.0
        %1614 = vmatpush1.xpose.msra.mxu0 0.0
        %1615 = vmatprep.mubr.f32.mxu0 0.0
        %1616 = vmatmul.mubr.f32.gmra.mrb[0].mxu0 %v1519
        %v1617 = vpop.f32.mrb[0].mxu0
        %v1618 = vadd.f32 0.0, %v1617
        %v1619 = vpop.f32.mrb[0].mxu0
        %1620 = vmatprep.mubr.f32.mxu0 0.0
        %1621 = vmatmul.mubr.f32.gmra.mrb[0].mxu0 %v1521
        %v1622 = vpop.f32.mrb[0].mxu0
        %v1623 = vadd.f32 0.0, %v1622
        %v1624 = vpop.f32.mrb[0].mxu0
        %1625 = vmatprep.mubr.f32.mxu0 0.0
        %1626 = vmatmul.mubr.f32.gmra.mrb[0].mxu0 %v1523
        %v1627 = vpop.f32.mrb[0].mxu0
        %v1628 = vadd.f32 0.0, %v1627
        %v1629 = vpop.f32.mrb[0].mxu0
        %1630 = vmatprep.mubr.f32.mxu0 0.0
        %1631 = vmatmul.mubr.f32.gmra.mrb[0].mxu0 %v1525
        %v1632 = vpop.f32.mrb[0].mxu0
        %v1633 = vadd.f32 0.0, %v1632
        %v1634 = vpop.f32.mrb[0].mxu0
        %1635 = vmatprep.mubr.f32.mxu0 0.0
        %1636 = vmatmul.mubr.f32.gmra.mrb[0].mxu0 %v1527
        %v1637 = vpop.f32.mrb[0].mxu0
        %v1638 = vadd.f32 0.0, %v1637
        %v1639 = vpop.f32.mrb[0].mxu0
        %1640 = vmatprep.mubr.f32.mxu0 0.0
        %1641 = vmatmul.mubr.f32.gmra.mrb[0].mxu0 %v1529
        %v1642 = vpop.f32.mrb[0].mxu0
        %v1643 = vadd.f32 0.0, %v1642
        %v1644 = vpop.f32.mrb[0].mxu0
        %1645 = vmatprep.mubr.f32.mxu0 0.0
        %1646 = vmatmul.mubr.f32.gmra.mrb[0].mxu0 %v1531
        %v1647 = vpop.f32.mrb[0].mxu0
        %v1648 = vadd.f32 0.0, %v1647
        %v1649 = vpop.f32.mrb[0].mxu0
        %1650 = vmatprep.mubr.f32.mxu0 0.0
        %1651 = vmatmul.mubr.f32.gmra.mrb[0].mxu0 %v1533
        %v1652 = vpop.f32.mrb[0].mxu0
        %v1653 = vadd.f32 0.0, %v1652
        %v1654 = vpop.f32.mrb[0].mxu0
        %1655 = vdwg.mxu0
        %v1656 = vsel %vm511, %v1618, -inf
        %1657 = vmax.xlane.f32.xlu0 %v1656
        %v1658 = vpop.xlane.xlu0 %1657
        %v1659 = vsel %vm511, %v1623, -inf
        %1660 = vmax.xlane.f32.xlu0 %v1659
        %v1661 = vpop.xlane.xlu0 %1660
        %v1662 = vsel %vm511, %v1628, -inf
        %1663 = vmax.xlane.f32.xlu0 %v1662
        %v1664 = vpop.xlane.xlu0 %1663
        %v1665 = vsel %vm511, %v1633, -inf
        %1666 = vmax.xlane.f32.xlu0 %v1665
        %v1667 = vpop.xlane.xlu0 %1666
        %v1668 = vsel %vm511, %v1638, -inf
        %1669 = vmax.xlane.f32.xlu0 %v1668
        %v1670 = vpop.xlane.xlu0 %1669
        %v1671 = vsel %vm511, %v1643, -inf
        %1672 = vmax.xlane.f32.xlu0 %v1671
        %v1673 = vpop.xlane.xlu0 %1672
        %v1674 = vsel %vm511, %v1648, -inf
        %1675 = vmax.xlane.f32.xlu0 %v1674
        %v1676 = vpop.xlane.xlu0 %1675
        %v1677 = vsel %vm511, %v1653, -inf
        %1678 = vmax.xlane.f32.xlu0 %v1677
        %v1679 = vpop.xlane.xlu0 %1678
        %v1680 = vsub.f32 %v1618, %v1658
        %v1681 = vsub.f32 %v1623, %v1661
        %v1682 = vsub.f32 %v1628, %v1664
        %v1683 = vsub.f32 %v1633, %v1667
        %v1684 = vsub.f32 %v1638, %v1670
        %v1685 = vsub.f32 %v1643, %v1673
        %v1686 = vsub.f32 %v1648, %v1676
        %v1687 = vsub.f32 %v1653, %v1679
        %v1688 = vmul.f32 %v1680, 1.442695
        %v1689 = vpow.pop %v1688
        %v1690 = vmul.f32 %v1681, 1.442695
        %v1691 = vpow.pop %v1690
        %v1692 = vmul.f32 %v1682, 1.442695
        %v1693 = vpow.pop %v1692
        %v1694 = vmul.f32 %v1683, 1.442695
        %v1695 = vpow.pop %v1694
        %v1696 = vmul.f32 %v1684, 1.442695
        %v1697 = vpow.pop %v1696
        %v1698 = vmul.f32 %v1685, 1.442695
        %v1699 = vpow.pop %v1698
        %v1700 = vmul.f32 %v1686, 1.442695
        %v1701 = vpow.pop %v1700
        %v1702 = vmul.f32 %v1687, 1.442695
        %v1703 = vpow.pop %v1702
        %v1704 = vsel %vm511, %v1689, 0.0
        %1705 = vadd.xlane.f32.xlu0 %v1704
        %v1706 = vpop.xlane.xlu0 %1705
        %v1707 = vsel %vm511, %v1691, 0.0
        %1708 = vadd.xlane.f32.xlu0 %v1707
        %v1709 = vpop.xlane.xlu0 %1708
        %v1710 = vsel %vm511, %v1693, 0.0
        %1711 = vadd.xlane.f32.xlu0 %v1710
        %v1712 = vpop.xlane.xlu0 %1711
        %v1713 = vsel %vm511, %v1695, 0.0
        %1714 = vadd.xlane.f32.xlu0 %v1713
        %v1715 = vpop.xlane.xlu0 %1714
        %v1716 = vsel %vm511, %v1697, 0.0
        %1717 = vadd.xlane.f32.xlu0 %v1716
        %v1718 = vpop.xlane.xlu0 %1717
        %v1719 = vsel %vm511, %v1699, 0.0
        %1720 = vadd.xlane.f32.xlu0 %v1719
        %v1721 = vpop.xlane.xlu0 %1720
        %v1722 = vsel %vm511, %v1701, 0.0
        %1723 = vadd.xlane.f32.xlu0 %v1722
        %v1724 = vpop.xlane.xlu0 %1723
        %v1725 = vsel %vm511, %v1703, 0.0
        %1726 = vadd.xlane.f32.xlu0 %v1725
        %v1727 = vpop.xlane.xlu0 %1726
        %v1728 = vrcp.pop %v1706
        %v1729 = vrcp.pop %v1709
        %v1730 = vrcp.pop %v1712
        %v1731 = vrcp.pop %v1715
        %v1732 = vrcp.pop %v1718
        %v1733 = vrcp.pop %v1721
        %v1734 = vrcp.pop %v1724
        %v1735 = vrcp.pop %v1727
        %v1736 = vmul.f32 %v1689, %v1728
        %v1737 = vmul.f32 %v1691, %v1729
        %v1738 = vmul.f32 %v1693, %v1730
        %v1739 = vmul.f32 %v1695, %v1731
        %v1740 = vmul.f32 %v1697, %v1732
        %v1741 = vmul.f32 %v1699, %v1733
        %v1742 = vmul.f32 %v1701, %v1734
        %v1743 = vmul.f32 %v1703, %v1735
        %v1744 = vpack.c.bf16 %v1737, %v1736
        %v1745 = vpack.c.bf16 %v1739, %v1738
        %v1746 = vpack.c.bf16 %v1741, %v1740
        %v1747 = vpack.c.bf16 %v1743, %v1742
        %1748 = vrot.lane.b32.xlu0 %v337, 90
        %v1749 = vpop.permute.xlu0 %1748
        %1750 = vrot.lane.b32.xlu0 %v338, 90
        %v1751 = vpop.permute.xlu0 %1750
        %1752 = vrot.lane.b32.xlu0 %v339, 90
        %v1753 = vpop.permute.xlu0 %1752
        %1754 = vrot.lane.b32.xlu0 %v340, 90
        %v1755 = vpop.permute.xlu0 %1754
        %v1761 = vsel %vm511, %v1744, 0
        %v1764 = vsel %vm511, %v1745, 0
        %v1767 = vsel %vm511, %v1746, 0
        %v1770 = vsel %vm511, %v1747, 0
        %1772 = vmatprep.subr.bf16.mxu0 0
        %1773 = vmatpush1.bf16.msra.mxu0 %v1749
        %1774 = vmatprep.subr.bf16.mxu0 0
        %1775 = vmatpush1.bf16.msra.mxu0 %v1751
        %1776 = vmatprep.subr.bf16.mxu0 0
        %1777 = vmatpush1.bf16.msra.mxu0 %v1753
        %1778 = vmatprep.subr.bf16.mxu0 0
        %1779 = vmatpush1.bf16.msra.mxu0 %v1755
        %1780 = vmatprep.subr.bf16.mxu0 0
        %1781 = vmatpush1.bf16.msra.mxu0 0
        %1782 = vmatprep.subr.bf16.mxu0 0
        %1783 = vmatpush1.bf16.msra.mxu0 0
        %1784 = vmatprep.subr.bf16.mxu0 0
        %1785 = vmatpush1.bf16.msra.mxu0 0
        %1786 = vmatprep.subr.bf16.mxu0 0
        %1787 = vmatpush1.bf16.msra.mxu0 0
        %1788 = vmatprep.subr.bf16.mxu0 0
        %1789 = vmatpush1.bf16.msra.mxu0 0
        %1790 = vmatprep.subr.bf16.mxu0 0
        %1791 = vmatpush1.bf16.msra.mxu0 0
        %1792 = vmatprep.subr.bf16.mxu0 0
        %1793 = vmatpush1.bf16.msra.mxu0 0
        %1794 = vmatprep.subr.bf16.mxu0 0
        %1795 = vmatpush1.bf16.msra.mxu0 0
        %1796 = vmatprep.subr.bf16.mxu0 0
        %1797 = vmatpush1.bf16.msra.mxu0 0
        %1798 = vmatprep.subr.bf16.mxu0 0
        %1799 = vmatpush1.bf16.msra.mxu0 0
        %1800 = vmatprep.subr.bf16.mxu0 0
        %1801 = vmatpush1.bf16.msra.mxu0 0
        %1802 = vmatprep.subr.bf16.mxu0 0
        %1803 = vmatpush1.bf16.msra.mxu0 0
        %1804 = vmatprep.mubr.bf16.mxu0 0
        %1805 = vmatmul.mubr.bf16.gmra.mrb[0].mxu0 %v1761
        %v1806 = vpop.f32.mrb[0].mxu0
        %v1807 = vadd.f32 0.0, %v1806
        %v1808 = vpop.f32.mrb[0].mxu0
        %v1809 = vpop.f32.mrb[0].mxu0
        %v1810 = vadd.f32 0.0, %v1809
        %v1811 = vpop.f32.mrb[0].mxu0
        %1812 = vmatprep.mubr.bf16.mxu0 0
        %1813 = vmatmul.mubr.bf16.gmra.mrb[0].mxu0 %v1764
        %v1814 = vpop.f32.mrb[0].mxu0
        %v1815 = vadd.f32 0.0, %v1814
        %v1816 = vpop.f32.mrb[0].mxu0
        %v1817 = vpop.f32.mrb[0].mxu0
        %v1818 = vadd.f32 0.0, %v1817
        %v1819 = vpop.f32.mrb[0].mxu0
        %1820 = vmatprep.mubr.bf16.mxu0 0
        %1821 = vmatmul.mubr.bf16.gmra.mrb[0].mxu0 %v1767
        %v1822 = vpop.f32.mrb[0].mxu0
        %v1823 = vadd.f32 0.0, %v1822
        %v1824 = vpop.f32.mrb[0].mxu0
        %v1825 = vpop.f32.mrb[0].mxu0
        %v1826 = vadd.f32 0.0, %v1825
        %v1827 = vpop.f32.mrb[0].mxu0
        %1828 = vmatprep.mubr.bf16.mxu0 0
        %1829 = vmatmul.mubr.bf16.gmra.mrb[0].mxu0 %v1770
        %v1830 = vpop.f32.mrb[0].mxu0
        %v1831 = vadd.f32 0.0, %v1830
        %v1832 = vpop.f32.mrb[0].mxu0
        %v1833 = vpop.f32.mrb[0].mxu0
        %v1834 = vadd.f32 0.0, %v1833
        %v1835 = vpop.f32.mrb[0].mxu0
        %1836 = vdwg.mxu0
        %1845 = vrot.lane.b32.xlu0 %v1807, 6
        %v1846 = vpop.permute.xlu0 %1845
        %1847 = vrot.lane.b32.xlu0 %v1810, 6
        %v1848 = vpop.permute.xlu0 %1847
        %1849 = vrot.lane.b32.xlu0 %v1815, 6
        %v1850 = vpop.permute.xlu0 %1849
        %1851 = vrot.lane.b32.xlu0 %v1818, 6
        %v1852 = vpop.permute.xlu0 %1851
        %1853 = vrot.lane.b32.xlu0 %v1823, 6
        %v1854 = vpop.permute.xlu0 %1853
        %1855 = vrot.lane.b32.xlu0 %v1826, 6
        %v1856 = vpop.permute.xlu0 %1855
        %1857 = vrot.lane.b32.xlu0 %v1831, 6
        %v1858 = vpop.permute.xlu0 %1857
        %1859 = vrot.lane.b32.xlu0 %v1834, 6
        %v1860 = vpop.permute.xlu0 %1859
        %vm1869 = vcmask 64560
        %1870 = vst.msk [vmem:[#allocation2] sm:$0xff] %vm1869, %v1846
        %1871 = vst.msk [vmem:[#allocation2 + $0x8] sm:$0xff] %vm1869, %v1848
        %1872 = vst.msk [vmem:[#allocation2 + $0x10] sm:$0xff] %vm1869, %v1850
        %1873 = vst.msk [vmem:[#allocation2 + $0x18] sm:$0xff] %vm1869, %v1852
        %1874 = vst.msk [vmem:[#allocation2 + $0x20] sm:$0xff] %vm1869, %v1854
        %1875 = vst.msk [vmem:[#allocation2 + $0x28] sm:$0xff] %vm1869, %v1856
        %1876 = vst.msk [vmem:[#allocation2 + $0x30] sm:$0xff] %vm1869, %v1858
        %1877 = vst.msk [vmem:[#allocation2 + $0x38] sm:$0xff] %vm1869, %v1860
        %1878 = vrot.lane.b32.xlu0 %v329, 120
        %v1879 = vpop.permute.xlu0 %1878
        %1880 = vrot.lane.b32.xlu0 %v330, 120
        %v1881 = vpop.permute.xlu0 %1880
        %1882 = vrot.lane.b32.xlu0 %v331, 120
        %v1883 = vpop.permute.xlu0 %1882
        %1884 = vrot.lane.b32.xlu0 %v332, 120
        %v1885 = vpop.permute.xlu0 %1884
        %1886 = vrot.lane.b32.xlu0 %v333, 120
        %v1887 = vpop.permute.xlu0 %1886
        %1888 = vrot.lane.b32.xlu0 %v334, 120
        %v1889 = vpop.permute.xlu0 %1888
        %1890 = vrot.lane.b32.xlu0 %v335, 120
        %v1891 = vpop.permute.xlu0 %1890
        %1892 = vrot.lane.b32.xlu0 %v336, 120
        %v1893 = vpop.permute.xlu0 %1892
        %1894 = vrot.lane.b32.xlu0 %v299, 104
        %v1895 = vpop.permute.xlu0 %1894
        %1896 = vrot.lane.b32.xlu0 %v302, 104
        %v1897 = vpop.permute.xlu0 %1896
        %1898 = vrot.lane.b32.xlu0 %v307, 104
        %v1899 = vpop.permute.xlu0 %1898
        %1900 = vrot.lane.b32.xlu0 %v310, 104
        %v1901 = vpop.permute.xlu0 %1900
        %1902 = vrot.lane.b32.xlu0 %v315, 104
        %v1903 = vpop.permute.xlu0 %1902
        %1904 = vrot.lane.b32.xlu0 %v318, 104
        %v1905 = vpop.permute.xlu0 %1904
        %1906 = vrot.lane.b32.xlu0 %v323, 104
        %v1907 = vpop.permute.xlu0 %1906
        %1908 = vrot.lane.b32.xlu0 %v326, 104
        %v1909 = vpop.permute.xlu0 %1908
        %v1910 = vsel %vm365, %v1879, 0
        %v1912 = vsel %vm365, %v1881, 0
        %v1914 = vsel %vm365, %v1883, 0
        %v1916 = vsel %vm365, %v1885, 0
        %v1918 = vsel %vm365, %v1887, 0
        %v1920 = vsel %vm365, %v1889, 0
        %v1922 = vsel %vm365, %v1891, 0
        %v1924 = vsel %vm365, %v1893, 0
        %v1926 = vsel %vm365, %v1895, 0
        %v1928 = vsel %vm365, %v1897, 0
        %v1930 = vsel %vm365, %v1899, 0
        %v1932 = vsel %vm365, %v1901, 0
        %v1934 = vsel %vm365, %v1903, 0
        %v1936 = vsel %vm365, %v1905, 0
        %v1938 = vsel %vm365, %v1907, 0
        %v1940 = vsel %vm365, %v1909, 0
        %1942 = vmatprep.subr.mxu0 0.0
        %1943 = vmatpush1.xpose.msra.mxu0 %v1926
        %1944 = vmatprep.subr.mxu0 0.0
        %1945 = vmatpush1.xpose.msra.mxu0 %v1928
        %1946 = vmatprep.subr.mxu0 0.0
        %1947 = vmatpush1.xpose.msra.mxu0 %v1930
        %1948 = vmatprep.subr.mxu0 0.0
        %1949 = vmatpush1.xpose.msra.mxu0 %v1932
        %1950 = vmatprep.subr.mxu0 0.0
        %1951 = vmatpush1.xpose.msra.mxu0 %v1934
        %1952 = vmatprep.subr.mxu0 0.0
        %1953 = vmatpush1.xpose.msra.mxu0 %v1936
        %1954 = vmatprep.subr.mxu0 0.0
        %1955 = vmatpush1.xpose.msra.mxu0 %v1938
        %1956 = vmatprep.subr.mxu0 0.0
        %1957 = vmatpush1.xpose.msra.mxu0 %v1940
        %1958 = vmatprep.subr.mxu0 0.0
        %1959 = vmatpush1.xpose.msra.mxu0 0.0
        %1960 = vmatprep.subr.mxu0 0.0
        %1961 = vmatpush1.xpose.msra.mxu0 0.0
        %1962 = vmatprep.subr.mxu0 0.0
        %1963 = vmatpush1.xpose.msra.mxu0 0.0
        %1964 = vmatprep.subr.mxu0 0.0
        %1965 = vmatpush1.xpose.msra.mxu0 0.0
        %1966 = vmatprep.subr.mxu0 0.0
        %1967 = vmatpush1.xpose.msra.mxu0 0.0
        %1968 = vmatprep.subr.mxu0 0.0
        %1969 = vmatpush1.xpose.msra.mxu0 0.0
        %1970 = vmatprep.subr.mxu0 0.0
        %1971 = vmatpush1.xpose.msra.mxu0 0.0
        %1972 = vmatprep.subr.mxu0 0.0
        %1973 = vmatpush1.xpose.msra.mxu0 0.0
        %1974 = vmatprep.subr.mxu0 0.0
        %1975 = vmatpush1.xpose.msra.mxu0 0.0
        %1976 = vmatprep.subr.mxu0 0.0
        %1977 = vmatpush1.xpose.msra.mxu0 0.0
        %1978 = vmatprep.subr.mxu0 0.0
        %1979 = vmatpush1.xpose.msra.mxu0 0.0
        %1980 = vmatprep.subr.mxu0 0.0
        %1981 = vmatpush1.xpose.msra.mxu0 0.0
        %1982 = vmatprep.subr.mxu0 0.0
        %1983 = vmatpush1.xpose.msra.mxu0 0.0
        %1984 = vmatprep.subr.mxu0 0.0
        %1985 = vmatpush1.xpose.msra.mxu0 0.0
        %1986 = vmatprep.subr.mxu0 0.0
        %1987 = vmatpush1.xpose.msra.mxu0 0.0
        %1988 = vmatprep.subr.mxu0 0.0
        %1989 = vmatpush1.xpose.msra.mxu0 0.0
        %1990 = vmatprep.subr.mxu0 0.0
        %1991 = vmatpush1.xpose.msra.mxu0 0.0
        %1992 = vmatprep.subr.mxu0 0.0
        %1993 = vmatpush1.xpose.msra.mxu0 0.0
        %1994 = vmatprep.subr.mxu0 0.0
        %1995 = vmatpush1.xpose.msra.mxu0 0.0
        %1996 = vmatprep.subr.mxu0 0.0
        %1997 = vmatpush1.xpose.msra.mxu0 0.0
        %1998 = vmatprep.subr.mxu0 0.0
        %1999 = vmatpush1.xpose.msra.mxu0 0.0
        %2000 = vmatprep.subr.mxu0 0.0
        %2001 = vmatpush1.xpose.msra.mxu0 0.0
        %2002 = vmatprep.subr.mxu0 0.0
        %2003 = vmatpush1.xpose.msra.mxu0 0.0
        %2004 = vmatprep.subr.mxu0 0.0
        %2005 = vmatpush1.xpose.msra.mxu0 0.0
        %2006 = vmatprep.mubr.f32.mxu0 0.0
        %2007 = vmatmul.mubr.f32.gmra.mrb[0].mxu0 %v1910
        %v2008 = vpop.f32.mrb[0].mxu0
        %v2009 = vadd.f32 0.0, %v2008
        %v2010 = vpop.f32.mrb[0].mxu0
        %2011 = vmatprep.mubr.f32.mxu0 0.0
        %2012 = vmatmul.mubr.f32.gmra.mrb[0].mxu0 %v1912
        %v2013 = vpop.f32.mrb[0].mxu0
        %v2014 = vadd.f32 0.0, %v2013
        %v2015 = vpop.f32.mrb[0].mxu0
        %2016 = vmatprep.mubr.f32.mxu0 0.0
        %2017 = vmatmul.mubr.f32.gmra.mrb[0].mxu0 %v1914
        %v2018 = vpop.f32.mrb[0].mxu0
        %v2019 = vadd.f32 0.0, %v2018
        %v2020 = vpop.f32.mrb[0].mxu0
        %2021 = vmatprep.mubr.f32.mxu0 0.0
        %2022 = vmatmul.mubr.f32.gmra.mrb[0].mxu0 %v1916
        %v2023 = vpop.f32.mrb[0].mxu0
        %v2024 = vadd.f32 0.0, %v2023
        %v2025 = vpop.f32.mrb[0].mxu0
        %2026 = vmatprep.mubr.f32.mxu0 0.0
        %2027 = vmatmul.mubr.f32.gmra.mrb[0].mxu0 %v1918
        %v2028 = vpop.f32.mrb[0].mxu0
        %v2029 = vadd.f32 0.0, %v2028
        %v2030 = vpop.f32.mrb[0].mxu0
        %2031 = vmatprep.mubr.f32.mxu0 0.0
        %2032 = vmatmul.mubr.f32.gmra.mrb[0].mxu0 %v1920
        %v2033 = vpop.f32.mrb[0].mxu0
        %v2034 = vadd.f32 0.0, %v2033
        %v2035 = vpop.f32.mrb[0].mxu0
        %2036 = vmatprep.mubr.f32.mxu0 0.0
        %2037 = vmatmul.mubr.f32.gmra.mrb[0].mxu0 %v1922
        %v2038 = vpop.f32.mrb[0].mxu0
        %v2039 = vadd.f32 0.0, %v2038
        %v2040 = vpop.f32.mrb[0].mxu0
        %2041 = vmatprep.mubr.f32.mxu0 0.0
        %2042 = vmatmul.mubr.f32.gmra.mrb[0].mxu0 %v1924
        %v2043 = vpop.f32.mrb[0].mxu0
        %v2044 = vadd.f32 0.0, %v2043
        %v2045 = vpop.f32.mrb[0].mxu0
        %2046 = vdwg.mxu0
        %v2047 = vsel %vm511, %v2009, -inf
        %2048 = vmax.xlane.f32.xlu0 %v2047
        %v2049 = vpop.xlane.xlu0 %2048
        %v2050 = vsel %vm511, %v2014, -inf
        %2051 = vmax.xlane.f32.xlu0 %v2050
        %v2052 = vpop.xlane.xlu0 %2051
        %v2053 = vsel %vm511, %v2019, -inf
        %2054 = vmax.xlane.f32.xlu0 %v2053
        %v2055 = vpop.xlane.xlu0 %2054
        %v2056 = vsel %vm511, %v2024, -inf
        %2057 = vmax.xlane.f32.xlu0 %v2056
        %v2058 = vpop.xlane.xlu0 %2057
        %v2059 = vsel %vm511, %v2029, -inf
        %2060 = vmax.xlane.f32.xlu0 %v2059
        %v2061 = vpop.xlane.xlu0 %2060
        %v2062 = vsel %vm511, %v2034, -inf
        %2063 = vmax.xlane.f32.xlu0 %v2062
        %v2064 = vpop.xlane.xlu0 %2063
        %v2065 = vsel %vm511, %v2039, -inf
        %2066 = vmax.xlane.f32.xlu0 %v2065
        %v2067 = vpop.xlane.xlu0 %2066
        %v2068 = vsel %vm511, %v2044, -inf
        %2069 = vmax.xlane.f32.xlu0 %v2068
        %v2070 = vpop.xlane.xlu0 %2069
        %v2071 = vsub.f32 %v2009, %v2049
        %v2072 = vsub.f32 %v2014, %v2052
        %v2073 = vsub.f32 %v2019, %v2055
        %v2074 = vsub.f32 %v2024, %v2058
        %v2075 = vsub.f32 %v2029, %v2061
        %v2076 = vsub.f32 %v2034, %v2064
        %v2077 = vsub.f32 %v2039, %v2067
        %v2078 = vsub.f32 %v2044, %v2070
        %v2079 = vmul.f32 %v2071, 1.442695
        %v2080 = vpow.pop %v2079
        %v2081 = vmul.f32 %v2072, 1.442695
        %v2082 = vpow.pop %v2081
        %v2083 = vmul.f32 %v2073, 1.442695
        %v2084 = vpow.pop %v2083
        %v2085 = vmul.f32 %v2074, 1.442695
        %v2086 = vpow.pop %v2085
        %v2087 = vmul.f32 %v2075, 1.442695
        %v2088 = vpow.pop %v2087
        %v2089 = vmul.f32 %v2076, 1.442695
        %v2090 = vpow.pop %v2089
        %v2091 = vmul.f32 %v2077, 1.442695
        %v2092 = vpow.pop %v2091
        %v2093 = vmul.f32 %v2078, 1.442695
        %v2094 = vpow.pop %v2093
        %v2095 = vsel %vm511, %v2080, 0.0
        %2096 = vadd.xlane.f32.xlu0 %v2095
        %v2097 = vpop.xlane.xlu0 %2096
        %v2098 = vsel %vm511, %v2082, 0.0
        %2099 = vadd.xlane.f32.xlu0 %v2098
        %v2100 = vpop.xlane.xlu0 %2099
        %v2101 = vsel %vm511, %v2084, 0.0
        %2102 = vadd.xlane.f32.xlu0 %v2101
        %v2103 = vpop.xlane.xlu0 %2102
        %v2104 = vsel %vm511, %v2086, 0.0
        %2105 = vadd.xlane.f32.xlu0 %v2104
        %v2106 = vpop.xlane.xlu0 %2105
        %v2107 = vsel %vm511, %v2088, 0.0
        %2108 = vadd.xlane.f32.xlu0 %v2107
        %v2109 = vpop.xlane.xlu0 %2108
        %v2110 = vsel %vm511, %v2090, 0.0
        %2111 = vadd.xlane.f32.xlu0 %v2110
        %v2112 = vpop.xlane.xlu0 %2111
        %v2113 = vsel %vm511, %v2092, 0.0
        %2114 = vadd.xlane.f32.xlu0 %v2113
        %v2115 = vpop.xlane.xlu0 %2114
        %v2116 = vsel %vm511, %v2094, 0.0
        %2117 = vadd.xlane.f32.xlu0 %v2116
        %v2118 = vpop.xlane.xlu0 %2117
        %v2119 = vrcp.pop %v2097
        %v2120 = vrcp.pop %v2100
        %v2121 = vrcp.pop %v2103
        %v2122 = vrcp.pop %v2106
        %v2123 = vrcp.pop %v2109
        %v2124 = vrcp.pop %v2112
        %v2125 = vrcp.pop %v2115
        %v2126 = vrcp.pop %v2118
        %v2127 = vmul.f32 %v2080, %v2119
        %v2128 = vmul.f32 %v2082, %v2120
        %v2129 = vmul.f32 %v2084, %v2121
        %v2130 = vmul.f32 %v2086, %v2122
        %v2131 = vmul.f32 %v2088, %v2123
        %v2132 = vmul.f32 %v2090, %v2124
        %v2133 = vmul.f32 %v2092, %v2125
        %v2134 = vmul.f32 %v2094, %v2126
        %v2135 = vpack.c.bf16 %v2128, %v2127
        %v2136 = vpack.c.bf16 %v2130, %v2129
        %v2137 = vpack.c.bf16 %v2132, %v2131
        %v2138 = vpack.c.bf16 %v2134, %v2133
        %2139 = vrot.lane.b32.xlu0 %v337, 88
        %v2140 = vpop.permute.xlu0 %2139
        %2141 = vrot.lane.b32.xlu0 %v338, 88
        %v2142 = vpop.permute.xlu0 %2141
        %2143 = vrot.lane.b32.xlu0 %v339, 88
        %v2144 = vpop.permute.xlu0 %2143
        %2145 = vrot.lane.b32.xlu0 %v340, 88
        %v2146 = vpop.permute.xlu0 %2145
        %v2152 = vsel %vm511, %v2135, 0
        %v2155 = vsel %vm511, %v2136, 0
        %v2158 = vsel %vm511, %v2137, 0
        %v2161 = vsel %vm511, %v2138, 0
        %2163 = vmatprep.subr.bf16.mxu0 0
        %2164 = vmatpush1.bf16.msra.mxu0 %v2140
        %2165 = vmatprep.subr.bf16.mxu0 0
        %2166 = vmatpush1.bf16.msra.mxu0 %v2142
        %2167 = vmatprep.subr.bf16.mxu0 0
        %2168 = vmatpush1.bf16.msra.mxu0 %v2144
        %2169 = vmatprep.subr.bf16.mxu0 0
        %2170 = vmatpush1.bf16.msra.mxu0 %v2146
        %2171 = vmatprep.subr.bf16.mxu0 0
        %2172 = vmatpush1.bf16.msra.mxu0 0
        %2173 = vmatprep.subr.bf16.mxu0 0
        %2174 = vmatpush1.bf16.msra.mxu0 0
        %2175 = vmatprep.subr.bf16.mxu0 0
        %2176 = vmatpush1.bf16.msra.mxu0 0
        %2177 = vmatprep.subr.bf16.mxu0 0
        %2178 = vmatpush1.bf16.msra.mxu0 0
        %2179 = vmatprep.subr.bf16.mxu0 0
        %2180 = vmatpush1.bf16.msra.mxu0 0
        %2181 = vmatprep.subr.bf16.mxu0 0
        %2182 = vmatpush1.bf16.msra.mxu0 0
        %2183 = vmatprep.subr.bf16.mxu0 0
        %2184 = vmatpush1.bf16.msra.mxu0 0
        %2185 = vmatprep.subr.bf16.mxu0 0
        %2186 = vmatpush1.bf16.msra.mxu0 0
        %2187 = vmatprep.subr.bf16.mxu0 0
        %2188 = vmatpush1.bf16.msra.mxu0 0
        %2189 = vmatprep.subr.bf16.mxu0 0
        %2190 = vmatpush1.bf16.msra.mxu0 0
        %2191 = vmatprep.subr.bf16.mxu0 0
        %2192 = vmatpush1.bf16.msra.mxu0 0
        %2193 = vmatprep.subr.bf16.mxu0 0
        %2194 = vmatpush1.bf16.msra.mxu0 0
        %2195 = vmatprep.mubr.bf16.mxu0 0
        %2196 = vmatmul.mubr.bf16.gmra.mrb[0].mxu0 %v2152
        %v2197 = vpop.f32.mrb[0].mxu0
        %v2198 = vadd.f32 0.0, %v2197
        %v2199 = vpop.f32.mrb[0].mxu0
        %v2200 = vpop.f32.mrb[0].mxu0
        %v2201 = vadd.f32 0.0, %v2200
        %v2202 = vpop.f32.mrb[0].mxu0
        %2203 = vmatprep.mubr.bf16.mxu0 0
        %2204 = vmatmul.mubr.bf16.gmra.mrb[0].mxu0 %v2155
        %v2205 = vpop.f32.mrb[0].mxu0
        %v2206 = vadd.f32 0.0, %v2205
        %v2207 = vpop.f32.mrb[0].mxu0
        %v2208 = vpop.f32.mrb[0].mxu0
        %v2209 = vadd.f32 0.0, %v2208
        %v2210 = vpop.f32.mrb[0].mxu0
        %2211 = vmatprep.mubr.bf16.mxu0 0
        %2212 = vmatmul.mubr.bf16.gmra.mrb[0].mxu0 %v2158
        %v2213 = vpop.f32.mrb[0].mxu0
        %v2214 = vadd.f32 0.0, %v2213
        %v2215 = vpop.f32.mrb[0].mxu0
        %v2216 = vpop.f32.mrb[0].mxu0
        %v2217 = vadd.f32 0.0, %v2216
        %v2218 = vpop.f32.mrb[0].mxu0
        %2219 = vmatprep.mubr.bf16.mxu0 0
        %2220 = vmatmul.mubr.bf16.gmra.mrb[0].mxu0 %v2161
        %v2221 = vpop.f32.mrb[0].mxu0
        %v2222 = vadd.f32 0.0, %v2221
        %v2223 = vpop.f32.mrb[0].mxu0
        %v2224 = vpop.f32.mrb[0].mxu0
        %v2225 = vadd.f32 0.0, %v2224
        %v2226 = vpop.f32.mrb[0].mxu0
        %2227 = vdwg.mxu0
        %2236 = vrot.lane.b32.xlu0 %v2198, 8
        %v2237 = vpop.permute.xlu0 %2236
        %2238 = vrot.lane.b32.xlu0 %v2201, 8
        %v2239 = vpop.permute.xlu0 %2238
        %2240 = vrot.lane.b32.xlu0 %v2206, 8
        %v2241 = vpop.permute.xlu0 %2240
        %2242 = vrot.lane.b32.xlu0 %v2209, 8
        %v2243 = vpop.permute.xlu0 %2242
        %2244 = vrot.lane.b32.xlu0 %v2214, 8
        %v2245 = vpop.permute.xlu0 %2244
        %2246 = vrot.lane.b32.xlu0 %v2217, 8
        %v2247 = vpop.permute.xlu0 %2246
        %2248 = vrot.lane.b32.xlu0 %v2222, 8
        %v2249 = vpop.permute.xlu0 %2248
        %2250 = vrot.lane.b32.xlu0 %v2225, 8
        %v2251 = vpop.permute.xlu0 %2250
        %vm2260 = vcmask 80960
        %2261 = vst.msk [vmem:[#allocation2] sm:$0xff] %vm2260, %v2237
        %2262 = vst.msk [vmem:[#allocation2 + $0x8] sm:$0xff] %vm2260, %v2239
        %2263 = vst.msk [vmem:[#allocation2 + $0x10] sm:$0xff] %vm2260, %v2241
        %2264 = vst.msk [vmem:[#allocation2 + $0x18] sm:$0xff] %vm2260, %v2243
        %2265 = vst.msk [vmem:[#allocation2 + $0x20] sm:$0xff] %vm2260, %v2245
        %2266 = vst.msk [vmem:[#allocation2 + $0x28] sm:$0xff] %vm2260, %v2247
        %2267 = vst.msk [vmem:[#allocation2 + $0x30] sm:$0xff] %vm2260, %v2249
        %2268 = vst.msk [vmem:[#allocation2 + $0x38] sm:$0xff] %vm2260, %v2251
        %2269 = vrot.lane.b32.xlu0 %v329, 118
        %v2270 = vpop.permute.xlu0 %2269
        %2271 = vrot.lane.b32.xlu0 %v330, 118
        %v2272 = vpop.permute.xlu0 %2271
        %2273 = vrot.lane.b32.xlu0 %v331, 118
        %v2274 = vpop.permute.xlu0 %2273
        %2275 = vrot.lane.b32.xlu0 %v332, 118
        %v2276 = vpop.permute.xlu0 %2275
        %2277 = vrot.lane.b32.xlu0 %v333, 118
        %v2278 = vpop.permute.xlu0 %2277
        %2279 = vrot.lane.b32.xlu0 %v334, 118
        %v2280 = vpop.permute.xlu0 %2279
        %2281 = vrot.lane.b32.xlu0 %v335, 118
        %v2282 = vpop.permute.xlu0 %2281
        %2283 = vrot.lane.b32.xlu0 %v336, 118
        %v2284 = vpop.permute.xlu0 %2283
        %2285 = vrot.lane.b32.xlu0 %v299, 102
        %v2286 = vpop.permute.xlu0 %2285
        %2287 = vrot.lane.b32.xlu0 %v302, 102
        %v2288 = vpop.permute.xlu0 %2287
        %2289 = vrot.lane.b32.xlu0 %v307, 102
        %v2290 = vpop.permute.xlu0 %2289
        %2291 = vrot.lane.b32.xlu0 %v310, 102
        %v2292 = vpop.permute.xlu0 %2291
        %2293 = vrot.lane.b32.xlu0 %v315, 102
        %v2294 = vpop.permute.xlu0 %2293
        %2295 = vrot.lane.b32.xlu0 %v318, 102
        %v2296 = vpop.permute.xlu0 %2295
        %2297 = vrot.lane.b32.xlu0 %v323, 102
        %v2298 = vpop.permute.xlu0 %2297
        %2299 = vrot.lane.b32.xlu0 %v326, 102
        %v2300 = vpop.permute.xlu0 %2299
        %v2301 = vsel %vm365, %v2270, 0
        %v2303 = vsel %vm365, %v2272, 0
        %v2305 = vsel %vm365, %v2274, 0
        %v2307 = vsel %vm365, %v2276, 0
        %v2309 = vsel %vm365, %v2278, 0
        %v2311 = vsel %vm365, %v2280, 0
        %v2313 = vsel %vm365, %v2282, 0
        %v2315 = vsel %vm365, %v2284, 0
        %v2317 = vsel %vm365, %v2286, 0
        %v2319 = vsel %vm365, %v2288, 0
        %v2321 = vsel %vm365, %v2290, 0
        %v2323 = vsel %vm365, %v2292, 0
        %v2325 = vsel %vm365, %v2294, 0
        %v2327 = vsel %vm365, %v2296, 0
        %v2329 = vsel %vm365, %v2298, 0
        %v2331 = vsel %vm365, %v2300, 0
        %2333 = vmatprep.subr.mxu0 0.0
        %2334 = vmatpush1.xpose.msra.mxu0 %v2317
        %2335 = vmatprep.subr.mxu0 0.0
        %2336 = vmatpush1.xpose.msra.mxu0 %v2319
        %2337 = vmatprep.subr.mxu0 0.0
        %2338 = vmatpush1.xpose.msra.mxu0 %v2321
        %2339 = vmatprep.subr.mxu0 0.0
        %2340 = vmatpush1.xpose.msra.mxu0 %v2323
        %2341 = vmatprep.subr.mxu0 0.0
        %2342 = vmatpush1.xpose.msra.mxu0 %v2325
        %2343 = vmatprep.subr.mxu0 0.0
        %2344 = vmatpush1.xpose.msra.mxu0 %v2327
        %2345 = vmatprep.subr.mxu0 0.0
        %2346 = vmatpush1.xpose.msra.mxu0 %v2329
        %2347 = vmatprep.subr.mxu0 0.0
        %2348 = vmatpush1.xpose.msra.mxu0 %v2331
        %2349 = vmatprep.subr.mxu0 0.0
        %2350 = vmatpush1.xpose.msra.mxu0 0.0
        %2351 = vmatprep.subr.mxu0 0.0
        %2352 = vmatpush1.xpose.msra.mxu0 0.0
        %2353 = vmatprep.subr.mxu0 0.0
        %2354 = vmatpush1.xpose.msra.mxu0 0.0
        %2355 = vmatprep.subr.mxu0 0.0
        %2356 = vmatpush1.xpose.msra.mxu0 0.0
        %2357 = vmatprep.subr.mxu0 0.0
        %2358 = vmatpush1.xpose.msra.mxu0 0.0
        %2359 = vmatprep.subr.mxu0 0.0
        %2360 = vmatpush1.xpose.msra.mxu0 0.0
        %2361 = vmatprep.subr.mxu0 0.0
        %2362 = vmatpush1.xpose.msra.mxu0 0.0
        %2363 = vmatprep.subr.mxu0 0.0
        %2364 = vmatpush1.xpose.msra.mxu0 0.0
        %2365 = vmatprep.subr.mxu0 0.0
        %2366 = vmatpush1.xpose.msra.mxu0 0.0
        %2367 = vmatprep.subr.mxu0 0.0
        %2368 = vmatpush1.xpose.msra.mxu0 0.0
        %2369 = vmatprep.subr.mxu0 0.0
        %2370 = vmatpush1.xpose.msra.mxu0 0.0
        %2371 = vmatprep.subr.mxu0 0.0
        %2372 = vmatpush1.xpose.msra.mxu0 0.0
        %2373 = vmatprep.subr.mxu0 0.0
        %2374 = vmatpush1.xpose.msra.mxu0 0.0
        %2375 = vmatprep.subr.mxu0 0.0
        %2376 = vmatpush1.xpose.msra.mxu0 0.0
        %2377 = vmatprep.subr.mxu0 0.0
        %2378 = vmatpush1.xpose.msra.mxu0 0.0
        %2379 = vmatprep.subr.mxu0 0.0
        %2380 = vmatpush1.xpose.msra.mxu0 0.0
        %2381 = vmatprep.subr.mxu0 0.0
        %2382 = vmatpush1.xpose.msra.mxu0 0.0
        %2383 = vmatprep.subr.mxu0 0.0
        %2384 = vmatpush1.xpose.msra.mxu0 0.0
        %2385 = vmatprep.subr.mxu0 0.0
        %2386 = vmatpush1.xpose.msra.mxu0 0.0
        %2387 = vmatprep.subr.mxu0 0.0
        %2388 = vmatpush1.xpose.msra.mxu0 0.0
        %2389 = vmatprep.subr.mxu0 0.0
        %2390 = vmatpush1.xpose.msra.mxu0 0.0
        %2391 = vmatprep.subr.mxu0 0.0
        %2392 = vmatpush1.xpose.msra.mxu0 0.0
        %2393 = vmatprep.subr.mxu0 0.0
        %2394 = vmatpush1.xpose.msra.mxu0 0.0
        %2395 = vmatprep.subr.mxu0 0.0
        %2396 = vmatpush1.xpose.msra.mxu0 0.0
        %2397 = vmatprep.mubr.f32.mxu0 0.0
        %2398 = vmatmul.mubr.f32.gmra.mrb[0].mxu0 %v2301
        %v2399 = vpop.f32.mrb[0].mxu0
        %v2400 = vadd.f32 0.0, %v2399
        %v2401 = vpop.f32.mrb[0].mxu0
        %2402 = vmatprep.mubr.f32.mxu0 0.0
        %2403 = vmatmul.mubr.f32.gmra.mrb[0].mxu0 %v2303
        %v2404 = vpop.f32.mrb[0].mxu0
        %v2405 = vadd.f32 0.0, %v2404
        %v2406 = vpop.f32.mrb[0].mxu0
        %2407 = vmatprep.mubr.f32.mxu0 0.0
        %2408 = vmatmul.mubr.f32.gmra.mrb[0].mxu0 %v2305
        %v2409 = vpop.f32.mrb[0].mxu0
        %v2410 = vadd.f32 0.0, %v2409
        %v2411 = vpop.f32.mrb[0].mxu0
        %2412 = vmatprep.mubr.f32.mxu0 0.0
        %2413 = vmatmul.mubr.f32.gmra.mrb[0].mxu0 %v2307
        %v2414 = vpop.f32.mrb[0].mxu0
        %v2415 = vadd.f32 0.0, %v2414
        %v2416 = vpop.f32.mrb[0].mxu0
        %2417 = vmatprep.mubr.f32.mxu0 0.0
        %2418 = vmatmul.mubr.f32.gmra.mrb[0].mxu0 %v2309
        %v2419 = vpop.f32.mrb[0].mxu0
        %v2420 = vadd.f32 0.0, %v2419
        %v2421 = vpop.f32.mrb[0].mxu0
        %2422 = vmatprep.mubr.f32.mxu0 0.0
        %2423 = vmatmul.mubr.f32.gmra.mrb[0].mxu0 %v2311
        %v2424 = vpop.f32.mrb[0].mxu0
        %v2425 = vadd.f32 0.0, %v2424
        %v2426 = vpop.f32.mrb[0].mxu0
        %2427 = vmatprep.mubr.f32.mxu0 0.0
        %2428 = vmatmul.mubr.f32.gmra.mrb[0].mxu0 %v2313
        %v2429 = vpop.f32.mrb[0].mxu0
        %v2430 = vadd.f32 0.0, %v2429
        %v2431 = vpop.f32.mrb[0].mxu0
        %2432 = vmatprep.mubr.f32.mxu0 0.0
        %2433 = vmatmul.mubr.f32.gmra.mrb[0].mxu0 %v2315
        %v2434 = vpop.f32.mrb[0].mxu0
        %v2435 = vadd.f32 0.0, %v2434
        %v2436 = vpop.f32.mrb[0].mxu0
        %2437 = vdwg.mxu0
        %v2438 = vsel %vm511, %v2400, -inf
        %2439 = vmax.xlane.f32.xlu0 %v2438
        %v2440 = vpop.xlane.xlu0 %2439
        %v2441 = vsel %vm511, %v2405, -inf
        %2442 = vmax.xlane.f32.xlu0 %v2441
        %v2443 = vpop.xlane.xlu0 %2442
        %v2444 = vsel %vm511, %v2410, -inf
        %2445 = vmax.xlane.f32.xlu0 %v2444
        %v2446 = vpop.xlane.xlu0 %2445
        %v2447 = vsel %vm511, %v2415, -inf
        %2448 = vmax.xlane.f32.xlu0 %v2447
        %v2449 = vpop.xlane.xlu0 %2448
        %v2450 = vsel %vm511, %v2420, -inf
        %2451 = vmax.xlane.f32.xlu0 %v2450
        %v2452 = vpop.xlane.xlu0 %2451
        %v2453 = vsel %vm511, %v2425, -inf
        %2454 = vmax.xlane.f32.xlu0 %v2453
        %v2455 = vpop.xlane.xlu0 %2454
        %v2456 = vsel %vm511, %v2430, -inf
        %2457 = vmax.xlane.f32.xlu0 %v2456
        %v2458 = vpop.xlane.xlu0 %2457
        %v2459 = vsel %vm511, %v2435, -inf
        %2460 = vmax.xlane.f32.xlu0 %v2459
        %v2461 = vpop.xlane.xlu0 %2460
        %v2462 = vsub.f32 %v2400, %v2440
        %v2463 = vsub.f32 %v2405, %v2443
        %v2464 = vsub.f32 %v2410, %v2446
        %v2465 = vsub.f32 %v2415, %v2449
        %v2466 = vsub.f32 %v2420, %v2452
        %v2467 = vsub.f32 %v2425, %v2455
        %v2468 = vsub.f32 %v2430, %v2458
        %v2469 = vsub.f32 %v2435, %v2461
        %v2470 = vmul.f32 %v2462, 1.442695
        %v2471 = vpow.pop %v2470
        %v2472 = vmul.f32 %v2463, 1.442695
        %v2473 = vpow.pop %v2472
        %v2474 = vmul.f32 %v2464, 1.442695
        %v2475 = vpow.pop %v2474
        %v2476 = vmul.f32 %v2465, 1.442695
        %v2477 = vpow.pop %v2476
        %v2478 = vmul.f32 %v2466, 1.442695
        %v2479 = vpow.pop %v2478
        %v2480 = vmul.f32 %v2467, 1.442695
        %v2481 = vpow.pop %v2480
        %v2482 = vmul.f32 %v2468, 1.442695
        %v2483 = vpow.pop %v2482
        %v2484 = vmul.f32 %v2469, 1.442695
        %v2485 = vpow.pop %v2484
        %v2486 = vsel %vm511, %v2471, 0.0
        %2487 = vadd.xlane.f32.xlu0 %v2486
        %v2488 = vpop.xlane.xlu0 %2487
        %v2489 = vsel %vm511, %v2473, 0.0
        %2490 = vadd.xlane.f32.xlu0 %v2489
        %v2491 = vpop.xlane.xlu0 %2490
        %v2492 = vsel %vm511, %v2475, 0.0
        %2493 = vadd.xlane.f32.xlu0 %v2492
        %v2494 = vpop.xlane.xlu0 %2493
        %v2495 = vsel %vm511, %v2477, 0.0
        %2496 = vadd.xlane.f32.xlu0 %v2495
        %v2497 = vpop.xlane.xlu0 %2496
        %v2498 = vsel %vm511, %v2479, 0.0
        %2499 = vadd.xlane.f32.xlu0 %v2498
        %v2500 = vpop.xlane.xlu0 %2499
        %v2501 = vsel %vm511, %v2481, 0.0
        %2502 = vadd.xlane.f32.xlu0 %v2501
        %v2503 = vpop.xlane.xlu0 %2502
        %v2504 = vsel %vm511, %v2483, 0.0
        %2505 = vadd.xlane.f32.xlu0 %v2504
        %v2506 = vpop.xlane.xlu0 %2505
        %v2507 = vsel %vm511, %v2485, 0.0
        %2508 = vadd.xlane.f32.xlu0 %v2507
        %v2509 = vpop.xlane.xlu0 %2508
        %v2510 = vrcp.pop %v2488
        %v2511 = vrcp.pop %v2491
        %v2512 = vrcp.pop %v2494
        %v2513 = vrcp.pop %v2497
        %v2514 = vrcp.pop %v2500
        %v2515 = vrcp.pop %v2503
        %v2516 = vrcp.pop %v2506
        %v2517 = vrcp.pop %v2509
        %v2518 = vmul.f32 %v2471, %v2510
        %v2519 = vmul.f32 %v2473, %v2511
        %v2520 = vmul.f32 %v2475, %v2512
        %v2521 = vmul.f32 %v2477, %v2513
        %v2522 = vmul.f32 %v2479, %v2514
        %v2523 = vmul.f32 %v2481, %v2515
        %v2524 = vmul.f32 %v2483, %v2516
        %v2525 = vmul.f32 %v2485, %v2517
        %v2526 = vpack.c.bf16 %v2519, %v2518
        %v2527 = vpack.c.bf16 %v2521, %v2520
        %v2528 = vpack.c.bf16 %v2523, %v2522
        %v2529 = vpack.c.bf16 %v2525, %v2524
        %2530 = vrot.lane.b32.xlu0 %v337, 86
        %v2531 = vpop.permute.xlu0 %2530
        %2532 = vrot.lane.b32.xlu0 %v338, 86
        %v2533 = vpop.permute.xlu0 %2532
        %2534 = vrot.lane.b32.xlu0 %v339, 86
        %v2535 = vpop.permute.xlu0 %2534
        %2536 = vrot.lane.b32.xlu0 %v340, 86
        %v2537 = vpop.permute.xlu0 %2536
        %v2543 = vsel %vm511, %v2526, 0
        %v2546 = vsel %vm511, %v2527, 0
        %v2549 = vsel %vm511, %v2528, 0
        %v2552 = vsel %vm511, %v2529, 0
        %2554 = vmatprep.subr.bf16.mxu0 0
        %2555 = vmatpush1.bf16.msra.mxu0 %v2531
        %2556 = vmatprep.subr.bf16.mxu0 0
        %2557 = vmatpush1.bf16.msra.mxu0 %v2533
        %2558 = vmatprep.subr.bf16.mxu0 0
        %2559 = vmatpush1.bf16.msra.mxu0 %v2535
        %2560 = vmatprep.subr.bf16.mxu0 0
        %2561 = vmatpush1.bf16.msra.mxu0 %v2537
        %2562 = vmatprep.subr.bf16.mxu0 0
        %2563 = vmatpush1.bf16.msra.mxu0 0
        %2564 = vmatprep.subr.bf16.mxu0 0
        %2565 = vmatpush1.bf16.msra.mxu0 0
        %2566 = vmatprep.subr.bf16.mxu0 0
        %2567 = vmatpush1.bf16.msra.mxu0 0
        %2568 = vmatprep.subr.bf16.mxu0 0
        %2569 = vmatpush1.bf16.msra.mxu0 0
        %2570 = vmatprep.subr.bf16.mxu0 0
        %2571 = vmatpush1.bf16.msra.mxu0 0
        %2572 = vmatprep.subr.bf16.mxu0 0
        %2573 = vmatpush1.bf16.msra.mxu0 0
        %2574 = vmatprep.subr.bf16.mxu0 0
        %2575 = vmatpush1.bf16.msra.mxu0 0
        %2576 = vmatprep.subr.bf16.mxu0 0
        %2577 = vmatpush1.bf16.msra.mxu0 0
        %2578 = vmatprep.subr.bf16.mxu0 0
        %2579 = vmatpush1.bf16.msra.mxu0 0
        %2580 = vmatprep.subr.bf16.mxu0 0
        %2581 = vmatpush1.bf16.msra.mxu0 0
        %2582 = vmatprep.subr.bf16.mxu0 0
        %2583 = vmatpush1.bf16.msra.mxu0 0
        %2584 = vmatprep.subr.bf16.mxu0 0
        %2585 = vmatpush1.bf16.msra.mxu0 0
        %2586 = vmatprep.mubr.bf16.mxu0 0
        %2587 = vmatmul.mubr.bf16.gmra.mrb[0].mxu0 %v2543
        %v2588 = vpop.f32.mrb[0].mxu0
        %v2589 = vadd.f32 0.0, %v2588
        %v2590 = vpop.f32.mrb[0].mxu0
        %v2591 = vpop.f32.mrb[0].mxu0
        %v2592 = vadd.f32 0.0, %v2591
        %v2593 = vpop.f32.mrb[0].mxu0
        %2594 = vmatprep.mubr.bf16.mxu0 0
        %2595 = vmatmul.mubr.bf16.gmra.mrb[0].mxu0 %v2546
        %v2596 = vpop.f32.mrb[0].mxu0
        %v2597 = vadd.f32 0.0, %v2596
        %v2598 = vpop.f32.mrb[0].mxu0
        %v2599 = vpop.f32.mrb[0].mxu0
        %v2600 = vadd.f32 0.0, %v2599
        %v2601 = vpop.f32.mrb[0].mxu0
        %2602 = vmatprep.mubr.bf16.mxu0 0
        %2603 = vmatmul.mubr.bf16.gmra.mrb[0].mxu0 %v2549
        %v2604 = vpop.f32.mrb[0].mxu0
        %v2605 = vadd.f32 0.0, %v2604
        %v2606 = vpop.f32.mrb[0].mxu0
        %v2607 = vpop.f32.mrb[0].mxu0
        %v2608 = vadd.f32 0.0, %v2607
        %v2609 = vpop.f32.mrb[0].mxu0
        %2610 = vmatprep.mubr.bf16.mxu0 0
        %2611 = vmatmul.mubr.bf16.gmra.mrb[0].mxu0 %v2552
        %v2612 = vpop.f32.mrb[0].mxu0
        %v2613 = vadd.f32 0.0, %v2612
        %v2614 = vpop.f32.mrb[0].mxu0
        %v2615 = vpop.f32.mrb[0].mxu0
        %v2616 = vadd.f32 0.0, %v2615
        %v2617 = vpop.f32.mrb[0].mxu0
        %2618 = vdwg.mxu0
        %2627 = vrot.lane.b32.xlu0 %v2589, 10
        %v2628 = vpop.permute.xlu0 %2627
        %2629 = vrot.lane.b32.xlu0 %v2592, 10
        %v2630 = vpop.permute.xlu0 %2629
        %2631 = vrot.lane.b32.xlu0 %v2597, 10
        %v2632 = vpop.permute.xlu0 %2631
        %2633 = vrot.lane.b32.xlu0 %v2600, 10
        %v2634 = vpop.permute.xlu0 %2633
        %2635 = vrot.lane.b32.xlu0 %v2605, 10
        %v2636 = vpop.permute.xlu0 %2635
        %2637 = vrot.lane.b32.xlu0 %v2608, 10
        %v2638 = vpop.permute.xlu0 %2637
        %2639 = vrot.lane.b32.xlu0 %v2613, 10
        %v2640 = vpop.permute.xlu0 %2639
        %2641 = vrot.lane.b32.xlu0 %v2616, 10
        %v2642 = vpop.permute.xlu0 %2641
        %vm2651 = vcmask 97360
        %2652 = vst.msk [vmem:[#allocation2] sm:$0xff] %vm2651, %v2628
        %2653 = vst.msk [vmem:[#allocation2 + $0x8] sm:$0xff] %vm2651, %v2630
        %2654 = vst.msk [vmem:[#allocation2 + $0x10] sm:$0xff] %vm2651, %v2632
        %2655 = vst.msk [vmem:[#allocation2 + $0x18] sm:$0xff] %vm2651, %v2634
        %2656 = vst.msk [vmem:[#allocation2 + $0x20] sm:$0xff] %vm2651, %v2636
        %2657 = vst.msk [vmem:[#allocation2 + $0x28] sm:$0xff] %vm2651, %v2638
        %2658 = vst.msk [vmem:[#allocation2 + $0x30] sm:$0xff] %vm2651, %v2640
        %2659 = vst.msk [vmem:[#allocation2 + $0x38] sm:$0xff] %vm2651, %v2642
        %2660 = vrot.lane.b32.xlu0 %v329, 116
        %v2661 = vpop.permute.xlu0 %2660
        %2662 = vrot.lane.b32.xlu0 %v330, 116
        %v2663 = vpop.permute.xlu0 %2662
        %2664 = vrot.lane.b32.xlu0 %v331, 116
        %v2665 = vpop.permute.xlu0 %2664
        %2666 = vrot.lane.b32.xlu0 %v332, 116
        %v2667 = vpop.permute.xlu0 %2666
        %2668 = vrot.lane.b32.xlu0 %v333, 116
        %v2669 = vpop.permute.xlu0 %2668
        %2670 = vrot.lane.b32.xlu0 %v334, 116
        %v2671 = vpop.permute.xlu0 %2670
        %2672 = vrot.lane.b32.xlu0 %v335, 116
        %v2673 = vpop.permute.xlu0 %2672
        %2674 = vrot.lane.b32.xlu0 %v336, 116
        %v2675 = vpop.permute.xlu0 %2674
        %2676 = vrot.lane.b32.xlu0 %v299, 100
        %v2677 = vpop.permute.xlu0 %2676
        %2678 = vrot.lane.b32.xlu0 %v302, 100
        %v2679 = vpop.permute.xlu0 %2678
        %2680 = vrot.lane.b32.xlu0 %v307, 100
        %v2681 = vpop.permute.xlu0 %2680
        %2682 = vrot.lane.b32.xlu0 %v310, 100
        %v2683 = vpop.permute.xlu0 %2682
        %2684 = vrot.lane.b32.xlu0 %v315, 100
        %v2685 = vpop.permute.xlu0 %2684
        %2686 = vrot.lane.b32.xlu0 %v318, 100
        %v2687 = vpop.permute.xlu0 %2686
        %2688 = vrot.lane.b32.xlu0 %v323, 100
        %v2689 = vpop.permute.xlu0 %2688
        %2690 = vrot.lane.b32.xlu0 %v326, 100
        %v2691 = vpop.permute.xlu0 %2690
        %v2692 = vsel %vm365, %v2661, 0
        %v2694 = vsel %vm365, %v2663, 0
        %v2696 = vsel %vm365, %v2665, 0
        %v2698 = vsel %vm365, %v2667, 0
        %v2700 = vsel %vm365, %v2669, 0
        %v2702 = vsel %vm365, %v2671, 0
        %v2704 = vsel %vm365, %v2673, 0
        %v2706 = vsel %vm365, %v2675, 0
        %v2708 = vsel %vm365, %v2677, 0
        %v2710 = vsel %vm365, %v2679, 0
        %v2712 = vsel %vm365, %v2681, 0
        %v2714 = vsel %vm365, %v2683, 0
        %v2716 = vsel %vm365, %v2685, 0
        %v2718 = vsel %vm365, %v2687, 0
        %v2720 = vsel %vm365, %v2689, 0
        %v2722 = vsel %vm365, %v2691, 0
        %2724 = vmatprep.subr.mxu0 0.0
        %2725 = vmatpush1.xpose.msra.mxu0 %v2708
        %2726 = vmatprep.subr.mxu0 0.0
        %2727 = vmatpush1.xpose.msra.mxu0 %v2710
        %2728 = vmatprep.subr.mxu0 0.0
        %2729 = vmatpush1.xpose.msra.mxu0 %v2712
        %2730 = vmatprep.subr.mxu0 0.0
        %2731 = vmatpush1.xpose.msra.mxu0 %v2714
        %2732 = vmatprep.subr.mxu0 0.0
        %2733 = vmatpush1.xpose.msra.mxu0 %v2716
        %2734 = vmatprep.subr.mxu0 0.0
        %2735 = vmatpush1.xpose.msra.mxu0 %v2718
        %2736 = vmatprep.subr.mxu0 0.0
        %2737 = vmatpush1.xpose.msra.mxu0 %v2720
        %2738 = vmatprep.subr.mxu0 0.0
        %2739 = vmatpush1.xpose.msra.mxu0 %v2722
        %2740 = vmatprep.subr.mxu0 0.0
        %2741 = vmatpush1.xpose.msra.mxu0 0.0
        %2742 = vmatprep.subr.mxu0 0.0
        %2743 = vmatpush1.xpose.msra.mxu0 0.0
        %2744 = vmatprep.subr.mxu0 0.0
        %2745 = vmatpush1.xpose.msra.mxu0 0.0
        %2746 = vmatprep.subr.mxu0 0.0
        %2747 = vmatpush1.xpose.msra.mxu0 0.0
        %2748 = vmatprep.subr.mxu0 0.0
        %2749 = vmatpush1.xpose.msra.mxu0 0.0
        %2750 = vmatprep.subr.mxu0 0.0
        %2751 = vmatpush1.xpose.msra.mxu0 0.0
        %2752 = vmatprep.subr.mxu0 0.0
        %2753 = vmatpush1.xpose.msra.mxu0 0.0
        %2754 = vmatprep.subr.mxu0 0.0
        %2755 = vmatpush1.xpose.msra.mxu0 0.0
        %2756 = vmatprep.subr.mxu0 0.0
        %2757 = vmatpush1.xpose.msra.mxu0 0.0
        %2758 = vmatprep.subr.mxu0 0.0
        %2759 = vmatpush1.xpose.msra.mxu0 0.0
        %2760 = vmatprep.subr.mxu0 0.0
        %2761 = vmatpush1.xpose.msra.mxu0 0.0
        %2762 = vmatprep.subr.mxu0 0.0
        %2763 = vmatpush1.xpose.msra.mxu0 0.0
        %2764 = vmatprep.subr.mxu0 0.0
        %2765 = vmatpush1.xpose.msra.mxu0 0.0
        %2766 = vmatprep.subr.mxu0 0.0
        %2767 = vmatpush1.xpose.msra.mxu0 0.0
        %2768 = vmatprep.subr.mxu0 0.0
        %2769 = vmatpush1.xpose.msra.mxu0 0.0
        %2770 = vmatprep.subr.mxu0 0.0
        %2771 = vmatpush1.xpose.msra.mxu0 0.0
        %2772 = vmatprep.subr.mxu0 0.0
        %2773 = vmatpush1.xpose.msra.mxu0 0.0
        %2774 = vmatprep.subr.mxu0 0.0
        %2775 = vmatpush1.xpose.msra.mxu0 0.0
        %2776 = vmatprep.subr.mxu0 0.0
        %2777 = vmatpush1.xpose.msra.mxu0 0.0
        %2778 = vmatprep.subr.mxu0 0.0
        %2779 = vmatpush1.xpose.msra.mxu0 0.0
        %2780 = vmatprep.subr.mxu0 0.0
        %2781 = vmatpush1.xpose.msra.mxu0 0.0
        %2782 = vmatprep.subr.mxu0 0.0
        %2783 = vmatpush1.xpose.msra.mxu0 0.0
        %2784 = vmatprep.subr.mxu0 0.0
        %2785 = vmatpush1.xpose.msra.mxu0 0.0
        %2786 = vmatprep.subr.mxu0 0.0
        %2787 = vmatpush1.xpose.msra.mxu0 0.0
        %2788 = vmatprep.mubr.f32.mxu0 0.0
        %2789 = vmatmul.mubr.f32.gmra.mrb[0].mxu0 %v2692
        %v2790 = vpop.f32.mrb[0].mxu0
        %v2791 = vadd.f32 0.0, %v2790
        %v2792 = vpop.f32.mrb[0].mxu0
        %2793 = vmatprep.mubr.f32.mxu0 0.0
        %2794 = vmatmul.mubr.f32.gmra.mrb[0].mxu0 %v2694
        %v2795 = vpop.f32.mrb[0].mxu0
        %v2796 = vadd.f32 0.0, %v2795
        %v2797 = vpop.f32.mrb[0].mxu0
        %2798 = vmatprep.mubr.f32.mxu0 0.0
        %2799 = vmatmul.mubr.f32.gmra.mrb[0].mxu0 %v2696
        %v2800 = vpop.f32.mrb[0].mxu0
        %v2801 = vadd.f32 0.0, %v2800
        %v2802 = vpop.f32.mrb[0].mxu0
        %2803 = vmatprep.mubr.f32.mxu0 0.0
        %2804 = vmatmul.mubr.f32.gmra.mrb[0].mxu0 %v2698
        %v2805 = vpop.f32.mrb[0].mxu0
        %v2806 = vadd.f32 0.0, %v2805
        %v2807 = vpop.f32.mrb[0].mxu0
        %2808 = vmatprep.mubr.f32.mxu0 0.0
        %2809 = vmatmul.mubr.f32.gmra.mrb[0].mxu0 %v2700
        %v2810 = vpop.f32.mrb[0].mxu0
        %v2811 = vadd.f32 0.0, %v2810
        %v2812 = vpop.f32.mrb[0].mxu0
        %2813 = vmatprep.mubr.f32.mxu0 0.0
        %2814 = vmatmul.mubr.f32.gmra.mrb[0].mxu0 %v2702
        %v2815 = vpop.f32.mrb[0].mxu0
        %v2816 = vadd.f32 0.0, %v2815
        %v2817 = vpop.f32.mrb[0].mxu0
        %2818 = vmatprep.mubr.f32.mxu0 0.0
        %2819 = vmatmul.mubr.f32.gmra.mrb[0].mxu0 %v2704
        %v2820 = vpop.f32.mrb[0].mxu0
        %v2821 = vadd.f32 0.0, %v2820
        %v2822 = vpop.f32.mrb[0].mxu0
        %2823 = vmatprep.mubr.f32.mxu0 0.0
        %2824 = vmatmul.mubr.f32.gmra.mrb[0].mxu0 %v2706
        %v2825 = vpop.f32.mrb[0].mxu0
        %v2826 = vadd.f32 0.0, %v2825
        %v2827 = vpop.f32.mrb[0].mxu0
        %2828 = vdwg.mxu0
        %v2829 = vsel %vm511, %v2791, -inf
        %2830 = vmax.xlane.f32.xlu0 %v2829
        %v2831 = vpop.xlane.xlu0 %2830
        %v2832 = vsel %vm511, %v2796, -inf
        %2833 = vmax.xlane.f32.xlu0 %v2832
        %v2834 = vpop.xlane.xlu0 %2833
        %v2835 = vsel %vm511, %v2801, -inf
        %2836 = vmax.xlane.f32.xlu0 %v2835
        %v2837 = vpop.xlane.xlu0 %2836
        %v2838 = vsel %vm511, %v2806, -inf
        %2839 = vmax.xlane.f32.xlu0 %v2838
        %v2840 = vpop.xlane.xlu0 %2839
        %v2841 = vsel %vm511, %v2811, -inf
        %2842 = vmax.xlane.f32.xlu0 %v2841
        %v2843 = vpop.xlane.xlu0 %2842
        %v2844 = vsel %vm511, %v2816, -inf
        %2845 = vmax.xlane.f32.xlu0 %v2844
        %v2846 = vpop.xlane.xlu0 %2845
        %v2847 = vsel %vm511, %v2821, -inf
        %2848 = vmax.xlane.f32.xlu0 %v2847
        %v2849 = vpop.xlane.xlu0 %2848
        %v2850 = vsel %vm511, %v2826, -inf
        %2851 = vmax.xlane.f32.xlu0 %v2850
        %v2852 = vpop.xlane.xlu0 %2851
        %v2853 = vsub.f32 %v2791, %v2831
        %v2854 = vsub.f32 %v2796, %v2834
        %v2855 = vsub.f32 %v2801, %v2837
        %v2856 = vsub.f32 %v2806, %v2840
        %v2857 = vsub.f32 %v2811, %v2843
        %v2858 = vsub.f32 %v2816, %v2846
        %v2859 = vsub.f32 %v2821, %v2849
        %v2860 = vsub.f32 %v2826, %v2852
        %v2861 = vmul.f32 %v2853, 1.442695
        %v2862 = vpow.pop %v2861
        %v2863 = vmul.f32 %v2854, 1.442695
        %v2864 = vpow.pop %v2863
        %v2865 = vmul.f32 %v2855, 1.442695
        %v2866 = vpow.pop %v2865
        %v2867 = vmul.f32 %v2856, 1.442695
        %v2868 = vpow.pop %v2867
        %v2869 = vmul.f32 %v2857, 1.442695
        %v2870 = vpow.pop %v2869
        %v2871 = vmul.f32 %v2858, 1.442695
        %v2872 = vpow.pop %v2871
        %v2873 = vmul.f32 %v2859, 1.442695
        %v2874 = vpow.pop %v2873
        %v2875 = vmul.f32 %v2860, 1.442695
        %v2876 = vpow.pop %v2875
        %v2877 = vsel %vm511, %v2862, 0.0
        %2878 = vadd.xlane.f32.xlu0 %v2877
        %v2879 = vpop.xlane.xlu0 %2878
        %v2880 = vsel %vm511, %v2864, 0.0
        %2881 = vadd.xlane.f32.xlu0 %v2880
        %v2882 = vpop.xlane.xlu0 %2881
        %v2883 = vsel %vm511, %v2866, 0.0
        %2884 = vadd.xlane.f32.xlu0 %v2883
        %v2885 = vpop.xlane.xlu0 %2884
        %v2886 = vsel %vm511, %v2868, 0.0
        %2887 = vadd.xlane.f32.xlu0 %v2886
        %v2888 = vpop.xlane.xlu0 %2887
        %v2889 = vsel %vm511, %v2870, 0.0
        %2890 = vadd.xlane.f32.xlu0 %v2889
        %v2891 = vpop.xlane.xlu0 %2890
        %v2892 = vsel %vm511, %v2872, 0.0
        %2893 = vadd.xlane.f32.xlu0 %v2892
        %v2894 = vpop.xlane.xlu0 %2893
        %v2895 = vsel %vm511, %v2874, 0.0
        %2896 = vadd.xlane.f32.xlu0 %v2895
        %v2897 = vpop.xlane.xlu0 %2896
        %v2898 = vsel %vm511, %v2876, 0.0
        %2899 = vadd.xlane.f32.xlu0 %v2898
        %v2900 = vpop.xlane.xlu0 %2899
        %v2901 = vrcp.pop %v2879
        %v2902 = vrcp.pop %v2882
        %v2903 = vrcp.pop %v2885
        %v2904 = vrcp.pop %v2888
        %v2905 = vrcp.pop %v2891
        %v2906 = vrcp.pop %v2894
        %v2907 = vrcp.pop %v2897
        %v2908 = vrcp.pop %v2900
        %v2909 = vmul.f32 %v2862, %v2901
        %v2910 = vmul.f32 %v2864, %v2902
        %v2911 = vmul.f32 %v2866, %v2903
        %v2912 = vmul.f32 %v2868, %v2904
        %v2913 = vmul.f32 %v2870, %v2905
        %v2914 = vmul.f32 %v2872, %v2906
        %v2915 = vmul.f32 %v2874, %v2907
        %v2916 = vmul.f32 %v2876, %v2908
        %v2917 = vpack.c.bf16 %v2910, %v2909
        %v2918 = vpack.c.bf16 %v2912, %v2911
        %v2919 = vpack.c.bf16 %v2914, %v2913
        %v2920 = vpack.c.bf16 %v2916, %v2915
        %2921 = vrot.lane.b32.xlu0 %v337, 84
        %v2922 = vpop.permute.xlu0 %2921
        %2923 = vrot.lane.b32.xlu0 %v338, 84
        %v2924 = vpop.permute.xlu0 %2923
        %2925 = vrot.lane.b32.xlu0 %v339, 84
        %v2926 = vpop.permute.xlu0 %2925
        %2927 = vrot.lane.b32.xlu0 %v340, 84
        %v2928 = vpop.permute.xlu0 %2927
        %v2934 = vsel %vm511, %v2917, 0
        %v2937 = vsel %vm511, %v2918, 0
        %v2940 = vsel %vm511, %v2919, 0
        %v2943 = vsel %vm511, %v2920, 0
        %2945 = vmatprep.subr.bf16.mxu0 0
        %2946 = vmatpush1.bf16.msra.mxu0 %v2922
        %2947 = vmatprep.subr.bf16.mxu0 0
        %2948 = vmatpush1.bf16.msra.mxu0 %v2924
        %2949 = vmatprep.subr.bf16.mxu0 0
        %2950 = vmatpush1.bf16.msra.mxu0 %v2926
        %2951 = vmatprep.subr.bf16.mxu0 0
        %2952 = vmatpush1.bf16.msra.mxu0 %v2928
        %2953 = vmatprep.subr.bf16.mxu0 0
        %2954 = vmatpush1.bf16.msra.mxu0 0
        %2955 = vmatprep.subr.bf16.mxu0 0
        %2956 = vmatpush1.bf16.msra.mxu0 0
        %2957 = vmatprep.subr.bf16.mxu0 0
        %2958 = vmatpush1.bf16.msra.mxu0 0
        %2959 = vmatprep.subr.bf16.mxu0 0
        %2960 = vmatpush1.bf16.msra.mxu0 0
        %2961 = vmatprep.subr.bf16.mxu0 0
        %2962 = vmatpush1.bf16.msra.mxu0 0
        %2963 = vmatprep.subr.bf16.mxu0 0
        %2964 = vmatpush1.bf16.msra.mxu0 0
        %2965 = vmatprep.subr.bf16.mxu0 0
        %2966 = vmatpush1.bf16.msra.mxu0 0
        %2967 = vmatprep.subr.bf16.mxu0 0
        %2968 = vmatpush1.bf16.msra.mxu0 0
        %2969 = vmatprep.subr.bf16.mxu0 0
        %2970 = vmatpush1.bf16.msra.mxu0 0
        %2971 = vmatprep.subr.bf16.mxu0 0
        %2972 = vmatpush1.bf16.msra.mxu0 0
        %2973 = vmatprep.subr.bf16.mxu0 0
        %2974 = vmatpush1.bf16.msra.mxu0 0
        %2975 = vmatprep.subr.bf16.mxu0 0
        %2976 = vmatpush1.bf16.msra.mxu0 0
        %2977 = vmatprep.mubr.bf16.mxu0 0
        %2978 = vmatmul.mubr.bf16.gmra.mrb[0].mxu0 %v2934
        %v2979 = vpop.f32.mrb[0].mxu0
        %v2980 = vadd.f32 0.0, %v2979
        %v2981 = vpop.f32.mrb[0].mxu0
        %v2982 = vpop.f32.mrb[0].mxu0
        %v2983 = vadd.f32 0.0, %v2982
        %v2984 = vpop.f32.mrb[0].mxu0
        %2985 = vmatprep.mubr.bf16.mxu0 0
        %2986 = vmatmul.mubr.bf16.gmra.mrb[0].mxu0 %v2937
        %v2987 = vpop.f32.mrb[0].mxu0
        %v2988 = vadd.f32 0.0, %v2987
        %v2989 = vpop.f32.mrb[0].mxu0
        %v2990 = vpop.f32.mrb[0].mxu0
        %v2991 = vadd.f32 0.0, %v2990
        %v2992 = vpop.f32.mrb[0].mxu0
        %2993 = vmatprep.mubr.bf16.mxu0 0
        %2994 = vmatmul.mubr.bf16.gmra.mrb[0].mxu0 %v2940
        %v2995 = vpop.f32.mrb[0].mxu0
        %v2996 = vadd.f32 0.0, %v2995
        %v2997 = vpop.f32.mrb[0].mxu0
        %v2998 = vpop.f32.mrb[0].mxu0
        %v2999 = vadd.f32 0.0, %v2998
        %v3000 = vpop.f32.mrb[0].mxu0
        %3001 = vmatprep.mubr.bf16.mxu0 0
        %3002 = vmatmul.mubr.bf16.gmra.mrb[0].mxu0 %v2943
        %v3003 = vpop.f32.mrb[0].mxu0
        %v3004 = vadd.f32 0.0, %v3003
        %v3005 = vpop.f32.mrb[0].mxu0
        %v3006 = vpop.f32.mrb[0].mxu0
        %v3007 = vadd.f32 0.0, %v3006
        %v3008 = vpop.f32.mrb[0].mxu0
        %3009 = vdwg.mxu0
        %3018 = vrot.lane.b32.xlu0 %v2980, 12
        %v3019 = vpop.permute.xlu0 %3018
        %3020 = vrot.lane.b32.xlu0 %v2983, 12
        %v3021 = vpop.permute.xlu0 %3020
        %3022 = vrot.lane.b32.xlu0 %v2988, 12
        %v3023 = vpop.permute.xlu0 %3022
        %3024 = vrot.lane.b32.xlu0 %v2991, 12
        %v3025 = vpop.permute.xlu0 %3024
        %3026 = vrot.lane.b32.xlu0 %v2996, 12
        %v3027 = vpop.permute.xlu0 %3026
        %3028 = vrot.lane.b32.xlu0 %v2999, 12
        %v3029 = vpop.permute.xlu0 %3028
        %3030 = vrot.lane.b32.xlu0 %v3004, 12
        %v3031 = vpop.permute.xlu0 %3030
        %3032 = vrot.lane.b32.xlu0 %v3007, 12
        %v3033 = vpop.permute.xlu0 %3032
        %vm3042 = vcmask 113760
        %3043 = vst.msk [vmem:[#allocation2] sm:$0xff] %vm3042, %v3019
        %3044 = vst.msk [vmem:[#allocation2 + $0x8] sm:$0xff] %vm3042, %v3021
        %3045 = vst.msk [vmem:[#allocation2 + $0x10] sm:$0xff] %vm3042, %v3023
        %3046 = vst.msk [vmem:[#allocation2 + $0x18] sm:$0xff] %vm3042, %v3025
        %3047 = vst.msk [vmem:[#allocation2 + $0x20] sm:$0xff] %vm3042, %v3027
        %3048 = vst.msk [vmem:[#allocation2 + $0x28] sm:$0xff] %vm3042, %v3029
        %3049 = vst.msk [vmem:[#allocation2 + $0x30] sm:$0xff] %vm3042, %v3031
        %3050 = vst.msk [vmem:[#allocation2 + $0x38] sm:$0xff] %vm3042, %v3033
        %3051 = vrot.lane.b32.xlu0 %v329, 114
        %v3052 = vpop.permute.xlu0 %3051
        %3053 = vrot.lane.b32.xlu0 %v330, 114
        %v3054 = vpop.permute.xlu0 %3053
        %3055 = vrot.lane.b32.xlu0 %v331, 114
        %v3056 = vpop.permute.xlu0 %3055
        %3057 = vrot.lane.b32.xlu0 %v332, 114
        %v3058 = vpop.permute.xlu0 %3057
        %3059 = vrot.lane.b32.xlu0 %v333, 114
        %v3060 = vpop.permute.xlu0 %3059
        %3061 = vrot.lane.b32.xlu0 %v334, 114
        %v3062 = vpop.permute.xlu0 %3061
        %3063 = vrot.lane.b32.xlu0 %v335, 114
        %v3064 = vpop.permute.xlu0 %3063
        %3065 = vrot.lane.b32.xlu0 %v336, 114
        %v3066 = vpop.permute.xlu0 %3065
        %3067 = vrot.lane.b32.xlu0 %v299, 98
        %v3068 = vpop.permute.xlu0 %3067
        %3069 = vrot.lane.b32.xlu0 %v302, 98
        %v3070 = vpop.permute.xlu0 %3069
        %3071 = vrot.lane.b32.xlu0 %v307, 98
        %v3072 = vpop.permute.xlu0 %3071
        %3073 = vrot.lane.b32.xlu0 %v310, 98
        %v3074 = vpop.permute.xlu0 %3073
        %3075 = vrot.lane.b32.xlu0 %v315, 98
        %v3076 = vpop.permute.xlu0 %3075
        %3077 = vrot.lane.b32.xlu0 %v318, 98
        %v3078 = vpop.permute.xlu0 %3077
        %3079 = vrot.lane.b32.xlu0 %v323, 98
        %v3080 = vpop.permute.xlu0 %3079
        %3081 = vrot.lane.b32.xlu0 %v326, 98
        %v3082 = vpop.permute.xlu0 %3081
        %v3083 = vsel %vm365, %v3052, 0
        %v3085 = vsel %vm365, %v3054, 0
        %v3087 = vsel %vm365, %v3056, 0
        %v3089 = vsel %vm365, %v3058, 0
        %v3091 = vsel %vm365, %v3060, 0
        %v3093 = vsel %vm365, %v3062, 0
        %v3095 = vsel %vm365, %v3064, 0
        %v3097 = vsel %vm365, %v3066, 0
        %v3099 = vsel %vm365, %v3068, 0
        %v3101 = vsel %vm365, %v3070, 0
        %v3103 = vsel %vm365, %v3072, 0
        %v3105 = vsel %vm365, %v3074, 0
        %v3107 = vsel %vm365, %v3076, 0
        %v3109 = vsel %vm365, %v3078, 0
        %v3111 = vsel %vm365, %v3080, 0
        %v3113 = vsel %vm365, %v3082, 0
        %3115 = vmatprep.subr.mxu0 0.0
        %3116 = vmatpush1.xpose.msra.mxu0 %v3099
        %3117 = vmatprep.subr.mxu0 0.0
        %3118 = vmatpush1.xpose.msra.mxu0 %v3101
        %3119 = vmatprep.subr.mxu0 0.0
        %3120 = vmatpush1.xpose.msra.mxu0 %v3103
        %3121 = vmatprep.subr.mxu0 0.0
        %3122 = vmatpush1.xpose.msra.mxu0 %v3105
        %3123 = vmatprep.subr.mxu0 0.0
        %3124 = vmatpush1.xpose.msra.mxu0 %v3107
        %3125 = vmatprep.subr.mxu0 0.0
        %3126 = vmatpush1.xpose.msra.mxu0 %v3109
        %3127 = vmatprep.subr.mxu0 0.0
        %3128 = vmatpush1.xpose.msra.mxu0 %v3111
        %3129 = vmatprep.subr.mxu0 0.0
        %3130 = vmatpush1.xpose.msra.mxu0 %v3113
        %3131 = vmatprep.subr.mxu0 0.0
        %3132 = vmatpush1.xpose.msra.mxu0 0.0
        %3133 = vmatprep.subr.mxu0 0.0
        %3134 = vmatpush1.xpose.msra.mxu0 0.0
        %3135 = vmatprep.subr.mxu0 0.0
        %3136 = vmatpush1.xpose.msra.mxu0 0.0
        %3137 = vmatprep.subr.mxu0 0.0
        %3138 = vmatpush1.xpose.msra.mxu0 0.0
        %3139 = vmatprep.subr.mxu0 0.0
        %3140 = vmatpush1.xpose.msra.mxu0 0.0
        %3141 = vmatprep.subr.mxu0 0.0
        %3142 = vmatpush1.xpose.msra.mxu0 0.0
        %3143 = vmatprep.subr.mxu0 0.0
        %3144 = vmatpush1.xpose.msra.mxu0 0.0
        %3145 = vmatprep.subr.mxu0 0.0
        %3146 = vmatpush1.xpose.msra.mxu0 0.0
        %3147 = vmatprep.subr.mxu0 0.0
        %3148 = vmatpush1.xpose.msra.mxu0 0.0
        %3149 = vmatprep.subr.mxu0 0.0
        %3150 = vmatpush1.xpose.msra.mxu0 0.0
        %3151 = vmatprep.subr.mxu0 0.0
        %3152 = vmatpush1.xpose.msra.mxu0 0.0
        %3153 = vmatprep.subr.mxu0 0.0
        %3154 = vmatpush1.xpose.msra.mxu0 0.0
        %3155 = vmatprep.subr.mxu0 0.0
        %3156 = vmatpush1.xpose.msra.mxu0 0.0
        %3157 = vmatprep.subr.mxu0 0.0
        %3158 = vmatpush1.xpose.msra.mxu0 0.0
        %3159 = vmatprep.subr.mxu0 0.0
        %3160 = vmatpush1.xpose.msra.mxu0 0.0
        %3161 = vmatprep.subr.mxu0 0.0
        %3162 = vmatpush1.xpose.msra.mxu0 0.0
        %3163 = vmatprep.subr.mxu0 0.0
        %3164 = vmatpush1.xpose.msra.mxu0 0.0
        %3165 = vmatprep.subr.mxu0 0.0
        %3166 = vmatpush1.xpose.msra.mxu0 0.0
        %3167 = vmatprep.subr.mxu0 0.0
        %3168 = vmatpush1.xpose.msra.mxu0 0.0
        %3169 = vmatprep.subr.mxu0 0.0
        %3170 = vmatpush1.xpose.msra.mxu0 0.0
        %3171 = vmatprep.subr.mxu0 0.0
        %3172 = vmatpush1.xpose.msra.mxu0 0.0
        %3173 = vmatprep.subr.mxu0 0.0
        %3174 = vmatpush1.xpose.msra.mxu0 0.0
        %3175 = vmatprep.subr.mxu0 0.0
        %3176 = vmatpush1.xpose.msra.mxu0 0.0
        %3177 = vmatprep.subr.mxu0 0.0
        %3178 = vmatpush1.xpose.msra.mxu0 0.0
        %3179 = vmatprep.mubr.f32.mxu0 0.0
        %3180 = vmatmul.mubr.f32.gmra.mrb[0].mxu0 %v3083
        %v3181 = vpop.f32.mrb[0].mxu0
        %v3182 = vadd.f32 0.0, %v3181
        %v3183 = vpop.f32.mrb[0].mxu0
        %3184 = vmatprep.mubr.f32.mxu0 0.0
        %3185 = vmatmul.mubr.f32.gmra.mrb[0].mxu0 %v3085
        %v3186 = vpop.f32.mrb[0].mxu0
        %v3187 = vadd.f32 0.0, %v3186
        %v3188 = vpop.f32.mrb[0].mxu0
        %3189 = vmatprep.mubr.f32.mxu0 0.0
        %3190 = vmatmul.mubr.f32.gmra.mrb[0].mxu0 %v3087
        %v3191 = vpop.f32.mrb[0].mxu0
        %v3192 = vadd.f32 0.0, %v3191
        %v3193 = vpop.f32.mrb[0].mxu0
        %3194 = vmatprep.mubr.f32.mxu0 0.0
        %3195 = vmatmul.mubr.f32.gmra.mrb[0].mxu0 %v3089
        %v3196 = vpop.f32.mrb[0].mxu0
        %v3197 = vadd.f32 0.0, %v3196
        %v3198 = vpop.f32.mrb[0].mxu0
        %3199 = vmatprep.mubr.f32.mxu0 0.0
        %3200 = vmatmul.mubr.f32.gmra.mrb[0].mxu0 %v3091
        %v3201 = vpop.f32.mrb[0].mxu0
        %v3202 = vadd.f32 0.0, %v3201
        %v3203 = vpop.f32.mrb[0].mxu0
        %3204 = vmatprep.mubr.f32.mxu0 0.0
        %3205 = vmatmul.mubr.f32.gmra.mrb[0].mxu0 %v3093
        %v3206 = vpop.f32.mrb[0].mxu0
        %v3207 = vadd.f32 0.0, %v3206
        %v3208 = vpop.f32.mrb[0].mxu0
        %3209 = vmatprep.mubr.f32.mxu0 0.0
        %3210 = vmatmul.mubr.f32.gmra.mrb[0].mxu0 %v3095
        %v3211 = vpop.f32.mrb[0].mxu0
        %v3212 = vadd.f32 0.0, %v3211
        %v3213 = vpop.f32.mrb[0].mxu0
        %3214 = vmatprep.mubr.f32.mxu0 0.0
        %3215 = vmatmul.mubr.f32.gmra.mrb[0].mxu0 %v3097
        %v3216 = vpop.f32.mrb[0].mxu0
        %v3217 = vadd.f32 0.0, %v3216
        %v3218 = vpop.f32.mrb[0].mxu0
        %3219 = vdwg.mxu0
        %v3220 = vsel %vm511, %v3182, -inf
        %3221 = vmax.xlane.f32.xlu0 %v3220
        %v3222 = vpop.xlane.xlu0 %3221
        %v3223 = vsel %vm511, %v3187, -inf
        %3224 = vmax.xlane.f32.xlu0 %v3223
        %v3225 = vpop.xlane.xlu0 %3224
        %v3226 = vsel %vm511, %v3192, -inf
        %3227 = vmax.xlane.f32.xlu0 %v3226
        %v3228 = vpop.xlane.xlu0 %3227
        %v3229 = vsel %vm511, %v3197, -inf
        %3230 = vmax.xlane.f32.xlu0 %v3229
        %v3231 = vpop.xlane.xlu0 %3230
        %v3232 = vsel %vm511, %v3202, -inf
        %3233 = vmax.xlane.f32.xlu0 %v3232
        %v3234 = vpop.xlane.xlu0 %3233
        %v3235 = vsel %vm511, %v3207, -inf
        %3236 = vmax.xlane.f32.xlu0 %v3235
        %v3237 = vpop.xlane.xlu0 %3236
        %v3238 = vsel %vm511, %v3212, -inf
        %3239 = vmax.xlane.f32.xlu0 %v3238
        %v3240 = vpop.xlane.xlu0 %3239
        %v3241 = vsel %vm511, %v3217, -inf
        %3242 = vmax.xlane.f32.xlu0 %v3241
        %v3243 = vpop.xlane.xlu0 %3242
        %v3244 = vsub.f32 %v3182, %v3222
        %v3245 = vsub.f32 %v3187, %v3225
        %v3246 = vsub.f32 %v3192, %v3228
        %v3247 = vsub.f32 %v3197, %v3231
        %v3248 = vsub.f32 %v3202, %v3234
        %v3249 = vsub.f32 %v3207, %v3237
        %v3250 = vsub.f32 %v3212, %v3240
        %v3251 = vsub.f32 %v3217, %v3243
        %v3252 = vmul.f32 %v3244, 1.442695
        %v3253 = vpow.pop %v3252
        %v3254 = vmul.f32 %v3245, 1.442695
        %v3255 = vpow.pop %v3254
        %v3256 = vmul.f32 %v3246, 1.442695
        %v3257 = vpow.pop %v3256
        %v3258 = vmul.f32 %v3247, 1.442695
        %v3259 = vpow.pop %v3258
        %v3260 = vmul.f32 %v3248, 1.442695
        %v3261 = vpow.pop %v3260
        %v3262 = vmul.f32 %v3249, 1.442695
        %v3263 = vpow.pop %v3262
        %v3264 = vmul.f32 %v3250, 1.442695
        %v3265 = vpow.pop %v3264
        %v3266 = vmul.f32 %v3251, 1.442695
        %v3267 = vpow.pop %v3266
        %v3268 = vsel %vm511, %v3253, 0.0
        %3269 = vadd.xlane.f32.xlu0 %v3268
        %v3270 = vpop.xlane.xlu0 %3269
        %v3271 = vsel %vm511, %v3255, 0.0
        %3272 = vadd.xlane.f32.xlu0 %v3271
        %v3273 = vpop.xlane.xlu0 %3272
        %v3274 = vsel %vm511, %v3257, 0.0
        %3275 = vadd.xlane.f32.xlu0 %v3274
        %v3276 = vpop.xlane.xlu0 %3275
        %v3277 = vsel %vm511, %v3259, 0.0
        %3278 = vadd.xlane.f32.xlu0 %v3277
        %v3279 = vpop.xlane.xlu0 %3278
        %v3280 = vsel %vm511, %v3261, 0.0
        %3281 = vadd.xlane.f32.xlu0 %v3280
        %v3282 = vpop.xlane.xlu0 %3281
        %v3283 = vsel %vm511, %v3263, 0.0
        %3284 = vadd.xlane.f32.xlu0 %v3283
        %v3285 = vpop.xlane.xlu0 %3284
        %v3286 = vsel %vm511, %v3265, 0.0
        %3287 = vadd.xlane.f32.xlu0 %v3286
        %v3288 = vpop.xlane.xlu0 %3287
        %v3289 = vsel %vm511, %v3267, 0.0
        %3290 = vadd.xlane.f32.xlu0 %v3289
        %v3291 = vpop.xlane.xlu0 %3290
        %v3292 = vrcp.pop %v3270
        %v3293 = vrcp.pop %v3273
        %v3294 = vrcp.pop %v3276
        %v3295 = vrcp.pop %v3279
        %v3296 = vrcp.pop %v3282
        %v3297 = vrcp.pop %v3285
        %v3298 = vrcp.pop %v3288
        %v3299 = vrcp.pop %v3291
        %v3300 = vmul.f32 %v3253, %v3292
        %v3301 = vmul.f32 %v3255, %v3293
        %v3302 = vmul.f32 %v3257, %v3294
        %v3303 = vmul.f32 %v3259, %v3295
        %v3304 = vmul.f32 %v3261, %v3296
        %v3305 = vmul.f32 %v3263, %v3297
        %v3306 = vmul.f32 %v3265, %v3298
        %v3307 = vmul.f32 %v3267, %v3299
        %v3308 = vpack.c.bf16 %v3301, %v3300
        %v3309 = vpack.c.bf16 %v3303, %v3302
        %v3310 = vpack.c.bf16 %v3305, %v3304
        %v3311 = vpack.c.bf16 %v3307, %v3306
        %3312 = vrot.lane.b32.xlu0 %v337, 82
        %v3313 = vpop.permute.xlu0 %3312
        %3314 = vrot.lane.b32.xlu0 %v338, 82
        %v3315 = vpop.permute.xlu0 %3314
        %3316 = vrot.lane.b32.xlu0 %v339, 82
        %v3317 = vpop.permute.xlu0 %3316
        %3318 = vrot.lane.b32.xlu0 %v340, 82
        %v3319 = vpop.permute.xlu0 %3318
        %v3325 = vsel %vm511, %v3308, 0
        %v3328 = vsel %vm511, %v3309, 0
        %v3331 = vsel %vm511, %v3310, 0
        %v3334 = vsel %vm511, %v3311, 0
        %3336 = vmatprep.subr.bf16.mxu0 0
        %3337 = vmatpush1.bf16.msra.mxu0 %v3313
        %3338 = vmatprep.subr.bf16.mxu0 0
        %3339 = vmatpush1.bf16.msra.mxu0 %v3315
        %3340 = vmatprep.subr.bf16.mxu0 0
        %3341 = vmatpush1.bf16.msra.mxu0 %v3317
        %3342 = vmatprep.subr.bf16.mxu0 0
        %3343 = vmatpush1.bf16.msra.mxu0 %v3319
        %3344 = vmatprep.subr.bf16.mxu0 0
        %3345 = vmatpush1.bf16.msra.mxu0 0
        %3346 = vmatprep.subr.bf16.mxu0 0
        %3347 = vmatpush1.bf16.msra.mxu0 0
        %3348 = vmatprep.subr.bf16.mxu0 0
        %3349 = vmatpush1.bf16.msra.mxu0 0
        %3350 = vmatprep.subr.bf16.mxu0 0
        %3351 = vmatpush1.bf16.msra.mxu0 0
        %3352 = vmatprep.subr.bf16.mxu0 0
        %3353 = vmatpush1.bf16.msra.mxu0 0
        %3354 = vmatprep.subr.bf16.mxu0 0
        %3355 = vmatpush1.bf16.msra.mxu0 0
        %3356 = vmatprep.subr.bf16.mxu0 0
        %3357 = vmatpush1.bf16.msra.mxu0 0
        %3358 = vmatprep.subr.bf16.mxu0 0
        %3359 = vmatpush1.bf16.msra.mxu0 0
        %3360 = vmatprep.subr.bf16.mxu0 0
        %3361 = vmatpush1.bf16.msra.mxu0 0
        %3362 = vmatprep.subr.bf16.mxu0 0
        %3363 = vmatpush1.bf16.msra.mxu0 0
        %3364 = vmatprep.subr.bf16.mxu0 0
        %3365 = vmatpush1.bf16.msra.mxu0 0
        %3366 = vmatprep.subr.bf16.mxu0 0
        %3367 = vmatpush1.bf16.msra.mxu0 0
        %3368 = vmatprep.mubr.bf16.mxu0 0
        %3369 = vmatmul.mubr.bf16.gmra.mrb[0].mxu0 %v3325
        %v3370 = vpop.f32.mrb[0].mxu0
        %v3371 = vadd.f32 0.0, %v3370
        %v3372 = vpop.f32.mrb[0].mxu0
        %v3373 = vpop.f32.mrb[0].mxu0
        %v3374 = vadd.f32 0.0, %v3373
        %v3375 = vpop.f32.mrb[0].mxu0
        %3376 = vmatprep.mubr.bf16.mxu0 0
        %3377 = vmatmul.mubr.bf16.gmra.mrb[0].mxu0 %v3328
        %v3378 = vpop.f32.mrb[0].mxu0
        %v3379 = vadd.f32 0.0, %v3378
        %v3380 = vpop.f32.mrb[0].mxu0
        %v3381 = vpop.f32.mrb[0].mxu0
        %v3382 = vadd.f32 0.0, %v3381
        %v3383 = vpop.f32.mrb[0].mxu0
        %3384 = vmatprep.mubr.bf16.mxu0 0
        %3385 = vmatmul.mubr.bf16.gmra.mrb[0].mxu0 %v3331
        %v3386 = vpop.f32.mrb[0].mxu0
        %v3387 = vadd.f32 0.0, %v3386
        %v3388 = vpop.f32.mrb[0].mxu0
        %v3389 = vpop.f32.mrb[0].mxu0
        %v3390 = vadd.f32 0.0, %v3389
        %v3391 = vpop.f32.mrb[0].mxu0
        %3392 = vmatprep.mubr.bf16.mxu0 0
        %3393 = vmatmul.mubr.bf16.gmra.mrb[0].mxu0 %v3334
        %v3394 = vpop.f32.mrb[0].mxu0
        %v3395 = vadd.f32 0.0, %v3394
        %v3396 = vpop.f32.mrb[0].mxu0
        %v3397 = vpop.f32.mrb[0].mxu0
        %v3398 = vadd.f32 0.0, %v3397
        %v3399 = vpop.f32.mrb[0].mxu0
        %3400 = vdwg.mxu0
        %3409 = vrot.lane.b32.xlu0 %v3371, 14
        %v3410 = vpop.permute.xlu0 %3409
        %3411 = vrot.lane.b32.xlu0 %v3374, 14
        %v3412 = vpop.permute.xlu0 %3411
        %3413 = vrot.lane.b32.xlu0 %v3379, 14
        %v3414 = vpop.permute.xlu0 %3413
        %3415 = vrot.lane.b32.xlu0 %v3382, 14
        %v3416 = vpop.permute.xlu0 %3415
        %3417 = vrot.lane.b32.xlu0 %v3387, 14
        %v3418 = vpop.permute.xlu0 %3417
        %3419 = vrot.lane.b32.xlu0 %v3390, 14
        %v3420 = vpop.permute.xlu0 %3419
        %3421 = vrot.lane.b32.xlu0 %v3395, 14
        %v3422 = vpop.permute.xlu0 %3421
        %3423 = vrot.lane.b32.xlu0 %v3398, 14
        %v3424 = vpop.permute.xlu0 %3423
        %vm3433 = vcmask 130160
        %3434 = vst.msk [vmem:[#allocation2] sm:$0xff] %vm3433, %v3410
        %3435 = vst.msk [vmem:[#allocation2 + $0x8] sm:$0xff] %vm3433, %v3412
        %3436 = vst.msk [vmem:[#allocation2 + $0x10] sm:$0xff] %vm3433, %v3414
        %3437 = vst.msk [vmem:[#allocation2 + $0x18] sm:$0xff] %vm3433, %v3416
        %3438 = vst.msk [vmem:[#allocation2 + $0x20] sm:$0xff] %vm3433, %v3418
        %3439 = vst.msk [vmem:[#allocation2 + $0x28] sm:$0xff] %vm3433, %v3420
        %3440 = vst.msk [vmem:[#allocation2 + $0x30] sm:$0xff] %vm3433, %v3422
        %3441 = vst.msk [vmem:[#allocation2 + $0x38] sm:$0xff] %vm3433, %v3424
        %v3442 = vld [vmem:[#allocation2] sm:$0xff]
        %v3443 = vld [vmem:[#allocation2 + $0x8] sm:$0xff]
        %v3444 = vld [vmem:[#allocation2 + $0x10] sm:$0xff]
        %v3445 = vld [vmem:[#allocation2 + $0x18] sm:$0xff]
        %v3446 = vld [vmem:[#allocation2 + $0x20] sm:$0xff]
        %v3447 = vld [vmem:[#allocation2 + $0x28] sm:$0xff]
        %v3448 = vld [vmem:[#allocation2 + $0x30] sm:$0xff]
        %v3449 = vld [vmem:[#allocation2 + $0x38] sm:$0xff]
        %v3450 = vpack.c.bf16 %v3443, %v3442
        %v3451 = vpack.c.bf16 %v3445, %v3444
        %v3452 = vpack.c.bf16 %v3447, %v3446
        %v3453 = vpack.c.bf16 %v3449, %v3448
        %v3454 = vld [vmem:[%s3] sm:$0xf]
        %v3455 = vld [vmem:[%s3 + $0x4] sm:$0xf]
        %v3456 = vld [vmem:[%s4] sm:$0x1]
        %v3458 = vlaneseq
        %v3459 = vshrl.u32 %v3458, 7
        %v3460 = vsub.s32 0, %v3459
        %v3461 = vrot.slane %v3456, %v3460
        %v3465 = vunpack.c.l.b16 %v3454
        %v3466 = vunpack.c.l.b16 %v3455
        %v3467 = vpack.c.b16 %v3466, %v3465
        %v3470 = vsel %vm251, %v3450, 0
        %v3473 = vsel %vm251, %v3451, 0
        %v3476 = vsel %vm251, %v3452, 0
        %v3479 = vsel %vm251, %v3453, 0
        %3481 = vmatprep.subr.bf16.mxu0 0
        %3482 = vmatpush1.bf16.msra.mxu0 %v3467
        %3483 = vmatprep.subr.bf16.mxu0 0
        %3484 = vmatpush1.bf16.msra.mxu0 0
        %3485 = vmatprep.subr.bf16.mxu0 0
        %3486 = vmatpush1.bf16.msra.mxu0 0
        %3487 = vmatprep.subr.bf16.mxu0 0
        %3488 = vmatpush1.bf16.msra.mxu0 0
        %3489 = vmatprep.subr.bf16.mxu0 0
        %3490 = vmatpush1.bf16.msra.mxu0 0
        %3491 = vmatprep.subr.bf16.mxu0 0
        %3492 = vmatpush1.bf16.msra.mxu0 0
        %3493 = vmatprep.subr.bf16.mxu0 0
        %3494 = vmatpush1.bf16.msra.mxu0 0
        %3495 = vmatprep.subr.bf16.mxu0 0
        %3496 = vmatpush1.bf16.msra.mxu0 0
        %3497 = vmatprep.subr.bf16.mxu0 0
        %3498 = vmatpush1.bf16.msra.mxu0 0
        %3499 = vmatprep.subr.bf16.mxu0 0
        %3500 = vmatpush1.bf16.msra.mxu0 0
        %3501 = vmatprep.subr.bf16.mxu0 0
        %3502 = vmatpush1.bf16.msra.mxu0 0
        %3503 = vmatprep.subr.bf16.mxu0 0
        %3504 = vmatpush1.bf16.msra.mxu0 0
        %3505 = vmatprep.subr.bf16.mxu0 0
        %3506 = vmatpush1.bf16.msra.mxu0 0
        %3507 = vmatprep.subr.bf16.mxu0 0
        %3508 = vmatpush1.bf16.msra.mxu0 0
        %3509 = vmatprep.subr.bf16.mxu0 0
        %3510 = vmatpush1.bf16.msra.mxu0 0
        %3511 = vmatprep.subr.bf16.mxu0 0
        %3512 = vmatpush1.bf16.msra.mxu0 0
        %3513 = vmatprep.mubr.bf16.mxu0 0
        %3514 = vmatmul.mubr.bf16.gmra.mrb[0].mxu0 %v3470
        %v3515 = vpop.f32.mrb[0].mxu0
        %v3516 = vadd.f32 %v3461, %v3515
        %v3517 = vpop.f32.mrb[0].mxu0
        %v3518 = vpop.f32.mrb[0].mxu0
        %v3519 = vadd.f32 %v3461, %v3518
        %v3520 = vpop.f32.mrb[0].mxu0
        %3521 = vmatprep.mubr.bf16.mxu0 0
        %3522 = vmatmul.mubr.bf16.gmra.mrb[0].mxu0 %v3473
        %v3523 = vpop.f32.mrb[0].mxu0
        %v3524 = vadd.f32 %v3461, %v3523
        %v3525 = vpop.f32.mrb[0].mxu0
        %v3526 = vpop.f32.mrb[0].mxu0
        %v3527 = vadd.f32 %v3461, %v3526
        %v3528 = vpop.f32.mrb[0].mxu0
        %3529 = vmatprep.mubr.bf16.mxu0 0
        %3530 = vmatmul.mubr.bf16.gmra.mrb[0].mxu0 %v3476
        %v3531 = vpop.f32.mrb[0].mxu0
        %v3532 = vadd.f32 %v3461, %v3531
        %v3533 = vpop.f32.mrb[0].mxu0
        %v3534 = vpop.f32.mrb[0].mxu0
        %v3535 = vadd.f32 %v3461, %v3534
        %v3536 = vpop.f32.mrb[0].mxu0
        %3537 = vmatprep.mubr.bf16.mxu0 0
        %3538 = vmatmul.mubr.bf16.gmra.mrb[0].mxu0 %v3479
        %v3539 = vpop.f32.mrb[0].mxu0
        %v3540 = vadd.f32 %v3461, %v3539
        %v3541 = vpop.f32.mrb[0].mxu0
        %v3542 = vpop.f32.mrb[0].mxu0
        %v3543 = vadd.f32 %v3461, %v3542
        %v3544 = vpop.f32.mrb[0].mxu0
        %3545 = vdwg.mxu0
        %vm3546 = vcmp.ge.f32.partialorder %v3516, 0.0
        %vm3547 = vcmp.ge.f32.partialorder %v3519, 0.0
        %vm3548 = vcmp.ge.f32.partialorder %v3524, 0.0
        %vm3549 = vcmp.ge.f32.partialorder %v3527, 0.0
        %vm3550 = vcmp.ge.f32.partialorder %v3532, 0.0
        %vm3551 = vcmp.ge.f32.partialorder %v3535, 0.0
        %vm3552 = vcmp.ge.f32.partialorder %v3540, 0.0
        %vm3553 = vcmp.ge.f32.partialorder %v3543, 0.0
        %v3554 = vmul.f32 %v3516, 0.2
        %v3555 = vmul.f32 %v3519, 0.2
        %v3556 = vmul.f32 %v3524, 0.2
        %v3557 = vmul.f32 %v3527, 0.2
        %v3558 = vmul.f32 %v3532, 0.2
        %v3559 = vmul.f32 %v3535, 0.2
        %v3560 = vmul.f32 %v3540, 0.2
        %v3561 = vmul.f32 %v3543, 0.2
        %v3562 = vsel %vm3546, %v3516, %v3554
        %v3563 = vsel %vm3547, %v3519, %v3555
        %v3564 = vsel %vm3548, %v3524, %v3556
        %v3565 = vsel %vm3549, %v3527, %v3557
        %v3566 = vsel %vm3550, %v3532, %v3558
        %v3567 = vsel %vm3551, %v3535, %v3559
        %v3568 = vsel %vm3552, %v3540, %v3560
        %v3569 = vsel %vm3553, %v3543, %v3561
        %3570 = vst.msk [vmem:[%s217] sm:$0xff] %vm251, %v3562
        %3571 = vst.msk [vmem:[%s217 + $0x8] sm:$0xff] %vm251, %v3563
        %3572 = vst.msk [vmem:[%s217 + $0x10] sm:$0xff] %vm251, %v3564
        %3573 = vst.msk [vmem:[%s217 + $0x18] sm:$0xff] %vm251, %v3565
        %3574 = vst.msk [vmem:[%s217 + $0x20] sm:$0xff] %vm251, %v3566
        %3575 = vst.msk [vmem:[%s217 + $0x28] sm:$0xff] %vm251, %v3567
        %3576 = vst.msk [vmem:[%s217 + $0x30] sm:$0xff] %vm251, %v3568
        %3577 = vst.msk [vmem:[%s217 + $0x38] sm:$0xff] %vm251, %v3569
        %s3578 = sand.u32 %s137, 1
        %s3579 = scalar_lea.sflag [#allocation4], %s3578
        %s3580 = sand.u32 %s137, 1
        %s3581 = smul.addr %s3580, 64
        %s3582 = scalar_lea.vmem [#allocation3], %s3581
        // Predicated region
        $region41: #{encoder_block_forward.3} parent=39 // pred_check
          %p3583 = pneg %p147
        $region42: #{encoder_block_forward.3} parent=39 // pred_check_branch
          %3585 = sbr.rel (%p3583) target = $region44
        $region43: #{encoder_block_forward.3} parent=39 // pred_region
          %s3587 = ssub.s32 1024, 1024
          %3588 = vsyncadd %s3579, %s3587
          %s3589 = smul.addr %s19, 8
          %s3590 = smul.addr %s3589, 128
          %s3591 = scalar_lea.hbm %s5, %s3590
          %s3592 = sshll.u32 %s3582, 4
          %s3593 = int_to_ptr.vmem [resolvable:$true] %s3592
          %3598 = dma.vmem_to_hbm [thread:$0]  %s3593, 1024, %s3591, %s3579, 128, 128, 8
        $region44: #{encoder_block_forward.3} parent=39 // pred_fallthru
          _
      $region40: #{encoder_block_forward.3} parent=5 // pred_fallthru
        _
      %p3599 = scmp.le.s32.totalorder 2, %s14
      // Predicated region
      $region45: #{encoder_block_forward.3} parent=5 // pred_check
        %p3600 = pneg %p3599
      $region46: #{encoder_block_forward.3} parent=5 // pred_check_branch
        %3602 = sbr.rel (%p3600) target = $region48
      $region47: #{encoder_block_forward.3} parent=5 // pred_region
        %s3603 = ssub.s32 %s14, 2
        // Predicated region
        $region49: #{encoder_block_forward.3} parent=47 // pred_check
          %p3604 = pneg %p153
        $region50: #{encoder_block_forward.3} parent=47 // pred_check_branch
          %3606 = sbr.rel (%p3604) target = $region52
        $region51: #{encoder_block_forward.3} parent=47 // pred_region
          %s3607 = sand.u32 %s138, 1
          %s3608 = scalar_lea.sflag [#allocation4], %s3607
          %s3609 = sand.u32 %s138, 1
          %s3610 = smul.addr %s3609, 64
          %s3611 = scalar_lea.vmem [#allocation3], %s3610
          %3612 = dma.done %s3608, 1024
        $region52: #{encoder_block_forward.3} parent=47 // pred_fallthru
          _
      $region48: #{encoder_block_forward.3} parent=5 // pred_fallthru
        _
    $region6: #{encoder_block_forward.3} parent=1 // loop_footer
      %s18 = sadd.s32 1, %s14
    $region7: #{encoder_block_forward.3} parent=1 // loop_footer_branch
      %13 = sbr.rel target = $region3
    $region8: #{encoder_block_forward.3} parent=1 // loop_exit
      _
    %3613 = vsyncpa [#allocation4], 1
    %s3614 = scalar_lea.sflag [#allocation4], 1
    %3615 = vsyncpa %s3614, 1

// kernel: encoder_block_forward.2
$region0: #{encoder_block_forward.2}
  #allocation0 [shape = 'u32[]', space=smem, size = 0x4, offset = 0x4, fixed_abs, tag = 'smem constant byte address 0x4 - core index']
  #allocation1 [shape = 'u32[144,128]{1,0:T(1,128)}', space=vmem, size = 0x12000, scoped, tag = 'internal scratch']
  #allocation2 [shape = 'f32[82,16]{1,0:T(8,128)}', space=vmem, size = 0xb000, scoped, tag = 'scratch operand']
  %s0 = inlined_call_operand.vmem [shape: f32[2,82,4], index: 0, kind: input, shape index: {}]
  %s1 = inlined_call_operand.vmem [shape: bf16[9,4,16], index: 1, kind: input, shape index: {}]
  %s2 = inlined_call_operand.vmem [shape: bf16[9,16,16], index: 2, kind: input, shape index: {}]
  %s3 = inlined_call_operand.vmem [shape: f32[2,64,16], index: 3, kind: output, shape index: {}]
  %s4 = sld [smem:[#allocation0]]
  $region45: #{encoder_block_forward.2} parent=0
    _
  %s6 = ssub.s32 1, %s4
  %s7 = scalar_select 0, %s6, %s4
  loop: start=0, step=1, limit=4
  $region2: #{encoder_block_forward.2} parent=0 // loop_pre_header
    _
  $region3: #{encoder_block_forward.2} parent=0 // loop_header
    %s9 = sphi 0, %s13
    %p10 = scmp.ge.s32.totalorder %s9, 4
    %s19 = sphi 0, %s21
    %s22 = sphi 0, %s19
    %s23 = sphi 0, %s22
    %s39 = sphi 0, %s23
    %s43 = sphi 0, %s43
    %s45 = sphi 0, %s43
    %s46 = sphi 0, %s45
    %s60 = sphi 0, %s46
    %s64 = sphi 0, %s64
    %s66 = sphi 0, %s64
    %s67 = sphi 0, %s66
    %s81 = sphi 0, %s67
    %s87 = sphi 0, %s89
    %s90 = sphi 0, %s87
    %s91 = sphi 0, %s90
    %s107 = sphi 0, %s91
  $region4: #{encoder_block_forward.2} parent=0 // loop_header_branch
    %12 = sbr.rel (%p10) target = $region8
  $region5: #{encoder_block_forward.2} parent=0 // loop_body
    %s14 = ssub.s32 %s9, 1
    %s15 = ssub.s32 %s9, 2
    %s16 = sadd.s32 %s9, 1
    %s17 = ssub.s32 %s9, %s16
    %p18 = scmp.eq.s32.totalorder %s17, 0
    %s20 = sadd.s32 %s19, 1
    %s21 = scalar_select %p18, %s19, %s20
    %p24 = pneg %p18
    %p25 = scmp.eq.s32.totalorder %s9, 1
    %p26 = por %p24, %p25
    %p27 = scmp.ne.s32.totalorder %s19, %s22
    %p28 = scmp.eq.s32.totalorder %s9, 0
    %p29 = por %p27, %p28
    %p30 = scmp.ne.s32.totalorder %s19, %s22
    %p31 = scmp.eq.s32.totalorder %s14, 1
    %p32 = por %p30, %p31
    %p33 = scmp.ne.s32.totalorder %s22, %s23
    %p34 = scmp.eq.s32.totalorder %s14, 0
    %p35 = por %p33, %p34
    %p36 = scmp.ne.s32.totalorder %s22, %s23
    %p37 = scmp.eq.s32.totalorder %s15, 1
    %p38 = por %p36, %p37
    %p40 = scmp.ne.s32.totalorder %s23, %s39
    %p41 = scmp.eq.s32.totalorder %s15, 0
    %p42 = por %p40, %p41
    %s44 = sadd.s32 %s43, 1
    %p47 = scmp.eq.s32.totalorder %s9, 1
    %p48 = scmp.ne.s32.totalorder %s43, %s45
    %p49 = scmp.eq.s32.totalorder %s9, 0
    %p50 = por %p48, %p49
    %p51 = scmp.ne.s32.totalorder %s43, %s45
    %p52 = scmp.eq.s32.totalorder %s14, 1
    %p53 = por %p51, %p52
    %p54 = scmp.ne.s32.totalorder %s45, %s46
    %p55 = scmp.eq.s32.totalorder %s14, 0
    %p56 = por %p54, %p55
    %p57 = scmp.ne.s32.totalorder %s45, %s46
    %p58 = scmp.eq.s32.totalorder %s15, 1
    %p59 = por %p57, %p58
    %p61 = scmp.ne.s32.totalorder %s46, %s60
    %p62 = scmp.eq.s32.totalorder %s15, 0
    %p63 = por %p61, %p62
    %s65 = sadd.s32 %s64, 1
    %p68 = scmp.eq.s32.totalorder %s9, 1
    %p69 = scmp.ne.s32.totalorder %s64, %s66
    %p70 = scmp.eq.s32.totalorder %s9, 0
    %p71 = por %p69, %p70
    %p72 = scmp.ne.s32.totalorder %s64, %s66
    %p73 = scmp.eq.s32.totalorder %s14, 1
    %p74 = por %p72, %p73
    %p75 = scmp.ne.s32.totalorder %s66, %s67
    %p76 = scmp.eq.s32.totalorder %s14, 0
    %p77 = por %p75, %p76
    %p78 = scmp.ne.s32.totalorder %s66, %s67
    %p79 = scmp.eq.s32.totalorder %s15, 1
    %p80 = por %p78, %p79
    %p82 = scmp.ne.s32.totalorder %s67, %s81
    %p83 = scmp.eq.s32.totalorder %s15, 0
    %p84 = por %p82, %p83
    %s85 = ssub.s32 %s9, %s16
    %p86 = scmp.eq.s32.totalorder %s85, 0
    %s88 = sadd.s32 %s87, 1
    %s89 = scalar_select %p86, %s87, %s88
    %p92 = pneg %p86
    %p93 = scmp.eq.s32.totalorder %s9, 1
    %p94 = por %p92, %p93
    %p95 = scmp.ne.s32.totalorder %s87, %s90
    %p96 = scmp.eq.s32.totalorder %s9, 0
    %p97 = por %p95, %p96
    %p98 = scmp.ne.s32.totalorder %s87, %s90
    %p99 = scmp.eq.s32.totalorder %s14, 1
    %p100 = por %p98, %p99
    %p101 = scmp.ne.s32.totalorder %s90, %s91
    %p102 = scmp.eq.s32.totalorder %s14, 0
    %p103 = por %p101, %p102
    %p104 = scmp.ne.s32.totalorder %s90, %s91
    %p105 = scmp.eq.s32.totalorder %s15, 1
    %p106 = por %p104, %p105
    %p108 = scmp.ne.s32.totalorder %s91, %s107
    %p109 = scmp.eq.s32.totalorder %s15, 0
    %p110 = por %p108, %p109
    %p111 = scmp.le.s32.totalorder 1, %s9
    %p112 = scmp.lt.s32.totalorder %s9, 3
    %p113 = pnand %p111, %p112
    %p114 = pneg %p113
    // Predicated region
    $region9: #{encoder_block_forward.2} parent=5 // pred_check
      _
    $region10: #{encoder_block_forward.2} parent=5 // pred_check_branch
      %116 = sbr.rel (%p113) target = $region12
    $region11: #{encoder_block_forward.2} parent=5 // pred_region
      %s117 = ssub.s32 %s9, 1
      // Predicated region
      $region13: #{encoder_block_forward.2} parent=11 // pred_check
        %p118 = pneg %p56
      $region14: #{encoder_block_forward.2} parent=11 // pred_check_branch
        %120 = sbr.rel (%p118) target = $region16
      $region15: #{encoder_block_forward.2} parent=11 // pred_region
        _
      $region16: #{encoder_block_forward.2} parent=11 // pred_fallthru
        _
      // Predicated region
      $region17: #{encoder_block_forward.2} parent=11 // pred_check
        %p121 = pneg %p77
      $region18: #{encoder_block_forward.2} parent=11 // pred_check_branch
        %123 = sbr.rel (%p121) target = $region20
      $region19: #{encoder_block_forward.2} parent=11 // pred_region
        _
      $region20: #{encoder_block_forward.2} parent=11 // pred_fallthru
        _
    $region12: #{encoder_block_forward.2} parent=5 // pred_fallthru
      _
    %p124 = scmp.lt.s32.totalorder %s9, 2
    // Predicated region
    $region21: #{encoder_block_forward.2} parent=5 // pred_check
      %p125 = pneg %p124
    $region22: #{encoder_block_forward.2} parent=5 // pred_check_branch
      %127 = sbr.rel (%p125) target = $region24
    $region23: #{encoder_block_forward.2} parent=5 // pred_region
      // Predicated region
      $region25: #{encoder_block_forward.2} parent=23 // pred_check
        %p128 = pneg %p29
      $region26: #{encoder_block_forward.2} parent=23 // pred_check_branch
        %130 = sbr.rel (%p128) target = $region28
      $region27: #{encoder_block_forward.2} parent=23 // pred_region
        %p131 = scmp.lt.s32.totalorder %s9, 1
        %s132 = scalar_select %p131, %s9, 1
        %s133 = smul.addr %s132, 11
        %s134 = smul.addr %s133, 8
        %s135 = scalar_lea.vmem %s0, %s134
      $region28: #{encoder_block_forward.2} parent=23 // pred_fallthru
        _
    $region24: #{encoder_block_forward.2} parent=5 // pred_fallthru
      _
    %p136 = scmp.le.s32.totalorder 1, %s9
    %p137 = scmp.lt.s32.totalorder %s9, 3
    %p138 = pnand %p136, %p137
    %p139 = pneg %p138
    // Predicated region
    $region29: #{encoder_block_forward.2} parent=5 // pred_check
      _
    $region30: #{encoder_block_forward.2} parent=5 // pred_check_branch
      %141 = sbr.rel (%p138) target = $region32
    $region31: #{encoder_block_forward.2} parent=5 // pred_region
      %s142 = ssub.s32 %s9, 1
      %p143 = scmp.lt.s32.totalorder %s14, 1
      %s144 = scalar_select %p143, %s14, 1
      %s145 = smul.addr %s144, 11
      %s146 = smul.addr %s145, 8
      %s147 = scalar_lea.vmem %s0, %s146
      %p148 = pneg %p35
      %p149 = pneg %p32
      %p150 = pneg %p56
      %p151 = pneg %p53
      %p152 = pneg %p77
      %p153 = pneg %p74
      %p154 = pneg %p103
      %p155 = pneg %p100
      %p156 = scmp.lt.s32.totalorder %s14, 1
      %s157 = scalar_select %p156, %s14, 1
      %s158 = smul.addr %s157, 8
      %s159 = smul.addr %s158, 8
      %s160 = scalar_lea.vmem %s3, %s159
      %p161 = scmp.lt.s32.totalorder %s14, 1
      %s162 = scalar_select %p161, %s14, 1
      %s163 = smul.addr %s162, 11
      %s164 = smul.addr %s163, 8
      %s165 = scalar_lea.vmem %s0, %s164
      %p166 = scmp.lt.s32.totalorder %s14, 1
      %s167 = scalar_select %p166, %s14, 1
      %s168 = smul.addr %s167, 8
      %s169 = smul.addr %s168, 8
      %s170 = scalar_lea.vmem %s3, %s169
      %v172 = vlaneseq
      %v173 = vshrl.u32 %v172, 7
      %v174 = vadd.s32 %v173, 8
      %v175 = vadd.s32 %v173, 16
      %v176 = vadd.s32 %v173, 24
      %v177 = vadd.s32 %v173, 32
      %v178 = vadd.s32 %v173, 40
      %v179 = vadd.s32 %v173, 48
      %v180 = vadd.s32 %v173, 56
      %vm181 = vcmp.lt.s32.totalorder %v173, 0
      %v182 = vsub.s32 0, %v173
      %v183 = vsel %vm181, %v182, %v173
      %v184 = vshrl.u32 %v183, 3
      %v185 = vand.u32 %v183, 7
      %v186 = vsub.s32 0, %v185
      %v187 = vsel %vm181, %v186, %v185
      %vm188 = vcmp.lt.s32.totalorder %v174, 0
      %v189 = vsub.s32 0, %v174
      %v190 = vsel %vm188, %v189, %v174
      %v191 = vshrl.u32 %v190, 3
      %v192 = vand.u32 %v190, 7
      %v193 = vsub.s32 0, %v192
      %v194 = vsel %vm188, %v193, %v192
      %vm195 = vcmp.lt.s32.totalorder %v175, 0
      %v196 = vsub.s32 0, %v175
      %v197 = vsel %vm195, %v196, %v175
      %v198 = vshrl.u32 %v197, 3
      %v199 = vand.u32 %v197, 7
      %v200 = vsub.s32 0, %v199
      %v201 = vsel %vm195, %v200, %v199
      %vm202 = vcmp.lt.s32.totalorder %v176, 0
      %v203 = vsub.s32 0, %v176
      %v204 = vsel %vm202, %v203, %v176
      %v205 = vshrl.u32 %v204, 3
      %v206 = vand.u32 %v204, 7
      %v207 = vsub.s32 0, %v206
      %v208 = vsel %vm202, %v207, %v206
      %vm209 = vcmp.lt.s32.totalorder %v177, 0
      %v210 = vsub.s32 0, %v177
      %v211 = vsel %vm209, %v210, %v177
      %v212 = vshrl.u32 %v211, 3
      %v213 = vand.u32 %v211, 7
      %v214 = vsub.s32 0, %v213
      %v215 = vsel %vm209, %v214, %v213
      %vm216 = vcmp.lt.s32.totalorder %v178, 0
      %v217 = vsub.s32 0, %v178
      %v218 = vsel %vm216, %v217, %v178
      %v219 = vshrl.u32 %v218, 3
      %v220 = vand.u32 %v218, 7
      %v221 = vsub.s32 0, %v220
      %v222 = vsel %vm216, %v221, %v220
      %vm223 = vcmp.lt.s32.totalorder %v179, 0
      %v224 = vsub.s32 0, %v179
      %v225 = vsel %vm223, %v224, %v179
      %v226 = vshrl.u32 %v225, 3
      %v227 = vand.u32 %v225, 7
      %v228 = vsub.s32 0, %v227
      %v229 = vsel %vm223, %v228, %v227
      %vm230 = vcmp.lt.s32.totalorder %v180, 0
      %v231 = vsub.s32 0, %v180
      %v232 = vsel %vm230, %v231, %v180
      %v233 = vshrl.u32 %v232, 3
      %v234 = vand.u32 %v232, 7
      %v235 = vsub.s32 0, %v234
      %v236 = vsel %vm230, %v235, %v234
      %vm237 = vcmp.ne.s32.totalorder %v187, 0
      %vm238 = vcmp.ne.s32.totalorder %v194, 0
      %vm239 = vcmp.ne.s32.totalorder %v201, 0
      %vm240 = vcmp.ne.s32.totalorder %v208, 0
      %vm241 = vcmp.ne.s32.totalorder %v215, 0
      %vm242 = vcmp.ne.s32.totalorder %v222, 0
      %vm243 = vcmp.ne.s32.totalorder %v229, 0
      %vm244 = vcmp.ne.s32.totalorder %v236, 0
      %vm245 = vcmp.lt.s32.totalorder %v187, 0
      %vm246 = vcmp.lt.s32.totalorder %v194, 0
      %vm247 = vcmp.lt.s32.totalorder %v201, 0
      %vm248 = vcmp.lt.s32.totalorder %v208, 0
      %vm249 = vcmp.lt.s32.totalorder %v215, 0
      %vm250 = vcmp.lt.s32.totalorder %v222, 0
      %vm251 = vcmp.lt.s32.totalorder %v229, 0
      %vm252 = vcmp.lt.s32.totalorder %v236, 0
      %vm253 = vmand %vm245, %vm237
      %vm254 = vmand %vm246, %vm238
      %vm255 = vmand %vm247, %vm239
      %vm256 = vmand %vm248, %vm240
      %vm257 = vmand %vm249, %vm241
      %vm258 = vmand %vm250, %vm242
      %vm259 = vmand %vm251, %vm243
      %vm260 = vmand %vm252, %vm244
      %v261 = vadd.s32 %v187, 8
      %v262 = vadd.s32 %v194, 8
      %v263 = vadd.s32 %v201, 8
      %v264 = vadd.s32 %v208, 8
      %v265 = vadd.s32 %v215, 8
      %v266 = vadd.s32 %v222, 8
      %v267 = vadd.s32 %v229, 8
      %v268 = vadd.s32 %v236, 8
      %v269 = vsel %vm253, %v261, %v187
      %v270 = vsel %vm254, %v262, %v194
      %v271 = vsel %vm255, %v263, %v201
      %v272 = vsel %vm256, %v264, %v208
      %v273 = vsel %vm257, %v265, %v215
      %v274 = vsel %vm258, %v266, %v222
      %v275 = vsel %vm259, %v267, %v229
      %v276 = vsel %vm260, %v268, %v236
      %v277 = vld [vmem:[%s165] sm:$0xff]
      %v278 = vld [vmem:[%s165 + $0x8] sm:$0xff]
      %v279 = vld [vmem:[%s165 + $0x10] sm:$0xff]
      %v280 = vld [vmem:[%s165 + $0x18] sm:$0xff]
      %v281 = vld [vmem:[%s165 + $0x20] sm:$0xff]
      %v282 = vld [vmem:[%s165 + $0x28] sm:$0xff]
      %v283 = vld [vmem:[%s165 + $0x30] sm:$0xff]
      %v284 = vld [vmem:[%s165 + $0x38] sm:$0xff]
      %v285 = vadd.s32 %v269, 4294967295
      %v286 = vadd.s32 %v270, 4294967295
      %v287 = vadd.s32 %v271, 4294967295
      %v288 = vadd.s32 %v272, 4294967295
      %v289 = vadd.s32 %v273, 4294967295
      %v290 = vadd.s32 %v274, 4294967295
      %v291 = vadd.s32 %v275, 4294967295
      %v292 = vadd.s32 %v276, 4294967295
      %vm293 = vcmp.ge.s32.totalorder %v285, 0
      %vm294 = vcmp.ge.s32.totalorder %v286, 0
      %vm295 = vcmp.ge.s32.totalorder %v287, 0
      %vm296 = vcmp.ge.s32.totalorder %v288, 0
      %vm297 = vcmp.ge.s32.totalorder %v289, 0
      %vm298 = vcmp.ge.s32.totalorder %v290, 0
      %vm299 = vcmp.ge.s32.totalorder %v291, 0
      %vm300 = vcmp.ge.s32.totalorder %v292, 0
      %vm301 = vcmp.lt.s32.totalorder %v285, 8
      %vm302 = vcmp.lt.s32.totalorder %v286, 8
      %vm303 = vcmp.lt.s32.totalorder %v287, 8
      %vm304 = vcmp.lt.s32.totalorder %v288, 8
      %vm305 = vcmp.lt.s32.totalorder %v289, 8
      %vm306 = vcmp.lt.s32.totalorder %v290, 8
      %vm307 = vcmp.lt.s32.totalorder %v291, 8
      %vm308 = vcmp.lt.s32.totalorder %v292, 8
      %vm309 = vmand %vm293, %vm301
      %vm310 = vmand %vm294, %vm302
      %vm311 = vmand %vm295, %vm303
      %vm312 = vmand %vm296, %vm304
      %vm313 = vmand %vm297, %vm305
      %vm314 = vmand %vm298, %vm306
      %vm315 = vmand %vm299, %vm307
      %vm316 = vmand %vm300, %vm308
      %v317 = vsel %vm309, 1, 0
      %v318 = vsel %vm310, 1, 0
      %v319 = vsel %vm311, 1, 0
      %v320 = vsel %vm312, 1, 0
      %v321 = vsel %vm313, 1, 0
      %v322 = vsel %vm314, 1, 0
      %v323 = vsel %vm315, 1, 0
      %v324 = vsel %vm316, 1, 0
      %vm325 = vcmp.eq.s32.totalorder %v317, 1
      %vm326 = vcmp.eq.s32.totalorder %v318, 1
      %vm327 = vcmp.eq.s32.totalorder %v319, 1
      %vm328 = vcmp.eq.s32.totalorder %v320, 1
      %vm329 = vcmp.eq.s32.totalorder %v321, 1
      %vm330 = vcmp.eq.s32.totalorder %v322, 1
      %vm331 = vcmp.eq.s32.totalorder %v323, 1
      %vm332 = vcmp.eq.s32.totalorder %v324, 1
      %v333 = vsel %vm325, %v277, 0.0
      %v334 = vsel %vm326, %v278, 0.0
      %v335 = vsel %vm327, %v279, 0.0
      %v336 = vsel %vm328, %v280, 0.0
      %v337 = vsel %vm329, %v281, 0.0
      %v338 = vsel %vm330, %v282, 0.0
      %v339 = vsel %vm331, %v283, 0.0
      %v340 = vsel %vm332, %v284, 0.0
      %v341 = vpack.c.bf16 %v334, %v333
      %v342 = vpack.c.bf16 %v336, %v335
      %v343 = vpack.c.bf16 %v338, %v337
      %v344 = vpack.c.bf16 %v340, %v339
      %v345 = vld [vmem:[%s1] sm:$0x3]
      %v346 = vld [vmem:[%s165 + $0x1] sm:$0xff]
      %v347 = vld [vmem:[%s165 + $0x9] sm:$0xff]
      %v348 = vld [vmem:[%s165 + $0x11] sm:$0xff]
      %v349 = vld [vmem:[%s165 + $0x19] sm:$0xff]
      %v350 = vld [vmem:[%s165 + $0x21] sm:$0xff]
      %v351 = vld [vmem:[%s165 + $0x29] sm:$0xff]
      %v352 = vld [vmem:[%s165 + $0x31] sm:$0xff]
      %v353 = vld [vmem:[%s165 + $0x39] sm:$0xff]
      %v354 = vpack.c.bf16 %v347, %v346
      %v355 = vpack.c.bf16 %v349, %v348
      %v356 = vpack.c.bf16 %v351, %v350
      %v357 = vpack.c.bf16 %v353, %v352
      %s358 = scalar_lea.vmem %s1, 2
      %v359 = vld [vmem:[%s358] sm:$0x3]
      %vm360 = vcmask 31744
      %v362 = vsel %vm360, %v354, 0
      %v365 = vsel %vm360, %v355, 0
      %v368 = vsel %vm360, %v356, 0
      %v371 = vsel %vm360, %v357, 0
      %vm373 = vcmask 1041408
      %v375 = vsel %vm373, %v359, 0
      %377 = vmatprep.subr.bf16.mxu0 0
      %378 = vmatpush1.bf16.msra.mxu0 %v375
      %379 = vmatprep.subr.bf16.mxu0 0
      %380 = vmatpush1.bf16.msra.mxu0 0
      %381 = vmatprep.subr.bf16.mxu0 0
      %382 = vmatpush1.bf16.msra.mxu0 0
      %383 = vmatprep.subr.bf16.mxu0 0
      %384 = vmatpush1.bf16.msra.mxu0 0
      %385 = vmatprep.subr.bf16.mxu0 0
      %386 = vmatpush1.bf16.msra.mxu0 0
      %387 = vmatprep.subr.bf16.mxu0 0
      %388 = vmatpush1.bf16.msra.mxu0 0
      %389 = vmatprep.subr.bf16.mxu0 0
      %390 = vmatpush1.bf16.msra.mxu0 0
      %391 = vmatprep.subr.bf16.mxu0 0
      %392 = vmatpush1.bf16.msra.mxu0 0
      %393 = vmatprep.subr.bf16.mxu0 0
      %394 = vmatpush1.bf16.msra.mxu0 0
      %395 = vmatprep.subr.bf16.mxu0 0
      %396 = vmatpush1.bf16.msra.mxu0 0
      %397 = vmatprep.subr.bf16.mxu0 0
      %398 = vmatpush1.bf16.msra.mxu0 0
      %399 = vmatprep.subr.bf16.mxu0 0
      %400 = vmatpush1.bf16.msra.mxu0 0
      %401 = vmatprep.subr.bf16.mxu0 0
      %402 = vmatpush1.bf16.msra.mxu0 0
      %403 = vmatprep.subr.bf16.mxu0 0
      %404 = vmatpush1.bf16.msra.mxu0 0
      %405 = vmatprep.subr.bf16.mxu0 0
      %406 = vmatpush1.bf16.msra.mxu0 0
      %407 = vmatprep.subr.bf16.mxu0 0
      %408 = vmatpush1.bf16.msra.mxu0 0
      %409 = vmatprep.mubr.bf16.mxu0 0
      %410 = vmatmul.mubr.bf16.gmra.mrb[0].mxu0 %v362
      %v411 = vpop.f32.mrb[0].mxu0
      %v412 = vadd.f32 0.0, %v411
      %v413 = vpop.f32.mrb[0].mxu0
      %v414 = vpop.f32.mrb[0].mxu0
      %v415 = vadd.f32 0.0, %v414
      %v416 = vpop.f32.mrb[0].mxu0
      %417 = vmatprep.mubr.bf16.mxu0 0
      %418 = vmatmul.mubr.bf16.gmra.mrb[0].mxu0 %v365
      %v419 = vpop.f32.mrb[0].mxu0
      %v420 = vadd.f32 0.0, %v419
      %v421 = vpop.f32.mrb[0].mxu0
      %v422 = vpop.f32.mrb[0].mxu0
      %v423 = vadd.f32 0.0, %v422
      %v424 = vpop.f32.mrb[0].mxu0
      %425 = vmatprep.mubr.bf16.mxu0 0
      %426 = vmatmul.mubr.bf16.gmra.mrb[0].mxu0 %v368
      %v427 = vpop.f32.mrb[0].mxu0
      %v428 = vadd.f32 0.0, %v427
      %v429 = vpop.f32.mrb[0].mxu0
      %v430 = vpop.f32.mrb[0].mxu0
      %v431 = vadd.f32 0.0, %v430
      %v432 = vpop.f32.mrb[0].mxu0
      %433 = vmatprep.mubr.bf16.mxu0 0
      %434 = vmatmul.mubr.bf16.gmra.mrb[0].mxu0 %v371
      %v435 = vpop.f32.mrb[0].mxu0
      %v436 = vadd.f32 0.0, %v435
      %v437 = vpop.f32.mrb[0].mxu0
      %v438 = vpop.f32.mrb[0].mxu0
      %v439 = vadd.f32 0.0, %v438
      %v440 = vpop.f32.mrb[0].mxu0
      %441 = vdwg.mxu0
      %v443 = vsel %vm360, %v341, 0
      %v446 = vsel %vm360, %v342, 0
      %v449 = vsel %vm360, %v343, 0
      %v452 = vsel %vm360, %v344, 0
      %v455 = vsel %vm373, %v345, 0
      %457 = vmatprep.subr.bf16.mxu0 0
      %458 = vmatpush1.bf16.msra.mxu0 %v455
      %459 = vmatprep.subr.bf16.mxu0 0
      %460 = vmatpush1.bf16.msra.mxu0 0
      %461 = vmatprep.subr.bf16.mxu0 0
      %462 = vmatpush1.bf16.msra.mxu0 0
      %463 = vmatprep.subr.bf16.mxu0 0
      %464 = vmatpush1.bf16.msra.mxu0 0
      %465 = vmatprep.subr.bf16.mxu0 0
      %466 = vmatpush1.bf16.msra.mxu0 0
      %467 = vmatprep.subr.bf16.mxu0 0
      %468 = vmatpush1.bf16.msra.mxu0 0
      %469 = vmatprep.subr.bf16.mxu0 0
      %470 = vmatpush1.bf16.msra.mxu0 0
      %471 = vmatprep.subr.bf16.mxu0 0
      %472 = vmatpush1.bf16.msra.mxu0 0
      %473 = vmatprep.subr.bf16.mxu0 0
      %474 = vmatpush1.bf16.msra.mxu0 0
      %475 = vmatprep.subr.bf16.mxu0 0
      %476 = vmatpush1.bf16.msra.mxu0 0
      %477 = vmatprep.subr.bf16.mxu0 0
      %478 = vmatpush1.bf16.msra.mxu0 0
      %479 = vmatprep.subr.bf16.mxu0 0
      %480 = vmatpush1.bf16.msra.mxu0 0
      %481 = vmatprep.subr.bf16.mxu0 0
      %482 = vmatpush1.bf16.msra.mxu0 0
      %483 = vmatprep.subr.bf16.mxu0 0
      %484 = vmatpush1.bf16.msra.mxu0 0
      %485 = vmatprep.subr.bf16.mxu0 0
      %486 = vmatpush1.bf16.msra.mxu0 0
      %487 = vmatprep.subr.bf16.mxu0 0
      %488 = vmatpush1.bf16.msra.mxu0 0
      %489 = vmatprep.mubr.bf16.mxu0 0
      %490 = vmatmul.mubr.bf16.gmra.mrb[0].mxu0 %v443
      %v491 = vpop.f32.mrb[0].mxu0
      %v492 = vadd.f32 %v412, %v491
      %v493 = vpop.f32.mrb[0].mxu0
      %v494 = vpop.f32.mrb[0].mxu0
      %v495 = vadd.f32 %v415, %v494
      %v496 = vpop.f32.mrb[0].mxu0
      %497 = vmatprep.mubr.bf16.mxu0 0
      %498 = vmatmul.mubr.bf16.gmra.mrb[0].mxu0 %v446
      %v499 = vpop.f32.mrb[0].mxu0
      %v500 = vadd.f32 %v420, %v499
      %v501 = vpop.f32.mrb[0].mxu0
      %v502 = vpop.f32.mrb[0].mxu0
      %v503 = vadd.f32 %v423, %v502
      %v504 = vpop.f32.mrb[0].mxu0
      %505 = vmatprep.mubr.bf16.mxu0 0
      %506 = vmatmul.mubr.bf16.gmra.mrb[0].mxu0 %v449
      %v507 = vpop.f32.mrb[0].mxu0
      %v508 = vadd.f32 %v428, %v507
      %v509 = vpop.f32.mrb[0].mxu0
      %v510 = vpop.f32.mrb[0].mxu0
      %v511 = vadd.f32 %v431, %v510
      %v512 = vpop.f32.mrb[0].mxu0
      %513 = vmatprep.mubr.bf16.mxu0 0
      %514 = vmatmul.mubr.bf16.gmra.mrb[0].mxu0 %v452
      %v515 = vpop.f32.mrb[0].mxu0
      %v516 = vadd.f32 %v436, %v515
      %v517 = vpop.f32.mrb[0].mxu0
      %v518 = vpop.f32.mrb[0].mxu0
      %v519 = vadd.f32 %v439, %v518
      %v520 = vpop.f32.mrb[0].mxu0
      %521 = vdwg.mxu0
      %v522 = vld [vmem:[%s165 + $0x2] sm:$0xff]
      %v523 = vld [vmem:[%s165 + $0xa] sm:$0xff]
      %v524 = vld [vmem:[%s165 + $0x12] sm:$0xff]
      %v525 = vld [vmem:[%s165 + $0x1a] sm:$0xff]
      %v526 = vld [vmem:[%s165 + $0x22] sm:$0xff]
      %v527 = vld [vmem:[%s165 + $0x2a] sm:$0xff]
      %v528 = vld [vmem:[%s165 + $0x32] sm:$0xff]
      %v529 = vld [vmem:[%s165 + $0x3a] sm:$0xff]
      %v530 = vadd.s32 %v269, 1
      %v531 = vadd.s32 %v270, 1
      %v532 = vadd.s32 %v271, 1
      %v533 = vadd.s32 %v272, 1
      %v534 = vadd.s32 %v273, 1
      %v535 = vadd.s32 %v274, 1
      %v536 = vadd.s32 %v275, 1
      %v537 = vadd.s32 %v276, 1
      %vm538 = vcmp.ge.s32.totalorder %v530, 0
      %vm539 = vcmp.ge.s32.totalorder %v531, 0
      %vm540 = vcmp.ge.s32.totalorder %v532, 0
      %vm541 = vcmp.ge.s32.totalorder %v533, 0
      %vm542 = vcmp.ge.s32.totalorder %v534, 0
      %vm543 = vcmp.ge.s32.totalorder %v535, 0
      %vm544 = vcmp.ge.s32.totalorder %v536, 0
      %vm545 = vcmp.ge.s32.totalorder %v537, 0
      %vm546 = vcmp.lt.s32.totalorder %v530, 8
      %vm547 = vcmp.lt.s32.totalorder %v531, 8
      %vm548 = vcmp.lt.s32.totalorder %v532, 8
      %vm549 = vcmp.lt.s32.totalorder %v533, 8
      %vm550 = vcmp.lt.s32.totalorder %v534, 8
      %vm551 = vcmp.lt.s32.totalorder %v535, 8
      %vm552 = vcmp.lt.s32.totalorder %v536, 8
      %vm553 = vcmp.lt.s32.totalorder %v537, 8
      %vm554 = vmand %vm538, %vm546
      %vm555 = vmand %vm539, %vm547
      %vm556 = vmand %vm540, %vm548
      %vm557 = vmand %vm541, %vm549
      %vm558 = vmand %vm542, %vm550
      %vm559 = vmand %vm543, %vm551
      %vm560 = vmand %vm544, %vm552
      %vm561 = vmand %vm545, %vm553
      %v562 = vsel %vm554, 1, 0
      %v563 = vsel %vm555, 1, 0
      %v564 = vsel %vm556, 1, 0
      %v565 = vsel %vm557, 1, 0
      %v566 = vsel %vm558, 1, 0
      %v567 = vsel %vm559, 1, 0
      %v568 = vsel %vm560, 1, 0
      %v569 = vsel %vm561, 1, 0
      %vm570 = vcmp.eq.s32.totalorder %v562, 1
      %vm571 = vcmp.eq.s32.totalorder %v563, 1
      %vm572 = vcmp.eq.s32.totalorder %v564, 1
      %vm573 = vcmp.eq.s32.totalorder %v565, 1
      %vm574 = vcmp.eq.s32.totalorder %v566, 1
      %vm575 = vcmp.eq.s32.totalorder %v567, 1
      %vm576 = vcmp.eq.s32.totalorder %v568, 1
      %vm577 = vcmp.eq.s32.totalorder %v569, 1
      %v578 = vsel %vm570, %v522, 0.0
      %v579 = vsel %vm571, %v523, 0.0
      %v580 = vsel %vm572, %v524, 0.0
      %v581 = vsel %vm573, %v525, 0.0
      %v582 = vsel %vm574, %v526, 0.0
      %v583 = vsel %vm575, %v527, 0.0
      %v584 = vsel %vm576, %v528, 0.0
      %v585 = vsel %vm577, %v529, 0.0
      %v586 = vpack.c.bf16 %v579, %v578
      %v587 = vpack.c.bf16 %v581, %v580
      %v588 = vpack.c.bf16 %v583, %v582
      %v589 = vpack.c.bf16 %v585, %v584
      %s590 = scalar_lea.vmem %s1, 4
      %v591 = vld [vmem:[%s590] sm:$0x3]
      %v593 = vsel %vm360, %v586, 0
      %v596 = vsel %vm360, %v587, 0
      %v599 = vsel %vm360, %v588, 0
      %v602 = vsel %vm360, %v589, 0
      %v605 = vsel %vm373, %v591, 0
      %607 = vmatprep.subr.bf16.mxu0 0
      %608 = vmatpush1.bf16.msra.mxu0 %v605
      %609 = vmatprep.subr.bf16.mxu0 0
      %610 = vmatpush1.bf16.msra.mxu0 0
      %611 = vmatprep.subr.bf16.mxu0 0
      %612 = vmatpush1.bf16.msra.mxu0 0
      %613 = vmatprep.subr.bf16.mxu0 0
      %614 = vmatpush1.bf16.msra.mxu0 0
      %615 = vmatprep.subr.bf16.mxu0 0
      %616 = vmatpush1.bf16.msra.mxu0 0
      %617 = vmatprep.subr.bf16.mxu0 0
      %618 = vmatpush1.bf16.msra.mxu0 0
      %619 = vmatprep.subr.bf16.mxu0 0
      %620 = vmatpush1.bf16.msra.mxu0 0
      %621 = vmatprep.subr.bf16.mxu0 0
      %622 = vmatpush1.bf16.msra.mxu0 0
      %623 = vmatprep.subr.bf16.mxu0 0
      %624 = vmatpush1.bf16.msra.mxu0 0
      %625 = vmatprep.subr.bf16.mxu0 0
      %626 = vmatpush1.bf16.msra.mxu0 0
      %627 = vmatprep.subr.bf16.mxu0 0
      %628 = vmatpush1.bf16.msra.mxu0 0
      %629 = vmatprep.subr.bf16.mxu0 0
      %630 = vmatpush1.bf16.msra.mxu0 0
      %631 = vmatprep.subr.bf16.mxu0 0
      %632 = vmatpush1.bf16.msra.mxu0 0
      %633 = vmatprep.subr.bf16.mxu0 0
      %634 = vmatpush1.bf16.msra.mxu0 0
      %635 = vmatprep.subr.bf16.mxu0 0
      %636 = vmatpush1.bf16.msra.mxu0 0
      %637 = vmatprep.subr.bf16.mxu0 0
      %638 = vmatpush1.bf16.msra.mxu0 0
      %639 = vmatprep.mubr.bf16.mxu0 0
      %640 = vmatmul.mubr.bf16.gmra.mrb[0].mxu0 %v593
      %v641 = vpop.f32.mrb[0].mxu0
      %v642 = vadd.f32 0.0, %v641
      %v643 = vpop.f32.mrb[0].mxu0
      %v644 = vpop.f32.mrb[0].mxu0
      %v645 = vadd.f32 0.0, %v644
      %v646 = vpop.f32.mrb[0].mxu0
      %647 = vmatprep.mubr.bf16.mxu0 0
      %648 = vmatmul.mubr.bf16.gmra.mrb[0].mxu0 %v596
      %v649 = vpop.f32.mrb[0].mxu0
      %v650 = vadd.f32 0.0, %v649
      %v651 = vpop.f32.mrb[0].mxu0
      %v652 = vpop.f32.mrb[0].mxu0
      %v653 = vadd.f32 0.0, %v652
      %v654 = vpop.f32.mrb[0].mxu0
      %655 = vmatprep.mubr.bf16.mxu0 0
      %656 = vmatmul.mubr.bf16.gmra.mrb[0].mxu0 %v599
      %v657 = vpop.f32.mrb[0].mxu0
      %v658 = vadd.f32 0.0, %v657
      %v659 = vpop.f32.mrb[0].mxu0
      %v660 = vpop.f32.mrb[0].mxu0
      %v661 = vadd.f32 0.0, %v660
      %v662 = vpop.f32.mrb[0].mxu0
      %663 = vmatprep.mubr.bf16.mxu0 0
      %664 = vmatmul.mubr.bf16.gmra.mrb[0].mxu0 %v602
      %v665 = vpop.f32.mrb[0].mxu0
      %v666 = vadd.f32 0.0, %v665
      %v667 = vpop.f32.mrb[0].mxu0
      %v668 = vpop.f32.mrb[0].mxu0
      %v669 = vadd.f32 0.0, %v668
      %v670 = vpop.f32.mrb[0].mxu0
      %671 = vdwg.mxu0
      %v672 = vadd.f32 %v492, %v642
      %v673 = vadd.f32 %v495, %v645
      %v674 = vadd.f32 %v500, %v650
      %v675 = vadd.f32 %v503, %v653
      %v676 = vadd.f32 %v508, %v658
      %v677 = vadd.f32 %v511, %v661
      %v678 = vadd.f32 %v516, %v666
      %v679 = vadd.f32 %v519, %v669
      %v680 = vld [vmem:[%s165 + $0x8] sm:$0xff]
      %v681 = vld [vmem:[%s165 + $0x10] sm:$0xff]
      %v682 = vld [vmem:[%s165 + $0x18] sm:$0xff]
      %v683 = vld [vmem:[%s165 + $0x20] sm:$0xff]
      %v684 = vld [vmem:[%s165 + $0x28] sm:$0xff]
      %v685 = vld [vmem:[%s165 + $0x30] sm:$0xff]
      %v686 = vld [vmem:[%s165 + $0x38] sm:$0xff]
      %v687 = vld [vmem:[%s165 + $0x40] sm:$0xff]
      %v688 = vsel %vm325, %v680, 0.0
      %v689 = vsel %vm326, %v681, 0.0
      %v690 = vsel %vm327, %v682, 0.0
      %v691 = vsel %vm328, %v683, 0.0
      %v692 = vsel %vm329, %v684, 0.0
      %v693 = vsel %vm330, %v685, 0.0
      %v694 = vsel %vm331, %v686, 0.0
      %v695 = vsel %vm332, %v687, 0.0
      %v696 = vpack.c.bf16 %v689, %v688
      %v697 = vpack.c.bf16 %v691, %v690
      %v698 = vpack.c.bf16 %v693, %v692
      %v699 = vpack.c.bf16 %v695, %v694
      %s700 = scalar_lea.vmem %s1, 6
      %v701 = vld [vmem:[%s700] sm:$0x3]
      %v703 = vsel %vm360, %v696, 0
      %v706 = vsel %vm360, %v697, 0
      %v709 = vsel %vm360, %v698, 0
      %v712 = vsel %vm360, %v699, 0
      %v715 = vsel %vm373, %v701, 0
      %717 = vmatprep.subr.bf16.mxu0 0
      %718 = vmatpush1.bf16.msra.mxu0 %v715
      %719 = vmatprep.subr.bf16.mxu0 0
      %720 = vmatpush1.bf16.msra.mxu0 0
      %721 = vmatprep.subr.bf16.mxu0 0
      %722 = vmatpush1.bf16.msra.mxu0 0
      %723 = vmatprep.subr.bf16.mxu0 0
      %724 = vmatpush1.bf16.msra.mxu0 0
      %725 = vmatprep.subr.bf16.mxu0 0
      %726 = vmatpush1.bf16.msra.mxu0 0
      %727 = vmatprep.subr.bf16.mxu0 0
      %728 = vmatpush1.bf16.msra.mxu0 0
      %729 = vmatprep.subr.bf16.mxu0 0
      %730 = vmatpush1.bf16.msra.mxu0 0
      %731 = vmatprep.subr.bf16.mxu0 0
      %732 = vmatpush1.bf16.msra.mxu0 0
      %733 = vmatprep.subr.bf16.mxu0 0
      %734 = vmatpush1.bf16.msra.mxu0 0
      %735 = vmatprep.subr.bf16.mxu0 0
      %736 = vmatpush1.bf16.msra.mxu0 0
      %737 = vmatprep.subr.bf16.mxu0 0
      %738 = vmatpush1.bf16.msra.mxu0 0
      %739 = vmatprep.subr.bf16.mxu0 0
      %740 = vmatpush1.bf16.msra.mxu0 0
      %741 = vmatprep.subr.bf16.mxu0 0
      %742 = vmatpush1.bf16.msra.mxu0 0
      %743 = vmatprep.subr.bf16.mxu0 0
      %744 = vmatpush1.bf16.msra.mxu0 0
      %745 = vmatprep.subr.bf16.mxu0 0
      %746 = vmatpush1.bf16.msra.mxu0 0
      %747 = vmatprep.subr.bf16.mxu0 0
      %748 = vmatpush1.bf16.msra.mxu0 0
      %749 = vmatprep.mubr.bf16.mxu0 0
      %750 = vmatmul.mubr.bf16.gmra.mrb[0].mxu0 %v703
      %v751 = vpop.f32.mrb[0].mxu0
      %v752 = vadd.f32 0.0, %v751
      %v753 = vpop.f32.mrb[0].mxu0
      %v754 = vpop.f32.mrb[0].mxu0
      %v755 = vadd.f32 0.0, %v754
      %v756 = vpop.f32.mrb[0].mxu0
      %757 = vmatprep.mubr.bf16.mxu0 0
      %758 = vmatmul.mubr.bf16.gmra.mrb[0].mxu0 %v706
      %v759 = vpop.f32.mrb[0].mxu0
      %v760 = vadd.f32 0.0, %v759
      %v761 = vpop.f32.mrb[0].mxu0
      %v762 = vpop.f32.mrb[0].mxu0
      %v763 = vadd.f32 0.0, %v762
      %v764 = vpop.f32.mrb[0].mxu0
      %765 = vmatprep.mubr.bf16.mxu0 0
      %766 = vmatmul.mubr.bf16.gmra.mrb[0].mxu0 %v709
      %v767 = vpop.f32.mrb[0].mxu0
      %v768 = vadd.f32 0.0, %v767
      %v769 = vpop.f32.mrb[0].mxu0
      %v770 = vpop.f32.mrb[0].mxu0
      %v771 = vadd.f32 0.0, %v770
      %v772 = vpop.f32.mrb[0].mxu0
      %773 = vmatprep.mubr.bf16.mxu0 0
      %774 = vmatmul.mubr.bf16.gmra.mrb[0].mxu0 %v712
      %v775 = vpop.f32.mrb[0].mxu0
      %v776 = vadd.f32 0.0, %v775
      %v777 = vpop.f32.mrb[0].mxu0
      %v778 = vpop.f32.mrb[0].mxu0
      %v779 = vadd.f32 0.0, %v778
      %v780 = vpop.f32.mrb[0].mxu0
      %781 = vdwg.mxu0
      %v782 = vadd.f32 %v672, %v752
      %v783 = vadd.f32 %v673, %v755
      %v784 = vadd.f32 %v674, %v760
      %v785 = vadd.f32 %v675, %v763
      %v786 = vadd.f32 %v676, %v768
      %v787 = vadd.f32 %v677, %v771
      %v788 = vadd.f32 %v678, %v776
      %v789 = vadd.f32 %v679, %v779
      %v790 = vld [vmem:[%s165 + $0x9] sm:$0xff]
      %v791 = vld [vmem:[%s165 + $0x11] sm:$0xff]
      %v792 = vld [vmem:[%s165 + $0x19] sm:$0xff]
      %v793 = vld [vmem:[%s165 + $0x21] sm:$0xff]
      %v794 = vld [vmem:[%s165 + $0x29] sm:$0xff]
      %v795 = vld [vmem:[%s165 + $0x31] sm:$0xff]
      %v796 = vld [vmem:[%s165 + $0x39] sm:$0xff]
      %v797 = vld [vmem:[%s165 + $0x41] sm:$0xff]
      %v798 = vpack.c.bf16 %v791, %v790
      %v799 = vpack.c.bf16 %v793, %v792
      %v800 = vpack.c.bf16 %v795, %v794
      %v801 = vpack.c.bf16 %v797, %v796
      %s802 = scalar_lea.vmem %s1, 8
      %v803 = vld [vmem:[%s802] sm:$0x3]
      %v805 = vsel %vm360, %v798, 0
      %v808 = vsel %vm360, %v799, 0
      %v811 = vsel %vm360, %v800, 0
      %v814 = vsel %vm360, %v801, 0
      %v817 = vsel %vm373, %v803, 0
      %819 = vmatprep.subr.bf16.mxu0 0
      %820 = vmatpush1.bf16.msra.mxu0 %v817
      %821 = vmatprep.subr.bf16.mxu0 0
      %822 = vmatpush1.bf16.msra.mxu0 0
      %823 = vmatprep.subr.bf16.mxu0 0
      %824 = vmatpush1.bf16.msra.mxu0 0
      %825 = vmatprep.subr.bf16.mxu0 0
      %826 = vmatpush1.bf16.msra.mxu0 0
      %827 = vmatprep.subr.bf16.mxu0 0
      %828 = vmatpush1.bf16.msra.mxu0 0
      %829 = vmatprep.subr.bf16.mxu0 0
      %830 = vmatpush1.bf16.msra.mxu0 0
      %831 = vmatprep.subr.bf16.mxu0 0
      %832 = vmatpush1.bf16.msra.mxu0 0
      %833 = vmatprep.subr.bf16.mxu0 0
      %834 = vmatpush1.bf16.msra.mxu0 0
      %835 = vmatprep.subr.bf16.mxu0 0
      %836 = vmatpush1.bf16.msra.mxu0 0
      %837 = vmatprep.subr.bf16.mxu0 0
      %838 = vmatpush1.bf16.msra.mxu0 0
      %839 = vmatprep.subr.bf16.mxu0 0
      %840 = vmatpush1.bf16.msra.mxu0 0
      %841 = vmatprep.subr.bf16.mxu0 0
      %842 = vmatpush1.bf16.msra.mxu0 0
      %843 = vmatprep.subr.bf16.mxu0 0
      %844 = vmatpush1.bf16.msra.mxu0 0
      %845 = vmatprep.subr.bf16.mxu0 0
      %846 = vmatpush1.bf16.msra.mxu0 0
      %847 = vmatprep.subr.bf16.mxu0 0
      %848 = vmatpush1.bf16.msra.mxu0 0
      %849 = vmatprep.subr.bf16.mxu0 0
      %850 = vmatpush1.bf16.msra.mxu0 0
      %851 = vmatprep.mubr.bf16.mxu0 0
      %852 = vmatmul.mubr.bf16.gmra.mrb[0].mxu0 %v805
      %v853 = vpop.f32.mrb[0].mxu0
      %v854 = vadd.f32 0.0, %v853
      %v855 = vpop.f32.mrb[0].mxu0
      %v856 = vpop.f32.mrb[0].mxu0
      %v857 = vadd.f32 0.0, %v856
      %v858 = vpop.f32.mrb[0].mxu0
      %859 = vmatprep.mubr.bf16.mxu0 0
      %860 = vmatmul.mubr.bf16.gmra.mrb[0].mxu0 %v808
      %v861 = vpop.f32.mrb[0].mxu0
      %v862 = vadd.f32 0.0, %v861
      %v863 = vpop.f32.mrb[0].mxu0
      %v864 = vpop.f32.mrb[0].mxu0
      %v865 = vadd.f32 0.0, %v864
      %v866 = vpop.f32.mrb[0].mxu0
      %867 = vmatprep.mubr.bf16.mxu0 0
      %868 = vmatmul.mubr.bf16.gmra.mrb[0].mxu0 %v811
      %v869 = vpop.f32.mrb[0].mxu0
      %v870 = vadd.f32 0.0, %v869
      %v871 = vpop.f32.mrb[0].mxu0
      %v872 = vpop.f32.mrb[0].mxu0
      %v873 = vadd.f32 0.0, %v872
      %v874 = vpop.f32.mrb[0].mxu0
      %875 = vmatprep.mubr.bf16.mxu0 0
      %876 = vmatmul.mubr.bf16.gmra.mrb[0].mxu0 %v814
      %v877 = vpop.f32.mrb[0].mxu0
      %v878 = vadd.f32 0.0, %v877
      %v879 = vpop.f32.mrb[0].mxu0
      %v880 = vpop.f32.mrb[0].mxu0
      %v881 = vadd.f32 0.0, %v880
      %v882 = vpop.f32.mrb[0].mxu0
      %883 = vdwg.mxu0
      %v884 = vadd.f32 %v782, %v854
      %v885 = vadd.f32 %v783, %v857
      %v886 = vadd.f32 %v784, %v862
      %v887 = vadd.f32 %v785, %v865
      %v888 = vadd.f32 %v786, %v870
      %v889 = vadd.f32 %v787, %v873
      %v890 = vadd.f32 %v788, %v878
      %v891 = vadd.f32 %v789, %v881
      %v892 = vld [vmem:[%s165 + $0xa] sm:$0xff]
      %v893 = vld [vmem:[%s165 + $0x12] sm:$0xff]
      %v894 = vld [vmem:[%s165 + $0x1a] sm:$0xff]
      %v895 = vld [vmem:[%s165 + $0x22] sm:$0xff]
      %v896 = vld [vmem:[%s165 + $0x2a] sm:$0xff]
      %v897 = vld [vmem:[%s165 + $0x32] sm:$0xff]
      %v898 = vld [vmem:[%s165 + $0x3a] sm:$0xff]
      %v899 = vld [vmem:[%s165 + $0x42] sm:$0xff]
      %v900 = vsel %vm570, %v892, 0.0
      %v901 = vsel %vm571, %v893, 0.0
      %v902 = vsel %vm572, %v894, 0.0
      %v903 = vsel %vm573, %v895, 0.0
      %v904 = vsel %vm574, %v896, 0.0
      %v905 = vsel %vm575, %v897, 0.0
      %v906 = vsel %vm576, %v898, 0.0
      %v907 = vsel %vm577, %v899, 0.0
      %v908 = vpack.c.bf16 %v901, %v900
      %v909 = vpack.c.bf16 %v903, %v902
      %v910 = vpack.c.bf16 %v905, %v904
      %v911 = vpack.c.bf16 %v907, %v906
      %s912 = scalar_lea.vmem %s1, 10
      %v913 = vld [vmem:[%s912] sm:$0x3]
      %v915 = vsel %vm360, %v908, 0
      %v918 = vsel %vm360, %v909, 0
      %v921 = vsel %vm360, %v910, 0
      %v924 = vsel %vm360, %v911, 0
      %v927 = vsel %vm373, %v913, 0
      %929 = vmatprep.subr.bf16.mxu0 0
      %930 = vmatpush1.bf16.msra.mxu0 %v927
      %931 = vmatprep.subr.bf16.mxu0 0
      %932 = vmatpush1.bf16.msra.mxu0 0
      %933 = vmatprep.subr.bf16.mxu0 0
      %934 = vmatpush1.bf16.msra.mxu0 0
      %935 = vmatprep.subr.bf16.mxu0 0
      %936 = vmatpush1.bf16.msra.mxu0 0
      %937 = vmatprep.subr.bf16.mxu0 0
      %938 = vmatpush1.bf16.msra.mxu0 0
      %939 = vmatprep.subr.bf16.mxu0 0
      %940 = vmatpush1.bf16.msra.mxu0 0
      %941 = vmatprep.subr.bf16.mxu0 0
      %942 = vmatpush1.bf16.msra.mxu0 0
      %943 = vmatprep.subr.bf16.mxu0 0
      %944 = vmatpush1.bf16.msra.mxu0 0
      %945 = vmatprep.subr.bf16.mxu0 0
      %946 = vmatpush1.bf16.msra.mxu0 0
      %947 = vmatprep.subr.bf16.mxu0 0
      %948 = vmatpush1.bf16.msra.mxu0 0
      %949 = vmatprep.subr.bf16.mxu0 0
      %950 = vmatpush1.bf16.msra.mxu0 0
      %951 = vmatprep.subr.bf16.mxu0 0
      %952 = vmatpush1.bf16.msra.mxu0 0
      %953 = vmatprep.subr.bf16.mxu0 0
      %954 = vmatpush1.bf16.msra.mxu0 0
      %955 = vmatprep.subr.bf16.mxu0 0
      %956 = vmatpush1.bf16.msra.mxu0 0
      %957 = vmatprep.subr.bf16.mxu0 0
      %958 = vmatpush1.bf16.msra.mxu0 0
      %959 = vmatprep.subr.bf16.mxu0 0
      %960 = vmatpush1.bf16.msra.mxu0 0
      %961 = vmatprep.mubr.bf16.mxu0 0
      %962 = vmatmul.mubr.bf16.gmra.mrb[0].mxu0 %v915
      %v963 = vpop.f32.mrb[0].mxu0
      %v964 = vadd.f32 0.0, %v963
      %v965 = vpop.f32.mrb[0].mxu0
      %v966 = vpop.f32.mrb[0].mxu0
      %v967 = vadd.f32 0.0, %v966
      %v968 = vpop.f32.mrb[0].mxu0
      %969 = vmatprep.mubr.bf16.mxu0 0
      %970 = vmatmul.mubr.bf16.gmra.mrb[0].mxu0 %v918
      %v971 = vpop.f32.mrb[0].mxu0
      %v972 = vadd.f32 0.0, %v971
      %v973 = vpop.f32.mrb[0].mxu0
      %v974 = vpop.f32.mrb[0].mxu0
      %v975 = vadd.f32 0.0, %v974
      %v976 = vpop.f32.mrb[0].mxu0
      %977 = vmatprep.mubr.bf16.mxu0 0
      %978 = vmatmul.mubr.bf16.gmra.mrb[0].mxu0 %v921
      %v979 = vpop.f32.mrb[0].mxu0
      %v980 = vadd.f32 0.0, %v979
      %v981 = vpop.f32.mrb[0].mxu0
      %v982 = vpop.f32.mrb[0].mxu0
      %v983 = vadd.f32 0.0, %v982
      %v984 = vpop.f32.mrb[0].mxu0
      %985 = vmatprep.mubr.bf16.mxu0 0
      %986 = vmatmul.mubr.bf16.gmra.mrb[0].mxu0 %v924
      %v987 = vpop.f32.mrb[0].mxu0
      %v988 = vadd.f32 0.0, %v987
      %v989 = vpop.f32.mrb[0].mxu0
      %v990 = vpop.f32.mrb[0].mxu0
      %v991 = vadd.f32 0.0, %v990
      %v992 = vpop.f32.mrb[0].mxu0
      %993 = vdwg.mxu0
      %v994 = vadd.f32 %v884, %v964
      %v995 = vadd.f32 %v885, %v967
      %v996 = vadd.f32 %v886, %v972
      %v997 = vadd.f32 %v887, %v975
      %v998 = vadd.f32 %v888, %v980
      %v999 = vadd.f32 %v889, %v983
      %v1000 = vadd.f32 %v890, %v988
      %v1001 = vadd.f32 %v891, %v991
      %v1002 = vld [vmem:[%s165 + $0x10] sm:$0xff]
      %v1003 = vld [vmem:[%s165 + $0x18] sm:$0xff]
      %v1004 = vld [vmem:[%s165 + $0x20] sm:$0xff]
      %v1005 = vld [vmem:[%s165 + $0x28] sm:$0xff]
      %v1006 = vld [vmem:[%s165 + $0x30] sm:$0xff]
      %v1007 = vld [vmem:[%s165 + $0x38] sm:$0xff]
      %v1008 = vld [vmem:[%s165 + $0x40] sm:$0xff]
      %v1009 = vld [vmem:[%s165 + $0x48] sm:$0xff]
      %v1010 = vsel %vm325, %v1002, 0.0
      %v1011 = vsel %vm326, %v1003, 0.0
      %v1012 = vsel %vm327, %v1004, 0.0
      %v1013 = vsel %vm328, %v1005, 0.0
      %v1014 = vsel %vm329, %v1006, 0.0
      %v1015 = vsel %vm330, %v1007, 0.0
      %v1016 = vsel %vm331, %v1008, 0.0
      %v1017 = vsel %vm332, %v1009, 0.0
      %v1018 = vpack.c.bf16 %v1011, %v1010
      %v1019 = vpack.c.bf16 %v1013, %v1012
      %v1020 = vpack.c.bf16 %v1015, %v1014
      %v1021 = vpack.c.bf16 %v1017, %v1016
      %s1022 = scalar_lea.vmem %s1, 12
      %v1023 = vld [vmem:[%s1022] sm:$0x3]
      %v1025 = vsel %vm360, %v1018, 0
      %v1028 = vsel %vm360, %v1019, 0
      %v1031 = vsel %vm360, %v1020, 0
      %v1034 = vsel %vm360, %v1021, 0
      %v1037 = vsel %vm373, %v1023, 0
      %1039 = vmatprep.subr.bf16.mxu0 0
      %1040 = vmatpush1.bf16.msra.mxu0 %v1037
      %1041 = vmatprep.subr.bf16.mxu0 0
      %1042 = vmatpush1.bf16.msra.mxu0 0
      %1043 = vmatprep.subr.bf16.mxu0 0
      %1044 = vmatpush1.bf16.msra.mxu0 0
      %1045 = vmatprep.subr.bf16.mxu0 0
      %1046 = vmatpush1.bf16.msra.mxu0 0
      %1047 = vmatprep.subr.bf16.mxu0 0
      %1048 = vmatpush1.bf16.msra.mxu0 0
      %1049 = vmatprep.subr.bf16.mxu0 0
      %1050 = vmatpush1.bf16.msra.mxu0 0
      %1051 = vmatprep.subr.bf16.mxu0 0
      %1052 = vmatpush1.bf16.msra.mxu0 0
      %1053 = vmatprep.subr.bf16.mxu0 0
      %1054 = vmatpush1.bf16.msra.mxu0 0
      %1055 = vmatprep.subr.bf16.mxu0 0
      %1056 = vmatpush1.bf16.msra.mxu0 0
      %1057 = vmatprep.subr.bf16.mxu0 0
      %1058 = vmatpush1.bf16.msra.mxu0 0
      %1059 = vmatprep.subr.bf16.mxu0 0
      %1060 = vmatpush1.bf16.msra.mxu0 0
      %1061 = vmatprep.subr.bf16.mxu0 0
      %1062 = vmatpush1.bf16.msra.mxu0 0
      %1063 = vmatprep.subr.bf16.mxu0 0
      %1064 = vmatpush1.bf16.msra.mxu0 0
      %1065 = vmatprep.subr.bf16.mxu0 0
      %1066 = vmatpush1.bf16.msra.mxu0 0
      %1067 = vmatprep.subr.bf16.mxu0 0
      %1068 = vmatpush1.bf16.msra.mxu0 0
      %1069 = vmatprep.subr.bf16.mxu0 0
      %1070 = vmatpush1.bf16.msra.mxu0 0
      %1071 = vmatprep.mubr.bf16.mxu0 0
      %1072 = vmatmul.mubr.bf16.gmra.mrb[0].mxu0 %v1025
      %v1073 = vpop.f32.mrb[0].mxu0
      %v1074 = vadd.f32 0.0, %v1073
      %v1075 = vpop.f32.mrb[0].mxu0
      %v1076 = vpop.f32.mrb[0].mxu0
      %v1077 = vadd.f32 0.0, %v1076
      %v1078 = vpop.f32.mrb[0].mxu0
      %1079 = vmatprep.mubr.bf16.mxu0 0
      %1080 = vmatmul.mubr.bf16.gmra.mrb[0].mxu0 %v1028
      %v1081 = vpop.f32.mrb[0].mxu0
      %v1082 = vadd.f32 0.0, %v1081
      %v1083 = vpop.f32.mrb[0].mxu0
      %v1084 = vpop.f32.mrb[0].mxu0
      %v1085 = vadd.f32 0.0, %v1084
      %v1086 = vpop.f32.mrb[0].mxu0
      %1087 = vmatprep.mubr.bf16.mxu0 0
      %1088 = vmatmul.mubr.bf16.gmra.mrb[0].mxu0 %v1031
      %v1089 = vpop.f32.mrb[0].mxu0
      %v1090 = vadd.f32 0.0, %v1089
      %v1091 = vpop.f32.mrb[0].mxu0
      %v1092 = vpop.f32.mrb[0].mxu0
      %v1093 = vadd.f32 0.0, %v1092
      %v1094 = vpop.f32.mrb[0].mxu0
      %1095 = vmatprep.mubr.bf16.mxu0 0
      %1096 = vmatmul.mubr.bf16.gmra.mrb[0].mxu0 %v1034
      %v1097 = vpop.f32.mrb[0].mxu0
      %v1098 = vadd.f32 0.0, %v1097
      %v1099 = vpop.f32.mrb[0].mxu0
      %v1100 = vpop.f32.mrb[0].mxu0
      %v1101 = vadd.f32 0.0, %v1100
      %v1102 = vpop.f32.mrb[0].mxu0
      %1103 = vdwg.mxu0
      %v1104 = vadd.f32 %v994, %v1074
      %v1105 = vadd.f32 %v995, %v1077
      %v1106 = vadd.f32 %v996, %v1082
      %v1107 = vadd.f32 %v997, %v1085
      %v1108 = vadd.f32 %v998, %v1090
      %v1109 = vadd.f32 %v999, %v1093
      %v1110 = vadd.f32 %v1000, %v1098
      %v1111 = vadd.f32 %v1001, %v1101
      %v1112 = vld [vmem:[%s165 + $0x11] sm:$0xff]
      %v1113 = vld [vmem:[%s165 + $0x19] sm:$0xff]
      %v1114 = vld [vmem:[%s165 + $0x21] sm:$0xff]
      %v1115 = vld [vmem:[%s165 + $0x29] sm:$0xff]
      %v1116 = vld [vmem:[%s165 + $0x31] sm:$0xff]
      %v1117 = vld [vmem:[%s165 + $0x39] sm:$0xff]
      %v1118 = vld [vmem:[%s165 + $0x41] sm:$0xff]
      %v1119 = vld [vmem:[%s165 + $0x49] sm:$0xff]
      %v1120 = vpack.c.bf16 %v1113, %v1112
      %v1121 = vpack.c.bf16 %v1115, %v1114
      %v1122 = vpack.c.bf16 %v1117, %v1116
      %v1123 = vpack.c.bf16 %v1119, %v1118
      %s1124 = scalar_lea.vmem %s1, 14
      %v1125 = vld [vmem:[%s1124] sm:$0x3]
      %v1127 = vsel %vm360, %v1120, 0
      %v1130 = vsel %vm360, %v1121, 0
      %v1133 = vsel %vm360, %v1122, 0
      %v1136 = vsel %vm360, %v1123, 0
      %v1139 = vsel %vm373, %v1125, 0
      %1141 = vmatprep.subr.bf16.mxu0 0
      %1142 = vmatpush1.bf16.msra.mxu0 %v1139
      %1143 = vmatprep.subr.bf16.mxu0 0
      %1144 = vmatpush1.bf16.msra.mxu0 0
      %1145 = vmatprep.subr.bf16.mxu0 0
      %1146 = vmatpush1.bf16.msra.mxu0 0
      %1147 = vmatprep.subr.bf16.mxu0 0
      %1148 = vmatpush1.bf16.msra.mxu0 0
      %1149 = vmatprep.subr.bf16.mxu0 0
      %1150 = vmatpush1.bf16.msra.mxu0 0
      %1151 = vmatprep.subr.bf16.mxu0 0
      %1152 = vmatpush1.bf16.msra.mxu0 0
      %1153 = vmatprep.subr.bf16.mxu0 0
      %1154 = vmatpush1.bf16.msra.mxu0 0
      %1155 = vmatprep.subr.bf16.mxu0 0
      %1156 = vmatpush1.bf16.msra.mxu0 0
      %1157 = vmatprep.subr.bf16.mxu0 0
      %1158 = vmatpush1.bf16.msra.mxu0 0
      %1159 = vmatprep.subr.bf16.mxu0 0
      %1160 = vmatpush1.bf16.msra.mxu0 0
      %1161 = vmatprep.subr.bf16.mxu0 0
      %1162 = vmatpush1.bf16.msra.mxu0 0
      %1163 = vmatprep.subr.bf16.mxu0 0
      %1164 = vmatpush1.bf16.msra.mxu0 0
      %1165 = vmatprep.subr.bf16.mxu0 0
      %1166 = vmatpush1.bf16.msra.mxu0 0
      %1167 = vmatprep.subr.bf16.mxu0 0
      %1168 = vmatpush1.bf16.msra.mxu0 0
      %1169 = vmatprep.subr.bf16.mxu0 0
      %1170 = vmatpush1.bf16.msra.mxu0 0
      %1171 = vmatprep.subr.bf16.mxu0 0
      %1172 = vmatpush1.bf16.msra.mxu0 0
      %1173 = vmatprep.mubr.bf16.mxu0 0
      %1174 = vmatmul.mubr.bf16.gmra.mrb[0].mxu0 %v1127
      %v1175 = vpop.f32.mrb[0].mxu0
      %v1176 = vadd.f32 0.0, %v1175
      %v1177 = vpop.f32.mrb[0].mxu0
      %v1178 = vpop.f32.mrb[0].mxu0
      %v1179 = vadd.f32 0.0, %v1178
      %v1180 = vpop.f32.mrb[0].mxu0
      %1181 = vmatprep.mubr.bf16.mxu0 0
      %1182 = vmatmul.mubr.bf16.gmra.mrb[0].mxu0 %v1130
      %v1183 = vpop.f32.mrb[0].mxu0
      %v1184 = vadd.f32 0.0, %v1183
      %v1185 = vpop.f32.mrb[0].mxu0
      %v1186 = vpop.f32.mrb[0].mxu0
      %v1187 = vadd.f32 0.0, %v1186
      %v1188 = vpop.f32.mrb[0].mxu0
      %1189 = vmatprep.mubr.bf16.mxu0 0
      %1190 = vmatmul.mubr.bf16.gmra.mrb[0].mxu0 %v1133
      %v1191 = vpop.f32.mrb[0].mxu0
      %v1192 = vadd.f32 0.0, %v1191
      %v1193 = vpop.f32.mrb[0].mxu0
      %v1194 = vpop.f32.mrb[0].mxu0
      %v1195 = vadd.f32 0.0, %v1194
      %v1196 = vpop.f32.mrb[0].mxu0
      %1197 = vmatprep.mubr.bf16.mxu0 0
      %1198 = vmatmul.mubr.bf16.gmra.mrb[0].mxu0 %v1136
      %v1199 = vpop.f32.mrb[0].mxu0
      %v1200 = vadd.f32 0.0, %v1199
      %v1201 = vpop.f32.mrb[0].mxu0
      %v1202 = vpop.f32.mrb[0].mxu0
      %v1203 = vadd.f32 0.0, %v1202
      %v1204 = vpop.f32.mrb[0].mxu0
      %1205 = vdwg.mxu0
      %v1206 = vadd.f32 %v1104, %v1176
      %v1207 = vadd.f32 %v1105, %v1179
      %v1208 = vadd.f32 %v1106, %v1184
      %v1209 = vadd.f32 %v1107, %v1187
      %v1210 = vadd.f32 %v1108, %v1192
      %v1211 = vadd.f32 %v1109, %v1195
      %v1212 = vadd.f32 %v1110, %v1200
      %v1213 = vadd.f32 %v1111, %v1203
      %v1214 = vld [vmem:[%s165 + $0x12] sm:$0xff]
      %v1215 = vld [vmem:[%s165 + $0x1a] sm:$0xff]
      %v1216 = vld [vmem:[%s165 + $0x22] sm:$0xff]
      %v1217 = vld [vmem:[%s165 + $0x2a] sm:$0xff]
      %v1218 = vld [vmem:[%s165 + $0x32] sm:$0xff]
      %v1219 = vld [vmem:[%s165 + $0x3a] sm:$0xff]
      %v1220 = vld [vmem:[%s165 + $0x42] sm:$0xff]
      %v1221 = vld [vmem:[%s165 + $0x4a] sm:$0xff]
      %v1222 = vsel %vm570, %v1214, 0.0
      %v1223 = vsel %vm571, %v1215, 0.0
      %v1224 = vsel %vm572, %v1216, 0.0
      %v1225 = vsel %vm573, %v1217, 0.0
      %v1226 = vsel %vm574, %v1218, 0.0
      %v1227 = vsel %vm575, %v1219, 0.0
      %v1228 = vsel %vm576, %v1220, 0.0
      %v1229 = vsel %vm577, %v1221, 0.0
      %v1230 = vpack.c.bf16 %v1223, %v1222
      %v1231 = vpack.c.bf16 %v1225, %v1224
      %v1232 = vpack.c.bf16 %v1227, %v1226
      %v1233 = vpack.c.bf16 %v1229, %v1228
      %s1234 = scalar_lea.vmem %s1, 16
      %v1235 = vld [vmem:[%s1234] sm:$0x3]
      %v1237 = vsel %vm360, %v1230, 0
      %v1240 = vsel %vm360, %v1231, 0
      %v1243 = vsel %vm360, %v1232, 0
      %v1246 = vsel %vm360, %v1233, 0
      %v1249 = vsel %vm373, %v1235, 0
      %1251 = vmatprep.subr.bf16.mxu0 0
      %1252 = vmatpush1.bf16.msra.mxu0 %v1249
      %1253 = vmatprep.subr.bf16.mxu0 0
      %1254 = vmatpush1.bf16.msra.mxu0 0
      %1255 = vmatprep.subr.bf16.mxu0 0
      %1256 = vmatpush1.bf16.msra.mxu0 0
      %1257 = vmatprep.subr.bf16.mxu0 0
      %1258 = vmatpush1.bf16.msra.mxu0 0
      %1259 = vmatprep.subr.bf16.mxu0 0
      %1260 = vmatpush1.bf16.msra.mxu0 0
      %1261 = vmatprep.subr.bf16.mxu0 0
      %1262 = vmatpush1.bf16.msra.mxu0 0
      %1263 = vmatprep.subr.bf16.mxu0 0
      %1264 = vmatpush1.bf16.msra.mxu0 0
      %1265 = vmatprep.subr.bf16.mxu0 0
      %1266 = vmatpush1.bf16.msra.mxu0 0
      %1267 = vmatprep.subr.bf16.mxu0 0
      %1268 = vmatpush1.bf16.msra.mxu0 0
      %1269 = vmatprep.subr.bf16.mxu0 0
      %1270 = vmatpush1.bf16.msra.mxu0 0
      %1271 = vmatprep.subr.bf16.mxu0 0
      %1272 = vmatpush1.bf16.msra.mxu0 0
      %1273 = vmatprep.subr.bf16.mxu0 0
      %1274 = vmatpush1.bf16.msra.mxu0 0
      %1275 = vmatprep.subr.bf16.mxu0 0
      %1276 = vmatpush1.bf16.msra.mxu0 0
      %1277 = vmatprep.subr.bf16.mxu0 0
      %1278 = vmatpush1.bf16.msra.mxu0 0
      %1279 = vmatprep.subr.bf16.mxu0 0
      %1280 = vmatpush1.bf16.msra.mxu0 0
      %1281 = vmatprep.subr.bf16.mxu0 0
      %1282 = vmatpush1.bf16.msra.mxu0 0
      %1283 = vmatprep.mubr.bf16.mxu0 0
      %1284 = vmatmul.mubr.bf16.gmra.mrb[0].mxu0 %v1237
      %v1285 = vpop.f32.mrb[0].mxu0
      %v1286 = vadd.f32 0.0, %v1285
      %v1287 = vpop.f32.mrb[0].mxu0
      %v1288 = vpop.f32.mrb[0].mxu0
      %v1289 = vadd.f32 0.0, %v1288
      %v1290 = vpop.f32.mrb[0].mxu0
      %1291 = vmatprep.mubr.bf16.mxu0 0
      %1292 = vmatmul.mubr.bf16.gmra.mrb[0].mxu0 %v1240
      %v1293 = vpop.f32.mrb[0].mxu0
      %v1294 = vadd.f32 0.0, %v1293
      %v1295 = vpop.f32.mrb[0].mxu0
      %v1296 = vpop.f32.mrb[0].mxu0
      %v1297 = vadd.f32 0.0, %v1296
      %v1298 = vpop.f32.mrb[0].mxu0
      %1299 = vmatprep.mubr.bf16.mxu0 0
      %1300 = vmatmul.mubr.bf16.gmra.mrb[0].mxu0 %v1243
      %v1301 = vpop.f32.mrb[0].mxu0
      %v1302 = vadd.f32 0.0, %v1301
      %v1303 = vpop.f32.mrb[0].mxu0
      %v1304 = vpop.f32.mrb[0].mxu0
      %v1305 = vadd.f32 0.0, %v1304
      %v1306 = vpop.f32.mrb[0].mxu0
      %1307 = vmatprep.mubr.bf16.mxu0 0
      %1308 = vmatmul.mubr.bf16.gmra.mrb[0].mxu0 %v1246
      %v1309 = vpop.f32.mrb[0].mxu0
      %v1310 = vadd.f32 0.0, %v1309
      %v1311 = vpop.f32.mrb[0].mxu0
      %v1312 = vpop.f32.mrb[0].mxu0
      %v1313 = vadd.f32 0.0, %v1312
      %v1314 = vpop.f32.mrb[0].mxu0
      %1315 = vdwg.mxu0
      %v1316 = vadd.f32 %v1206, %v1286
      %v1317 = vadd.f32 %v1207, %v1289
      %v1318 = vadd.f32 %v1208, %v1294
      %v1319 = vadd.f32 %v1209, %v1297
      %v1320 = vadd.f32 %v1210, %v1302
      %v1321 = vadd.f32 %v1211, %v1305
      %v1322 = vadd.f32 %v1212, %v1310
      %v1323 = vadd.f32 %v1213, %v1313
      %vm1324 = vcmask 130048
      %v1325 = vsel %vm1324, %v1316, 0.0
      %v1326 = vsel %vm1324, %v1317, 0.0
      %v1327 = vadd.f32 %v1325, %v1326
      %v1328 = vsel %vm1324, %v1318, 0.0
      %v1329 = vadd.f32 %v1327, %v1328
      %v1330 = vsel %vm1324, %v1319, 0.0
      %v1331 = vadd.f32 %v1329, %v1330
      %v1332 = vsel %vm1324, %v1320, 0.0
      %v1333 = vadd.f32 %v1331, %v1332
      %v1334 = vsel %vm1324, %v1321, 0.0
      %v1335 = vadd.f32 %v1333, %v1334
      %v1336 = vsel %vm1324, %v1322, 0.0
      %v1337 = vadd.f32 %v1335, %v1336
      %v1338 = vsel %vm1324, %v1323, 0.0
      %v1339 = vadd.f32 %v1337, %v1338
      %v1340 = vrot.slane %v1339, 4
      %v1341 = vadd.f32 %v1339, %v1340
      %v1342 = vrot.slane %v1341, 2
      %v1343 = vadd.f32 %v1341, %v1342
      %v1344 = vrot.slane %v1343, 1
      %v1345 = vadd.f32 %v1343, %v1344
      %v1346 = vrcp.pop 64.0
      %v1347 = vmul.f32 %v1345, %v1346
      %v1348 = vmul.f32 %v1316, %v1316
      %v1349 = vmul.f32 %v1317, %v1317
      %v1350 = vmul.f32 %v1318, %v1318
      %v1351 = vmul.f32 %v1319, %v1319
      %v1352 = vmul.f32 %v1320, %v1320
      %v1353 = vmul.f32 %v1321, %v1321
      %v1354 = vmul.f32 %v1322, %v1322
      %v1355 = vmul.f32 %v1323, %v1323
      %v1356 = vsel %vm1324, %v1348, 0.0
      %v1357 = vsel %vm1324, %v1349, 0.0
      %v1358 = vadd.f32 %v1356, %v1357
      %v1359 = vsel %vm1324, %v1350, 0.0
      %v1360 = vadd.f32 %v1358, %v1359
      %v1361 = vsel %vm1324, %v1351, 0.0
      %v1362 = vadd.f32 %v1360, %v1361
      %v1363 = vsel %vm1324, %v1352, 0.0
      %v1364 = vadd.f32 %v1362, %v1363
      %v1365 = vsel %vm1324, %v1353, 0.0
      %v1366 = vadd.f32 %v1364, %v1365
      %v1367 = vsel %vm1324, %v1354, 0.0
      %v1368 = vadd.f32 %v1366, %v1367
      %v1369 = vsel %vm1324, %v1355, 0.0
      %v1370 = vadd.f32 %v1368, %v1369
      %v1371 = vrot.slane %v1370, 4
      %v1372 = vadd.f32 %v1370, %v1371
      %v1373 = vrot.slane %v1372, 2
      %v1374 = vadd.f32 %v1372, %v1373
      %v1375 = vrot.slane %v1374, 1
      %v1376 = vadd.f32 %v1374, %v1375
      %v1377 = vmul.f32 %v1376, %v1346
      %v1378 = vmul.f32 %v1347, %v1347
      %v1379 = vsub.f32 %v1377, %v1378
      %v1380 = vmax.f32 %v1379, 0.0
      %v1381 = vsub.f32 %v1316, %v1347
      %v1382 = vsub.f32 %v1317, %v1347
      %v1383 = vsub.f32 %v1318, %v1347
      %v1384 = vsub.f32 %v1319, %v1347
      %v1385 = vsub.f32 %v1320, %v1347
      %v1386 = vsub.f32 %v1321, %v1347
      %v1387 = vsub.f32 %v1322, %v1347
      %v1388 = vsub.f32 %v1323, %v1347
      %v1389 = vadd.f32 %v1380, 1e-05
      %v1390 = vrsqrt.pop %v1389
      %v1391 = vmul.f32 %v1381, %v1390
      %v1392 = vmul.f32 %v1382, %v1390
      %v1393 = vmul.f32 %v1383, %v1390
      %v1394 = vmul.f32 %v1384, %v1390
      %v1395 = vmul.f32 %v1385, %v1390
      %v1396 = vmul.f32 %v1386, %v1390
      %v1397 = vmul.f32 %v1387, %v1390
      %v1398 = vmul.f32 %v1388, %v1390
      %vm1399 = vcmp.ge.f32.partialorder %v1391, 0.0
      %vm1400 = vcmp.ge.f32.partialorder %v1392, 0.0
      %vm1401 = vcmp.ge.f32.partialorder %v1393, 0.0
      %vm1402 = vcmp.ge.f32.partialorder %v1394, 0.0
      %vm1403 = vcmp.ge.f32.partialorder %v1395, 0.0
      %vm1404 = vcmp.ge.f32.partialorder %v1396, 0.0
      %vm1405 = vcmp.ge.f32.partialorder %v1397, 0.0
      %vm1406 = vcmp.ge.f32.partialorder %v1398, 0.0
      %v1407 = vmul.f32 %v1391, 0.2
      %v1408 = vmul.f32 %v1392, 0.2
      %v1409 = vmul.f32 %v1393, 0.2
      %v1410 = vmul.f32 %v1394, 0.2
      %v1411 = vmul.f32 %v1395, 0.2
      %v1412 = vmul.f32 %v1396, 0.2
      %v1413 = vmul.f32 %v1397, 0.2
      %v1414 = vmul.f32 %v1398, 0.2
      %v1415 = vsel %vm1399, %v1391, %v1407
      %v1416 = vsel %vm1400, %v1392, %v1408
      %v1417 = vsel %vm1401, %v1393, %v1409
      %v1418 = vsel %vm1402, %v1394, %v1410
      %v1419 = vsel %vm1403, %v1395, %v1411
      %v1420 = vsel %vm1404, %v1396, %v1412
      %v1421 = vsel %vm1405, %v1397, %v1413
      %v1422 = vsel %vm1406, %v1398, %v1414
      %1423 = vst.msk [vmem:[#allocation2] sm:$0xff] %vm1324, 0.0
      %1424 = vst.msk [vmem:[#allocation2 + $0x8] sm:$0xff] %vm1324, 0.0
      %1425 = vst.msk [vmem:[#allocation2 + $0x10] sm:$0xff] %vm1324, 0.0
      %1426 = vst.msk [vmem:[#allocation2 + $0x18] sm:$0xff] %vm1324, 0.0
      %1427 = vst.msk [vmem:[#allocation2 + $0x20] sm:$0xff] %vm1324, 0.0
      %1428 = vst.msk [vmem:[#allocation2 + $0x28] sm:$0xff] %vm1324, 0.0
      %1429 = vst.msk [vmem:[#allocation2 + $0x30] sm:$0xff] %vm1324, 0.0
      %1430 = vst.msk [vmem:[#allocation2 + $0x38] sm:$0xff] %vm1324, 0.0
      %1431 = vst.msk [vmem:[#allocation2 + $0x40] sm:$0xff] %vm1324, 0.0
      %1432 = vst.msk [vmem:[#allocation2 + $0x48] sm:$0xff] %vm1324, 0.0
      %vm1433 = vcmask 123904
      %1434 = vst.msk [vmem:[#allocation2 + $0x50] sm:$0x3] %vm1433, 0.0
      %1435 = vst.msk [vmem:[#allocation2 + $0x9] sm:$0xff] %vm1324, %v1415
      %1436 = vst.msk [vmem:[#allocation2 + $0x11] sm:$0xff] %vm1324, %v1416
      %1437 = vst.msk [vmem:[#allocation2 + $0x19] sm:$0xff] %vm1324, %v1417
      %1438 = vst.msk [vmem:[#allocation2 + $0x21] sm:$0xff] %vm1324, %v1418
      %1439 = vst.msk [vmem:[#allocation2 + $0x29] sm:$0xff] %vm1324, %v1419
      %1440 = vst.msk [vmem:[#allocation2 + $0x31] sm:$0xff] %vm1324, %v1420
      %1441 = vst.msk [vmem:[#allocation2 + $0x39] sm:$0xff] %vm1324, %v1421
      %1442 = vst.msk [vmem:[#allocation2 + $0x41] sm:$0xff] %vm1324, %v1422
      %v1443 = vld [vmem:[#allocation2] sm:$0xff]
      %v1444 = vld [vmem:[#allocation2 + $0x8] sm:$0xff]
      %v1445 = vld [vmem:[#allocation2 + $0x10] sm:$0xff]
      %v1446 = vld [vmem:[#allocation2 + $0x18] sm:$0xff]
      %v1447 = vld [vmem:[#allocation2 + $0x20] sm:$0xff]
      %v1448 = vld [vmem:[#allocation2 + $0x28] sm:$0xff]
      %v1449 = vld [vmem:[#allocation2 + $0x30] sm:$0xff]
      %v1450 = vld [vmem:[#allocation2 + $0x38] sm:$0xff]
      %v1451 = vsel %vm325, %v1443, 0.0
      %v1452 = vsel %vm326, %v1444, 0.0
      %v1453 = vsel %vm327, %v1445, 0.0
      %v1454 = vsel %vm328, %v1446, 0.0
      %v1455 = vsel %vm329, %v1447, 0.0
      %v1456 = vsel %vm330, %v1448, 0.0
      %v1457 = vsel %vm331, %v1449, 0.0
      %v1458 = vsel %vm332, %v1450, 0.0
      %v1459 = vpack.c.bf16 %v1452, %v1451
      %v1460 = vpack.c.bf16 %v1454, %v1453
      %v1461 = vpack.c.bf16 %v1456, %v1455
      %v1462 = vpack.c.bf16 %v1458, %v1457
      %v1463 = vld [vmem:[%s2] sm:$0xf]
      %v1464 = vld [vmem:[%s2 + $0x4] sm:$0xf]
      %v1465 = vld [vmem:[#allocation2 + $0x1] sm:$0xff]
      %v1466 = vld [vmem:[#allocation2 + $0x9] sm:$0xff]
      %v1467 = vld [vmem:[#allocation2 + $0x11] sm:$0xff]
      %v1468 = vld [vmem:[#allocation2 + $0x19] sm:$0xff]
      %v1469 = vld [vmem:[#allocation2 + $0x21] sm:$0xff]
      %v1470 = vld [vmem:[#allocation2 + $0x29] sm:$0xff]
      %v1471 = vld [vmem:[#allocation2 + $0x31] sm:$0xff]
      %v1472 = vld [vmem:[#allocation2 + $0x39] sm:$0xff]
      %v1473 = vpack.c.bf16 %v1466, %v1465
      %v1474 = vpack.c.bf16 %v1468, %v1467
      %v1475 = vpack.c.bf16 %v1470, %v1469
      %v1476 = vpack.c.bf16 %v1472, %v1471
      %s1477 = scalar_lea.vmem %s2, 8
      %v1478 = vld [vmem:[%s1477] sm:$0xf]
      %v1479 = vld [vmem:[%s1477 + $0x4] sm:$0xf]
      %v1482 = vunpack.c.l.b16 %v1478
      %v1483 = vunpack.c.l.b16 %v1479
      %v1484 = vpack.c.b16 %v1483, %v1482
      %v1487 = vsel %vm1324, %v1473, 0
      %v1490 = vsel %vm1324, %v1474, 0
      %v1493 = vsel %vm1324, %v1475, 0
      %v1496 = vsel %vm1324, %v1476, 0
      %1498 = vmatprep.subr.bf16.mxu0 0
      %1499 = vmatpush1.bf16.msra.mxu0 %v1484
      %1500 = vmatprep.subr.bf16.mxu0 0
      %1501 = vmatpush1.bf16.msra.mxu0 0
      %1502 = vmatprep.subr.bf16.mxu0 0
      %1503 = vmatpush1.bf16.msra.mxu0 0
      %1504 = vmatprep.subr.bf16.mxu0 0
      %1505 = vmatpush1.bf16.msra.mxu0 0
      %1506 = vmatprep.subr.bf16.mxu0 0
      %1507 = vmatpush1.bf16.msra.mxu0 0
      %1508 = vmatprep.subr.bf16.mxu0 0
      %1509 = vmatpush1.bf16.msra.mxu0 0
      %1510 = vmatprep.subr.bf16.mxu0 0
      %1511 = vmatpush1.bf16.msra.mxu0 0
      %1512 = vmatprep.subr.bf16.mxu0 0
      %1513 = vmatpush1.bf16.msra.mxu0 0
      %1514 = vmatprep.subr.bf16.mxu0 0
      %1515 = vmatpush1.bf16.msra.mxu0 0
      %1516 = vmatprep.subr.bf16.mxu0 0
      %1517 = vmatpush1.bf16.msra.mxu0 0
      %1518 = vmatprep.subr.bf16.mxu0 0
      %1519 = vmatpush1.bf16.msra.mxu0 0
      %1520 = vmatprep.subr.bf16.mxu0 0
      %1521 = vmatpush1.bf16.msra.mxu0 0
      %1522 = vmatprep.subr.bf16.mxu0 0
      %1523 = vmatpush1.bf16.msra.mxu0 0
      %1524 = vmatprep.subr.bf16.mxu0 0
      %1525 = vmatpush1.bf16.msra.mxu0 0
      %1526 = vmatprep.subr.bf16.mxu0 0
      %1527 = vmatpush1.bf16.msra.mxu0 0
      %1528 = vmatprep.subr.bf16.mxu0 0
      %1529 = vmatpush1.bf16.msra.mxu0 0
      %1530 = vmatprep.mubr.bf16.mxu0 0
      %1531 = vmatmul.mubr.bf16.gmra.mrb[0].mxu0 %v1487
      %v1532 = vpop.f32.mrb[0].mxu0
      %v1533 = vadd.f32 0.0, %v1532
      %v1534 = vpop.f32.mrb[0].mxu0
      %v1535 = vpop.f32.mrb[0].mxu0
      %v1536 = vadd.f32 0.0, %v1535
      %v1537 = vpop.f32.mrb[0].mxu0
      %1538 = vmatprep.mubr.bf16.mxu0 0
      %1539 = vmatmul.mubr.bf16.gmra.mrb[0].mxu0 %v1490
      %v1540 = vpop.f32.mrb[0].mxu0
      %v1541 = vadd.f32 0.0, %v1540
      %v1542 = vpop.f32.mrb[0].mxu0
      %v1543 = vpop.f32.mrb[0].mxu0
      %v1544 = vadd.f32 0.0, %v1543
      %v1545 = vpop.f32.mrb[0].mxu0
      %1546 = vmatprep.mubr.bf16.mxu0 0
      %1547 = vmatmul.mubr.bf16.gmra.mrb[0].mxu0 %v1493
      %v1548 = vpop.f32.mrb[0].mxu0
      %v1549 = vadd.f32 0.0, %v1548
      %v1550 = vpop.f32.mrb[0].mxu0
      %v1551 = vpop.f32.mrb[0].mxu0
      %v1552 = vadd.f32 0.0, %v1551
      %v1553 = vpop.f32.mrb[0].mxu0
      %1554 = vmatprep.mubr.bf16.mxu0 0
      %1555 = vmatmul.mubr.bf16.gmra.mrb[0].mxu0 %v1496
      %v1556 = vpop.f32.mrb[0].mxu0
      %v1557 = vadd.f32 0.0, %v1556
      %v1558 = vpop.f32.mrb[0].mxu0
      %v1559 = vpop.f32.mrb[0].mxu0
      %v1560 = vadd.f32 0.0, %v1559
      %v1561 = vpop.f32.mrb[0].mxu0
      %1562 = vdwg.mxu0
      %v1565 = vunpack.c.l.b16 %v1463
      %v1566 = vunpack.c.l.b16 %v1464
      %v1567 = vpack.c.b16 %v1566, %v1565
      %v1570 = vsel %vm1324, %v1459, 0
      %v1573 = vsel %vm1324, %v1460, 0
      %v1576 = vsel %vm1324, %v1461, 0
      %v1579 = vsel %vm1324, %v1462, 0
      %1581 = vmatprep.subr.bf16.mxu0 0
      %1582 = vmatpush1.bf16.msra.mxu0 %v1567
      %1583 = vmatprep.subr.bf16.mxu0 0
      %1584 = vmatpush1.bf16.msra.mxu0 0
      %1585 = vmatprep.subr.bf16.mxu0 0
      %1586 = vmatpush1.bf16.msra.mxu0 0
      %1587 = vmatprep.subr.bf16.mxu0 0
      %1588 = vmatpush1.bf16.msra.mxu0 0
      %1589 = vmatprep.subr.bf16.mxu0 0
      %1590 = vmatpush1.bf16.msra.mxu0 0
      %1591 = vmatprep.subr.bf16.mxu0 0
      %1592 = vmatpush1.bf16.msra.mxu0 0
      %1593 = vmatprep.subr.bf16.mxu0 0
      %1594 = vmatpush1.bf16.msra.mxu0 0
      %1595 = vmatprep.subr.bf16.mxu0 0
      %1596 = vmatpush1.bf16.msra.mxu0 0
      %1597 = vmatprep.subr.bf16.mxu0 0
      %1598 = vmatpush1.bf16.msra.mxu0 0
      %1599 = vmatprep.subr.bf16.mxu0 0
      %1600 = vmatpush1.bf16.msra.mxu0 0
      %1601 = vmatprep.subr.bf16.mxu0 0
      %1602 = vmatpush1.bf16.msra.mxu0 0
      %1603 = vmatprep.subr.bf16.mxu0 0
      %1604 = vmatpush1.bf16.msra.mxu0 0
      %1605 = vmatprep.subr.bf16.mxu0 0
      %1606 = vmatpush1.bf16.msra.mxu0 0
      %1607 = vmatprep.subr.bf16.mxu0 0
      %1608 = vmatpush1.bf16.msra.mxu0 0
      %1609 = vmatprep.subr.bf16.mxu0 0
      %1610 = vmatpush1.bf16.msra.mxu0 0
      %1611 = vmatprep.subr.bf16.mxu0 0
      %1612 = vmatpush1.bf16.msra.mxu0 0
      %1613 = vmatprep.mubr.bf16.mxu0 0
      %1614 = vmatmul.mubr.bf16.gmra.mrb[0].mxu0 %v1570
      %v1615 = vpop.f32.mrb[0].mxu0
      %v1616 = vadd.f32 %v1533, %v1615
      %v1617 = vpop.f32.mrb[0].mxu0
      %v1618 = vpop.f32.mrb[0].mxu0
      %v1619 = vadd.f32 %v1536, %v1618
      %v1620 = vpop.f32.mrb[0].mxu0
      %1621 = vmatprep.mubr.bf16.mxu0 0
      %1622 = vmatmul.mubr.bf16.gmra.mrb[0].mxu0 %v1573
      %v1623 = vpop.f32.mrb[0].mxu0
      %v1624 = vadd.f32 %v1541, %v1623
      %v1625 = vpop.f32.mrb[0].mxu0
      %v1626 = vpop.f32.mrb[0].mxu0
      %v1627 = vadd.f32 %v1544, %v1626
      %v1628 = vpop.f32.mrb[0].mxu0
      %1629 = vmatprep.mubr.bf16.mxu0 0
      %1630 = vmatmul.mubr.bf16.gmra.mrb[0].mxu0 %v1576
      %v1631 = vpop.f32.mrb[0].mxu0
      %v1632 = vadd.f32 %v1549, %v1631
      %v1633 = vpop.f32.mrb[0].mxu0
      %v1634 = vpop.f32.mrb[0].mxu0
      %v1635 = vadd.f32 %v1552, %v1634
      %v1636 = vpop.f32.mrb[0].mxu0
      %1637 = vmatprep.mubr.bf16.mxu0 0
      %1638 = vmatmul.mubr.bf16.gmra.mrb[0].mxu0 %v1579
      %v1639 = vpop.f32.mrb[0].mxu0
      %v1640 = vadd.f32 %v1557, %v1639
      %v1641 = vpop.f32.mrb[0].mxu0
      %v1642 = vpop.f32.mrb[0].mxu0
      %v1643 = vadd.f32 %v1560, %v1642
      %v1644 = vpop.f32.mrb[0].mxu0
      %1645 = vdwg.mxu0
      %v1646 = vld [vmem:[#allocation2 + $0x2] sm:$0xff]
      %v1647 = vld [vmem:[#allocation2 + $0xa] sm:$0xff]
      %v1648 = vld [vmem:[#allocation2 + $0x12] sm:$0xff]
      %v1649 = vld [vmem:[#allocation2 + $0x1a] sm:$0xff]
      %v1650 = vld [vmem:[#allocation2 + $0x22] sm:$0xff]
      %v1651 = vld [vmem:[#allocation2 + $0x2a] sm:$0xff]
      %v1652 = vld [vmem:[#allocation2 + $0x32] sm:$0xff]
      %v1653 = vld [vmem:[#allocation2 + $0x3a] sm:$0xff]
      %v1654 = vsel %vm570, %v1646, 0.0
      %v1655 = vsel %vm571, %v1647, 0.0
      %v1656 = vsel %vm572, %v1648, 0.0
      %v1657 = vsel %vm573, %v1649, 0.0
      %v1658 = vsel %vm574, %v1650, 0.0
      %v1659 = vsel %vm575, %v1651, 0.0
      %v1660 = vsel %vm576, %v1652, 0.0
      %v1661 = vsel %vm577, %v1653, 0.0
      %v1662 = vpack.c.bf16 %v1655, %v1654
      %v1663 = vpack.c.bf16 %v1657, %v1656
      %v1664 = vpack.c.bf16 %v1659, %v1658
      %v1665 = vpack.c.bf16 %v1661, %v1660
      %s1666 = scalar_lea.vmem %s2, 16
      %v1667 = vld [vmem:[%s1666] sm:$0xf]
      %v1668 = vld [vmem:[%s1666 + $0x4] sm:$0xf]
      %v1671 = vunpack.c.l.b16 %v1667
      %v1672 = vunpack.c.l.b16 %v1668
      %v1673 = vpack.c.b16 %v1672, %v1671
      %v1676 = vsel %vm1324, %v1662, 0
      %v1679 = vsel %vm1324, %v1663, 0
      %v1682 = vsel %vm1324, %v1664, 0
      %v1685 = vsel %vm1324, %v1665, 0
      %1687 = vmatprep.subr.bf16.mxu0 0
      %1688 = vmatpush1.bf16.msra.mxu0 %v1673
      %1689 = vmatprep.subr.bf16.mxu0 0
      %1690 = vmatpush1.bf16.msra.mxu0 0
      %1691 = vmatprep.subr.bf16.mxu0 0
      %1692 = vmatpush1.bf16.msra.mxu0 0
      %1693 = vmatprep.subr.bf16.mxu0 0
      %1694 = vmatpush1.bf16.msra.mxu0 0
      %1695 = vmatprep.subr.bf16.mxu0 0
      %1696 = vmatpush1.bf16.msra.mxu0 0
      %1697 = vmatprep.subr.bf16.mxu0 0
      %1698 = vmatpush1.bf16.msra.mxu0 0
      %1699 = vmatprep.subr.bf16.mxu0 0
      %1700 = vmatpush1.bf16.msra.mxu0 0
      %1701 = vmatprep.subr.bf16.mxu0 0
      %1702 = vmatpush1.bf16.msra.mxu0 0
      %1703 = vmatprep.subr.bf16.mxu0 0
      %1704 = vmatpush1.bf16.msra.mxu0 0
      %1705 = vmatprep.subr.bf16.mxu0 0
      %1706 = vmatpush1.bf16.msra.mxu0 0
      %1707 = vmatprep.subr.bf16.mxu0 0
      %1708 = vmatpush1.bf16.msra.mxu0 0
      %1709 = vmatprep.subr.bf16.mxu0 0
      %1710 = vmatpush1.bf16.msra.mxu0 0
      %1711 = vmatprep.subr.bf16.mxu0 0
      %1712 = vmatpush1.bf16.msra.mxu0 0
      %1713 = vmatprep.subr.bf16.mxu0 0
      %1714 = vmatpush1.bf16.msra.mxu0 0
      %1715 = vmatprep.subr.bf16.mxu0 0
      %1716 = vmatpush1.bf16.msra.mxu0 0
      %1717 = vmatprep.subr.bf16.mxu0 0
      %1718 = vmatpush1.bf16.msra.mxu0 0
      %1719 = vmatprep.mubr.bf16.mxu0 0
      %1720 = vmatmul.mubr.bf16.gmra.mrb[0].mxu0 %v1676
      %v1721 = vpop.f32.mrb[0].mxu0
      %v1722 = vadd.f32 0.0, %v1721
      %v1723 = vpop.f32.mrb[0].mxu0
      %v1724 = vpop.f32.mrb[0].mxu0
      %v1725 = vadd.f32 0.0, %v1724
      %v1726 = vpop.f32.mrb[0].mxu0
      %1727 = vmatprep.mubr.bf16.mxu0 0
      %1728 = vmatmul.mubr.bf16.gmra.mrb[0].mxu0 %v1679
      %v1729 = vpop.f32.mrb[0].mxu0
      %v1730 = vadd.f32 0.0, %v1729
      %v1731 = vpop.f32.mrb[0].mxu0
      %v1732 = vpop.f32.mrb[0].mxu0
      %v1733 = vadd.f32 0.0, %v1732
      %v1734 = vpop.f32.mrb[0].mxu0
      %1735 = vmatprep.mubr.bf16.mxu0 0
      %1736 = vmatmul.mubr.bf16.gmra.mrb[0].mxu0 %v1682
      %v1737 = vpop.f32.mrb[0].mxu0
      %v1738 = vadd.f32 0.0, %v1737
      %v1739 = vpop.f32.mrb[0].mxu0
      %v1740 = vpop.f32.mrb[0].mxu0
      %v1741 = vadd.f32 0.0, %v1740
      %v1742 = vpop.f32.mrb[0].mxu0
      %1743 = vmatprep.mubr.bf16.mxu0 0
      %1744 = vmatmul.mubr.bf16.gmra.mrb[0].mxu0 %v1685
      %v1745 = vpop.f32.mrb[0].mxu0
      %v1746 = vadd.f32 0.0, %v1745
      %v1747 = vpop.f32.mrb[0].mxu0
      %v1748 = vpop.f32.mrb[0].mxu0
      %v1749 = vadd.f32 0.0, %v1748
      %v1750 = vpop.f32.mrb[0].mxu0
      %1751 = vdwg.mxu0
      %v1752 = vadd.f32 %v1616, %v1722
      %v1753 = vadd.f32 %v1619, %v1725
      %v1754 = vadd.f32 %v1624, %v1730
      %v1755 = vadd.f32 %v1627, %v1733
      %v1756 = vadd.f32 %v1632, %v1738
      %v1757 = vadd.f32 %v1635, %v1741
      %v1758 = vadd.f32 %v1640, %v1746
      %v1759 = vadd.f32 %v1643, %v1749
      %v1760 = vld [vmem:[#allocation2 + $0x8] sm:$0xff]
      %v1761 = vld [vmem:[#allocation2 + $0x10] sm:$0xff]
      %v1762 = vld [vmem:[#allocation2 + $0x18] sm:$0xff]
      %v1763 = vld [vmem:[#allocation2 + $0x20] sm:$0xff]
      %v1764 = vld [vmem:[#allocation2 + $0x28] sm:$0xff]
      %v1765 = vld [vmem:[#allocation2 + $0x30] sm:$0xff]
      %v1766 = vld [vmem:[#allocation2 + $0x38] sm:$0xff]
      %v1767 = vld [vmem:[#allocation2 + $0x40] sm:$0xff]
      %v1768 = vsel %vm325, %v1760, 0.0
      %v1769 = vsel %vm326, %v1761, 0.0
      %v1770 = vsel %vm327, %v1762, 0.0
      %v1771 = vsel %vm328, %v1763, 0.0
      %v1772 = vsel %vm329, %v1764, 0.0
      %v1773 = vsel %vm330, %v1765, 0.0
      %v1774 = vsel %vm331, %v1766, 0.0
      %v1775 = vsel %vm332, %v1767, 0.0
      %v1776 = vpack.c.bf16 %v1769, %v1768
      %v1777 = vpack.c.bf16 %v1771, %v1770
      %v1778 = vpack.c.bf16 %v1773, %v1772
      %v1779 = vpack.c.bf16 %v1775, %v1774
      %s1780 = scalar_lea.vmem %s2, 24
      %v1781 = vld [vmem:[%s1780] sm:$0xf]
      %v1782 = vld [vmem:[%s1780 + $0x4] sm:$0xf]
      %v1785 = vunpack.c.l.b16 %v1781
      %v1786 = vunpack.c.l.b16 %v1782
      %v1787 = vpack.c.b16 %v1786, %v1785
      %v1790 = vsel %vm1324, %v1776, 0
      %v1793 = vsel %vm1324, %v1777, 0
      %v1796 = vsel %vm1324, %v1778, 0
      %v1799 = vsel %vm1324, %v1779, 0
      %1801 = vmatprep.subr.bf16.mxu0 0
      %1802 = vmatpush1.bf16.msra.mxu0 %v1787
      %1803 = vmatprep.subr.bf16.mxu0 0
      %1804 = vmatpush1.bf16.msra.mxu0 0
      %1805 = vmatprep.subr.bf16.mxu0 0
      %1806 = vmatpush1.bf16.msra.mxu0 0
      %1807 = vmatprep.subr.bf16.mxu0 0
      %1808 = vmatpush1.bf16.msra.mxu0 0
      %1809 = vmatprep.subr.bf16.mxu0 0
      %1810 = vmatpush1.bf16.msra.mxu0 0
      %1811 = vmatprep.subr.bf16.mxu0 0
      %1812 = vmatpush1.bf16.msra.mxu0 0
      %1813 = vmatprep.subr.bf16.mxu0 0
      %1814 = vmatpush1.bf16.msra.mxu0 0
      %1815 = vmatprep.subr.bf16.mxu0 0
      %1816 = vmatpush1.bf16.msra.mxu0 0
      %1817 = vmatprep.subr.bf16.mxu0 0
      %1818 = vmatpush1.bf16.msra.mxu0 0
      %1819 = vmatprep.subr.bf16.mxu0 0
      %1820 = vmatpush1.bf16.msra.mxu0 0
      %1821 = vmatprep.subr.bf16.mxu0 0
      %1822 = vmatpush1.bf16.msra.mxu0 0
      %1823 = vmatprep.subr.bf16.mxu0 0
      %1824 = vmatpush1.bf16.msra.mxu0 0
      %1825 = vmatprep.subr.bf16.mxu0 0
      %1826 = vmatpush1.bf16.msra.mxu0 0
      %1827 = vmatprep.subr.bf16.mxu0 0
      %1828 = vmatpush1.bf16.msra.mxu0 0
      %1829 = vmatprep.subr.bf16.mxu0 0
      %1830 = vmatpush1.bf16.msra.mxu0 0
      %1831 = vmatprep.subr.bf16.mxu0 0
      %1832 = vmatpush1.bf16.msra.mxu0 0
      %1833 = vmatprep.mubr.bf16.mxu0 0
      %1834 = vmatmul.mubr.bf16.gmra.mrb[0].mxu0 %v1790
      %v1835 = vpop.f32.mrb[0].mxu0
      %v1836 = vadd.f32 0.0, %v1835
      %v1837 = vpop.f32.mrb[0].mxu0
      %v1838 = vpop.f32.mrb[0].mxu0
      %v1839 = vadd.f32 0.0, %v1838
      %v1840 = vpop.f32.mrb[0].mxu0
      %1841 = vmatprep.mubr.bf16.mxu0 0
      %1842 = vmatmul.mubr.bf16.gmra.mrb[0].mxu0 %v1793
      %v1843 = vpop.f32.mrb[0].mxu0
      %v1844 = vadd.f32 0.0, %v1843
      %v1845 = vpop.f32.mrb[0].mxu0
      %v1846 = vpop.f32.mrb[0].mxu0
      %v1847 = vadd.f32 0.0, %v1846
      %v1848 = vpop.f32.mrb[0].mxu0
      %1849 = vmatprep.mubr.bf16.mxu0 0
      %1850 = vmatmul.mubr.bf16.gmra.mrb[0].mxu0 %v1796
      %v1851 = vpop.f32.mrb[0].mxu0
      %v1852 = vadd.f32 0.0, %v1851
      %v1853 = vpop.f32.mrb[0].mxu0
      %v1854 = vpop.f32.mrb[0].mxu0
      %v1855 = vadd.f32 0.0, %v1854
      %v1856 = vpop.f32.mrb[0].mxu0
      %1857 = vmatprep.mubr.bf16.mxu0 0
      %1858 = vmatmul.mubr.bf16.gmra.mrb[0].mxu0 %v1799
      %v1859 = vpop.f32.mrb[0].mxu0
      %v1860 = vadd.f32 0.0, %v1859
      %v1861 = vpop.f32.mrb[0].mxu0
      %v1862 = vpop.f32.mrb[0].mxu0
      %v1863 = vadd.f32 0.0, %v1862
      %v1864 = vpop.f32.mrb[0].mxu0
      %1865 = vdwg.mxu0
      %v1866 = vadd.f32 %v1752, %v1836
      %v1867 = vadd.f32 %v1753, %v1839
      %v1868 = vadd.f32 %v1754, %v1844
      %v1869 = vadd.f32 %v1755, %v1847
      %v1870 = vadd.f32 %v1756, %v1852
      %v1871 = vadd.f32 %v1757, %v1855
      %v1872 = vadd.f32 %v1758, %v1860
      %v1873 = vadd.f32 %v1759, %v1863
      %v1874 = vld [vmem:[#allocation2 + $0x9] sm:$0xff]
      %v1875 = vld [vmem:[#allocation2 + $0x11] sm:$0xff]
      %v1876 = vld [vmem:[#allocation2 + $0x19] sm:$0xff]
      %v1877 = vld [vmem:[#allocation2 + $0x21] sm:$0xff]
      %v1878 = vld [vmem:[#allocation2 + $0x29] sm:$0xff]
      %v1879 = vld [vmem:[#allocation2 + $0x31] sm:$0xff]
      %v1880 = vld [vmem:[#allocation2 + $0x39] sm:$0xff]
      %v1881 = vld [vmem:[#allocation2 + $0x41] sm:$0xff]
      %v1882 = vpack.c.bf16 %v1875, %v1874
      %v1883 = vpack.c.bf16 %v1877, %v1876
      %v1884 = vpack.c.bf16 %v1879, %v1878
      %v1885 = vpack.c.bf16 %v1881, %v1880
      %s1886 = scalar_lea.vmem %s2, 32
      %v1887 = vld [vmem:[%s1886] sm:$0xf]
      %v1888 = vld [vmem:[%s1886 + $0x4] sm:$0xf]
      %v1891 = vunpack.c.l.b16 %v1887
      %v1892 = vunpack.c.l.b16 %v1888
      %v1893 = vpack.c.b16 %v1892, %v1891
      %v1896 = vsel %vm1324, %v1882, 0
      %v1899 = vsel %vm1324, %v1883, 0
      %v1902 = vsel %vm1324, %v1884, 0
      %v1905 = vsel %vm1324, %v1885, 0
      %1907 = vmatprep.subr.bf16.mxu0 0
      %1908 = vmatpush1.bf16.msra.mxu0 %v1893
      %1909 = vmatprep.subr.bf16.mxu0 0
      %1910 = vmatpush1.bf16.msra.mxu0 0
      %1911 = vmatprep.subr.bf16.mxu0 0
      %1912 = vmatpush1.bf16.msra.mxu0 0
      %1913 = vmatprep.subr.bf16.mxu0 0
      %1914 = vmatpush1.bf16.msra.mxu0 0
      %1915 = vmatprep.subr.bf16.mxu0 0
      %1916 = vmatpush1.bf16.msra.mxu0 0
      %1917 = vmatprep.subr.bf16.mxu0 0
      %1918 = vmatpush1.bf16.msra.mxu0 0
      %1919 = vmatprep.subr.bf16.mxu0 0
      %1920 = vmatpush1.bf16.msra.mxu0 0
      %1921 = vmatprep.subr.bf16.mxu0 0
      %1922 = vmatpush1.bf16.msra.mxu0 0
      %1923 = vmatprep.subr.bf16.mxu0 0
      %1924 = vmatpush1.bf16.msra.mxu0 0
      %1925 = vmatprep.subr.bf16.mxu0 0
      %1926 = vmatpush1.bf16.msra.mxu0 0
      %1927 = vmatprep.subr.bf16.mxu0 0
      %1928 = vmatpush1.bf16.msra.mxu0 0
      %1929 = vmatprep.subr.bf16.mxu0 0
      %1930 = vmatpush1.bf16.msra.mxu0 0
      %1931 = vmatprep.subr.bf16.mxu0 0
      %1932 = vmatpush1.bf16.msra.mxu0 0
      %1933 = vmatprep.subr.bf16.mxu0 0
      %1934 = vmatpush1.bf16.msra.mxu0 0
      %1935 = vmatprep.subr.bf16.mxu0 0
      %1936 = vmatpush1.bf16.msra.mxu0 0
      %1937 = vmatprep.subr.bf16.mxu0 0
      %1938 = vmatpush1.bf16.msra.mxu0 0
      %1939 = vmatprep.mubr.bf16.mxu0 0
      %1940 = vmatmul.mubr.bf16.gmra.mrb[0].mxu0 %v1896
      %v1941 = vpop.f32.mrb[0].mxu0
      %v1942 = vadd.f32 0.0, %v1941
      %v1943 = vpop.f32.mrb[0].mxu0
      %v1944 = vpop.f32.mrb[0].mxu0
      %v1945 = vadd.f32 0.0, %v1944
      %v1946 = vpop.f32.mrb[0].mxu0
      %1947 = vmatprep.mubr.bf16.mxu0 0
      %1948 = vmatmul.mubr.bf16.gmra.mrb[0].mxu0 %v1899
      %v1949 = vpop.f32.mrb[0].mxu0
      %v1950 = vadd.f32 0.0, %v1949
      %v1951 = vpop.f32.mrb[0].mxu0
      %v1952 = vpop.f32.mrb[0].mxu0
      %v1953 = vadd.f32 0.0, %v1952
      %v1954 = vpop.f32.mrb[0].mxu0
      %1955 = vmatprep.mubr.bf16.mxu0 0
      %1956 = vmatmul.mubr.bf16.gmra.mrb[0].mxu0 %v1902
      %v1957 = vpop.f32.mrb[0].mxu0
      %v1958 = vadd.f32 0.0, %v1957
      %v1959 = vpop.f32.mrb[0].mxu0
      %v1960 = vpop.f32.mrb[0].mxu0
      %v1961 = vadd.f32 0.0, %v1960
      %v1962 = vpop.f32.mrb[0].mxu0
      %1963 = vmatprep.mubr.bf16.mxu0 0
      %1964 = vmatmul.mubr.bf16.gmra.mrb[0].mxu0 %v1905
      %v1965 = vpop.f32.mrb[0].mxu0
      %v1966 = vadd.f32 0.0, %v1965
      %v1967 = vpop.f32.mrb[0].mxu0
      %v1968 = vpop.f32.mrb[0].mxu0
      %v1969 = vadd.f32 0.0, %v1968
      %v1970 = vpop.f32.mrb[0].mxu0
      %1971 = vdwg.mxu0
      %v1972 = vadd.f32 %v1866, %v1942
      %v1973 = vadd.f32 %v1867, %v1945
      %v1974 = vadd.f32 %v1868, %v1950
      %v1975 = vadd.f32 %v1869, %v1953
      %v1976 = vadd.f32 %v1870, %v1958
      %v1977 = vadd.f32 %v1871, %v1961
      %v1978 = vadd.f32 %v1872, %v1966
      %v1979 = vadd.f32 %v1873, %v1969
      %v1980 = vld [vmem:[#allocation2 + $0xa] sm:$0xff]
      %v1981 = vld [vmem:[#allocation2 + $0x12] sm:$0xff]
      %v1982 = vld [vmem:[#allocation2 + $0x1a] sm:$0xff]
      %v1983 = vld [vmem:[#allocation2 + $0x22] sm:$0xff]
      %v1984 = vld [vmem:[#allocation2 + $0x2a] sm:$0xff]
      %v1985 = vld [vmem:[#allocation2 + $0x32] sm:$0xff]
      %v1986 = vld [vmem:[#allocation2 + $0x3a] sm:$0xff]
      %v1987 = vld [vmem:[#allocation2 + $0x42] sm:$0xff]
      %v1988 = vsel %vm570, %v1980, 0.0
      %v1989 = vsel %vm571, %v1981, 0.0
      %v1990 = vsel %vm572, %v1982, 0.0
      %v1991 = vsel %vm573, %v1983, 0.0
      %v1992 = vsel %vm574, %v1984, 0.0
      %v1993 = vsel %vm575, %v1985, 0.0
      %v1994 = vsel %vm576, %v1986, 0.0
      %v1995 = vsel %vm577, %v1987, 0.0
      %v1996 = vpack.c.bf16 %v1989, %v1988
      %v1997 = vpack.c.bf16 %v1991, %v1990
      %v1998 = vpack.c.bf16 %v1993, %v1992
      %v1999 = vpack.c.bf16 %v1995, %v1994
      %s2000 = scalar_lea.vmem %s2, 40
      %v2001 = vld [vmem:[%s2000] sm:$0xf]
      %v2002 = vld [vmem:[%s2000 + $0x4] sm:$0xf]
      %v2005 = vunpack.c.l.b16 %v2001
      %v2006 = vunpack.c.l.b16 %v2002
      %v2007 = vpack.c.b16 %v2006, %v2005
      %v2010 = vsel %vm1324, %v1996, 0
      %v2013 = vsel %vm1324, %v1997, 0
      %v2016 = vsel %vm1324, %v1998, 0
      %v2019 = vsel %vm1324, %v1999, 0
      %2021 = vmatprep.subr.bf16.mxu0 0
      %2022 = vmatpush1.bf16.msra.mxu0 %v2007
      %2023 = vmatprep.subr.bf16.mxu0 0
      %2024 = vmatpush1.bf16.msra.mxu0 0
      %2025 = vmatprep.subr.bf16.mxu0 0
      %2026 = vmatpush1.bf16.msra.mxu0 0
      %2027 = vmatprep.subr.bf16.mxu0 0
      %2028 = vmatpush1.bf16.msra.mxu0 0
      %2029 = vmatprep.subr.bf16.mxu0 0
      %2030 = vmatpush1.bf16.msra.mxu0 0
      %2031 = vmatprep.subr.bf16.mxu0 0
      %2032 = vmatpush1.bf16.msra.mxu0 0
      %2033 = vmatprep.subr.bf16.mxu0 0
      %2034 = vmatpush1.bf16.msra.mxu0 0
      %2035 = vmatprep.subr.bf16.mxu0 0
      %2036 = vmatpush1.bf16.msra.mxu0 0
      %2037 = vmatprep.subr.bf16.mxu0 0
      %2038 = vmatpush1.bf16.msra.mxu0 0
      %2039 = vmatprep.subr.bf16.mxu0 0
      %2040 = vmatpush1.bf16.msra.mxu0 0
      %2041 = vmatprep.subr.bf16.mxu0 0
      %2042 = vmatpush1.bf16.msra.mxu0 0
      %2043 = vmatprep.subr.bf16.mxu0 0
      %2044 = vmatpush1.bf16.msra.mxu0 0
      %2045 = vmatprep.subr.bf16.mxu0 0
      %2046 = vmatpush1.bf16.msra.mxu0 0
      %2047 = vmatprep.subr.bf16.mxu0 0
      %2048 = vmatpush1.bf16.msra.mxu0 0
      %2049 = vmatprep.subr.bf16.mxu0 0
      %2050 = vmatpush1.bf16.msra.mxu0 0
      %2051 = vmatprep.subr.bf16.mxu0 0
      %2052 = vmatpush1.bf16.msra.mxu0 0
      %2053 = vmatprep.mubr.bf16.mxu0 0
      %2054 = vmatmul.mubr.bf16.gmra.mrb[0].mxu0 %v2010
      %v2055 = vpop.f32.mrb[0].mxu0
      %v2056 = vadd.f32 0.0, %v2055
      %v2057 = vpop.f32.mrb[0].mxu0
      %v2058 = vpop.f32.mrb[0].mxu0
      %v2059 = vadd.f32 0.0, %v2058
      %v2060 = vpop.f32.mrb[0].mxu0
      %2061 = vmatprep.mubr.bf16.mxu0 0
      %2062 = vmatmul.mubr.bf16.gmra.mrb[0].mxu0 %v2013
      %v2063 = vpop.f32.mrb[0].mxu0
      %v2064 = vadd.f32 0.0, %v2063
      %v2065 = vpop.f32.mrb[0].mxu0
      %v2066 = vpop.f32.mrb[0].mxu0
      %v2067 = vadd.f32 0.0, %v2066
      %v2068 = vpop.f32.mrb[0].mxu0
      %2069 = vmatprep.mubr.bf16.mxu0 0
      %2070 = vmatmul.mubr.bf16.gmra.mrb[0].mxu0 %v2016
      %v2071 = vpop.f32.mrb[0].mxu0
      %v2072 = vadd.f32 0.0, %v2071
      %v2073 = vpop.f32.mrb[0].mxu0
      %v2074 = vpop.f32.mrb[0].mxu0
      %v2075 = vadd.f32 0.0, %v2074
      %v2076 = vpop.f32.mrb[0].mxu0
      %2077 = vmatprep.mubr.bf16.mxu0 0
      %2078 = vmatmul.mubr.bf16.gmra.mrb[0].mxu0 %v2019
      %v2079 = vpop.f32.mrb[0].mxu0
      %v2080 = vadd.f32 0.0, %v2079
      %v2081 = vpop.f32.mrb[0].mxu0
      %v2082 = vpop.f32.mrb[0].mxu0
      %v2083 = vadd.f32 0.0, %v2082
      %v2084 = vpop.f32.mrb[0].mxu0
      %2085 = vdwg.mxu0
      %v2086 = vadd.f32 %v1972, %v2056
      %v2087 = vadd.f32 %v1973, %v2059
      %v2088 = vadd.f32 %v1974, %v2064
      %v2089 = vadd.f32 %v1975, %v2067
      %v2090 = vadd.f32 %v1976, %v2072
      %v2091 = vadd.f32 %v1977, %v2075
      %v2092 = vadd.f32 %v1978, %v2080
      %v2093 = vadd.f32 %v1979, %v2083
      %v2094 = vld [vmem:[#allocation2 + $0x10] sm:$0xff]
      %v2095 = vld [vmem:[#allocation2 + $0x18] sm:$0xff]
      %v2096 = vld [vmem:[#allocation2 + $0x20] sm:$0xff]
      %v2097 = vld [vmem:[#allocation2 + $0x28] sm:$0xff]
      %v2098 = vld [vmem:[#allocation2 + $0x30] sm:$0xff]
      %v2099 = vld [vmem:[#allocation2 + $0x38] sm:$0xff]
      %v2100 = vld [vmem:[#allocation2 + $0x40] sm:$0xff]
      %v2101 = vld [vmem:[#allocation2 + $0x48] sm:$0xff]
      %v2102 = vsel %vm325, %v2094, 0.0
      %v2103 = vsel %vm326, %v2095, 0.0
      %v2104 = vsel %vm327, %v2096, 0.0
      %v2105 = vsel %vm328, %v2097, 0.0
      %v2106 = vsel %vm329, %v2098, 0.0
      %v2107 = vsel %vm330, %v2099, 0.0
      %v2108 = vsel %vm331, %v2100, 0.0
      %v2109 = vsel %vm332, %v2101, 0.0
      %v2110 = vpack.c.bf16 %v2103, %v2102
      %v2111 = vpack.c.bf16 %v2105, %v2104
      %v2112 = vpack.c.bf16 %v2107, %v2106
      %v2113 = vpack.c.bf16 %v2109, %v2108
      %s2114 = scalar_lea.vmem %s2, 48
      %v2115 = vld [vmem:[%s2114] sm:$0xf]
      %v2116 = vld [vmem:[%s2114 + $0x4] sm:$0xf]
      %v2119 = vunpack.c.l.b16 %v2115
      %v2120 = vunpack.c.l.b16 %v2116
      %v2121 = vpack.c.b16 %v2120, %v2119
      %v2124 = vsel %vm1324, %v2110, 0
      %v2127 = vsel %vm1324, %v2111, 0
      %v2130 = vsel %vm1324, %v2112, 0
      %v2133 = vsel %vm1324, %v2113, 0
      %2135 = vmatprep.subr.bf16.mxu0 0
      %2136 = vmatpush1.bf16.msra.mxu0 %v2121
      %2137 = vmatprep.subr.bf16.mxu0 0
      %2138 = vmatpush1.bf16.msra.mxu0 0
      %2139 = vmatprep.subr.bf16.mxu0 0
      %2140 = vmatpush1.bf16.msra.mxu0 0
      %2141 = vmatprep.subr.bf16.mxu0 0
      %2142 = vmatpush1.bf16.msra.mxu0 0
      %2143 = vmatprep.subr.bf16.mxu0 0
      %2144 = vmatpush1.bf16.msra.mxu0 0
      %2145 = vmatprep.subr.bf16.mxu0 0
      %2146 = vmatpush1.bf16.msra.mxu0 0
      %2147 = vmatprep.subr.bf16.mxu0 0
      %2148 = vmatpush1.bf16.msra.mxu0 0
      %2149 = vmatprep.subr.bf16.mxu0 0
      %2150 = vmatpush1.bf16.msra.mxu0 0
      %2151 = vmatprep.subr.bf16.mxu0 0
      %2152 = vmatpush1.bf16.msra.mxu0 0
      %2153 = vmatprep.subr.bf16.mxu0 0
      %2154 = vmatpush1.bf16.msra.mxu0 0
      %2155 = vmatprep.subr.bf16.mxu0 0
      %2156 = vmatpush1.bf16.msra.mxu0 0
      %2157 = vmatprep.subr.bf16.mxu0 0
      %2158 = vmatpush1.bf16.msra.mxu0 0
      %2159 = vmatprep.subr.bf16.mxu0 0
      %2160 = vmatpush1.bf16.msra.mxu0 0
      %2161 = vmatprep.subr.bf16.mxu0 0
      %2162 = vmatpush1.bf16.msra.mxu0 0
      %2163 = vmatprep.subr.bf16.mxu0 0
      %2164 = vmatpush1.bf16.msra.mxu0 0
      %2165 = vmatprep.subr.bf16.mxu0 0
      %2166 = vmatpush1.bf16.msra.mxu0 0
      %2167 = vmatprep.mubr.bf16.mxu0 0
      %2168 = vmatmul.mubr.bf16.gmra.mrb[0].mxu0 %v2124
      %v2169 = vpop.f32.mrb[0].mxu0
      %v2170 = vadd.f32 0.0, %v2169
      %v2171 = vpop.f32.mrb[0].mxu0
      %v2172 = vpop.f32.mrb[0].mxu0
      %v2173 = vadd.f32 0.0, %v2172
      %v2174 = vpop.f32.mrb[0].mxu0
      %2175 = vmatprep.mubr.bf16.mxu0 0
      %2176 = vmatmul.mubr.bf16.gmra.mrb[0].mxu0 %v2127
      %v2177 = vpop.f32.mrb[0].mxu0
      %v2178 = vadd.f32 0.0, %v2177
      %v2179 = vpop.f32.mrb[0].mxu0
      %v2180 = vpop.f32.mrb[0].mxu0
      %v2181 = vadd.f32 0.0, %v2180
      %v2182 = vpop.f32.mrb[0].mxu0
      %2183 = vmatprep.mubr.bf16.mxu0 0
      %2184 = vmatmul.mubr.bf16.gmra.mrb[0].mxu0 %v2130
      %v2185 = vpop.f32.mrb[0].mxu0
      %v2186 = vadd.f32 0.0, %v2185
      %v2187 = vpop.f32.mrb[0].mxu0
      %v2188 = vpop.f32.mrb[0].mxu0
      %v2189 = vadd.f32 0.0, %v2188
      %v2190 = vpop.f32.mrb[0].mxu0
      %2191 = vmatprep.mubr.bf16.mxu0 0
      %2192 = vmatmul.mubr.bf16.gmra.mrb[0].mxu0 %v2133
      %v2193 = vpop.f32.mrb[0].mxu0
      %v2194 = vadd.f32 0.0, %v2193
      %v2195 = vpop.f32.mrb[0].mxu0
      %v2196 = vpop.f32.mrb[0].mxu0
      %v2197 = vadd.f32 0.0, %v2196
      %v2198 = vpop.f32.mrb[0].mxu0
      %2199 = vdwg.mxu0
      %v2200 = vadd.f32 %v2086, %v2170
      %v2201 = vadd.f32 %v2087, %v2173
      %v2202 = vadd.f32 %v2088, %v2178
      %v2203 = vadd.f32 %v2089, %v2181
      %v2204 = vadd.f32 %v2090, %v2186
      %v2205 = vadd.f32 %v2091, %v2189
      %v2206 = vadd.f32 %v2092, %v2194
      %v2207 = vadd.f32 %v2093, %v2197
      %v2208 = vld [vmem:[#allocation2 + $0x11] sm:$0xff]
      %v2209 = vld [vmem:[#allocation2 + $0x19] sm:$0xff]
      %v2210 = vld [vmem:[#allocation2 + $0x21] sm:$0xff]
      %v2211 = vld [vmem:[#allocation2 + $0x29] sm:$0xff]
      %v2212 = vld [vmem:[#allocation2 + $0x31] sm:$0xff]
      %v2213 = vld [vmem:[#allocation2 + $0x39] sm:$0xff]
      %v2214 = vld [vmem:[#allocation2 + $0x41] sm:$0xff]
      %v2215 = vld [vmem:[#allocation2 + $0x49] sm:$0xff]
      %v2216 = vpack.c.bf16 %v2209, %v2208
      %v2217 = vpack.c.bf16 %v2211, %v2210
      %v2218 = vpack.c.bf16 %v2213, %v2212
      %v2219 = vpack.c.bf16 %v2215, %v2214
      %s2220 = scalar_lea.vmem %s2, 56
      %v2221 = vld [vmem:[%s2220] sm:$0xf]
      %v2222 = vld [vmem:[%s2220 + $0x4] sm:$0xf]
      %v2225 = vunpack.c.l.b16 %v2221
      %v2226 = vunpack.c.l.b16 %v2222
      %v2227 = vpack.c.b16 %v2226, %v2225
      %v2230 = vsel %vm1324, %v2216, 0
      %v2233 = vsel %vm1324, %v2217, 0
      %v2236 = vsel %vm1324, %v2218, 0
      %v2239 = vsel %vm1324, %v2219, 0
      %2241 = vmatprep.subr.bf16.mxu0 0
      %2242 = vmatpush1.bf16.msra.mxu0 %v2227
      %2243 = vmatprep.subr.bf16.mxu0 0
      %2244 = vmatpush1.bf16.msra.mxu0 0
      %2245 = vmatprep.subr.bf16.mxu0 0
      %2246 = vmatpush1.bf16.msra.mxu0 0
      %2247 = vmatprep.subr.bf16.mxu0 0
      %2248 = vmatpush1.bf16.msra.mxu0 0
      %2249 = vmatprep.subr.bf16.mxu0 0
      %2250 = vmatpush1.bf16.msra.mxu0 0
      %2251 = vmatprep.subr.bf16.mxu0 0
      %2252 = vmatpush1.bf16.msra.mxu0 0
      %2253 = vmatprep.subr.bf16.mxu0 0
      %2254 = vmatpush1.bf16.msra.mxu0 0
      %2255 = vmatprep.subr.bf16.mxu0 0
      %2256 = vmatpush1.bf16.msra.mxu0 0
      %2257 = vmatprep.subr.bf16.mxu0 0
      %2258 = vmatpush1.bf16.msra.mxu0 0
      %2259 = vmatprep.subr.bf16.mxu0 0
      %2260 = vmatpush1.bf16.msra.mxu0 0
      %2261 = vmatprep.subr.bf16.mxu0 0
      %2262 = vmatpush1.bf16.msra.mxu0 0
      %2263 = vmatprep.subr.bf16.mxu0 0
      %2264 = vmatpush1.bf16.msra.mxu0 0
      %2265 = vmatprep.subr.bf16.mxu0 0
      %2266 = vmatpush1.bf16.msra.mxu0 0
      %2267 = vmatprep.subr.bf16.mxu0 0
      %2268 = vmatpush1.bf16.msra.mxu0 0
      %2269 = vmatprep.subr.bf16.mxu0 0
      %2270 = vmatpush1.bf16.msra.mxu0 0
      %2271 = vmatprep.subr.bf16.mxu0 0
      %2272 = vmatpush1.bf16.msra.mxu0 0
      %2273 = vmatprep.mubr.bf16.mxu0 0
      %2274 = vmatmul.mubr.bf16.gmra.mrb[0].mxu0 %v2230
      %v2275 = vpop.f32.mrb[0].mxu0
      %v2276 = vadd.f32 0.0, %v2275
      %v2277 = vpop.f32.mrb[0].mxu0
      %v2278 = vpop.f32.mrb[0].mxu0
      %v2279 = vadd.f32 0.0, %v2278
      %v2280 = vpop.f32.mrb[0].mxu0
      %2281 = vmatprep.mubr.bf16.mxu0 0
      %2282 = vmatmul.mubr.bf16.gmra.mrb[0].mxu0 %v2233
      %v2283 = vpop.f32.mrb[0].mxu0
      %v2284 = vadd.f32 0.0, %v2283
      %v2285 = vpop.f32.mrb[0].mxu0
      %v2286 = vpop.f32.mrb[0].mxu0
      %v2287 = vadd.f32 0.0, %v2286
      %v2288 = vpop.f32.mrb[0].mxu0
      %2289 = vmatprep.mubr.bf16.mxu0 0
      %2290 = vmatmul.mubr.bf16.gmra.mrb[0].mxu0 %v2236
      %v2291 = vpop.f32.mrb[0].mxu0
      %v2292 = vadd.f32 0.0, %v2291
      %v2293 = vpop.f32.mrb[0].mxu0
      %v2294 = vpop.f32.mrb[0].mxu0
      %v2295 = vadd.f32 0.0, %v2294
      %v2296 = vpop.f32.mrb[0].mxu0
      %2297 = vmatprep.mubr.bf16.mxu0 0
      %2298 = vmatmul.mubr.bf16.gmra.mrb[0].mxu0 %v2239
      %v2299 = vpop.f32.mrb[0].mxu0
      %v2300 = vadd.f32 0.0, %v2299
      %v2301 = vpop.f32.mrb[0].mxu0
      %v2302 = vpop.f32.mrb[0].mxu0
      %v2303 = vadd.f32 0.0, %v2302
      %v2304 = vpop.f32.mrb[0].mxu0
      %2305 = vdwg.mxu0
      %v2306 = vadd.f32 %v2200, %v2276
      %v2307 = vadd.f32 %v2201, %v2279
      %v2308 = vadd.f32 %v2202, %v2284
      %v2309 = vadd.f32 %v2203, %v2287
      %v2310 = vadd.f32 %v2204, %v2292
      %v2311 = vadd.f32 %v2205, %v2295
      %v2312 = vadd.f32 %v2206, %v2300
      %v2313 = vadd.f32 %v2207, %v2303
      %v2314 = vld [vmem:[#allocation2 + $0x12] sm:$0xff]
      %v2315 = vld [vmem:[#allocation2 + $0x1a] sm:$0xff]
      %v2316 = vld [vmem:[#allocation2 + $0x22] sm:$0xff]
      %v2317 = vld [vmem:[#allocation2 + $0x2a] sm:$0xff]
      %v2318 = vld [vmem:[#allocation2 + $0x32] sm:$0xff]
      %v2319 = vld [vmem:[#allocation2 + $0x3a] sm:$0xff]
      %v2320 = vld [vmem:[#allocation2 + $0x42] sm:$0xff]
      %v2321 = vld [vmem:[#allocation2 + $0x4a] sm:$0xff]
      %v2322 = vsel %vm570, %v2314, 0.0
      %v2323 = vsel %vm571, %v2315, 0.0
      %v2324 = vsel %vm572, %v2316, 0.0
      %v2325 = vsel %vm573, %v2317, 0.0
      %v2326 = vsel %vm574, %v2318, 0.0
      %v2327 = vsel %vm575, %v2319, 0.0
      %v2328 = vsel %vm576, %v2320, 0.0
      %v2329 = vsel %vm577, %v2321, 0.0
      %v2330 = vpack.c.bf16 %v2323, %v2322
      %v2331 = vpack.c.bf16 %v2325, %v2324
      %v2332 = vpack.c.bf16 %v2327, %v2326
      %v2333 = vpack.c.bf16 %v2329, %v2328
      %s2334 = scalar_lea.vmem %s2, 64
      %v2335 = vld [vmem:[%s2334] sm:$0xf]
      %v2336 = vld [vmem:[%s2334 + $0x4] sm:$0xf]
      %v2339 = vunpack.c.l.b16 %v2335
      %v2340 = vunpack.c.l.b16 %v2336
      %v2341 = vpack.c.b16 %v2340, %v2339
      %v2344 = vsel %vm1324, %v2330, 0
      %v2347 = vsel %vm1324, %v2331, 0
      %v2350 = vsel %vm1324, %v2332, 0
      %v2353 = vsel %vm1324, %v2333, 0
      %2355 = vmatprep.subr.bf16.mxu0 0
      %2356 = vmatpush1.bf16.msra.mxu0 %v2341
      %2357 = vmatprep.subr.bf16.mxu0 0
      %2358 = vmatpush1.bf16.msra.mxu0 0
      %2359 = vmatprep.subr.bf16.mxu0 0
      %2360 = vmatpush1.bf16.msra.mxu0 0
      %2361 = vmatprep.subr.bf16.mxu0 0
      %2362 = vmatpush1.bf16.msra.mxu0 0
      %2363 = vmatprep.subr.bf16.mxu0 0
      %2364 = vmatpush1.bf16.msra.mxu0 0
      %2365 = vmatprep.subr.bf16.mxu0 0
      %2366 = vmatpush1.bf16.msra.mxu0 0
      %2367 = vmatprep.subr.bf16.mxu0 0
      %2368 = vmatpush1.bf16.msra.mxu0 0
      %2369 = vmatprep.subr.bf16.mxu0 0
      %2370 = vmatpush1.bf16.msra.mxu0 0
      %2371 = vmatprep.subr.bf16.mxu0 0
      %2372 = vmatpush1.bf16.msra.mxu0 0
      %2373 = vmatprep.subr.bf16.mxu0 0
      %2374 = vmatpush1.bf16.msra.mxu0 0
      %2375 = vmatprep.subr.bf16.mxu0 0
      %2376 = vmatpush1.bf16.msra.mxu0 0
      %2377 = vmatprep.subr.bf16.mxu0 0
      %2378 = vmatpush1.bf16.msra.mxu0 0
      %2379 = vmatprep.subr.bf16.mxu0 0
      %2380 = vmatpush1.bf16.msra.mxu0 0
      %2381 = vmatprep.subr.bf16.mxu0 0
      %2382 = vmatpush1.bf16.msra.mxu0 0
      %2383 = vmatprep.subr.bf16.mxu0 0
      %2384 = vmatpush1.bf16.msra.mxu0 0
      %2385 = vmatprep.subr.bf16.mxu0 0
      %2386 = vmatpush1.bf16.msra.mxu0 0
      %2387 = vmatprep.mubr.bf16.mxu0 0
      %2388 = vmatmul.mubr.bf16.gmra.mrb[0].mxu0 %v2344
      %v2389 = vpop.f32.mrb[0].mxu0
      %v2390 = vadd.f32 0.0, %v2389
      %v2391 = vpop.f32.mrb[0].mxu0
      %v2392 = vpop.f32.mrb[0].mxu0
      %v2393 = vadd.f32 0.0, %v2392
      %v2394 = vpop.f32.mrb[0].mxu0
      %2395 = vmatprep.mubr.bf16.mxu0 0
      %2396 = vmatmul.mubr.bf16.gmra.mrb[0].mxu0 %v2347
      %v2397 = vpop.f32.mrb[0].mxu0
      %v2398 = vadd.f32 0.0, %v2397
      %v2399 = vpop.f32.mrb[0].mxu0
      %v2400 = vpop.f32.mrb[0].mxu0
      %v2401 = vadd.f32 0.0, %v2400
      %v2402 = vpop.f32.mrb[0].mxu0
      %2403 = vmatprep.mubr.bf16.mxu0 0
      %2404 = vmatmul.mubr.bf16.gmra.mrb[0].mxu0 %v2350
      %v2405 = vpop.f32.mrb[0].mxu0
      %v2406 = vadd.f32 0.0, %v2405
      %v2407 = vpop.f32.mrb[0].mxu0
      %v2408 = vpop.f32.mrb[0].mxu0
      %v2409 = vadd.f32 0.0, %v2408
      %v2410 = vpop.f32.mrb[0].mxu0
      %2411 = vmatprep.mubr.bf16.mxu0 0
      %2412 = vmatmul.mubr.bf16.gmra.mrb[0].mxu0 %v2353
      %v2413 = vpop.f32.mrb[0].mxu0
      %v2414 = vadd.f32 0.0, %v2413
      %v2415 = vpop.f32.mrb[0].mxu0
      %v2416 = vpop.f32.mrb[0].mxu0
      %v2417 = vadd.f32 0.0, %v2416
      %v2418 = vpop.f32.mrb[0].mxu0
      %2419 = vdwg.mxu0
      %v2420 = vadd.f32 %v2306, %v2390
      %v2421 = vadd.f32 %v2307, %v2393
      %v2422 = vadd.f32 %v2308, %v2398
      %v2423 = vadd.f32 %v2309, %v2401
      %v2424 = vadd.f32 %v2310, %v2406
      %v2425 = vadd.f32 %v2311, %v2409
      %v2426 = vadd.f32 %v2312, %v2414
      %v2427 = vadd.f32 %v2313, %v2417
      %v2428 = vsel %vm1324, %v2420, 0.0
      %v2429 = vsel %vm1324, %v2421, 0.0
      %v2430 = vadd.f32 %v2428, %v2429
      %v2431 = vsel %vm1324, %v2422, 0.0
      %v2432 = vadd.f32 %v2430, %v2431
      %v2433 = vsel %vm1324, %v2423, 0.0
      %v2434 = vadd.f32 %v2432, %v2433
      %v2435 = vsel %vm1324, %v2424, 0.0
      %v2436 = vadd.f32 %v2434, %v2435
      %v2437 = vsel %vm1324, %v2425, 0.0
      %v2438 = vadd.f32 %v2436, %v2437
      %v2439 = vsel %vm1324, %v2426, 0.0
      %v2440 = vadd.f32 %v2438, %v2439
      %v2441 = vsel %vm1324, %v2427, 0.0
      %v2442 = vadd.f32 %v2440, %v2441
      %v2443 = vrot.slane %v2442, 4
      %v2444 = vadd.f32 %v2442, %v2443
      %v2445 = vrot.slane %v2444, 2
      %v2446 = vadd.f32 %v2444, %v2445
      %v2447 = vrot.slane %v2446, 1
      %v2448 = vadd.f32 %v2446, %v2447
      %v2449 = vmul.f32 %v2448, %v1346
      %v2450 = vmul.f32 %v2420, %v2420
      %v2451 = vmul.f32 %v2421, %v2421
      %v2452 = vmul.f32 %v2422, %v2422
      %v2453 = vmul.f32 %v2423, %v2423
      %v2454 = vmul.f32 %v2424, %v2424
      %v2455 = vmul.f32 %v2425, %v2425
      %v2456 = vmul.f32 %v2426, %v2426
      %v2457 = vmul.f32 %v2427, %v2427
      %v2458 = vsel %vm1324, %v2450, 0.0
      %v2459 = vsel %vm1324, %v2451, 0.0
      %v2460 = vadd.f32 %v2458, %v2459
      %v2461 = vsel %vm1324, %v2452, 0.0
      %v2462 = vadd.f32 %v2460, %v2461
      %v2463 = vsel %vm1324, %v2453, 0.0
      %v2464 = vadd.f32 %v2462, %v2463
      %v2465 = vsel %vm1324, %v2454, 0.0
      %v2466 = vadd.f32 %v2464, %v2465
      %v2467 = vsel %vm1324, %v2455, 0.0
      %v2468 = vadd.f32 %v2466, %v2467
      %v2469 = vsel %vm1324, %v2456, 0.0
      %v2470 = vadd.f32 %v2468, %v2469
      %v2471 = vsel %vm1324, %v2457, 0.0
      %v2472 = vadd.f32 %v2470, %v2471
      %v2473 = vrot.slane %v2472, 4
      %v2474 = vadd.f32 %v2472, %v2473
      %v2475 = vrot.slane %v2474, 2
      %v2476 = vadd.f32 %v2474, %v2475
      %v2477 = vrot.slane %v2476, 1
      %v2478 = vadd.f32 %v2476, %v2477
      %v2479 = vmul.f32 %v2478, %v1346
      %v2480 = vmul.f32 %v2449, %v2449
      %v2481 = vsub.f32 %v2479, %v2480
      %v2482 = vmax.f32 %v2481, 0.0
      %v2483 = vsub.f32 %v2420, %v2449
      %v2484 = vsub.f32 %v2421, %v2449
      %v2485 = vsub.f32 %v2422, %v2449
      %v2486 = vsub.f32 %v2423, %v2449
      %v2487 = vsub.f32 %v2424, %v2449
      %v2488 = vsub.f32 %v2425, %v2449
      %v2489 = vsub.f32 %v2426, %v2449
      %v2490 = vsub.f32 %v2427, %v2449
      %v2491 = vadd.f32 %v2482, 1e-05
      %v2492 = vrsqrt.pop %v2491
      %v2493 = vmul.f32 %v2483, %v2492
      %v2494 = vmul.f32 %v2484, %v2492
      %v2495 = vmul.f32 %v2485, %v2492
      %v2496 = vmul.f32 %v2486, %v2492
      %v2497 = vmul.f32 %v2487, %v2492
      %v2498 = vmul.f32 %v2488, %v2492
      %v2499 = vmul.f32 %v2489, %v2492
      %v2500 = vmul.f32 %v2490, %v2492
      %2501 = vst.msk [vmem:[%s170] sm:$0xff] %vm1324, %v2493
      %2502 = vst.msk [vmem:[%s170 + $0x8] sm:$0xff] %vm1324, %v2494
      %2503 = vst.msk [vmem:[%s170 + $0x10] sm:$0xff] %vm1324, %v2495
      %2504 = vst.msk [vmem:[%s170 + $0x18] sm:$0xff] %vm1324, %v2496
      %2505 = vst.msk [vmem:[%s170 + $0x20] sm:$0xff] %vm1324, %v2497
      %2506 = vst.msk [vmem:[%s170 + $0x28] sm:$0xff] %vm1324, %v2498
      %2507 = vst.msk [vmem:[%s170 + $0x30] sm:$0xff] %vm1324, %v2499
      %2508 = vst.msk [vmem:[%s170 + $0x38] sm:$0xff] %vm1324, %v2500
      %p2509 = scmp.lt.s32.totalorder %s14, 1
      %s2510 = scalar_select %p2509, %s14, 1
      %s2511 = smul.addr %s2510, 8
      %s2512 = smul.addr %s2511, 8
      %s2513 = scalar_lea.vmem %s3, %s2512
      // Predicated region
      $region33: #{encoder_block_forward.2} parent=31 // pred_check
        %p2514 = pneg %p100
      $region34: #{encoder_block_forward.2} parent=31 // pred_check_branch
        %2516 = sbr.rel (%p2514) target = $region36
      $region35: #{encoder_block_forward.2} parent=31 // pred_region
        _
      $region36: #{encoder_block_forward.2} parent=31 // pred_fallthru
        _
    $region32: #{encoder_block_forward.2} parent=5 // pred_fallthru
      _
    %p2517 = scmp.le.s32.totalorder 2, %s9
    // Predicated region
    $region37: #{encoder_block_forward.2} parent=5 // pred_check
      %p2518 = pneg %p2517
    $region38: #{encoder_block_forward.2} parent=5 // pred_check_branch
      %2520 = sbr.rel (%p2518) target = $region40
    $region39: #{encoder_block_forward.2} parent=5 // pred_region
      %s2521 = ssub.s32 %s9, 2
      // Predicated region
      $region41: #{encoder_block_forward.2} parent=39 // pred_check
        %p2522 = pneg %p106
      $region42: #{encoder_block_forward.2} parent=39 // pred_check_branch
        %2524 = sbr.rel (%p2522) target = $region44
      $region43: #{encoder_block_forward.2} parent=39 // pred_region
        %p2525 = scmp.lt.s32.totalorder %s15, 1
        %s2526 = scalar_select %p2525, %s15, 1
        %s2527 = smul.addr %s2526, 8
        %s2528 = smul.addr %s2527, 8
        %s2529 = scalar_lea.vmem %s3, %s2528
      $region44: #{encoder_block_forward.2} parent=39 // pred_fallthru
        _
    $region40: #{encoder_block_forward.2} parent=5 // pred_fallthru
      _
  $region6: #{encoder_block_forward.2} parent=0 // loop_footer
    %s13 = sadd.s32 1, %s9
  $region7: #{encoder_block_forward.2} parent=0 // loop_footer_branch
    %8 = sbr.rel target = $region3
  $region8: #{encoder_block_forward.2} parent=0 // loop_exit
    _

</llo_original>
